<compile_context>
chip_gen: v6e
topology: v6e:2x2x1
jax: 0.10.0
libtpu: 0.0.40
codegen_flags: <defaults>
</compile_context>

<pallas_src>
import functools

import jax
import jax.numpy as jnp
from jax.experimental import pallas as pl
from jax.experimental.pallas import tpu as pltpu


# ---------------------------------------------------------------------------
# Fused forward kernel
# ---------------------------------------------------------------------------

def _corrnet_kernel(x_ref, w_bb_ref, b_bb_ref, w_red_ref, b_red_ref,
                    w_stt_ref, b_stt_ref, w_ltt_ref, b_ltt_ref,
                    w_down_ref, b_down_ref, w_adj_ref, b_adj_ref,
                    w_fc_ref, b_fc_ref, o_ref, *, T, cb):
    """One grid step = `cb` whole clips (cb * T frames)."""
    f32, bf16 = jnp.float32, jnp.bfloat16
    R = cb * T                              # rows in this block (clip-major)
    CHW = x_ref.shape[-1]

    # ---- backbone: avg-pool(HxW) + Linear(C, 512) + ReLU, folded into one
    # lane-dense MXU matmul against the pre-expanded (C*H*W, 512) weight.
    # TODO(synk): ResNetBackbone source not provided; stand-in implementation.
    x = x_ref[...].reshape(R, CHW).astype(bf16)                       # (R, CHW)
    feats = jnp.dot(x, w_bb_ref[...], preferred_element_type=f32) + b_bb_ref[...]
    feats = jnp.maximum(feats, 0.0)                                   # (R, 512) f32
    feats_bf = feats.astype(bf16)

    # ---- channel_reducer: Linear(512, 3), weight zero-padded to 128 lanes --
    reduced = (jnp.dot(feats_bf, w_red_ref[...], preferred_element_type=f32)
               + b_red_ref[...])                                      # (R, 128) lanes 0-2 live

    # ---- per-row frame index & intra-clip temporal shifts ------------------
    t_idx = jax.lax.broadcasted_iota(jnp.int32, (R, 128), 0) % T
    is_first = t_idx == 0
    is_last = t_idx == T - 1

    def prev_rows(a):   # a[b, t-1, :], zero-padded at t == 0
        return jnp.where(is_first, 0.0, pltpu.roll(a, shift=1, axis=0))

    def next_rows(a):   # a[b, t+1, :], zero-padded at t == T-1
        return jnp.where(is_last, 0.0, pltpu.roll(a, shift=R - 1, axis=0))

    # ---- short_term_temporal: Conv1d(3, 3, k=3, pad=1) + ReLU --------------
    # TODO(synk): ShortTermTemporalModule source not provided; stand-in conv.
    # Three lane-dense MXU dots (one per tap) with zero-padded (128,128) weights.
    stt = (jnp.dot(prev_rows(reduced).astype(bf16), w_stt_ref[0],
                   preferred_element_type=f32)
           + jnp.dot(reduced.astype(bf16), w_stt_ref[1],
                     preferred_element_type=f32)
           + jnp.dot(next_rows(reduced).astype(bf16), w_stt_ref[2],
                     preferred_element_type=f32)
           + b_stt_ref[...])
    stt = jnp.maximum(stt, 0.0)                                       # (R, 128)

    # ---- long_term_temporal: Linear(512, 2048) + tanh (MXU, f32 acc) -------
    # TODO(synk): LongTermTemporalModule (LSTM) source not provided; stand-in
    # for a bidirectional hidden=1024 module producing 2048 features.
    ltt = jnp.tanh(jnp.dot(feats_bf, w_ltt_ref[...],
                           preferred_element_type=f32) + b_ltt_ref[...])   # (R, 2048)

    # ---- channel_downscale: Conv3d(2048, 3, k=1) on the MXU ----------------
    # (zero-padded (2048, 128) weight; only lanes 0-2 live downstream)
    down = (jnp.dot(ltt.astype(bf16), w_down_ref[...],
                    preferred_element_type=f32) + b_down_ref[...])         # (R, 128)

    # ---- correlation of (prev, current, next) short-term frames ------------
    # TODO(synk): CorrelationModule source not provided; stand-in p*c + c*n.
    corr = prev_rows(stt) * stt + stt * next_rows(stt)                     # (R, 128)

    # ---- identification: fuse long-term + correlated features (add + ReLU) -
    # TODO(synk): CombinedIdentificationModule source not provided; stand-in.
    valid = jnp.logical_and(t_idx >= 1, t_idx <= T - 2)  # only T-2 middle frames exist
    ident = jnp.where(valid, jnp.maximum(down + corr, 0.0), 0.0)           # (R, 128)

    # Temporal mean over the T-2 valid frames, per clip -> (cb, 128).
    ident_mean = ident.reshape(cb, T, 128).sum(axis=1) * (1.0 / (T - 2))

    # ---- adjust_conv (3 -> 2048) folded with AdaptiveAvgPool3d -------------
    # (both linear, so pool-then-conv == conv-then-pool); lanes 3..127 of
    # ident_mean are zero and the padded weight rows 3..127 are zero too.
    adj = (jnp.dot(ident_mean.astype(bf16), w_adj_ref[...],
                   preferred_element_type=f32) + b_adj_ref[...])           # (cb, 2048)

    # ---- fc: Linear(2048, output_size) --------------------------------------
    out = (jnp.dot(adj.astype(bf16), w_fc_ref[...],
                   preferred_element_type=f32) + b_fc_ref[...])            # (cb, out)
    o_ref[...] = out.reshape(o_ref.shape)


# ---------------------------------------------------------------------------
# Parameters (deterministic synthetic init; shapes follow CorrNetModel,
# stored pre-padded / pre-folded for lane-dense MXU use)
# ---------------------------------------------------------------------------

def init_params(key, input_channels=3, height=16, width=16, output_size=128):
    ks = jax.random.split(key, 8)
    s = 0.02
    f32, bf16 = jnp.float32, jnp.bfloat16
    C, HW = input_channels, height * width

    # TODO(synk): ResNetBackbone stand-in: avg-pool(HxW) + Linear(C, 512) + ReLU,
    # folded into a single (C*HW, 512) matmul weight (pooling is linear).
    w_lin = jax.random.normal(ks[0], (C, 512)) * s
    backbone_w = jnp.repeat(w_lin / HW, HW, axis=0).astype(bf16)       # (C*HW, 512)
    backbone_b = jnp.zeros((1, 512), f32)

    # nn.Linear(512, 3), zero-padded to 128 output lanes.
    reducer_w = (jnp.zeros((512, 128), f32)
                 .at[:, :3].set(jax.random.normal(ks[1], (512, 3)) * s)).astype(bf16)
    reducer_b = jnp.zeros((1, 128), f32)

    # TODO(synk): ShortTermTemporalModule stand-in: Conv1d(3,3,k=3,pad=1)+ReLU,
    # one zero-padded (128,128) weight per tap (prev, cur, next).
    taps = jax.random.normal(ks[2], (3, 3, 3)) * s                      # (tap, in, out)
    stt_w = (jnp.zeros((3, 128, 128), f32).at[:, :3, :3].set(taps)).astype(bf16)
    stt_b = jnp.zeros((1, 128), f32)

    # TODO(synk): LongTermTemporalModule stand-in: Linear(512, 2048) + tanh.
    ltt_w = (jax.random.normal(ks[3], (512, 2048)) * s).astype(bf16)
    ltt_b = jnp.zeros((1, 2048), f32)

    # nn.Conv3d(2048, 3, kernel_size=1), zero-padded to 128 output lanes.
    down_w = (jnp.zeros((2048, 128), f32)
              .at[:, :3].set(jax.random.normal(ks[4], (2048, 3)) * s)).astype(bf16)
    down_b = jnp.zeros((1, 128), f32)

    # nn.Conv3d(3, 2048, kernel_size=1); input lanes padded to 128 (rows 3+ zero).
    adj_w = (jnp.zeros((128, 2048), f32)
             .at[:3, :].set(jax.random.normal(ks[5], (3, 2048)) * s)).astype(bf16)
    adj_b = jnp.zeros((1, 2048), f32)

    # nn.Linear(2048, output_size).
    fc_w = (jax.random.normal(ks[6], (2048, output_size)) * s).astype(bf16)
    fc_b = jnp.zeros((1, output_size), f32)

    return {
        "backbone_w": backbone_w, "backbone_b": backbone_b,
        "reducer_w": reducer_w, "reducer_b": reducer_b,
        "stt_w": stt_w, "stt_b": stt_b,
        "ltt_w": ltt_w, "ltt_b": ltt_b,
        "down_w": down_w, "down_b": down_b,
        "adj_w": adj_w, "adj_b": adj_b,
        "fc_w": fc_w, "fc_b": fc_b,
    }


# ---------------------------------------------------------------------------
# Forward pass wrapper (single fused pallas_call, grid over whole clips)
# ---------------------------------------------------------------------------

def _pick_clips_per_block(B, T):
    """Largest divisor of B keeping <=128 rows/block while leaving >=2 blocks
    (so v7x's second TensorCore gets work)."""
    best = 1
    for cb in range(1, B + 1):
        if B % cb == 0 and cb * T <= 128 and B // cb >= 2:
            best = cb
    return best


def corrnet_forward(x, params, clips_per_block=None):
    B, T, C, H, W = x.shape
    assert T >= 3, "CorrNet temporal correlation requires at least 3 frames"
    CHW = C * H * W
    out_size = params["fc_w"].shape[1]

    cb = clips_per_block if clips_per_block is not None else _pick_clips_per_block(B, T)
    assert B % cb == 0
    nblk = B // cb

    # Lane-dense x layout: (B, T, C*H*W); the HxW mean is folded into backbone_w.
    x_flat = x.reshape(B, T, CHW)

    weights = (
        params["backbone_w"], params["backbone_b"],
        params["reducer_w"], params["reducer_b"],
        params["stt_w"], params["stt_b"],
        params["ltt_w"], params["ltt_b"],
        params["down_w"], params["down_b"],
        params["adj_w"], params["adj_b"],
        params["fc_w"], params["fc_b"],
    )

    # Weights/biases: whole-array VMEM residents (no pipelining, single buffer).
    vmem_spec = pl.BlockSpec(memory_space=pltpu.MemorySpace.VMEM)

    in_specs = ([pl.BlockSpec((cb, T, CHW), lambda i: (i, 0, 0))]
                + [vmem_spec] * len(weights))
    out_specs = pl.BlockSpec((1, cb, out_size), lambda i: (i, 0, 0))
    out_shape = jax.ShapeDtypeStruct((nblk, cb, out_size), jnp.float32)

    flops = (2 * B * T * CHW * 512            # backbone
             + 2 * B * T * 512 * 128          # channel_reducer (padded)
             + 3 * 2 * B * T * 128 * 128      # short-term conv taps (padded)
             + 2 * B * T * 512 * 2048         # long-term
             + 2 * B * T * 2048 * 128         # channel_downscale (padded)
             + 2 * B * 128 * 2048             # adjust_conv (padded)
             + 2 * B * 2048 * out_size)       # fc
    bytes_accessed = int(x_flat.size * x_flat.dtype.itemsize
                         + sum(a.size * a.dtype.itemsize for a in weights)
                         + nblk * cb * out_size * 4)

    # TODO(synk): for production-sized inputs, pick clips_per_block so each
    # block has >= 128 rows (MXU M-utilization), block x explicitly over clips,
    # and set vmem_limit_bytes (v7x has only 64 MiB physical VMEM).
    out = pl.pallas_call(
        functools.partial(_corrnet_kernel, T=T, cb=cb),
        grid=(nblk,),
        in_specs=in_specs,
        out_specs=out_specs,
        out_shape=out_shape,
        compiler_params=pltpu.CompilerParams(
            dimension_semantics=("parallel",)),
        cost_estimate=pl.CostEstimate(
            flops=flops, transcendentals=B * T * 2048,
            bytes_accessed=bytes_accessed),
    )(x_flat, *weights)

    return out.reshape(B, out_size)


# ---------------------------------------------------------------------------

if __name__ == "__main__":
    B, T, C, H, W = 2, 8, 3, 16, 16
    OUTPUT_SIZE = 128

    key = jax.random.PRNGKey(0)
    kx, kp = jax.random.split(key)
    x = jax.random.normal(kx, (B, T, C, H, W), dtype=jnp.float32)
    params = init_params(kp, input_channels=C, height=H, width=W,
                         output_size=OUTPUT_SIZE)

    out = jax.jit(corrnet_forward)(x, params)
    out = jax.block_until_ready(out)
    assert out.shape == (B, OUTPUT_SIZE), out.shape
    assert bool(jnp.all(jnp.isfinite(out)))
    print("KERNEL_OK")
</pallas_src>

<mosaic_0001>
module attributes {stable_mosaic.version = 11 : i64} {
  func.func @_corrnet_kernel(%arg0: i32, %arg1: memref<1x8x768xf32, #tpu.memory_space<vmem>>, %arg2: memref<768x512xbf16, #tpu.memory_space<vmem>>, %arg3: memref<1x512xf32, #tpu.memory_space<vmem>>, %arg4: memref<512x128xbf16, #tpu.memory_space<vmem>>, %arg5: memref<1x128xf32, #tpu.memory_space<vmem>>, %arg6: memref<3x128x128xbf16, #tpu.memory_space<vmem>>, %arg7: memref<1x128xf32, #tpu.memory_space<vmem>>, %arg8: memref<512x2048xbf16, #tpu.memory_space<vmem>>, %arg9: memref<1x2048xf32, #tpu.memory_space<vmem>>, %arg10: memref<2048x128xbf16, #tpu.memory_space<vmem>>, %arg11: memref<1x128xf32, #tpu.memory_space<vmem>>, %arg12: memref<128x2048xbf16, #tpu.memory_space<vmem>>, %arg13: memref<1x2048xf32, #tpu.memory_space<vmem>>, %arg14: memref<2048x128xbf16, #tpu.memory_space<vmem>>, %arg15: memref<1x128xf32, #tpu.memory_space<vmem>>, %arg16: memref<1x1x128xf32, #tpu.memory_space<vmem>>) attributes {dimension_semantics = [#tpu.dimension_semantics<parallel>], iteration_bounds = array<i64: 2>, scalar_prefetch = 0 : i64, scratch_operands = 0 : i64, tpu.core_type = #tpu.core_type<tc>, window_params = [{transform_indices = @transform_0, window_bounds = array<i64: 1, 8, 768>}, {pipeline_mode = #tpu.pipeline_mode<synchronous>, transform_indices = @transform_1, window_bounds = array<i64: 768, 512>}, {pipeline_mode = #tpu.pipeline_mode<synchronous>, transform_indices = @transform_2, window_bounds = array<i64: 1, 512>}, {pipeline_mode = #tpu.pipeline_mode<synchronous>, transform_indices = @transform_3, window_bounds = array<i64: 512, 128>}, {pipeline_mode = #tpu.pipeline_mode<synchronous>, transform_indices = @transform_4, window_bounds = array<i64: 1, 128>}, {pipeline_mode = #tpu.pipeline_mode<synchronous>, transform_indices = @transform_5, window_bounds = array<i64: 3, 128, 128>}, {pipeline_mode = #tpu.pipeline_mode<synchronous>, transform_indices = @transform_6, window_bounds = array<i64: 1, 128>}, {pipeline_mode = #tpu.pipeline_mode<synchronous>, transform_indices = @transform_7, window_bounds = array<i64: 512, 2048>}, {pipeline_mode = #tpu.pipeline_mode<synchronous>, transform_indices = @transform_8, window_bounds = array<i64: 1, 2048>}, {pipeline_mode = #tpu.pipeline_mode<synchronous>, transform_indices = @transform_9, window_bounds = array<i64: 2048, 128>}, {pipeline_mode = #tpu.pipeline_mode<synchronous>, transform_indices = @transform_10, window_bounds = array<i64: 1, 128>}, {pipeline_mode = #tpu.pipeline_mode<synchronous>, transform_indices = @transform_11, window_bounds = array<i64: 128, 2048>}, {pipeline_mode = #tpu.pipeline_mode<synchronous>, transform_indices = @transform_12, window_bounds = array<i64: 1, 2048>}, {pipeline_mode = #tpu.pipeline_mode<synchronous>, transform_indices = @transform_13, window_bounds = array<i64: 2048, 128>}, {pipeline_mode = #tpu.pipeline_mode<synchronous>, transform_indices = @transform_14, window_bounds = array<i64: 1, 128>}, {transform_indices = @transform_15, window_bounds = array<i64: 1, 1, 128>}]} {
    %c0 = arith.constant 0 : index
    %c0_0 = arith.constant 0 : index
    %c0_1 = arith.constant 0 : index
    %0 = vector.load %arg1[%c0, %c0_0, %c0_1] : memref<1x8x768xf32, #tpu.memory_space<vmem>>, vector<1x8x768xf32>
    %1 = vector.shape_cast %0 : vector<1x8x768xf32> to vector<8x768xf32>
    %2 = arith.truncf %1 : vector<8x768xf32> to vector<8x768xbf16>
    %c0_2 = arith.constant 0 : index
    %c0_3 = arith.constant 0 : index
    %3 = vector.load %arg2[%c0_2, %c0_3] : memref<768x512xbf16, #tpu.memory_space<vmem>>, vector<768x512xbf16>
    %cst = arith.constant dense<0.000000e+00> : vector<8x512xf32>
    %4 = tpu.matmul %2, %3, %cst {dimension_numbers = #tpu.dot_dimension_numbers<[1], [0], [0], [1], [0, 0, 1, 1], [], []>} : vector<8x768xbf16>, vector<768x512xbf16>, vector<8x512xf32> -> vector<8x512xf32>
    %c0_4 = arith.constant 0 : index
    %c0_5 = arith.constant 0 : index
    %5 = vector.load %arg3[%c0_4, %c0_5] : memref<1x512xf32, #tpu.memory_space<vmem>>, vector<1x512xf32>
    %6 = vector.broadcast %5 : vector<1x512xf32> to vector<8x512xf32>
    %7 = arith.addf %4, %6 : vector<8x512xf32>
    %cst_6 = arith.constant 0.000000e+00 : f32
    %8 = vector.broadcast %cst_6 : f32 to vector<8x512xf32>
    %9 = arith.maximumf %7, %8 : vector<8x512xf32>
    %10 = arith.truncf %9 : vector<8x512xf32> to vector<8x512xbf16>
    %c0_7 = arith.constant 0 : index
    %c0_8 = arith.constant 0 : index
    %11 = vector.load %arg4[%c0_7, %c0_8] : memref<512x128xbf16, #tpu.memory_space<vmem>>, vector<512x128xbf16>
    %cst_9 = arith.constant dense<0.000000e+00> : vector<8x128xf32>
    %12 = tpu.matmul %10, %11, %cst_9 {dimension_numbers = #tpu.dot_dimension_numbers<[1], [0], [0], [1], [0, 0, 1, 1], [], []>} : vector<8x512xbf16>, vector<512x128xbf16>, vector<8x128xf32> -> vector<8x128xf32>
    %c0_10 = arith.constant 0 : index
    %c0_11 = arith.constant 0 : index
    %13 = vector.load %arg5[%c0_10, %c0_11] : memref<1x128xf32, #tpu.memory_space<vmem>>, vector<1x128xf32>
    %14 = vector.broadcast %13 : vector<1x128xf32> to vector<8x128xf32>
    %15 = arith.addf %12, %14 : vector<8x128xf32>
    %16 = tpu.iota {dimensions = array<i32: 0>} : vector<8x128xi32>
    %c8_i32 = arith.constant 8 : i32
    %c0_i32 = arith.constant 0 : i32
    %17 = arith.cmpi eq, %c8_i32, %c0_i32 : i32
    %c1_i32 = arith.constant 1 : i32
    %18 = arith.select %17, %c1_i32, %c8_i32 : i32
    %19 = vector.broadcast %18 : i32 to vector<8x128xi32>
    %20 = arith.remsi %16, %19 : vector<8x128xi32>
    %c0_i32_12 = arith.constant 0 : i32
    %21 = vector.broadcast %c0_i32_12 : i32 to vector<8x128xi32>
    %22 = arith.cmpi ne, %20, %21 : vector<8x128xi32>
    %c0_i32_13 = arith.constant 0 : i32
    %23 = vector.broadcast %c0_i32_13 : i32 to vector<8x128xi32>
    %24 = arith.cmpi slt, %20, %23 : vector<8x128xi32>
    %c0_i32_14 = arith.constant 0 : i32
    %25 = arith.cmpi slt, %18, %c0_i32_14 : i32
    %26 = vector.broadcast %25 : i1 to vector<8x128xi1>
    %27 = vector.broadcast %26 : vector<8x128xi1> to vector<8x128xi1>
    %28 = arith.xori %24, %27 : vector<8x128xi1>
    %29 = arith.andi %28, %22 : vector<8x128xi1>
    %30 = vector.broadcast %18 : i32 to vector<8x128xi32>
    %31 = arith.addi %20, %30 : vector<8x128xi32>
    %32 = arith.select %29, %31, %20 : vector<8x128xi1>, vector<8x128xi32>
    %c0_i32_15 = arith.constant 0 : i32
    %33 = vector.broadcast %c0_i32_15 : i32 to vector<8x128xi32>
    %34 = arith.cmpi eq, %32, %33 : vector<8x128xi32>
    %c7_i32 = arith.constant 7 : i32
    %35 = vector.broadcast %c7_i32 : i32 to vector<8x128xi32>
    %36 = arith.cmpi eq, %32, %35 : vector<8x128xi32>
    %c1_i32_16 = arith.constant 1 : i32
    %37 = tpu.dynamic_rotate %15 by %c1_i32_16 dim 0 : vector<8x128xf32>, i32 -> vector<8x128xf32>
    %cst_17 = arith.constant 0.000000e+00 : f32
    %38 = vector.broadcast %cst_17 : f32 to vector<8x128xf32>
    %39 = arith.select %34, %38, %37 : vector<8x128xi1>, vector<8x128xf32>
    %40 = arith.truncf %39 : vector<8x128xf32> to vector<8x128xbf16>
    %c0_18 = arith.constant 0 : index
    %c0_19 = arith.constant 0 : index
    %c0_20 = arith.constant 0 : index
    %41 = vector.load %arg6[%c0_18, %c0_19, %c0_20] : memref<3x128x128xbf16, #tpu.memory_space<vmem>>, vector<1x128x128xbf16>
    %42 = vector.shape_cast %41 : vector<1x128x128xbf16> to vector<128x128xbf16>
    %cst_21 = arith.constant dense<0.000000e+00> : vector<8x128xf32>
    %43 = tpu.matmul %40, %42, %cst_21 {dimension_numbers = #tpu.dot_dimension_numbers<[1], [0], [0], [1], [0, 0, 1, 1], [], []>} : vector<8x128xbf16>, vector<128x128xbf16>, vector<8x128xf32> -> vector<8x128xf32>
    %44 = arith.truncf %15 : vector<8x128xf32> to vector<8x128xbf16>
    %c1 = arith.constant 1 : index
    %c0_22 = arith.constant 0 : index
    %c0_23 = arith.constant 0 : index
    %45 = vector.load %arg6[%c1, %c0_22, %c0_23] : memref<3x128x128xbf16, #tpu.memory_space<vmem>>, vector<1x128x128xbf16>
    %46 = vector.shape_cast %45 : vector<1x128x128xbf16> to vector<128x128xbf16>
    %cst_24 = arith.constant dense<0.000000e+00> : vector<8x128xf32>
    %47 = tpu.matmul %44, %46, %cst_24 {dimension_numbers = #tpu.dot_dimension_numbers<[1], [0], [0], [1], [0, 0, 1, 1], [], []>} : vector<8x128xbf16>, vector<128x128xbf16>, vector<8x128xf32> -> vector<8x128xf32>
    %48 = arith.addf %43, %47 : vector<8x128xf32>
    %c7_i32_25 = arith.constant 7 : i32
    %49 = tpu.dynamic_rotate %15 by %c7_i32_25 dim 0 : vector<8x128xf32>, i32 -> vector<8x128xf32>
    %cst_26 = arith.constant 0.000000e+00 : f32
    %50 = vector.broadcast %cst_26 : f32 to vector<8x128xf32>
    %51 = arith.select %36, %50, %49 : vector<8x128xi1>, vector<8x128xf32>
    %52 = arith.truncf %51 : vector<8x128xf32> to vector<8x128xbf16>
    %c2 = arith.constant 2 : index
    %c0_27 = arith.constant 0 : index
    %c0_28 = arith.constant 0 : index
    %53 = vector.load %arg6[%c2, %c0_27, %c0_28] : memref<3x128x128xbf16, #tpu.memory_space<vmem>>, vector<1x128x128xbf16>
    %54 = vector.shape_cast %53 : vector<1x128x128xbf16> to vector<128x128xbf16>
    %cst_29 = arith.constant dense<0.000000e+00> : vector<8x128xf32>
    %55 = tpu.matmul %52, %54, %cst_29 {dimension_numbers = #tpu.dot_dimension_numbers<[1], [0], [0], [1], [0, 0, 1, 1], [], []>} : vector<8x128xbf16>, vector<128x128xbf16>, vector<8x128xf32> -> vector<8x128xf32>
    %56 = arith.addf %48, %55 : vector<8x128xf32>
    %c0_30 = arith.constant 0 : index
    %c0_31 = arith.constant 0 : index
    %57 = vector.load %arg7[%c0_30, %c0_31] : memref<1x128xf32, #tpu.memory_space<vmem>>, vector<1x128xf32>
    %58 = vector.broadcast %57 : vector<1x128xf32> to vector<8x128xf32>
    %59 = arith.addf %56, %58 : vector<8x128xf32>
    %cst_32 = arith.constant 0.000000e+00 : f32
    %60 = vector.broadcast %cst_32 : f32 to vector<8x128xf32>
    %61 = arith.maximumf %59, %60 : vector<8x128xf32>
    %c0_33 = arith.constant 0 : index
    %c0_34 = arith.constant 0 : index
    %62 = vector.load %arg8[%c0_33, %c0_34] : memref<512x2048xbf16, #tpu.memory_space<vmem>>, vector<512x2048xbf16>
    %cst_35 = arith.constant dense<0.000000e+00> : vector<8x2048xf32>
    %63 = tpu.matmul %10, %62, %cst_35 {dimension_numbers = #tpu.dot_dimension_numbers<[1], [0], [0], [1], [0, 0, 1, 1], [], []>} : vector<8x512xbf16>, vector<512x2048xbf16>, vector<8x2048xf32> -> vector<8x2048xf32>
    %c0_36 = arith.constant 0 : index
    %c0_37 = arith.constant 0 : index
    %64 = vector.load %arg9[%c0_36, %c0_37] : memref<1x2048xf32, #tpu.memory_space<vmem>>, vector<1x2048xf32>
    %65 = vector.broadcast %64 : vector<1x2048xf32> to vector<8x2048xf32>
    %66 = arith.addf %63, %65 : vector<8x2048xf32>
    %67 = math.tanh %66 : vector<8x2048xf32>
    %68 = arith.truncf %67 : vector<8x2048xf32> to vector<8x2048xbf16>
    %c0_38 = arith.constant 0 : index
    %c0_39 = arith.constant 0 : index
    %69 = vector.load %arg10[%c0_38, %c0_39] : memref<2048x128xbf16, #tpu.memory_space<vmem>>, vector<2048x128xbf16>
    %cst_40 = arith.constant dense<0.000000e+00> : vector<8x128xf32>
    %70 = tpu.matmul %68, %69, %cst_40 {dimension_numbers = #tpu.dot_dimension_numbers<[1], [0], [0], [1], [0, 0, 1, 1], [], []>} : vector<8x2048xbf16>, vector<2048x128xbf16>, vector<8x128xf32> -> vector<8x128xf32>
    %c0_41 = arith.constant 0 : index
    %c0_42 = arith.constant 0 : index
    %71 = vector.load %arg11[%c0_41, %c0_42] : memref<1x128xf32, #tpu.memory_space<vmem>>, vector<1x128xf32>
    %72 = vector.broadcast %71 : vector<1x128xf32> to vector<8x128xf32>
    %73 = arith.addf %70, %72 : vector<8x128xf32>
    %c1_i32_43 = arith.constant 1 : i32
    %74 = tpu.dynamic_rotate %61 by %c1_i32_43 dim 0 : vector<8x128xf32>, i32 -> vector<8x128xf32>
    %cst_44 = arith.constant 0.000000e+00 : f32
    %75 = vector.broadcast %cst_44 : f32 to vector<8x128xf32>
    %76 = arith.select %34, %75, %74 : vector<8x128xi1>, vector<8x128xf32>
    %77 = arith.mulf %76, %61 : vector<8x128xf32>
    %c7_i32_45 = arith.constant 7 : i32
    %78 = tpu.dynamic_rotate %61 by %c7_i32_45 dim 0 : vector<8x128xf32>, i32 -> vector<8x128xf32>
    %cst_46 = arith.constant 0.000000e+00 : f32
    %79 = vector.broadcast %cst_46 : f32 to vector<8x128xf32>
    %80 = arith.select %36, %79, %78 : vector<8x128xi1>, vector<8x128xf32>
    %81 = arith.mulf %61, %80 : vector<8x128xf32>
    %82 = arith.addf %77, %81 : vector<8x128xf32>
    %c1_i32_47 = arith.constant 1 : i32
    %83 = vector.broadcast %c1_i32_47 : i32 to vector<8x128xi32>
    %84 = arith.cmpi sge, %32, %83 : vector<8x128xi32>
    %c6_i32 = arith.constant 6 : i32
    %85 = vector.broadcast %c6_i32 : i32 to vector<8x128xi32>
    %86 = arith.cmpi sle, %32, %85 : vector<8x128xi32>
    %87 = arith.andi %84, %86 : vector<8x128xi1>
    %88 = arith.addf %73, %82 : vector<8x128xf32>
    %cst_48 = arith.constant 0.000000e+00 : f32
    %89 = vector.broadcast %cst_48 : f32 to vector<8x128xf32>
    %90 = arith.maximumf %88, %89 : vector<8x128xf32>
    %cst_49 = arith.constant 0.000000e+00 : f32
    %91 = vector.broadcast %cst_49 : f32 to vector<8x128xf32>
    %92 = arith.select %87, %90, %91 : vector<8x128xi1>, vector<8x128xf32>
    %93 = vector.shape_cast %92 : vector<8x128xf32> to vector<1x8x128xf32>
    %cst_50 = arith.constant dense<0.000000e+00> : vector<1x128xf32>
    %94 = vector.multi_reduction <add>, %93, %cst_50 [1] : vector<1x8x128xf32> to vector<1x128xf32>
    %cst_51 = arith.constant 0.166666672 : f32
    %95 = vector.broadcast %cst_51 : f32 to vector<1x128xf32>
    %96 = arith.mulf %94, %95 : vector<1x128xf32>
    %97 = arith.truncf %96 : vector<1x128xf32> to vector<1x128xbf16>
    %c0_52 = arith.constant 0 : index
    %c0_53 = arith.constant 0 : index
    %98 = vector.load %arg12[%c0_52, %c0_53] : memref<128x2048xbf16, #tpu.memory_space<vmem>>, vector<128x2048xbf16>
    %cst_54 = arith.constant dense<0.000000e+00> : vector<1x2048xf32>
    %99 = tpu.matmul %97, %98, %cst_54 {dimension_numbers = #tpu.dot_dimension_numbers<[1], [0], [0], [1], [0, 0, 1, 1], [], []>} : vector<1x128xbf16>, vector<128x2048xbf16>, vector<1x2048xf32> -> vector<1x2048xf32>
    %c0_55 = arith.constant 0 : index
    %c0_56 = arith.constant 0 : index
    %100 = vector.load %arg13[%c0_55, %c0_56] : memref<1x2048xf32, #tpu.memory_space<vmem>>, vector<1x2048xf32>
    %101 = arith.addf %99, %100 : vector<1x2048xf32>
    %102 = arith.truncf %101 : vector<1x2048xf32> to vector<1x2048xbf16>
    %c0_57 = arith.constant 0 : index
    %c0_58 = arith.constant 0 : index
    %103 = vector.load %arg14[%c0_57, %c0_58] : memref<2048x128xbf16, #tpu.memory_space<vmem>>, vector<2048x128xbf16>
    %cst_59 = arith.constant dense<0.000000e+00> : vector<1x128xf32>
    %104 = tpu.matmul %102, %103, %cst_59 {dimension_numbers = #tpu.dot_dimension_numbers<[1], [0], [0], [1], [0, 0, 1, 1], [], []>} : vector<1x2048xbf16>, vector<2048x128xbf16>, vector<1x128xf32> -> vector<1x128xf32>
    %c0_60 = arith.constant 0 : index
    %c0_61 = arith.constant 0 : index
    %105 = vector.load %arg15[%c0_60, %c0_61] : memref<1x128xf32, #tpu.memory_space<vmem>>, vector<1x128xf32>
    %106 = arith.addf %104, %105 : vector<1x128xf32>
    %107 = vector.shape_cast %106 : vector<1x128xf32> to vector<1x1x128xf32>
    %c0_62 = arith.constant 0 : index
    %c0_63 = arith.constant 0 : index
    %c0_64 = arith.constant 0 : index
    %108 = vector.load %arg16[%c0_62, %c0_63, %c0_64] : memref<1x1x128xf32, #tpu.memory_space<vmem>>, vector<1x1x128xf32>
    tpu.vector_store %arg16[%c0_62, %c0_63, %c0_64], %107 {strides = array<i32>} : memref<1x1x128xf32, #tpu.memory_space<vmem>>, vector<1x1x128xf32>,
    return
  }
  func.func @transform_0(%arg0: i32) -> (i32, i32, i32) {
    %c0_i32 = arith.constant 0 : i32
    %c0_i32_0 = arith.constant 0 : i32
    %c0_i32_1 = arith.constant 0 : i32
    return %arg0, %c0_i32, %c0_i32_0 : i32, i32, i32
  }
  func.func @transform_1(%arg0: i32) -> (i32, i32) {
    %c0_i32 = arith.constant 0 : i32
    %c0_i32_0 = arith.constant 0 : i32
    %c0_i32_1 = arith.constant 0 : i32
    return %c0_i32, %c0_i32_0 : i32, i32
  }
  func.func @transform_2(%arg0: i32) -> (i32, i32) {
    %c0_i32 = arith.constant 0 : i32
    %c0_i32_0 = arith.constant 0 : i32
    %c0_i32_1 = arith.constant 0 : i32
    return %c0_i32, %c0_i32_0 : i32, i32
  }
  func.func @transform_3(%arg0: i32) -> (i32, i32) {
    %c0_i32 = arith.constant 0 : i32
    %c0_i32_0 = arith.constant 0 : i32
    %c0_i32_1 = arith.constant 0 : i32
    return %c0_i32, %c0_i32_0 : i32, i32
  }
  func.func @transform_4(%arg0: i32) -> (i32, i32) {
    %c0_i32 = arith.constant 0 : i32
    %c0_i32_0 = arith.constant 0 : i32
    %c0_i32_1 = arith.constant 0 : i32
    return %c0_i32, %c0_i32_0 : i32, i32
  }
  func.func @transform_5(%arg0: i32) -> (i32, i32, i32) {
    %c0_i32 = arith.constant 0 : i32
    %c0_i32_0 = arith.constant 0 : i32
    %c0_i32_1 = arith.constant 0 : i32
    %c0_i32_2 = arith.constant 0 : i32
    return %c0_i32, %c0_i32_0, %c0_i32_1 : i32, i32, i32
  }
  func.func @transform_6(%arg0: i32) -> (i32, i32) {
    %c0_i32 = arith.constant 0 : i32
    %c0_i32_0 = arith.constant 0 : i32
    %c0_i32_1 = arith.constant 0 : i32
    return %c0_i32, %c0_i32_0 : i32, i32
  }
  func.func @transform_7(%arg0: i32) -> (i32, i32) {
    %c0_i32 = arith.constant 0 : i32
    %c0_i32_0 = arith.constant 0 : i32
    %c0_i32_1 = arith.constant 0 : i32
    return %c0_i32, %c0_i32_0 : i32, i32
  }
  func.func @transform_8(%arg0: i32) -> (i32, i32) {
    %c0_i32 = arith.constant 0 : i32
    %c0_i32_0 = arith.constant 0 : i32
    %c0_i32_1 = arith.constant 0 : i32
    return %c0_i32, %c0_i32_0 : i32, i32
  }
  func.func @transform_9(%arg0: i32) -> (i32, i32) {
    %c0_i32 = arith.constant 0 : i32
    %c0_i32_0 = arith.constant 0 : i32
    %c0_i32_1 = arith.constant 0 : i32
    return %c0_i32, %c0_i32_0 : i32, i32
  }
  func.func @transform_10(%arg0: i32) -> (i32, i32) {
    %c0_i32 = arith.constant 0 : i32
    %c0_i32_0 = arith.constant 0 : i32
    %c0_i32_1 = arith.constant 0 : i32
    return %c0_i32, %c0_i32_0 : i32, i32
  }
  func.func @transform_11(%arg0: i32) -> (i32, i32) {
    %c0_i32 = arith.constant 0 : i32
    %c0_i32_0 = arith.constant 0 : i32
    %c0_i32_1 = arith.constant 0 : i32
    return %c0_i32, %c0_i32_0 : i32, i32
  }
  func.func @transform_12(%arg0: i32) -> (i32, i32) {
    %c0_i32 = arith.constant 0 : i32
    %c0_i32_0 = arith.constant 0 : i32
    %c0_i32_1 = arith.constant 0 : i32
    return %c0_i32, %c0_i32_0 : i32, i32
  }
  func.func @transform_13(%arg0: i32) -> (i32, i32) {
    %c0_i32 = arith.constant 0 : i32
    %c0_i32_0 = arith.constant 0 : i32
    %c0_i32_1 = arith.constant 0 : i32
    return %c0_i32, %c0_i32_0 : i32, i32
  }
  func.func @transform_14(%arg0: i32) -> (i32, i32) {
    %c0_i32 = arith.constant 0 : i32
    %c0_i32_0 = arith.constant 0 : i32
    %c0_i32_1 = arith.constant 0 : i32
    return %c0_i32, %c0_i32_0 : i32, i32
  }
  func.func @transform_15(%arg0: i32) -> (i32, i32, i32) {
    %c0_i32 = arith.constant 0 : i32
    %c0_i32_0 = arith.constant 0 : i32
    %c0_i32_1 = arith.constant 0 : i32
    return %arg0, %c0_i32, %c0_i32_0 : i32, i32, i32
  }
}

</mosaic_0001>

<llo_original>
// kernel: corrnet_forward.1
$region0: #{corrnet_forward.1}
  #allocation0 [shape = 'u32[]', space=smem, size = 0x4, offset = 0x4, fixed_abs, tag = 'smem constant byte address 0x4 - core index']
  #allocation1 [shape = 'u32[144,128]{1,0:T(1,128)}', space=vmem, size = 0x12000, scoped, tag = 'internal scratch']
  %s0 = inlined_call_operand.vmem [shape: f32[2,8,768], index: 0, kind: input, shape index: {}]
  %s1 = inlined_call_operand.hbm [shape: bf16[768,512], index: 1, kind: input, shape index: {}]
  %s2 = inlined_call_operand.hbm [shape: f32[1,512], index: 2, kind: input, shape index: {}]
  %s3 = inlined_call_operand.hbm [shape: bf16[512,128], index: 3, kind: input, shape index: {}]
  %s4 = inlined_call_operand.hbm [shape: f32[1,128], index: 4, kind: input, shape index: {}]
  %s5 = inlined_call_operand.hbm [shape: bf16[3,128,128], index: 5, kind: input, shape index: {}]
  %s6 = inlined_call_operand.hbm [shape: f32[1,128], index: 6, kind: input, shape index: {}]
  %s7 = inlined_call_operand.hbm [shape: bf16[512,2048], index: 7, kind: input, shape index: {}]
  %s8 = inlined_call_operand.hbm [shape: f32[1,2048], index: 8, kind: input, shape index: {}]
  %s9 = inlined_call_operand.hbm [shape: bf16[2048,128], index: 9, kind: input, shape index: {}]
  %s10 = inlined_call_operand.hbm [shape: f32[1,128], index: 10, kind: input, shape index: {}]
  %s11 = inlined_call_operand.hbm [shape: bf16[128,2048], index: 11, kind: input, shape index: {}]
  %s12 = inlined_call_operand.hbm [shape: f32[1,2048], index: 12, kind: input, shape index: {}]
  %s13 = inlined_call_operand.hbm [shape: bf16[2048,128], index: 13, kind: input, shape index: {}]
  %s14 = inlined_call_operand.hbm [shape: f32[1,128], index: 14, kind: input, shape index: {}]
  %s15 = inlined_call_operand.hbm [shape: f32[2,1,128], index: 15, kind: output, shape index: {}]
  %s16 = sld [smem:[#allocation0]]
  $region149: #{corrnet_forward.1} parent=0
    _
  %s18 = ssub.s32 1, %s16
  %s19 = scalar_select 0, %s18, %s16
  $region1: #{corrnet_forward.1} parent=0
    #allocation2 [shape = 'u8[786432]{0}', space=vmem, size = 0xc0000, scoped, tag = 'input window, operand 1, single buffered']
    #allocation3 [shape = 's32[2]{0}', space=sflag, size = 0x8, scoped, tag = 'scoped memory for corrnet_forward.1']
    #allocation4 [shape = 's32[2]{0}', space=sflag, size = 0x8, scoped, tag = 'scoped memory for corrnet_forward.1']
    #allocation5 [shape = 'u8[2048]{0}', space=vmem, size = 0x800, scoped, tag = 'input window, operand 2, single buffered']
    #allocation6 [shape = 's32[1]{0}', space=sflag, size = 0x4, scoped, tag = 'scoped memory for corrnet_forward.1']
    #allocation7 [shape = 'u8[131072]{0}', space=vmem, size = 0x20000, scoped, tag = 'input window, operand 3, single buffered']
    #allocation8 [shape = 'u8[512]{0}', space=vmem, size = 0x400, scoped, tag = 'input window, operand 4, single buffered']
    #allocation9 [shape = 's32[1]{0}', space=sflag, size = 0x4, scoped, tag = 'scoped memory for corrnet_forward.1']
    #allocation10 [shape = 'u8[98304]{0}', space=vmem, size = 0x18000, scoped, tag = 'input window, operand 5, single buffered']
    #allocation11 [shape = 'u8[512]{0}', space=vmem, size = 0x400, scoped, tag = 'input window, operand 6, single buffered']
    #allocation12 [shape = 's32[1]{0}', space=sflag, size = 0x4, scoped, tag = 'scoped memory for corrnet_forward.1']
    #allocation13 [shape = 'u8[2097152]{0}', space=vmem, size = 0x200000, scoped, tag = 'input window, operand 7, single buffered']
    #allocation14 [shape = 'u8[8192]{0}', space=vmem, size = 0x2000, scoped, tag = 'input window, operand 8, single buffered']
    #allocation15 [shape = 's32[1]{0}', space=sflag, size = 0x4, scoped, tag = 'scoped memory for corrnet_forward.1']
    #allocation16 [shape = 'u8[524288]{0}', space=vmem, size = 0x80000, scoped, tag = 'input window, operand 9, single buffered']
    #allocation17 [shape = 'u8[512]{0}', space=vmem, size = 0x400, scoped, tag = 'input window, operand 10, single buffered']
    #allocation18 [shape = 's32[1]{0}', space=sflag, size = 0x4, scoped, tag = 'scoped memory for corrnet_forward.1']
    #allocation19 [shape = 'u8[524288]{0}', space=vmem, size = 0x80000, scoped, tag = 'input window, operand 11, single buffered']
    #allocation20 [shape = 'u8[8192]{0}', space=vmem, size = 0x2000, scoped, tag = 'input window, operand 12, single buffered']
    #allocation21 [shape = 's32[1]{0}', space=sflag, size = 0x4, scoped, tag = 'scoped memory for corrnet_forward.1']
    #allocation22 [shape = 'u8[524288]{0}', space=vmem, size = 0x80000, scoped, tag = 'input window, operand 13, single buffered']
    #allocation23 [shape = 'u8[512]{0}', space=vmem, size = 0x400, scoped, tag = 'input window, operand 14, single buffered']
    #allocation24 [shape = 's32[1]{0}', space=sflag, size = 0x4, scoped, tag = 'scoped memory for corrnet_forward.1']
    #allocation25 [shape = 'u8[1024]{0}', space=vmem, size = 0x400, scoped, tag = 'output window, operand 0']
    %20 = vsyncpa [#allocation3], 0
    %21 = vsyncpa [#allocation6], 0
    %22 = vsyncpa [#allocation9], 0
    %23 = vsyncpa [#allocation12], 0
    %24 = vsyncpa [#allocation15], 0
    %25 = vsyncpa [#allocation18], 0
    %26 = vsyncpa [#allocation21], 0
    %27 = vsyncpa [#allocation24], 0
    %28 = vsyncpa [#allocation4], 0
    %s29 = scalar_lea.sflag [#allocation4], 1
    %30 = vsyncpa %s29, 0
    loop: start=0, step=1, limit=4
    $region2: #{corrnet_forward.1} parent=1 // loop_pre_header
      _
    $region3: #{corrnet_forward.1} parent=1 // loop_header
      %s32 = sphi 0, %s36
      %p33 = scmp.ge.s32.totalorder %s32, 4
      %s42 = sphi 0, %s44
      %s45 = sphi 0, %s42
      %s46 = sphi 0, %s45
      %s62 = sphi 0, %s46
      %s66 = sphi 0, %s66
      %s68 = sphi 0, %s66
      %s69 = sphi 0, %s68
      %s83 = sphi 0, %s69
      %s87 = sphi 0, %s87
      %s89 = sphi 0, %s87
      %s90 = sphi 0, %s89
      %s104 = sphi 0, %s90
      %s108 = sphi 0, %s108
      %s110 = sphi 0, %s108
      %s111 = sphi 0, %s110
      %s125 = sphi 0, %s111
      %s129 = sphi 0, %s129
      %s131 = sphi 0, %s129
      %s132 = sphi 0, %s131
      %s146 = sphi 0, %s132
      %s150 = sphi 0, %s150
      %s152 = sphi 0, %s150
      %s153 = sphi 0, %s152
      %s167 = sphi 0, %s153
      %s171 = sphi 0, %s171
      %s173 = sphi 0, %s171
      %s174 = sphi 0, %s173
      %s188 = sphi 0, %s174
      %s192 = sphi 0, %s192
      %s194 = sphi 0, %s192
      %s195 = sphi 0, %s194
      %s209 = sphi 0, %s195
      %s213 = sphi 0, %s213
      %s215 = sphi 0, %s213
      %s216 = sphi 0, %s215
      %s230 = sphi 0, %s216
      %s234 = sphi 0, %s234
      %s236 = sphi 0, %s234
      %s237 = sphi 0, %s236
      %s251 = sphi 0, %s237
      %s255 = sphi 0, %s255
      %s257 = sphi 0, %s255
      %s258 = sphi 0, %s257
      %s272 = sphi 0, %s258
      %s276 = sphi 0, %s276
      %s278 = sphi 0, %s276
      %s279 = sphi 0, %s278
      %s293 = sphi 0, %s279
      %s297 = sphi 0, %s297
      %s299 = sphi 0, %s297
      %s300 = sphi 0, %s299
      %s314 = sphi 0, %s300
      %s318 = sphi 0, %s318
      %s320 = sphi 0, %s318
      %s321 = sphi 0, %s320
      %s335 = sphi 0, %s321
      %s339 = sphi 0, %s339
      %s341 = sphi 0, %s339
      %s342 = sphi 0, %s341
      %s356 = sphi 0, %s342
      %s362 = sphi 0, %s364
      %s365 = sphi 0, %s362
      %s366 = sphi 0, %s365
      %s382 = sphi 0, %s366
    $region4: #{corrnet_forward.1} parent=1 // loop_header_branch
      %35 = sbr.rel (%p33) target = $region8
    $region5: #{corrnet_forward.1} parent=1 // loop_body
      %s37 = ssub.s32 %s32, 1
      %s38 = ssub.s32 %s32, 2
      %s39 = sadd.s32 %s32, 1
      %s40 = ssub.s32 %s32, %s39
      %p41 = scmp.eq.s32.totalorder %s40, 0
      %s43 = sadd.s32 %s42, 1
      %s44 = scalar_select %p41, %s42, %s43
      %p47 = pneg %p41
      %p48 = scmp.eq.s32.totalorder %s32, 1
      %p49 = por %p47, %p48
      %p50 = scmp.ne.s32.totalorder %s42, %s45
      %p51 = scmp.eq.s32.totalorder %s32, 0
      %p52 = por %p50, %p51
      %p53 = scmp.ne.s32.totalorder %s42, %s45
      %p54 = scmp.eq.s32.totalorder %s37, 1
      %p55 = por %p53, %p54
      %p56 = scmp.ne.s32.totalorder %s45, %s46
      %p57 = scmp.eq.s32.totalorder %s37, 0
      %p58 = por %p56, %p57
      %p59 = scmp.ne.s32.totalorder %s45, %s46
      %p60 = scmp.eq.s32.totalorder %s38, 1
      %p61 = por %p59, %p60
      %p63 = scmp.ne.s32.totalorder %s46, %s62
      %p64 = scmp.eq.s32.totalorder %s38, 0
      %p65 = por %p63, %p64
      %s67 = sadd.s32 %s66, 1
      %p70 = scmp.eq.s32.totalorder %s32, 1
      %p71 = scmp.ne.s32.totalorder %s66, %s68
      %p72 = scmp.eq.s32.totalorder %s32, 0
      %p73 = por %p71, %p72
      %p74 = scmp.ne.s32.totalorder %s66, %s68
      %p75 = scmp.eq.s32.totalorder %s37, 1
      %p76 = por %p74, %p75
      %p77 = scmp.ne.s32.totalorder %s68, %s69
      %p78 = scmp.eq.s32.totalorder %s37, 0
      %p79 = por %p77, %p78
      %p80 = scmp.ne.s32.totalorder %s68, %s69
      %p81 = scmp.eq.s32.totalorder %s38, 1
      %p82 = por %p80, %p81
      %p84 = scmp.ne.s32.totalorder %s69, %s83
      %p85 = scmp.eq.s32.totalorder %s38, 0
      %p86 = por %p84, %p85
      %s88 = sadd.s32 %s87, 1
      %p91 = scmp.eq.s32.totalorder %s32, 1
      %p92 = scmp.ne.s32.totalorder %s87, %s89
      %p93 = scmp.eq.s32.totalorder %s32, 0
      %p94 = por %p92, %p93
      %p95 = scmp.ne.s32.totalorder %s87, %s89
      %p96 = scmp.eq.s32.totalorder %s37, 1
      %p97 = por %p95, %p96
      %p98 = scmp.ne.s32.totalorder %s89, %s90
      %p99 = scmp.eq.s32.totalorder %s37, 0
      %p100 = por %p98, %p99
      %p101 = scmp.ne.s32.totalorder %s89, %s90
      %p102 = scmp.eq.s32.totalorder %s38, 1
      %p103 = por %p101, %p102
      %p105 = scmp.ne.s32.totalorder %s90, %s104
      %p106 = scmp.eq.s32.totalorder %s38, 0
      %p107 = por %p105, %p106
      %s109 = sadd.s32 %s108, 1
      %p112 = scmp.eq.s32.totalorder %s32, 1
      %p113 = scmp.ne.s32.totalorder %s108, %s110
      %p114 = scmp.eq.s32.totalorder %s32, 0
      %p115 = por %p113, %p114
      %p116 = scmp.ne.s32.totalorder %s108, %s110
      %p117 = scmp.eq.s32.totalorder %s37, 1
      %p118 = por %p116, %p117
      %p119 = scmp.ne.s32.totalorder %s110, %s111
      %p120 = scmp.eq.s32.totalorder %s37, 0
      %p121 = por %p119, %p120
      %p122 = scmp.ne.s32.totalorder %s110, %s111
      %p123 = scmp.eq.s32.totalorder %s38, 1
      %p124 = por %p122, %p123
      %p126 = scmp.ne.s32.totalorder %s111, %s125
      %p127 = scmp.eq.s32.totalorder %s38, 0
      %p128 = por %p126, %p127
      %s130 = sadd.s32 %s129, 1
      %p133 = scmp.eq.s32.totalorder %s32, 1
      %p134 = scmp.ne.s32.totalorder %s129, %s131
      %p135 = scmp.eq.s32.totalorder %s32, 0
      %p136 = por %p134, %p135
      %p137 = scmp.ne.s32.totalorder %s129, %s131
      %p138 = scmp.eq.s32.totalorder %s37, 1
      %p139 = por %p137, %p138
      %p140 = scmp.ne.s32.totalorder %s131, %s132
      %p141 = scmp.eq.s32.totalorder %s37, 0
      %p142 = por %p140, %p141
      %p143 = scmp.ne.s32.totalorder %s131, %s132
      %p144 = scmp.eq.s32.totalorder %s38, 1
      %p145 = por %p143, %p144
      %p147 = scmp.ne.s32.totalorder %s132, %s146
      %p148 = scmp.eq.s32.totalorder %s38, 0
      %p149 = por %p147, %p148
      %s151 = sadd.s32 %s150, 1
      %p154 = scmp.eq.s32.totalorder %s32, 1
      %p155 = scmp.ne.s32.totalorder %s150, %s152
      %p156 = scmp.eq.s32.totalorder %s32, 0
      %p157 = por %p155, %p156
      %p158 = scmp.ne.s32.totalorder %s150, %s152
      %p159 = scmp.eq.s32.totalorder %s37, 1
      %p160 = por %p158, %p159
      %p161 = scmp.ne.s32.totalorder %s152, %s153
      %p162 = scmp.eq.s32.totalorder %s37, 0
      %p163 = por %p161, %p162
      %p164 = scmp.ne.s32.totalorder %s152, %s153
      %p165 = scmp.eq.s32.totalorder %s38, 1
      %p166 = por %p164, %p165
      %p168 = scmp.ne.s32.totalorder %s153, %s167
      %p169 = scmp.eq.s32.totalorder %s38, 0
      %p170 = por %p168, %p169
      %s172 = sadd.s32 %s171, 1
      %p175 = scmp.eq.s32.totalorder %s32, 1
      %p176 = scmp.ne.s32.totalorder %s171, %s173
      %p177 = scmp.eq.s32.totalorder %s32, 0
      %p178 = por %p176, %p177
      %p179 = scmp.ne.s32.totalorder %s171, %s173
      %p180 = scmp.eq.s32.totalorder %s37, 1
      %p181 = por %p179, %p180
      %p182 = scmp.ne.s32.totalorder %s173, %s174
      %p183 = scmp.eq.s32.totalorder %s37, 0
      %p184 = por %p182, %p183
      %p185 = scmp.ne.s32.totalorder %s173, %s174
      %p186 = scmp.eq.s32.totalorder %s38, 1
      %p187 = por %p185, %p186
      %p189 = scmp.ne.s32.totalorder %s174, %s188
      %p190 = scmp.eq.s32.totalorder %s38, 0
      %p191 = por %p189, %p190
      %s193 = sadd.s32 %s192, 1
      %p196 = scmp.eq.s32.totalorder %s32, 1
      %p197 = scmp.ne.s32.totalorder %s192, %s194
      %p198 = scmp.eq.s32.totalorder %s32, 0
      %p199 = por %p197, %p198
      %p200 = scmp.ne.s32.totalorder %s192, %s194
      %p201 = scmp.eq.s32.totalorder %s37, 1
      %p202 = por %p200, %p201
      %p203 = scmp.ne.s32.totalorder %s194, %s195
      %p204 = scmp.eq.s32.totalorder %s37, 0
      %p205 = por %p203, %p204
      %p206 = scmp.ne.s32.totalorder %s194, %s195
      %p207 = scmp.eq.s32.totalorder %s38, 1
      %p208 = por %p206, %p207
      %p210 = scmp.ne.s32.totalorder %s195, %s209
      %p211 = scmp.eq.s32.totalorder %s38, 0
      %p212 = por %p210, %p211
      %s214 = sadd.s32 %s213, 1
      %p217 = scmp.eq.s32.totalorder %s32, 1
      %p218 = scmp.ne.s32.totalorder %s213, %s215
      %p219 = scmp.eq.s32.totalorder %s32, 0
      %p220 = por %p218, %p219
      %p221 = scmp.ne.s32.totalorder %s213, %s215
      %p222 = scmp.eq.s32.totalorder %s37, 1
      %p223 = por %p221, %p222
      %p224 = scmp.ne.s32.totalorder %s215, %s216
      %p225 = scmp.eq.s32.totalorder %s37, 0
      %p226 = por %p224, %p225
      %p227 = scmp.ne.s32.totalorder %s215, %s216
      %p228 = scmp.eq.s32.totalorder %s38, 1
      %p229 = por %p227, %p228
      %p231 = scmp.ne.s32.totalorder %s216, %s230
      %p232 = scmp.eq.s32.totalorder %s38, 0
      %p233 = por %p231, %p232
      %s235 = sadd.s32 %s234, 1
      %p238 = scmp.eq.s32.totalorder %s32, 1
      %p239 = scmp.ne.s32.totalorder %s234, %s236
      %p240 = scmp.eq.s32.totalorder %s32, 0
      %p241 = por %p239, %p240
      %p242 = scmp.ne.s32.totalorder %s234, %s236
      %p243 = scmp.eq.s32.totalorder %s37, 1
      %p244 = por %p242, %p243
      %p245 = scmp.ne.s32.totalorder %s236, %s237
      %p246 = scmp.eq.s32.totalorder %s37, 0
      %p247 = por %p245, %p246
      %p248 = scmp.ne.s32.totalorder %s236, %s237
      %p249 = scmp.eq.s32.totalorder %s38, 1
      %p250 = por %p248, %p249
      %p252 = scmp.ne.s32.totalorder %s237, %s251
      %p253 = scmp.eq.s32.totalorder %s38, 0
      %p254 = por %p252, %p253
      %s256 = sadd.s32 %s255, 1
      %p259 = scmp.eq.s32.totalorder %s32, 1
      %p260 = scmp.ne.s32.totalorder %s255, %s257
      %p261 = scmp.eq.s32.totalorder %s32, 0
      %p262 = por %p260, %p261
      %p263 = scmp.ne.s32.totalorder %s255, %s257
      %p264 = scmp.eq.s32.totalorder %s37, 1
      %p265 = por %p263, %p264
      %p266 = scmp.ne.s32.totalorder %s257, %s258
      %p267 = scmp.eq.s32.totalorder %s37, 0
      %p268 = por %p266, %p267
      %p269 = scmp.ne.s32.totalorder %s257, %s258
      %p270 = scmp.eq.s32.totalorder %s38, 1
      %p271 = por %p269, %p270
      %p273 = scmp.ne.s32.totalorder %s258, %s272
      %p274 = scmp.eq.s32.totalorder %s38, 0
      %p275 = por %p273, %p274
      %s277 = sadd.s32 %s276, 1
      %p280 = scmp.eq.s32.totalorder %s32, 1
      %p281 = scmp.ne.s32.totalorder %s276, %s278
      %p282 = scmp.eq.s32.totalorder %s32, 0
      %p283 = por %p281, %p282
      %p284 = scmp.ne.s32.totalorder %s276, %s278
      %p285 = scmp.eq.s32.totalorder %s37, 1
      %p286 = por %p284, %p285
      %p287 = scmp.ne.s32.totalorder %s278, %s279
      %p288 = scmp.eq.s32.totalorder %s37, 0
      %p289 = por %p287, %p288
      %p290 = scmp.ne.s32.totalorder %s278, %s279
      %p291 = scmp.eq.s32.totalorder %s38, 1
      %p292 = por %p290, %p291
      %p294 = scmp.ne.s32.totalorder %s279, %s293
      %p295 = scmp.eq.s32.totalorder %s38, 0
      %p296 = por %p294, %p295
      %s298 = sadd.s32 %s297, 1
      %p301 = scmp.eq.s32.totalorder %s32, 1
      %p302 = scmp.ne.s32.totalorder %s297, %s299
      %p303 = scmp.eq.s32.totalorder %s32, 0
      %p304 = por %p302, %p303
      %p305 = scmp.ne.s32.totalorder %s297, %s299
      %p306 = scmp.eq.s32.totalorder %s37, 1
      %p307 = por %p305, %p306
      %p308 = scmp.ne.s32.totalorder %s299, %s300
      %p309 = scmp.eq.s32.totalorder %s37, 0
      %p310 = por %p308, %p309
      %p311 = scmp.ne.s32.totalorder %s299, %s300
      %p312 = scmp.eq.s32.totalorder %s38, 1
      %p313 = por %p311, %p312
      %p315 = scmp.ne.s32.totalorder %s300, %s314
      %p316 = scmp.eq.s32.totalorder %s38, 0
      %p317 = por %p315, %p316
      %s319 = sadd.s32 %s318, 1
      %p322 = scmp.eq.s32.totalorder %s32, 1
      %p323 = scmp.ne.s32.totalorder %s318, %s320
      %p324 = scmp.eq.s32.totalorder %s32, 0
      %p325 = por %p323, %p324
      %p326 = scmp.ne.s32.totalorder %s318, %s320
      %p327 = scmp.eq.s32.totalorder %s37, 1
      %p328 = por %p326, %p327
      %p329 = scmp.ne.s32.totalorder %s320, %s321
      %p330 = scmp.eq.s32.totalorder %s37, 0
      %p331 = por %p329, %p330
      %p332 = scmp.ne.s32.totalorder %s320, %s321
      %p333 = scmp.eq.s32.totalorder %s38, 1
      %p334 = por %p332, %p333
      %p336 = scmp.ne.s32.totalorder %s321, %s335
      %p337 = scmp.eq.s32.totalorder %s38, 0
      %p338 = por %p336, %p337
      %s340 = sadd.s32 %s339, 1
      %p343 = scmp.eq.s32.totalorder %s32, 1
      %p344 = scmp.ne.s32.totalorder %s339, %s341
      %p345 = scmp.eq.s32.totalorder %s32, 0
      %p346 = por %p344, %p345
      %p347 = scmp.ne.s32.totalorder %s339, %s341
      %p348 = scmp.eq.s32.totalorder %s37, 1
      %p349 = por %p347, %p348
      %p350 = scmp.ne.s32.totalorder %s341, %s342
      %p351 = scmp.eq.s32.totalorder %s37, 0
      %p352 = por %p350, %p351
      %p353 = scmp.ne.s32.totalorder %s341, %s342
      %p354 = scmp.eq.s32.totalorder %s38, 1
      %p355 = por %p353, %p354
      %p357 = scmp.ne.s32.totalorder %s342, %s356
      %p358 = scmp.eq.s32.totalorder %s38, 0
      %p359 = por %p357, %p358
      %s360 = ssub.s32 %s32, %s39
      %p361 = scmp.eq.s32.totalorder %s360, 0
      %s363 = sadd.s32 %s362, 1
      %s364 = scalar_select %p361, %s362, %s363
      %p367 = pneg %p361
      %p368 = scmp.eq.s32.totalorder %s32, 1
      %p369 = por %p367, %p368
      %p370 = scmp.ne.s32.totalorder %s362, %s365
      %p371 = scmp.eq.s32.totalorder %s32, 0
      %p372 = por %p370, %p371
      %p373 = scmp.ne.s32.totalorder %s362, %s365
      %p374 = scmp.eq.s32.totalorder %s37, 1
      %p375 = por %p373, %p374
      %p376 = scmp.ne.s32.totalorder %s365, %s366
      %p377 = scmp.eq.s32.totalorder %s37, 0
      %p378 = por %p376, %p377
      %p379 = scmp.ne.s32.totalorder %s365, %s366
      %p380 = scmp.eq.s32.totalorder %s38, 1
      %p381 = por %p379, %p380
      %p383 = scmp.ne.s32.totalorder %s366, %s382
      %p384 = scmp.eq.s32.totalorder %s38, 0
      %p385 = por %p383, %p384
      %p386 = scmp.le.s32.totalorder 1, %s32
      %p387 = scmp.lt.s32.totalorder %s32, 3
      %p388 = pnand %p386, %p387
      %p389 = pneg %p388
      // Predicated region
      $region9: #{corrnet_forward.1} parent=5 // pred_check
        _
      $region10: #{corrnet_forward.1} parent=5 // pred_check_branch
        %391 = sbr.rel (%p388) target = $region12
      $region11: #{corrnet_forward.1} parent=5 // pred_region
        %s392 = ssub.s32 %s32, 1
        // Predicated region
        $region13: #{corrnet_forward.1} parent=11 // pred_check
          %p393 = pneg %p79
        $region14: #{corrnet_forward.1} parent=11 // pred_check_branch
          %395 = sbr.rel (%p393) target = $region16
        $region15: #{corrnet_forward.1} parent=11 // pred_region
          %s397 = ssub.s32 24576, 24576
          %398 = vsyncadd [#allocation3], %s397
          %s399 = sshll.u32 [#allocation2], 4
          %s400 = int_to_ptr.vmem [resolvable:$true] %s399
          %405 = dma.hbm_to_vmem [thread:$0]  %s1, 24576, %s400, [#allocation3], 256, 256, 16
        $region16: #{corrnet_forward.1} parent=11 // pred_fallthru
          _
        // Predicated region
        $region17: #{corrnet_forward.1} parent=11 // pred_check
          %p406 = pneg %p100
        $region18: #{corrnet_forward.1} parent=11 // pred_check_branch
          %408 = sbr.rel (%p406) target = $region20
        $region19: #{corrnet_forward.1} parent=11 // pred_region
          %s410 = ssub.s32 64, 64
          %411 = vsyncadd [#allocation6], %s410
          %s413 = sshll.u32 [#allocation5], 4
          %s414 = int_to_ptr.vmem [resolvable:$true] %s413
          %416 = dma.hbm_to_vmem [thread:$0]  %s2, 64, %s414, [#allocation6]
        $region20: #{corrnet_forward.1} parent=11 // pred_fallthru
          _
        // Predicated region
        $region21: #{corrnet_forward.1} parent=11 // pred_check
          %p417 = pneg %p121
        $region22: #{corrnet_forward.1} parent=11 // pred_check_branch
          %419 = sbr.rel (%p417) target = $region24
        $region23: #{corrnet_forward.1} parent=11 // pred_region
          %s421 = ssub.s32 4096, 4096
          %422 = vsyncadd [#allocation6], %s421
          %s423 = sshll.u32 [#allocation7], 4
          %s424 = int_to_ptr.vmem [resolvable:$true] %s423
          %429 = dma.hbm_to_vmem [thread:$0]  %s3, 4096, %s424, [#allocation6], 64, 64, 4
        $region24: #{corrnet_forward.1} parent=11 // pred_fallthru
          _
        // Predicated region
        $region25: #{corrnet_forward.1} parent=11 // pred_check
          %p430 = pneg %p142
        $region26: #{corrnet_forward.1} parent=11 // pred_check_branch
          %432 = sbr.rel (%p430) target = $region28
        $region27: #{corrnet_forward.1} parent=11 // pred_region
          %s434 = ssub.s32 16, 16
          %435 = vsyncadd [#allocation9], %s434
          %s437 = sshll.u32 [#allocation8], 4
          %s438 = int_to_ptr.vmem [resolvable:$true] %s437
          %440 = dma.hbm_to_vmem [thread:$0]  %s4, 16, %s438, [#allocation9]
        $region28: #{corrnet_forward.1} parent=11 // pred_fallthru
          _
        // Predicated region
        $region29: #{corrnet_forward.1} parent=11 // pred_check
          %p441 = pneg %p163
        $region30: #{corrnet_forward.1} parent=11 // pred_check_branch
          %443 = sbr.rel (%p441) target = $region32
        $region31: #{corrnet_forward.1} parent=11 // pred_region
          %s445 = ssub.s32 3072, 3072
          %446 = vsyncadd [#allocation9], %s445
          %s447 = sshll.u32 [#allocation10], 4
          %s448 = int_to_ptr.vmem [resolvable:$true] %s447
          %453 = dma.hbm_to_vmem [thread:$0]  %s5, 3072, %s448, [#allocation9], 64, 64, 4
        $region32: #{corrnet_forward.1} parent=11 // pred_fallthru
          _
        // Predicated region
        $region33: #{corrnet_forward.1} parent=11 // pred_check
          %p454 = pneg %p184
        $region34: #{corrnet_forward.1} parent=11 // pred_check_branch
          %456 = sbr.rel (%p454) target = $region36
        $region35: #{corrnet_forward.1} parent=11 // pred_region
          %s458 = ssub.s32 16, 16
          %459 = vsyncadd [#allocation12], %s458
          %s461 = sshll.u32 [#allocation11], 4
          %s462 = int_to_ptr.vmem [resolvable:$true] %s461
          %464 = dma.hbm_to_vmem [thread:$0]  %s6, 16, %s462, [#allocation12]
        $region36: #{corrnet_forward.1} parent=11 // pred_fallthru
          _
        // Predicated region
        $region37: #{corrnet_forward.1} parent=11 // pred_check
          %p465 = pneg %p205
        $region38: #{corrnet_forward.1} parent=11 // pred_check_branch
          %467 = sbr.rel (%p465) target = $region40
        $region39: #{corrnet_forward.1} parent=11 // pred_region
          %s469 = ssub.s32 65536, 65536
          %470 = vsyncadd [#allocation12], %s469
          %s471 = sshll.u32 [#allocation13], 4
          %s472 = int_to_ptr.vmem [resolvable:$true] %s471
          %477 = dma.hbm_to_vmem [thread:$0]  %s7, 65536, %s472, [#allocation12], 1024, 1024, 64
        $region40: #{corrnet_forward.1} parent=11 // pred_fallthru
          _
        // Predicated region
        $region41: #{corrnet_forward.1} parent=11 // pred_check
          %p478 = pneg %p226
        $region42: #{corrnet_forward.1} parent=11 // pred_check_branch
          %480 = sbr.rel (%p478) target = $region44
        $region43: #{corrnet_forward.1} parent=11 // pred_region
          %s482 = ssub.s32 256, 256
          %483 = vsyncadd [#allocation15], %s482
          %s485 = sshll.u32 [#allocation14], 4
          %s486 = int_to_ptr.vmem [resolvable:$true] %s485
          %488 = dma.hbm_to_vmem [thread:$0]  %s8, 256, %s486, [#allocation15]
        $region44: #{corrnet_forward.1} parent=11 // pred_fallthru
          _
        // Predicated region
        $region45: #{corrnet_forward.1} parent=11 // pred_check
          %p489 = pneg %p247
        $region46: #{corrnet_forward.1} parent=11 // pred_check_branch
          %491 = sbr.rel (%p489) target = $region48
        $region47: #{corrnet_forward.1} parent=11 // pred_region
          %s493 = ssub.s32 16384, 16384
          %494 = vsyncadd [#allocation15], %s493
          %s495 = sshll.u32 [#allocation16], 4
          %s496 = int_to_ptr.vmem [resolvable:$true] %s495
          %501 = dma.hbm_to_vmem [thread:$0]  %s9, 16384, %s496, [#allocation15], 64, 64, 4
        $region48: #{corrnet_forward.1} parent=11 // pred_fallthru
          _
        // Predicated region
        $region49: #{corrnet_forward.1} parent=11 // pred_check
          %p502 = pneg %p268
        $region50: #{corrnet_forward.1} parent=11 // pred_check_branch
          %504 = sbr.rel (%p502) target = $region52
        $region51: #{corrnet_forward.1} parent=11 // pred_region
          %s506 = ssub.s32 16, 16
          %507 = vsyncadd [#allocation18], %s506
          %s509 = sshll.u32 [#allocation17], 4
          %s510 = int_to_ptr.vmem [resolvable:$true] %s509
          %512 = dma.hbm_to_vmem [thread:$0]  %s10, 16, %s510, [#allocation18]
        $region52: #{corrnet_forward.1} parent=11 // pred_fallthru
          _
        // Predicated region
        $region53: #{corrnet_forward.1} parent=11 // pred_check
          %p513 = pneg %p289
        $region54: #{corrnet_forward.1} parent=11 // pred_check_branch
          %515 = sbr.rel (%p513) target = $region56
        $region55: #{corrnet_forward.1} parent=11 // pred_region
          %s517 = ssub.s32 16384, 16384
          %518 = vsyncadd [#allocation18], %s517
          %s519 = sshll.u32 [#allocation19], 4
          %s520 = int_to_ptr.vmem [resolvable:$true] %s519
          %525 = dma.hbm_to_vmem [thread:$0]  %s11, 16384, %s520, [#allocation18], 1024, 1024, 64
        $region56: #{corrnet_forward.1} parent=11 // pred_fallthru
          _
        // Predicated region
        $region57: #{corrnet_forward.1} parent=11 // pred_check
          %p526 = pneg %p310
        $region58: #{corrnet_forward.1} parent=11 // pred_check_branch
          %528 = sbr.rel (%p526) target = $region60
        $region59: #{corrnet_forward.1} parent=11 // pred_region
          %s530 = ssub.s32 256, 256
          %531 = vsyncadd [#allocation21], %s530
          %s533 = sshll.u32 [#allocation20], 4
          %s534 = int_to_ptr.vmem [resolvable:$true] %s533
          %536 = dma.hbm_to_vmem [thread:$0]  %s12, 256, %s534, [#allocation21]
        $region60: #{corrnet_forward.1} parent=11 // pred_fallthru
          _
        // Predicated region
        $region61: #{corrnet_forward.1} parent=11 // pred_check
          %p537 = pneg %p331
        $region62: #{corrnet_forward.1} parent=11 // pred_check_branch
          %539 = sbr.rel (%p537) target = $region64
        $region63: #{corrnet_forward.1} parent=11 // pred_region
          %s541 = ssub.s32 16384, 16384
          %542 = vsyncadd [#allocation21], %s541
          %s543 = sshll.u32 [#allocation22], 4
          %s544 = int_to_ptr.vmem [resolvable:$true] %s543
          %549 = dma.hbm_to_vmem [thread:$0]  %s13, 16384, %s544, [#allocation21], 64, 64, 4
        $region64: #{corrnet_forward.1} parent=11 // pred_fallthru
          _
        // Predicated region
        $region65: #{corrnet_forward.1} parent=11 // pred_check
          %p550 = pneg %p352
        $region66: #{corrnet_forward.1} parent=11 // pred_check_branch
          %552 = sbr.rel (%p550) target = $region68
        $region67: #{corrnet_forward.1} parent=11 // pred_region
          %s554 = ssub.s32 16, 16
          %555 = vsyncadd [#allocation24], %s554
          %s557 = sshll.u32 [#allocation23], 4
          %s558 = int_to_ptr.vmem [resolvable:$true] %s557
          %560 = dma.hbm_to_vmem [thread:$0]  %s14, 16, %s558, [#allocation24]
        $region68: #{corrnet_forward.1} parent=11 // pred_fallthru
          _
      $region12: #{corrnet_forward.1} parent=5 // pred_fallthru
        _
      %p561 = scmp.lt.s32.totalorder %s32, 2
      // Predicated region
      $region69: #{corrnet_forward.1} parent=5 // pred_check
        %p562 = pneg %p561
      $region70: #{corrnet_forward.1} parent=5 // pred_check_branch
        %564 = sbr.rel (%p562) target = $region72
      $region71: #{corrnet_forward.1} parent=5 // pred_region
        // Predicated region
        $region73: #{corrnet_forward.1} parent=71 // pred_check
          %p565 = pneg %p52
        $region74: #{corrnet_forward.1} parent=71 // pred_check_branch
          %567 = sbr.rel (%p565) target = $region76
        $region75: #{corrnet_forward.1} parent=71 // pred_region
          %p568 = scmp.lt.s32.totalorder %s32, 1
          %s569 = scalar_select %p568, %s32, 1
          %s570 = smul.addr %s569, 6
          %s571 = smul.addr %s570, 8
          %s572 = scalar_lea.vmem %s0, %s571
        $region76: #{corrnet_forward.1} parent=71 // pred_fallthru
          _
      $region72: #{corrnet_forward.1} parent=5 // pred_fallthru
        _
      %p573 = scmp.le.s32.totalorder 1, %s32
      %p574 = scmp.lt.s32.totalorder %s32, 3
      %p575 = pnand %p573, %p574
      %p576 = pneg %p575
      // Predicated region
      $region77: #{corrnet_forward.1} parent=5 // pred_check
        _
      $region78: #{corrnet_forward.1} parent=5 // pred_check_branch
        %578 = sbr.rel (%p575) target = $region80
      $region79: #{corrnet_forward.1} parent=5 // pred_region
        %s579 = ssub.s32 %s32, 1
        // Predicated region
        $region81: #{corrnet_forward.1} parent=79 // pred_check
          %p580 = pneg %p79
        $region82: #{corrnet_forward.1} parent=79 // pred_check_branch
          %582 = sbr.rel (%p580) target = $region84
        $region83: #{corrnet_forward.1} parent=79 // pred_region
          %583 = dma.done [#allocation3], 24576
        $region84: #{corrnet_forward.1} parent=79 // pred_fallthru
          _
        // Predicated region
        $region85: #{corrnet_forward.1} parent=79 // pred_check
          %p584 = pneg %p100
        $region86: #{corrnet_forward.1} parent=79 // pred_check_branch
          %586 = sbr.rel (%p584) target = $region88
        $region87: #{corrnet_forward.1} parent=79 // pred_region
          %587 = dma.done [#allocation6], 64
        $region88: #{corrnet_forward.1} parent=79 // pred_fallthru
          _
        // Predicated region
        $region89: #{corrnet_forward.1} parent=79 // pred_check
          %p588 = pneg %p121
        $region90: #{corrnet_forward.1} parent=79 // pred_check_branch
          %590 = sbr.rel (%p588) target = $region92
        $region91: #{corrnet_forward.1} parent=79 // pred_region
          %591 = dma.done [#allocation6], 4096
        $region92: #{corrnet_forward.1} parent=79 // pred_fallthru
          _
        // Predicated region
        $region93: #{corrnet_forward.1} parent=79 // pred_check
          %p592 = pneg %p142
        $region94: #{corrnet_forward.1} parent=79 // pred_check_branch
          %594 = sbr.rel (%p592) target = $region96
        $region95: #{corrnet_forward.1} parent=79 // pred_region
          %595 = dma.done [#allocation9], 16
        $region96: #{corrnet_forward.1} parent=79 // pred_fallthru
          _
        // Predicated region
        $region97: #{corrnet_forward.1} parent=79 // pred_check
          %p596 = pneg %p163
        $region98: #{corrnet_forward.1} parent=79 // pred_check_branch
          %598 = sbr.rel (%p596) target = $region100
        $region99: #{corrnet_forward.1} parent=79 // pred_region
          %599 = dma.done [#allocation9], 3072
        $region100: #{corrnet_forward.1} parent=79 // pred_fallthru
          _
        // Predicated region
        $region101: #{corrnet_forward.1} parent=79 // pred_check
          %p600 = pneg %p184
        $region102: #{corrnet_forward.1} parent=79 // pred_check_branch
          %602 = sbr.rel (%p600) target = $region104
        $region103: #{corrnet_forward.1} parent=79 // pred_region
          %603 = dma.done [#allocation12], 16
        $region104: #{corrnet_forward.1} parent=79 // pred_fallthru
          _
        // Predicated region
        $region105: #{corrnet_forward.1} parent=79 // pred_check
          %p604 = pneg %p205
        $region106: #{corrnet_forward.1} parent=79 // pred_check_branch
          %606 = sbr.rel (%p604) target = $region108
        $region107: #{corrnet_forward.1} parent=79 // pred_region
          %607 = dma.done [#allocation12], 65536
        $region108: #{corrnet_forward.1} parent=79 // pred_fallthru
          _
        // Predicated region
        $region109: #{corrnet_forward.1} parent=79 // pred_check
          %p608 = pneg %p226
        $region110: #{corrnet_forward.1} parent=79 // pred_check_branch
          %610 = sbr.rel (%p608) target = $region112
        $region111: #{corrnet_forward.1} parent=79 // pred_region
          %611 = dma.done [#allocation15], 256
        $region112: #{corrnet_forward.1} parent=79 // pred_fallthru
          _
        // Predicated region
        $region113: #{corrnet_forward.1} parent=79 // pred_check
          %p612 = pneg %p247
        $region114: #{corrnet_forward.1} parent=79 // pred_check_branch
          %614 = sbr.rel (%p612) target = $region116
        $region115: #{corrnet_forward.1} parent=79 // pred_region
          %615 = dma.done [#allocation15], 16384
        $region116: #{corrnet_forward.1} parent=79 // pred_fallthru
          _
        // Predicated region
        $region117: #{corrnet_forward.1} parent=79 // pred_check
          %p616 = pneg %p268
        $region118: #{corrnet_forward.1} parent=79 // pred_check_branch
          %618 = sbr.rel (%p616) target = $region120
        $region119: #{corrnet_forward.1} parent=79 // pred_region
          %619 = dma.done [#allocation18], 16
        $region120: #{corrnet_forward.1} parent=79 // pred_fallthru
          _
        // Predicated region
        $region121: #{corrnet_forward.1} parent=79 // pred_check
          %p620 = pneg %p289
        $region122: #{corrnet_forward.1} parent=79 // pred_check_branch
          %622 = sbr.rel (%p620) target = $region124
        $region123: #{corrnet_forward.1} parent=79 // pred_region
          %623 = dma.done [#allocation18], 16384
        $region124: #{corrnet_forward.1} parent=79 // pred_fallthru
          _
        // Predicated region
        $region125: #{corrnet_forward.1} parent=79 // pred_check
          %p624 = pneg %p310
        $region126: #{corrnet_forward.1} parent=79 // pred_check_branch
          %626 = sbr.rel (%p624) target = $region128
        $region127: #{corrnet_forward.1} parent=79 // pred_region
          %627 = dma.done [#allocation21], 256
        $region128: #{corrnet_forward.1} parent=79 // pred_fallthru
          _
        // Predicated region
        $region129: #{corrnet_forward.1} parent=79 // pred_check
          %p628 = pneg %p331
        $region130: #{corrnet_forward.1} parent=79 // pred_check_branch
          %630 = sbr.rel (%p628) target = $region132
        $region131: #{corrnet_forward.1} parent=79 // pred_region
          %631 = dma.done [#allocation21], 16384
        $region132: #{corrnet_forward.1} parent=79 // pred_fallthru
          _
        // Predicated region
        $region133: #{corrnet_forward.1} parent=79 // pred_check
          %p632 = pneg %p352
        $region134: #{corrnet_forward.1} parent=79 // pred_check_branch
          %634 = sbr.rel (%p632) target = $region136
        $region135: #{corrnet_forward.1} parent=79 // pred_region
          %635 = dma.done [#allocation24], 16
        $region136: #{corrnet_forward.1} parent=79 // pred_fallthru
          _
        %p636 = scmp.lt.s32.totalorder %s37, 1
        %s637 = scalar_select %p636, %s37, 1
        %s638 = smul.addr %s637, 6
        %s639 = smul.addr %s638, 8
        %s640 = scalar_lea.vmem %s0, %s639
        %p641 = pneg %p58
        %p642 = pneg %p55
        %p643 = pneg %p79
        %p644 = pneg %p76
        %p645 = pneg %p100
        %p646 = pneg %p97
        %p647 = pneg %p121
        %p648 = pneg %p118
        %p649 = pneg %p142
        %p650 = pneg %p139
        %p651 = pneg %p163
        %p652 = pneg %p160
        %p653 = pneg %p184
        %p654 = pneg %p181
        %p655 = pneg %p205
        %p656 = pneg %p202
        %p657 = pneg %p226
        %p658 = pneg %p223
        %p659 = pneg %p247
        %p660 = pneg %p244
        %p661 = pneg %p268
        %p662 = pneg %p265
        %p663 = pneg %p289
        %p664 = pneg %p286
        %p665 = pneg %p310
        %p666 = pneg %p307
        %p667 = pneg %p331
        %p668 = pneg %p328
        %p669 = pneg %p352
        %p670 = pneg %p349
        %p671 = pneg %p378
        %p672 = pneg %p375
        %s673 = sand.u32 %s365, 1
        %s674 = scalar_lea.sflag [#allocation4], %s673
        %s675 = sand.u32 %s365, 1
        %s676 = scalar_lea.vmem [#allocation25], %s675
        %p677 = scmp.lt.s32.totalorder %s37, 1
        %s678 = scalar_select %p677, %s37, 1
        %s679 = smul.addr %s678, 6
        %s680 = smul.addr %s679, 8
        %s681 = scalar_lea.vmem %s0, %s680
        %v683 = vld [vmem:[%s681] sm:$0xff]
        %v684 = vld [vmem:[%s681 + $0x8] sm:$0xff]
        %v685 = vld [vmem:[%s681 + $0x10] sm:$0xff]
        %v686 = vld [vmem:[%s681 + $0x18] sm:$0xff]
        %v687 = vld [vmem:[%s681 + $0x20] sm:$0xff]
        %v688 = vld [vmem:[%s681 + $0x28] sm:$0xff]
        %v689 = vpack.c.bf16 %v683, %v683
        %v690 = vpack.c.bf16 %v684, %v684
        %v691 = vpack.c.bf16 %v685, %v685
        %v692 = vpack.c.bf16 %v686, %v686
        %v693 = vpack.c.bf16 %v687, %v687
        %v694 = vpack.c.bf16 %v688, %v688
        %v695 = vld [vmem:[#allocation2] sm:$0xff]
        %v696 = vld [vmem:[#allocation2 + $0x8] sm:$0xff]
        %v697 = vld [vmem:[#allocation2 + $0x10] sm:$0xff]
        %v698 = vld [vmem:[#allocation2 + $0x18] sm:$0xff]
        %v699 = vld [vmem:[#allocation2 + $0x20] sm:$0xff]
        %v700 = vld [vmem:[#allocation2 + $0x28] sm:$0xff]
        %v701 = vld [vmem:[#allocation2 + $0x30] sm:$0xff]
        %v702 = vld [vmem:[#allocation2 + $0x38] sm:$0xff]
        %v703 = vld [vmem:[#allocation2 + $0x40] sm:$0xff]
        %v704 = vld [vmem:[#allocation2 + $0x48] sm:$0xff]
        %v705 = vld [vmem:[#allocation2 + $0x50] sm:$0xff]
        %v706 = vld [vmem:[#allocation2 + $0x58] sm:$0xff]
        %v707 = vld [vmem:[#allocation2 + $0x60] sm:$0xff]
        %v708 = vld [vmem:[#allocation2 + $0x68] sm:$0xff]
        %v709 = vld [vmem:[#allocation2 + $0x70] sm:$0xff]
        %v710 = vld [vmem:[#allocation2 + $0x78] sm:$0xff]
        %v711 = vld [vmem:[#allocation2 + $0x80] sm:$0xff]
        %v712 = vld [vmem:[#allocation2 + $0x88] sm:$0xff]
        %v713 = vld [vmem:[#allocation2 + $0x90] sm:$0xff]
        %v714 = vld [vmem:[#allocation2 + $0x98] sm:$0xff]
        %v715 = vld [vmem:[#allocation2 + $0xa0] sm:$0xff]
        %v716 = vld [vmem:[#allocation2 + $0xa8] sm:$0xff]
        %v717 = vld [vmem:[#allocation2 + $0xb0] sm:$0xff]
        %v718 = vld [vmem:[#allocation2 + $0xb8] sm:$0xff]
        %v719 = vld [vmem:[#allocation2 + $0xc0] sm:$0xff]
        %v720 = vld [vmem:[#allocation2 + $0xc8] sm:$0xff]
        %v721 = vld [vmem:[#allocation2 + $0xd0] sm:$0xff]
        %v722 = vld [vmem:[#allocation2 + $0xd8] sm:$0xff]
        %v723 = vld [vmem:[#allocation2 + $0xe0] sm:$0xff]
        %v724 = vld [vmem:[#allocation2 + $0xe8] sm:$0xff]
        %v725 = vld [vmem:[#allocation2 + $0xf0] sm:$0xff]
        %v726 = vld [vmem:[#allocation2 + $0xf8] sm:$0xff]
        %v727 = vld [vmem:[#allocation2 + $0x100] sm:$0xff]
        %v728 = vld [vmem:[#allocation2 + $0x108] sm:$0xff]
        %v729 = vld [vmem:[#allocation2 + $0x110] sm:$0xff]
        %v730 = vld [vmem:[#allocation2 + $0x118] sm:$0xff]
        %v731 = vld [vmem:[#allocation2 + $0x120] sm:$0xff]
        %v732 = vld [vmem:[#allocation2 + $0x128] sm:$0xff]
        %v733 = vld [vmem:[#allocation2 + $0x130] sm:$0xff]
        %v734 = vld [vmem:[#allocation2 + $0x138] sm:$0xff]
        %v735 = vld [vmem:[#allocation2 + $0x140] sm:$0xff]
        %v736 = vld [vmem:[#allocation2 + $0x148] sm:$0xff]
        %v737 = vld [vmem:[#allocation2 + $0x150] sm:$0xff]
        %v738 = vld [vmem:[#allocation2 + $0x158] sm:$0xff]
        %v739 = vld [vmem:[#allocation2 + $0x160] sm:$0xff]
        %v740 = vld [vmem:[#allocation2 + $0x168] sm:$0xff]
        %v741 = vld [vmem:[#allocation2 + $0x170] sm:$0xff]
        %v742 = vld [vmem:[#allocation2 + $0x178] sm:$0xff]
        %v743 = vld [vmem:[#allocation2 + $0x180] sm:$0xff]
        %v744 = vld [vmem:[#allocation2 + $0x188] sm:$0xff]
        %v745 = vld [vmem:[#allocation2 + $0x190] sm:$0xff]
        %v746 = vld [vmem:[#allocation2 + $0x198] sm:$0xff]
        %v747 = vld [vmem:[#allocation2 + $0x1a0] sm:$0xff]
        %v748 = vld [vmem:[#allocation2 + $0x1a8] sm:$0xff]
        %v749 = vld [vmem:[#allocation2 + $0x1b0] sm:$0xff]
        %v750 = vld [vmem:[#allocation2 + $0x1b8] sm:$0xff]
        %v751 = vld [vmem:[#allocation2 + $0x1c0] sm:$0xff]
        %v752 = vld [vmem:[#allocation2 + $0x1c8] sm:$0xff]
        %v753 = vld [vmem:[#allocation2 + $0x1d0] sm:$0xff]
        %v754 = vld [vmem:[#allocation2 + $0x1d8] sm:$0xff]
        %v755 = vld [vmem:[#allocation2 + $0x1e0] sm:$0xff]
        %v756 = vld [vmem:[#allocation2 + $0x1e8] sm:$0xff]
        %v757 = vld [vmem:[#allocation2 + $0x1f0] sm:$0xff]
        %v758 = vld [vmem:[#allocation2 + $0x1f8] sm:$0xff]
        %v759 = vld [vmem:[#allocation2 + $0x200] sm:$0xff]
        %v760 = vld [vmem:[#allocation2 + $0x208] sm:$0xff]
        %v761 = vld [vmem:[#allocation2 + $0x210] sm:$0xff]
        %v762 = vld [vmem:[#allocation2 + $0x218] sm:$0xff]
        %v763 = vld [vmem:[#allocation2 + $0x220] sm:$0xff]
        %v764 = vld [vmem:[#allocation2 + $0x228] sm:$0xff]
        %v765 = vld [vmem:[#allocation2 + $0x230] sm:$0xff]
        %v766 = vld [vmem:[#allocation2 + $0x238] sm:$0xff]
        %v767 = vld [vmem:[#allocation2 + $0x240] sm:$0xff]
        %v768 = vld [vmem:[#allocation2 + $0x248] sm:$0xff]
        %v769 = vld [vmem:[#allocation2 + $0x250] sm:$0xff]
        %v770 = vld [vmem:[#allocation2 + $0x258] sm:$0xff]
        %v771 = vld [vmem:[#allocation2 + $0x260] sm:$0xff]
        %v772 = vld [vmem:[#allocation2 + $0x268] sm:$0xff]
        %v773 = vld [vmem:[#allocation2 + $0x270] sm:$0xff]
        %v774 = vld [vmem:[#allocation2 + $0x278] sm:$0xff]
        %v775 = vld [vmem:[#allocation2 + $0x280] sm:$0xff]
        %v776 = vld [vmem:[#allocation2 + $0x288] sm:$0xff]
        %v777 = vld [vmem:[#allocation2 + $0x290] sm:$0xff]
        %v778 = vld [vmem:[#allocation2 + $0x298] sm:$0xff]
        %v779 = vld [vmem:[#allocation2 + $0x2a0] sm:$0xff]
        %v780 = vld [vmem:[#allocation2 + $0x2a8] sm:$0xff]
        %v781 = vld [vmem:[#allocation2 + $0x2b0] sm:$0xff]
        %v782 = vld [vmem:[#allocation2 + $0x2b8] sm:$0xff]
        %v783 = vld [vmem:[#allocation2 + $0x2c0] sm:$0xff]
        %v784 = vld [vmem:[#allocation2 + $0x2c8] sm:$0xff]
        %v785 = vld [vmem:[#allocation2 + $0x2d0] sm:$0xff]
        %v786 = vld [vmem:[#allocation2 + $0x2d8] sm:$0xff]
        %v787 = vld [vmem:[#allocation2 + $0x2e0] sm:$0xff]
        %v788 = vld [vmem:[#allocation2 + $0x2e8] sm:$0xff]
        %v789 = vld [vmem:[#allocation2 + $0x2f0] sm:$0xff]
        %v790 = vld [vmem:[#allocation2 + $0x2f8] sm:$0xff]
        %v791 = vld [vmem:[#allocation2 + $0x300] sm:$0xff]
        %v792 = vld [vmem:[#allocation2 + $0x308] sm:$0xff]
        %v793 = vld [vmem:[#allocation2 + $0x310] sm:$0xff]
        %v794 = vld [vmem:[#allocation2 + $0x318] sm:$0xff]
        %v795 = vld [vmem:[#allocation2 + $0x320] sm:$0xff]
        %v796 = vld [vmem:[#allocation2 + $0x328] sm:$0xff]
        %v797 = vld [vmem:[#allocation2 + $0x330] sm:$0xff]
        %v798 = vld [vmem:[#allocation2 + $0x338] sm:$0xff]
        %v799 = vld [vmem:[#allocation2 + $0x340] sm:$0xff]
        %v800 = vld [vmem:[#allocation2 + $0x348] sm:$0xff]
        %v801 = vld [vmem:[#allocation2 + $0x350] sm:$0xff]
        %v802 = vld [vmem:[#allocation2 + $0x358] sm:$0xff]
        %v803 = vld [vmem:[#allocation2 + $0x360] sm:$0xff]
        %v804 = vld [vmem:[#allocation2 + $0x368] sm:$0xff]
        %v805 = vld [vmem:[#allocation2 + $0x370] sm:$0xff]
        %v806 = vld [vmem:[#allocation2 + $0x378] sm:$0xff]
        %v807 = vld [vmem:[#allocation2 + $0x380] sm:$0xff]
        %v808 = vld [vmem:[#allocation2 + $0x388] sm:$0xff]
        %v809 = vld [vmem:[#allocation2 + $0x390] sm:$0xff]
        %v810 = vld [vmem:[#allocation2 + $0x398] sm:$0xff]
        %v811 = vld [vmem:[#allocation2 + $0x3a0] sm:$0xff]
        %v812 = vld [vmem:[#allocation2 + $0x3a8] sm:$0xff]
        %v813 = vld [vmem:[#allocation2 + $0x3b0] sm:$0xff]
        %v814 = vld [vmem:[#allocation2 + $0x3b8] sm:$0xff]
        %v815 = vld [vmem:[#allocation2 + $0x3c0] sm:$0xff]
        %v816 = vld [vmem:[#allocation2 + $0x3c8] sm:$0xff]
        %v817 = vld [vmem:[#allocation2 + $0x3d0] sm:$0xff]
        %v818 = vld [vmem:[#allocation2 + $0x3d8] sm:$0xff]
        %v819 = vld [vmem:[#allocation2 + $0x3e0] sm:$0xff]
        %v820 = vld [vmem:[#allocation2 + $0x3e8] sm:$0xff]
        %v821 = vld [vmem:[#allocation2 + $0x3f0] sm:$0xff]
        %v822 = vld [vmem:[#allocation2 + $0x3f8] sm:$0xff]
        %v823 = vld [vmem:[#allocation2 + $0x400] sm:$0xff]
        %v824 = vld [vmem:[#allocation2 + $0x408] sm:$0xff]
        %v825 = vld [vmem:[#allocation2 + $0x410] sm:$0xff]
        %v826 = vld [vmem:[#allocation2 + $0x418] sm:$0xff]
        %v827 = vld [vmem:[#allocation2 + $0x420] sm:$0xff]
        %v828 = vld [vmem:[#allocation2 + $0x428] sm:$0xff]
        %v829 = vld [vmem:[#allocation2 + $0x430] sm:$0xff]
        %v830 = vld [vmem:[#allocation2 + $0x438] sm:$0xff]
        %v831 = vld [vmem:[#allocation2 + $0x440] sm:$0xff]
        %v832 = vld [vmem:[#allocation2 + $0x448] sm:$0xff]
        %v833 = vld [vmem:[#allocation2 + $0x450] sm:$0xff]
        %v834 = vld [vmem:[#allocation2 + $0x458] sm:$0xff]
        %v835 = vld [vmem:[#allocation2 + $0x460] sm:$0xff]
        %v836 = vld [vmem:[#allocation2 + $0x468] sm:$0xff]
        %v837 = vld [vmem:[#allocation2 + $0x470] sm:$0xff]
        %v838 = vld [vmem:[#allocation2 + $0x478] sm:$0xff]
        %v839 = vld [vmem:[#allocation2 + $0x480] sm:$0xff]
        %v840 = vld [vmem:[#allocation2 + $0x488] sm:$0xff]
        %v841 = vld [vmem:[#allocation2 + $0x490] sm:$0xff]
        %v842 = vld [vmem:[#allocation2 + $0x498] sm:$0xff]
        %v843 = vld [vmem:[#allocation2 + $0x4a0] sm:$0xff]
        %v844 = vld [vmem:[#allocation2 + $0x4a8] sm:$0xff]
        %v845 = vld [vmem:[#allocation2 + $0x4b0] sm:$0xff]
        %v846 = vld [vmem:[#allocation2 + $0x4b8] sm:$0xff]
        %v847 = vld [vmem:[#allocation2 + $0x4c0] sm:$0xff]
        %v848 = vld [vmem:[#allocation2 + $0x4c8] sm:$0xff]
        %v849 = vld [vmem:[#allocation2 + $0x4d0] sm:$0xff]
        %v850 = vld [vmem:[#allocation2 + $0x4d8] sm:$0xff]
        %v851 = vld [vmem:[#allocation2 + $0x4e0] sm:$0xff]
        %v852 = vld [vmem:[#allocation2 + $0x4e8] sm:$0xff]
        %v853 = vld [vmem:[#allocation2 + $0x4f0] sm:$0xff]
        %v854 = vld [vmem:[#allocation2 + $0x4f8] sm:$0xff]
        %v855 = vld [vmem:[#allocation2 + $0x500] sm:$0xff]
        %v856 = vld [vmem:[#allocation2 + $0x508] sm:$0xff]
        %v857 = vld [vmem:[#allocation2 + $0x510] sm:$0xff]
        %v858 = vld [vmem:[#allocation2 + $0x518] sm:$0xff]
        %v859 = vld [vmem:[#allocation2 + $0x520] sm:$0xff]
        %v860 = vld [vmem:[#allocation2 + $0x528] sm:$0xff]
        %v861 = vld [vmem:[#allocation2 + $0x530] sm:$0xff]
        %v862 = vld [vmem:[#allocation2 + $0x538] sm:$0xff]
        %v863 = vld [vmem:[#allocation2 + $0x540] sm:$0xff]
        %v864 = vld [vmem:[#allocation2 + $0x548] sm:$0xff]
        %v865 = vld [vmem:[#allocation2 + $0x550] sm:$0xff]
        %v866 = vld [vmem:[#allocation2 + $0x558] sm:$0xff]
        %v867 = vld [vmem:[#allocation2 + $0x560] sm:$0xff]
        %v868 = vld [vmem:[#allocation2 + $0x568] sm:$0xff]
        %v869 = vld [vmem:[#allocation2 + $0x570] sm:$0xff]
        %v870 = vld [vmem:[#allocation2 + $0x578] sm:$0xff]
        %v871 = vld [vmem:[#allocation2 + $0x580] sm:$0xff]
        %v872 = vld [vmem:[#allocation2 + $0x588] sm:$0xff]
        %v873 = vld [vmem:[#allocation2 + $0x590] sm:$0xff]
        %v874 = vld [vmem:[#allocation2 + $0x598] sm:$0xff]
        %v875 = vld [vmem:[#allocation2 + $0x5a0] sm:$0xff]
        %v876 = vld [vmem:[#allocation2 + $0x5a8] sm:$0xff]
        %v877 = vld [vmem:[#allocation2 + $0x5b0] sm:$0xff]
        %v878 = vld [vmem:[#allocation2 + $0x5b8] sm:$0xff]
        %v879 = vld [vmem:[#allocation2 + $0x5c0] sm:$0xff]
        %v880 = vld [vmem:[#allocation2 + $0x5c8] sm:$0xff]
        %v881 = vld [vmem:[#allocation2 + $0x5d0] sm:$0xff]
        %v882 = vld [vmem:[#allocation2 + $0x5d8] sm:$0xff]
        %v883 = vld [vmem:[#allocation2 + $0x5e0] sm:$0xff]
        %v884 = vld [vmem:[#allocation2 + $0x5e8] sm:$0xff]
        %v885 = vld [vmem:[#allocation2 + $0x5f0] sm:$0xff]
        %v886 = vld [vmem:[#allocation2 + $0x5f8] sm:$0xff]
        %v887 = vld [vmem:[#allocation5] sm:$0xf]
        %v889 = vlaneseq
        %v890 = vshrl.u32 %v889, 7
        %v891 = vsub.s32 0, %v890
        %v892 = vrot.slane %v887, %v891
        %v893 = vlaneseq
        %v894 = vshrl.u32 %v893, 7
        %v895 = vsub.s32 1, %v894
        %v896 = vrot.slane %v887, %v895
        %v897 = vlaneseq
        %v898 = vshrl.u32 %v897, 7
        %v899 = vsub.s32 2, %v898
        %v900 = vrot.slane %v887, %v899
        %v901 = vlaneseq
        %v902 = vshrl.u32 %v901, 7
        %v903 = vsub.s32 3, %v902
        %v904 = vrot.slane %v887, %v903
        %v1101 = vunpack.c.l.b16 %v695
        %v1102 = vunpack.c.h.b16 %v695
        %v1103 = vunpack.c.l.b16 %v696
        %v1104 = vunpack.c.h.b16 %v696
        %v1105 = vunpack.c.l.b16 %v697
        %v1106 = vunpack.c.h.b16 %v697
        %v1107 = vunpack.c.l.b16 %v698
        %v1108 = vunpack.c.h.b16 %v698
        %v1109 = vunpack.c.l.b16 %v699
        %v1110 = vunpack.c.h.b16 %v699
        %v1111 = vunpack.c.l.b16 %v700
        %v1112 = vunpack.c.h.b16 %v700
        %v1113 = vunpack.c.l.b16 %v701
        %v1114 = vunpack.c.h.b16 %v701
        %v1115 = vunpack.c.l.b16 %v702
        %v1116 = vunpack.c.h.b16 %v702
        %v1117 = vunpack.c.l.b16 %v703
        %v1118 = vunpack.c.h.b16 %v703
        %v1119 = vunpack.c.l.b16 %v704
        %v1120 = vunpack.c.h.b16 %v704
        %v1121 = vunpack.c.l.b16 %v705
        %v1122 = vunpack.c.h.b16 %v705
        %v1123 = vunpack.c.l.b16 %v706
        %v1124 = vunpack.c.h.b16 %v706
        %v1125 = vunpack.c.l.b16 %v707
        %v1126 = vunpack.c.h.b16 %v707
        %v1127 = vunpack.c.l.b16 %v708
        %v1128 = vunpack.c.h.b16 %v708
        %v1129 = vunpack.c.l.b16 %v709
        %v1130 = vunpack.c.h.b16 %v709
        %v1131 = vunpack.c.l.b16 %v710
        %v1132 = vunpack.c.h.b16 %v710
        %v1133 = vunpack.c.l.b16 %v711
        %v1134 = vunpack.c.h.b16 %v711
        %v1135 = vunpack.c.l.b16 %v712
        %v1136 = vunpack.c.h.b16 %v712
        %v1137 = vunpack.c.l.b16 %v713
        %v1138 = vunpack.c.h.b16 %v713
        %v1139 = vunpack.c.l.b16 %v714
        %v1140 = vunpack.c.h.b16 %v714
        %v1141 = vunpack.c.l.b16 %v715
        %v1142 = vunpack.c.h.b16 %v715
        %v1143 = vunpack.c.l.b16 %v716
        %v1144 = vunpack.c.h.b16 %v716
        %v1145 = vunpack.c.l.b16 %v717
        %v1146 = vunpack.c.h.b16 %v717
        %v1147 = vunpack.c.l.b16 %v718
        %v1148 = vunpack.c.h.b16 %v718
        %v1149 = vunpack.c.l.b16 %v719
        %v1150 = vunpack.c.h.b16 %v719
        %v1151 = vunpack.c.l.b16 %v720
        %v1152 = vunpack.c.h.b16 %v720
        %v1153 = vunpack.c.l.b16 %v721
        %v1154 = vunpack.c.h.b16 %v721
        %v1155 = vunpack.c.l.b16 %v722
        %v1156 = vunpack.c.h.b16 %v722
        %v1157 = vunpack.c.l.b16 %v723
        %v1158 = vunpack.c.h.b16 %v723
        %v1159 = vunpack.c.l.b16 %v724
        %v1160 = vunpack.c.h.b16 %v724
        %v1161 = vunpack.c.l.b16 %v725
        %v1162 = vunpack.c.h.b16 %v725
        %v1163 = vunpack.c.l.b16 %v726
        %v1164 = vunpack.c.h.b16 %v726
        %v1165 = vunpack.c.l.b16 %v727
        %v1166 = vunpack.c.h.b16 %v727
        %v1167 = vunpack.c.l.b16 %v728
        %v1168 = vunpack.c.h.b16 %v728
        %v1169 = vunpack.c.l.b16 %v729
        %v1170 = vunpack.c.h.b16 %v729
        %v1171 = vunpack.c.l.b16 %v730
        %v1172 = vunpack.c.h.b16 %v730
        %v1173 = vunpack.c.l.b16 %v731
        %v1174 = vunpack.c.h.b16 %v731
        %v1175 = vunpack.c.l.b16 %v732
        %v1176 = vunpack.c.h.b16 %v732
        %v1177 = vunpack.c.l.b16 %v733
        %v1178 = vunpack.c.h.b16 %v733
        %v1179 = vunpack.c.l.b16 %v734
        %v1180 = vunpack.c.h.b16 %v734
        %v1181 = vunpack.c.l.b16 %v735
        %v1182 = vunpack.c.h.b16 %v735
        %v1183 = vunpack.c.l.b16 %v736
        %v1184 = vunpack.c.h.b16 %v736
        %v1185 = vunpack.c.l.b16 %v737
        %v1186 = vunpack.c.h.b16 %v737
        %v1187 = vunpack.c.l.b16 %v738
        %v1188 = vunpack.c.h.b16 %v738
        %v1189 = vunpack.c.l.b16 %v739
        %v1190 = vunpack.c.h.b16 %v739
        %v1191 = vunpack.c.l.b16 %v740
        %v1192 = vunpack.c.h.b16 %v740
        %v1193 = vunpack.c.l.b16 %v741
        %v1194 = vunpack.c.h.b16 %v741
        %v1195 = vunpack.c.l.b16 %v742
        %v1196 = vunpack.c.h.b16 %v742
        %v1197 = vunpack.c.l.b16 %v743
        %v1198 = vunpack.c.h.b16 %v743
        %v1199 = vunpack.c.l.b16 %v744
        %v1200 = vunpack.c.h.b16 %v744
        %v1201 = vunpack.c.l.b16 %v745
        %v1202 = vunpack.c.h.b16 %v745
        %v1203 = vunpack.c.l.b16 %v746
        %v1204 = vunpack.c.h.b16 %v746
        %v1205 = vunpack.c.l.b16 %v747
        %v1206 = vunpack.c.h.b16 %v747
        %v1207 = vunpack.c.l.b16 %v748
        %v1208 = vunpack.c.h.b16 %v748
        %v1209 = vunpack.c.l.b16 %v749
        %v1210 = vunpack.c.h.b16 %v749
        %v1211 = vunpack.c.l.b16 %v750
        %v1212 = vunpack.c.h.b16 %v750
        %v1213 = vunpack.c.l.b16 %v751
        %v1214 = vunpack.c.h.b16 %v751
        %v1215 = vunpack.c.l.b16 %v752
        %v1216 = vunpack.c.h.b16 %v752
        %v1217 = vunpack.c.l.b16 %v753
        %v1218 = vunpack.c.h.b16 %v753
        %v1219 = vunpack.c.l.b16 %v754
        %v1220 = vunpack.c.h.b16 %v754
        %v1221 = vunpack.c.l.b16 %v755
        %v1222 = vunpack.c.h.b16 %v755
        %v1223 = vunpack.c.l.b16 %v756
        %v1224 = vunpack.c.h.b16 %v756
        %v1225 = vunpack.c.l.b16 %v757
        %v1226 = vunpack.c.h.b16 %v757
        %v1227 = vunpack.c.l.b16 %v758
        %v1228 = vunpack.c.h.b16 %v758
        %v1229 = vunpack.c.l.b16 %v759
        %v1230 = vunpack.c.h.b16 %v759
        %v1231 = vunpack.c.l.b16 %v760
        %v1232 = vunpack.c.h.b16 %v760
        %v1233 = vunpack.c.l.b16 %v761
        %v1234 = vunpack.c.h.b16 %v761
        %v1235 = vunpack.c.l.b16 %v762
        %v1236 = vunpack.c.h.b16 %v762
        %v1237 = vunpack.c.l.b16 %v763
        %v1238 = vunpack.c.h.b16 %v763
        %v1239 = vunpack.c.l.b16 %v764
        %v1240 = vunpack.c.h.b16 %v764
        %v1241 = vunpack.c.l.b16 %v765
        %v1242 = vunpack.c.h.b16 %v765
        %v1243 = vunpack.c.l.b16 %v766
        %v1244 = vunpack.c.h.b16 %v766
        %v1245 = vunpack.c.l.b16 %v767
        %v1246 = vunpack.c.h.b16 %v767
        %v1247 = vunpack.c.l.b16 %v768
        %v1248 = vunpack.c.h.b16 %v768
        %v1249 = vunpack.c.l.b16 %v769
        %v1250 = vunpack.c.h.b16 %v769
        %v1251 = vunpack.c.l.b16 %v770
        %v1252 = vunpack.c.h.b16 %v770
        %v1253 = vunpack.c.l.b16 %v771
        %v1254 = vunpack.c.h.b16 %v771
        %v1255 = vunpack.c.l.b16 %v772
        %v1256 = vunpack.c.h.b16 %v772
        %v1257 = vunpack.c.l.b16 %v773
        %v1258 = vunpack.c.h.b16 %v773
        %v1259 = vunpack.c.l.b16 %v774
        %v1260 = vunpack.c.h.b16 %v774
        %v1261 = vunpack.c.l.b16 %v775
        %v1262 = vunpack.c.h.b16 %v775
        %v1263 = vunpack.c.l.b16 %v776
        %v1264 = vunpack.c.h.b16 %v776
        %v1265 = vunpack.c.l.b16 %v777
        %v1266 = vunpack.c.h.b16 %v777
        %v1267 = vunpack.c.l.b16 %v778
        %v1268 = vunpack.c.h.b16 %v778
        %v1269 = vunpack.c.l.b16 %v779
        %v1270 = vunpack.c.h.b16 %v779
        %v1271 = vunpack.c.l.b16 %v780
        %v1272 = vunpack.c.h.b16 %v780
        %v1273 = vunpack.c.l.b16 %v781
        %v1274 = vunpack.c.h.b16 %v781
        %v1275 = vunpack.c.l.b16 %v782
        %v1276 = vunpack.c.h.b16 %v782
        %v1277 = vunpack.c.l.b16 %v783
        %v1278 = vunpack.c.h.b16 %v783
        %v1279 = vunpack.c.l.b16 %v784
        %v1280 = vunpack.c.h.b16 %v784
        %v1281 = vunpack.c.l.b16 %v785
        %v1282 = vunpack.c.h.b16 %v785
        %v1283 = vunpack.c.l.b16 %v786
        %v1284 = vunpack.c.h.b16 %v786
        %v1285 = vunpack.c.l.b16 %v787
        %v1286 = vunpack.c.h.b16 %v787
        %v1287 = vunpack.c.l.b16 %v788
        %v1288 = vunpack.c.h.b16 %v788
        %v1289 = vunpack.c.l.b16 %v789
        %v1290 = vunpack.c.h.b16 %v789
        %v1291 = vunpack.c.l.b16 %v790
        %v1292 = vunpack.c.h.b16 %v790
        %v1293 = vunpack.c.l.b16 %v791
        %v1294 = vunpack.c.h.b16 %v791
        %v1295 = vunpack.c.l.b16 %v792
        %v1296 = vunpack.c.h.b16 %v792
        %v1297 = vunpack.c.l.b16 %v793
        %v1298 = vunpack.c.h.b16 %v793
        %v1299 = vunpack.c.l.b16 %v794
        %v1300 = vunpack.c.h.b16 %v794
        %v1301 = vunpack.c.l.b16 %v795
        %v1302 = vunpack.c.h.b16 %v795
        %v1303 = vunpack.c.l.b16 %v796
        %v1304 = vunpack.c.h.b16 %v796
        %v1305 = vunpack.c.l.b16 %v797
        %v1306 = vunpack.c.h.b16 %v797
        %v1307 = vunpack.c.l.b16 %v798
        %v1308 = vunpack.c.h.b16 %v798
        %v1309 = vunpack.c.l.b16 %v799
        %v1310 = vunpack.c.h.b16 %v799
        %v1311 = vunpack.c.l.b16 %v800
        %v1312 = vunpack.c.h.b16 %v800
        %v1313 = vunpack.c.l.b16 %v801
        %v1314 = vunpack.c.h.b16 %v801
        %v1315 = vunpack.c.l.b16 %v802
        %v1316 = vunpack.c.h.b16 %v802
        %v1317 = vunpack.c.l.b16 %v803
        %v1318 = vunpack.c.h.b16 %v803
        %v1319 = vunpack.c.l.b16 %v804
        %v1320 = vunpack.c.h.b16 %v804
        %v1321 = vunpack.c.l.b16 %v805
        %v1322 = vunpack.c.h.b16 %v805
        %v1323 = vunpack.c.l.b16 %v806
        %v1324 = vunpack.c.h.b16 %v806
        %v1325 = vunpack.c.l.b16 %v807
        %v1326 = vunpack.c.h.b16 %v807
        %v1327 = vunpack.c.l.b16 %v808
        %v1328 = vunpack.c.h.b16 %v808
        %v1329 = vunpack.c.l.b16 %v809
        %v1330 = vunpack.c.h.b16 %v809
        %v1331 = vunpack.c.l.b16 %v810
        %v1332 = vunpack.c.h.b16 %v810
        %v1333 = vunpack.c.l.b16 %v811
        %v1334 = vunpack.c.h.b16 %v811
        %v1335 = vunpack.c.l.b16 %v812
        %v1336 = vunpack.c.h.b16 %v812
        %v1337 = vunpack.c.l.b16 %v813
        %v1338 = vunpack.c.h.b16 %v813
        %v1339 = vunpack.c.l.b16 %v814
        %v1340 = vunpack.c.h.b16 %v814
        %v1341 = vunpack.c.l.b16 %v815
        %v1342 = vunpack.c.h.b16 %v815
        %v1343 = vunpack.c.l.b16 %v816
        %v1344 = vunpack.c.h.b16 %v816
        %v1345 = vunpack.c.l.b16 %v817
        %v1346 = vunpack.c.h.b16 %v817
        %v1347 = vunpack.c.l.b16 %v818
        %v1348 = vunpack.c.h.b16 %v818
        %v1349 = vunpack.c.l.b16 %v819
        %v1350 = vunpack.c.h.b16 %v819
        %v1351 = vunpack.c.l.b16 %v820
        %v1352 = vunpack.c.h.b16 %v820
        %v1353 = vunpack.c.l.b16 %v821
        %v1354 = vunpack.c.h.b16 %v821
        %v1355 = vunpack.c.l.b16 %v822
        %v1356 = vunpack.c.h.b16 %v822
        %v1357 = vunpack.c.l.b16 %v823
        %v1358 = vunpack.c.h.b16 %v823
        %v1359 = vunpack.c.l.b16 %v824
        %v1360 = vunpack.c.h.b16 %v824
        %v1361 = vunpack.c.l.b16 %v825
        %v1362 = vunpack.c.h.b16 %v825
        %v1363 = vunpack.c.l.b16 %v826
        %v1364 = vunpack.c.h.b16 %v826
        %v1365 = vunpack.c.l.b16 %v827
        %v1366 = vunpack.c.h.b16 %v827
        %v1367 = vunpack.c.l.b16 %v828
        %v1368 = vunpack.c.h.b16 %v828
        %v1369 = vunpack.c.l.b16 %v829
        %v1370 = vunpack.c.h.b16 %v829
        %v1371 = vunpack.c.l.b16 %v830
        %v1372 = vunpack.c.h.b16 %v830
        %v1373 = vunpack.c.l.b16 %v831
        %v1374 = vunpack.c.h.b16 %v831
        %v1375 = vunpack.c.l.b16 %v832
        %v1376 = vunpack.c.h.b16 %v832
        %v1377 = vunpack.c.l.b16 %v833
        %v1378 = vunpack.c.h.b16 %v833
        %v1379 = vunpack.c.l.b16 %v834
        %v1380 = vunpack.c.h.b16 %v834
        %v1381 = vunpack.c.l.b16 %v835
        %v1382 = vunpack.c.h.b16 %v835
        %v1383 = vunpack.c.l.b16 %v836
        %v1384 = vunpack.c.h.b16 %v836
        %v1385 = vunpack.c.l.b16 %v837
        %v1386 = vunpack.c.h.b16 %v837
        %v1387 = vunpack.c.l.b16 %v838
        %v1388 = vunpack.c.h.b16 %v838
        %v1389 = vunpack.c.l.b16 %v839
        %v1390 = vunpack.c.h.b16 %v839
        %v1391 = vunpack.c.l.b16 %v840
        %v1392 = vunpack.c.h.b16 %v840
        %v1393 = vunpack.c.l.b16 %v841
        %v1394 = vunpack.c.h.b16 %v841
        %v1395 = vunpack.c.l.b16 %v842
        %v1396 = vunpack.c.h.b16 %v842
        %v1397 = vunpack.c.l.b16 %v843
        %v1398 = vunpack.c.h.b16 %v843
        %v1399 = vunpack.c.l.b16 %v844
        %v1400 = vunpack.c.h.b16 %v844
        %v1401 = vunpack.c.l.b16 %v845
        %v1402 = vunpack.c.h.b16 %v845
        %v1403 = vunpack.c.l.b16 %v846
        %v1404 = vunpack.c.h.b16 %v846
        %v1405 = vunpack.c.l.b16 %v847
        %v1406 = vunpack.c.h.b16 %v847
        %v1407 = vunpack.c.l.b16 %v848
        %v1408 = vunpack.c.h.b16 %v848
        %v1409 = vunpack.c.l.b16 %v849
        %v1410 = vunpack.c.h.b16 %v849
        %v1411 = vunpack.c.l.b16 %v850
        %v1412 = vunpack.c.h.b16 %v850
        %v1413 = vunpack.c.l.b16 %v851
        %v1414 = vunpack.c.h.b16 %v851
        %v1415 = vunpack.c.l.b16 %v852
        %v1416 = vunpack.c.h.b16 %v852
        %v1417 = vunpack.c.l.b16 %v853
        %v1418 = vunpack.c.h.b16 %v853
        %v1419 = vunpack.c.l.b16 %v854
        %v1420 = vunpack.c.h.b16 %v854
        %v1421 = vunpack.c.l.b16 %v855
        %v1422 = vunpack.c.h.b16 %v855
        %v1423 = vunpack.c.l.b16 %v856
        %v1424 = vunpack.c.h.b16 %v856
        %v1425 = vunpack.c.l.b16 %v857
        %v1426 = vunpack.c.h.b16 %v857
        %v1427 = vunpack.c.l.b16 %v858
        %v1428 = vunpack.c.h.b16 %v858
        %v1429 = vunpack.c.l.b16 %v859
        %v1430 = vunpack.c.h.b16 %v859
        %v1431 = vunpack.c.l.b16 %v860
        %v1432 = vunpack.c.h.b16 %v860
        %v1433 = vunpack.c.l.b16 %v861
        %v1434 = vunpack.c.h.b16 %v861
        %v1435 = vunpack.c.l.b16 %v862
        %v1436 = vunpack.c.h.b16 %v862
        %v1437 = vunpack.c.l.b16 %v863
        %v1438 = vunpack.c.h.b16 %v863
        %v1439 = vunpack.c.l.b16 %v864
        %v1440 = vunpack.c.h.b16 %v864
        %v1441 = vunpack.c.l.b16 %v865
        %v1442 = vunpack.c.h.b16 %v865
        %v1443 = vunpack.c.l.b16 %v866
        %v1444 = vunpack.c.h.b16 %v866
        %v1445 = vunpack.c.l.b16 %v867
        %v1446 = vunpack.c.h.b16 %v867
        %v1447 = vunpack.c.l.b16 %v868
        %v1448 = vunpack.c.h.b16 %v868
        %v1449 = vunpack.c.l.b16 %v869
        %v1450 = vunpack.c.h.b16 %v869
        %v1451 = vunpack.c.l.b16 %v870
        %v1452 = vunpack.c.h.b16 %v870
        %v1453 = vunpack.c.l.b16 %v871
        %v1454 = vunpack.c.h.b16 %v871
        %v1455 = vunpack.c.l.b16 %v872
        %v1456 = vunpack.c.h.b16 %v872
        %v1457 = vunpack.c.l.b16 %v873
        %v1458 = vunpack.c.h.b16 %v873
        %v1459 = vunpack.c.l.b16 %v874
        %v1460 = vunpack.c.h.b16 %v874
        %v1461 = vunpack.c.l.b16 %v875
        %v1462 = vunpack.c.h.b16 %v875
        %v1463 = vunpack.c.l.b16 %v876
        %v1464 = vunpack.c.h.b16 %v876
        %v1465 = vunpack.c.l.b16 %v877
        %v1466 = vunpack.c.h.b16 %v877
        %v1467 = vunpack.c.l.b16 %v878
        %v1468 = vunpack.c.h.b16 %v878
        %v1469 = vunpack.c.l.b16 %v879
        %v1470 = vunpack.c.h.b16 %v879
        %v1471 = vunpack.c.l.b16 %v880
        %v1472 = vunpack.c.h.b16 %v880
        %v1473 = vunpack.c.l.b16 %v881
        %v1474 = vunpack.c.h.b16 %v881
        %v1475 = vunpack.c.l.b16 %v882
        %v1476 = vunpack.c.h.b16 %v882
        %v1477 = vunpack.c.l.b16 %v883
        %v1478 = vunpack.c.h.b16 %v883
        %v1479 = vunpack.c.l.b16 %v884
        %v1480 = vunpack.c.h.b16 %v884
        %v1481 = vunpack.c.l.b16 %v885
        %v1482 = vunpack.c.h.b16 %v885
        %v1483 = vunpack.c.l.b16 %v886
        %v1484 = vunpack.c.h.b16 %v886
        %v1485 = vpack.c.b16 %v1105, %v1101
        %v1486 = vpack.c.b16 %v1106, %v1102
        %v1487 = vpack.c.b16 %v1107, %v1103
        %v1488 = vpack.c.b16 %v1108, %v1104
        %v1489 = vpack.c.b16 %v1113, %v1109
        %v1490 = vpack.c.b16 %v1114, %v1110
        %v1491 = vpack.c.b16 %v1115, %v1111
        %v1492 = vpack.c.b16 %v1116, %v1112
        %v1493 = vpack.c.b16 %v1121, %v1117
        %v1494 = vpack.c.b16 %v1122, %v1118
        %v1495 = vpack.c.b16 %v1123, %v1119
        %v1496 = vpack.c.b16 %v1124, %v1120
        %v1497 = vpack.c.b16 %v1129, %v1125
        %v1498 = vpack.c.b16 %v1130, %v1126
        %v1499 = vpack.c.b16 %v1131, %v1127
        %v1500 = vpack.c.b16 %v1132, %v1128
        %v1501 = vpack.c.b16 %v1137, %v1133
        %v1502 = vpack.c.b16 %v1138, %v1134
        %v1503 = vpack.c.b16 %v1139, %v1135
        %v1504 = vpack.c.b16 %v1140, %v1136
        %v1505 = vpack.c.b16 %v1145, %v1141
        %v1506 = vpack.c.b16 %v1146, %v1142
        %v1507 = vpack.c.b16 %v1147, %v1143
        %v1508 = vpack.c.b16 %v1148, %v1144
        %v1509 = vpack.c.b16 %v1153, %v1149
        %v1510 = vpack.c.b16 %v1154, %v1150
        %v1511 = vpack.c.b16 %v1155, %v1151
        %v1512 = vpack.c.b16 %v1156, %v1152
        %v1513 = vpack.c.b16 %v1161, %v1157
        %v1514 = vpack.c.b16 %v1162, %v1158
        %v1515 = vpack.c.b16 %v1163, %v1159
        %v1516 = vpack.c.b16 %v1164, %v1160
        %v1517 = vpack.c.b16 %v1169, %v1165
        %v1518 = vpack.c.b16 %v1170, %v1166
        %v1519 = vpack.c.b16 %v1171, %v1167
        %v1520 = vpack.c.b16 %v1172, %v1168
        %v1521 = vpack.c.b16 %v1177, %v1173
        %v1522 = vpack.c.b16 %v1178, %v1174
        %v1523 = vpack.c.b16 %v1179, %v1175
        %v1524 = vpack.c.b16 %v1180, %v1176
        %v1525 = vpack.c.b16 %v1185, %v1181
        %v1526 = vpack.c.b16 %v1186, %v1182
        %v1527 = vpack.c.b16 %v1187, %v1183
        %v1528 = vpack.c.b16 %v1188, %v1184
        %v1529 = vpack.c.b16 %v1193, %v1189
        %v1530 = vpack.c.b16 %v1194, %v1190
        %v1531 = vpack.c.b16 %v1195, %v1191
        %v1532 = vpack.c.b16 %v1196, %v1192
        %v1533 = vpack.c.b16 %v1201, %v1197
        %v1534 = vpack.c.b16 %v1202, %v1198
        %v1535 = vpack.c.b16 %v1203, %v1199
        %v1536 = vpack.c.b16 %v1204, %v1200
        %v1537 = vpack.c.b16 %v1209, %v1205
        %v1538 = vpack.c.b16 %v1210, %v1206
        %v1539 = vpack.c.b16 %v1211, %v1207
        %v1540 = vpack.c.b16 %v1212, %v1208
        %v1541 = vpack.c.b16 %v1217, %v1213
        %v1542 = vpack.c.b16 %v1218, %v1214
        %v1543 = vpack.c.b16 %v1219, %v1215
        %v1544 = vpack.c.b16 %v1220, %v1216
        %v1545 = vpack.c.b16 %v1225, %v1221
        %v1546 = vpack.c.b16 %v1226, %v1222
        %v1547 = vpack.c.b16 %v1227, %v1223
        %v1548 = vpack.c.b16 %v1228, %v1224
        %v1549 = vpack.c.b16 %v1233, %v1229
        %v1550 = vpack.c.b16 %v1234, %v1230
        %v1551 = vpack.c.b16 %v1235, %v1231
        %v1552 = vpack.c.b16 %v1236, %v1232
        %v1553 = vpack.c.b16 %v1241, %v1237
        %v1554 = vpack.c.b16 %v1242, %v1238
        %v1555 = vpack.c.b16 %v1243, %v1239
        %v1556 = vpack.c.b16 %v1244, %v1240
        %v1557 = vpack.c.b16 %v1249, %v1245
        %v1558 = vpack.c.b16 %v1250, %v1246
        %v1559 = vpack.c.b16 %v1251, %v1247
        %v1560 = vpack.c.b16 %v1252, %v1248
        %v1561 = vpack.c.b16 %v1257, %v1253
        %v1562 = vpack.c.b16 %v1258, %v1254
        %v1563 = vpack.c.b16 %v1259, %v1255
        %v1564 = vpack.c.b16 %v1260, %v1256
        %v1565 = vpack.c.b16 %v1265, %v1261
        %v1566 = vpack.c.b16 %v1266, %v1262
        %v1567 = vpack.c.b16 %v1267, %v1263
        %v1568 = vpack.c.b16 %v1268, %v1264
        %v1569 = vpack.c.b16 %v1273, %v1269
        %v1570 = vpack.c.b16 %v1274, %v1270
        %v1571 = vpack.c.b16 %v1275, %v1271
        %v1572 = vpack.c.b16 %v1276, %v1272
        %v1573 = vpack.c.b16 %v1281, %v1277
        %v1574 = vpack.c.b16 %v1282, %v1278
        %v1575 = vpack.c.b16 %v1283, %v1279
        %v1576 = vpack.c.b16 %v1284, %v1280
        %v1577 = vpack.c.b16 %v1289, %v1285
        %v1578 = vpack.c.b16 %v1290, %v1286
        %v1579 = vpack.c.b16 %v1291, %v1287
        %v1580 = vpack.c.b16 %v1292, %v1288
        %v1581 = vpack.c.b16 %v1297, %v1293
        %v1582 = vpack.c.b16 %v1298, %v1294
        %v1583 = vpack.c.b16 %v1299, %v1295
        %v1584 = vpack.c.b16 %v1300, %v1296
        %v1585 = vpack.c.b16 %v1305, %v1301
        %v1586 = vpack.c.b16 %v1306, %v1302
        %v1587 = vpack.c.b16 %v1307, %v1303
        %v1588 = vpack.c.b16 %v1308, %v1304
        %v1589 = vpack.c.b16 %v1313, %v1309
        %v1590 = vpack.c.b16 %v1314, %v1310
        %v1591 = vpack.c.b16 %v1315, %v1311
        %v1592 = vpack.c.b16 %v1316, %v1312
        %v1593 = vpack.c.b16 %v1321, %v1317
        %v1594 = vpack.c.b16 %v1322, %v1318
        %v1595 = vpack.c.b16 %v1323, %v1319
        %v1596 = vpack.c.b16 %v1324, %v1320
        %v1597 = vpack.c.b16 %v1329, %v1325
        %v1598 = vpack.c.b16 %v1330, %v1326
        %v1599 = vpack.c.b16 %v1331, %v1327
        %v1600 = vpack.c.b16 %v1332, %v1328
        %v1601 = vpack.c.b16 %v1337, %v1333
        %v1602 = vpack.c.b16 %v1338, %v1334
        %v1603 = vpack.c.b16 %v1339, %v1335
        %v1604 = vpack.c.b16 %v1340, %v1336
        %v1605 = vpack.c.b16 %v1345, %v1341
        %v1606 = vpack.c.b16 %v1346, %v1342
        %v1607 = vpack.c.b16 %v1347, %v1343
        %v1608 = vpack.c.b16 %v1348, %v1344
        %v1609 = vpack.c.b16 %v1353, %v1349
        %v1610 = vpack.c.b16 %v1354, %v1350
        %v1611 = vpack.c.b16 %v1355, %v1351
        %v1612 = vpack.c.b16 %v1356, %v1352
        %v1613 = vpack.c.b16 %v1361, %v1357
        %v1614 = vpack.c.b16 %v1362, %v1358
        %v1615 = vpack.c.b16 %v1363, %v1359
        %v1616 = vpack.c.b16 %v1364, %v1360
        %v1617 = vpack.c.b16 %v1369, %v1365
        %v1618 = vpack.c.b16 %v1370, %v1366
        %v1619 = vpack.c.b16 %v1371, %v1367
        %v1620 = vpack.c.b16 %v1372, %v1368
        %v1621 = vpack.c.b16 %v1377, %v1373
        %v1622 = vpack.c.b16 %v1378, %v1374
        %v1623 = vpack.c.b16 %v1379, %v1375
        %v1624 = vpack.c.b16 %v1380, %v1376
        %v1625 = vpack.c.b16 %v1385, %v1381
        %v1626 = vpack.c.b16 %v1386, %v1382
        %v1627 = vpack.c.b16 %v1387, %v1383
        %v1628 = vpack.c.b16 %v1388, %v1384
        %v1629 = vpack.c.b16 %v1393, %v1389
        %v1630 = vpack.c.b16 %v1394, %v1390
        %v1631 = vpack.c.b16 %v1395, %v1391
        %v1632 = vpack.c.b16 %v1396, %v1392
        %v1633 = vpack.c.b16 %v1401, %v1397
        %v1634 = vpack.c.b16 %v1402, %v1398
        %v1635 = vpack.c.b16 %v1403, %v1399
        %v1636 = vpack.c.b16 %v1404, %v1400
        %v1637 = vpack.c.b16 %v1409, %v1405
        %v1638 = vpack.c.b16 %v1410, %v1406
        %v1639 = vpack.c.b16 %v1411, %v1407
        %v1640 = vpack.c.b16 %v1412, %v1408
        %v1641 = vpack.c.b16 %v1417, %v1413
        %v1642 = vpack.c.b16 %v1418, %v1414
        %v1643 = vpack.c.b16 %v1419, %v1415
        %v1644 = vpack.c.b16 %v1420, %v1416
        %v1645 = vpack.c.b16 %v1425, %v1421
        %v1646 = vpack.c.b16 %v1426, %v1422
        %v1647 = vpack.c.b16 %v1427, %v1423
        %v1648 = vpack.c.b16 %v1428, %v1424
        %v1649 = vpack.c.b16 %v1433, %v1429
        %v1650 = vpack.c.b16 %v1434, %v1430
        %v1651 = vpack.c.b16 %v1435, %v1431
        %v1652 = vpack.c.b16 %v1436, %v1432
        %v1653 = vpack.c.b16 %v1441, %v1437
        %v1654 = vpack.c.b16 %v1442, %v1438
        %v1655 = vpack.c.b16 %v1443, %v1439
        %v1656 = vpack.c.b16 %v1444, %v1440
        %v1657 = vpack.c.b16 %v1449, %v1445
        %v1658 = vpack.c.b16 %v1450, %v1446
        %v1659 = vpack.c.b16 %v1451, %v1447
        %v1660 = vpack.c.b16 %v1452, %v1448
        %v1661 = vpack.c.b16 %v1457, %v1453
        %v1662 = vpack.c.b16 %v1458, %v1454
        %v1663 = vpack.c.b16 %v1459, %v1455
        %v1664 = vpack.c.b16 %v1460, %v1456
        %v1665 = vpack.c.b16 %v1465, %v1461
        %v1666 = vpack.c.b16 %v1466, %v1462
        %v1667 = vpack.c.b16 %v1467, %v1463
        %v1668 = vpack.c.b16 %v1468, %v1464
        %v1669 = vpack.c.b16 %v1473, %v1469
        %v1670 = vpack.c.b16 %v1474, %v1470
        %v1671 = vpack.c.b16 %v1475, %v1471
        %v1672 = vpack.c.b16 %v1476, %v1472
        %v1673 = vpack.c.b16 %v1481, %v1477
        %v1674 = vpack.c.b16 %v1482, %v1478
        %v1675 = vpack.c.b16 %v1483, %v1479
        %v1676 = vpack.c.b16 %v1484, %v1480
        %1869 = vmatprep.subr.bf16.mxu0 %v1514
        %1870 = vmatpush1.bf16.msra.mxu0 %v1513
        %1871 = vmatprep.subr.bf16.mxu0 %v1510
        %1872 = vmatpush1.bf16.msra.mxu0 %v1509
        %1873 = vmatprep.subr.bf16.mxu0 %v1506
        %1874 = vmatpush1.bf16.msra.mxu0 %v1505
        %1875 = vmatprep.subr.bf16.mxu0 %v1502
        %1876 = vmatpush1.bf16.msra.mxu0 %v1501
        %1877 = vmatprep.subr.bf16.mxu0 %v1498
        %1878 = vmatpush1.bf16.msra.mxu0 %v1497
        %1879 = vmatprep.subr.bf16.mxu0 %v1494
        %1880 = vmatpush1.bf16.msra.mxu0 %v1493
        %1881 = vmatprep.subr.bf16.mxu0 %v1490
        %1882 = vmatpush1.bf16.msra.mxu0 %v1489
        %1883 = vmatprep.subr.bf16.mxu0 %v1486
        %1884 = vmatpush1.bf16.msra.mxu0 %v1485
        %1885 = vmatprep.subr.bf16.mxu0 %v1546
        %1886 = vmatpush2.bf16.msra.mxu0 %v1545
        %1887 = vmatprep.subr.bf16.mxu0 %v1542
        %1888 = vmatpush2.bf16.msra.mxu0 %v1541
        %1889 = vmatprep.subr.bf16.mxu0 %v1538
        %1890 = vmatpush2.bf16.msra.mxu0 %v1537
        %1891 = vmatprep.subr.bf16.mxu0 %v1534
        %1892 = vmatpush2.bf16.msra.mxu0 %v1533
        %1893 = vmatprep.subr.bf16.mxu0 %v1530
        %1894 = vmatpush2.bf16.msra.mxu0 %v1529
        %1895 = vmatprep.subr.bf16.mxu0 %v1526
        %1896 = vmatpush2.bf16.msra.mxu0 %v1525
        %1897 = vmatprep.subr.bf16.mxu0 %v1522
        %1898 = vmatpush2.bf16.msra.mxu0 %v1521
        %1899 = vmatprep.subr.bf16.mxu0 %v1518
        %1900 = vmatpush2.bf16.msra.mxu0 %v1517
        %1901 = vmatprep.mubr.bf16.mxu0 %v690
        %1902 = vmatmul.mubr.bf16.gmra.mxu0 %v689
        %v1903 = vpop.f32.mrf.mxu0
        %v1904 = vadd.f32 %v892, %v1903
        %v1905 = vpop.f32.mrf.mxu0
        %v1906 = vadd.f32 %v896, %v1905
        %v1907 = vpop.f32.mrf.mxu0
        %v1908 = vpop.f32.mrf.mxu0
        %1909 = vdwg.mxu0
        %1910 = vmatprep.subr.bf16.mxu0 %v1578
        %1911 = vmatpush1.bf16.msra.mxu0 %v1577
        %1912 = vmatprep.subr.bf16.mxu0 %v1574
        %1913 = vmatpush1.bf16.msra.mxu0 %v1573
        %1914 = vmatprep.subr.bf16.mxu0 %v1570
        %1915 = vmatpush1.bf16.msra.mxu0 %v1569
        %1916 = vmatprep.subr.bf16.mxu0 %v1566
        %1917 = vmatpush1.bf16.msra.mxu0 %v1565
        %1918 = vmatprep.subr.bf16.mxu0 %v1562
        %1919 = vmatpush1.bf16.msra.mxu0 %v1561
        %1920 = vmatprep.subr.bf16.mxu0 %v1558
        %1921 = vmatpush1.bf16.msra.mxu0 %v1557
        %1922 = vmatprep.subr.bf16.mxu0 %v1554
        %1923 = vmatpush1.bf16.msra.mxu0 %v1553
        %1924 = vmatprep.subr.bf16.mxu0 %v1550
        %1925 = vmatpush1.bf16.msra.mxu0 %v1549
        %1926 = vmatprep.subr.bf16.mxu0 %v1610
        %1927 = vmatpush2.bf16.msra.mxu0 %v1609
        %1928 = vmatprep.subr.bf16.mxu0 %v1606
        %1929 = vmatpush2.bf16.msra.mxu0 %v1605
        %1930 = vmatprep.subr.bf16.mxu0 %v1602
        %1931 = vmatpush2.bf16.msra.mxu0 %v1601
        %1932 = vmatprep.subr.bf16.mxu0 %v1598
        %1933 = vmatpush2.bf16.msra.mxu0 %v1597
        %1934 = vmatprep.subr.bf16.mxu0 %v1594
        %1935 = vmatpush2.bf16.msra.mxu0 %v1593
        %1936 = vmatprep.subr.bf16.mxu0 %v1590
        %1937 = vmatpush2.bf16.msra.mxu0 %v1589
        %1938 = vmatprep.subr.bf16.mxu0 %v1586
        %1939 = vmatpush2.bf16.msra.mxu0 %v1585
        %1940 = vmatprep.subr.bf16.mxu0 %v1582
        %1941 = vmatpush2.bf16.msra.mxu0 %v1581
        %1942 = vmatprep.mubr.bf16.mxu0 %v692
        %1943 = vmatmul.mubr.bf16.gmra.mxu0 %v691
        %v1944 = vpop.f32.mrf.mxu0
        %v1945 = vadd.f32 %v1904, %v1944
        %v1946 = vpop.f32.mrf.mxu0
        %v1947 = vadd.f32 %v1906, %v1946
        %v1948 = vpop.f32.mrf.mxu0
        %v1949 = vpop.f32.mrf.mxu0
        %1950 = vdwg.mxu0
        %1951 = vmatprep.subr.bf16.mxu0 %v1642
        %1952 = vmatpush1.bf16.msra.mxu0 %v1641
        %1953 = vmatprep.subr.bf16.mxu0 %v1638
        %1954 = vmatpush1.bf16.msra.mxu0 %v1637
        %1955 = vmatprep.subr.bf16.mxu0 %v1634
        %1956 = vmatpush1.bf16.msra.mxu0 %v1633
        %1957 = vmatprep.subr.bf16.mxu0 %v1630
        %1958 = vmatpush1.bf16.msra.mxu0 %v1629
        %1959 = vmatprep.subr.bf16.mxu0 %v1626
        %1960 = vmatpush1.bf16.msra.mxu0 %v1625
        %1961 = vmatprep.subr.bf16.mxu0 %v1622
        %1962 = vmatpush1.bf16.msra.mxu0 %v1621
        %1963 = vmatprep.subr.bf16.mxu0 %v1618
        %1964 = vmatpush1.bf16.msra.mxu0 %v1617
        %1965 = vmatprep.subr.bf16.mxu0 %v1614
        %1966 = vmatpush1.bf16.msra.mxu0 %v1613
        %1967 = vmatprep.subr.bf16.mxu0 %v1674
        %1968 = vmatpush2.bf16.msra.mxu0 %v1673
        %1969 = vmatprep.subr.bf16.mxu0 %v1670
        %1970 = vmatpush2.bf16.msra.mxu0 %v1669
        %1971 = vmatprep.subr.bf16.mxu0 %v1666
        %1972 = vmatpush2.bf16.msra.mxu0 %v1665
        %1973 = vmatprep.subr.bf16.mxu0 %v1662
        %1974 = vmatpush2.bf16.msra.mxu0 %v1661
        %1975 = vmatprep.subr.bf16.mxu0 %v1658
        %1976 = vmatpush2.bf16.msra.mxu0 %v1657
        %1977 = vmatprep.subr.bf16.mxu0 %v1654
        %1978 = vmatpush2.bf16.msra.mxu0 %v1653
        %1979 = vmatprep.subr.bf16.mxu0 %v1650
        %1980 = vmatpush2.bf16.msra.mxu0 %v1649
        %1981 = vmatprep.subr.bf16.mxu0 %v1646
        %1982 = vmatpush2.bf16.msra.mxu0 %v1645
        %1983 = vmatprep.mubr.bf16.mxu0 %v694
        %1984 = vmatmul.mubr.bf16.gmra.mxu0 %v693
        %v1985 = vpop.f32.mrf.mxu0
        %v1986 = vadd.f32 %v1945, %v1985
        %v1987 = vpop.f32.mrf.mxu0
        %v1988 = vadd.f32 %v1947, %v1987
        %v1989 = vpop.f32.mrf.mxu0
        %v1990 = vpop.f32.mrf.mxu0
        %1991 = vdwg.mxu0
        %1992 = vmatprep.subr.bf16.mxu0 %v1516
        %1993 = vmatpush1.bf16.msra.mxu0 %v1515
        %1994 = vmatprep.subr.bf16.mxu0 %v1512
        %1995 = vmatpush1.bf16.msra.mxu0 %v1511
        %1996 = vmatprep.subr.bf16.mxu0 %v1508
        %1997 = vmatpush1.bf16.msra.mxu0 %v1507
        %1998 = vmatprep.subr.bf16.mxu0 %v1504
        %1999 = vmatpush1.bf16.msra.mxu0 %v1503
        %2000 = vmatprep.subr.bf16.mxu0 %v1500
        %2001 = vmatpush1.bf16.msra.mxu0 %v1499
        %2002 = vmatprep.subr.bf16.mxu0 %v1496
        %2003 = vmatpush1.bf16.msra.mxu0 %v1495
        %2004 = vmatprep.subr.bf16.mxu0 %v1492
        %2005 = vmatpush1.bf16.msra.mxu0 %v1491
        %2006 = vmatprep.subr.bf16.mxu0 %v1488
        %2007 = vmatpush1.bf16.msra.mxu0 %v1487
        %2008 = vmatprep.subr.bf16.mxu0 %v1548
        %2009 = vmatpush2.bf16.msra.mxu0 %v1547
        %2010 = vmatprep.subr.bf16.mxu0 %v1544
        %2011 = vmatpush2.bf16.msra.mxu0 %v1543
        %2012 = vmatprep.subr.bf16.mxu0 %v1540
        %2013 = vmatpush2.bf16.msra.mxu0 %v1539
        %2014 = vmatprep.subr.bf16.mxu0 %v1536
        %2015 = vmatpush2.bf16.msra.mxu0 %v1535
        %2016 = vmatprep.subr.bf16.mxu0 %v1532
        %2017 = vmatpush2.bf16.msra.mxu0 %v1531
        %2018 = vmatprep.subr.bf16.mxu0 %v1528
        %2019 = vmatpush2.bf16.msra.mxu0 %v1527
        %2020 = vmatprep.subr.bf16.mxu0 %v1524
        %2021 = vmatpush2.bf16.msra.mxu0 %v1523
        %2022 = vmatprep.subr.bf16.mxu0 %v1520
        %2023 = vmatpush2.bf16.msra.mxu0 %v1519
        %2024 = vmatprep.mubr.bf16.mxu0 %v690
        %2025 = vmatmul.mubr.bf16.gmra.mxu0 %v689
        %v2026 = vpop.f32.mrf.mxu0
        %v2027 = vadd.f32 %v900, %v2026
        %v2028 = vpop.f32.mrf.mxu0
        %v2029 = vadd.f32 %v904, %v2028
        %v2030 = vpop.f32.mrf.mxu0
        %v2031 = vpop.f32.mrf.mxu0
        %2032 = vdwg.mxu0
        %2033 = vmatprep.subr.bf16.mxu0 %v1580
        %2034 = vmatpush1.bf16.msra.mxu0 %v1579
        %2035 = vmatprep.subr.bf16.mxu0 %v1576
        %2036 = vmatpush1.bf16.msra.mxu0 %v1575
        %2037 = vmatprep.subr.bf16.mxu0 %v1572
        %2038 = vmatpush1.bf16.msra.mxu0 %v1571
        %2039 = vmatprep.subr.bf16.mxu0 %v1568
        %2040 = vmatpush1.bf16.msra.mxu0 %v1567
        %2041 = vmatprep.subr.bf16.mxu0 %v1564
        %2042 = vmatpush1.bf16.msra.mxu0 %v1563
        %2043 = vmatprep.subr.bf16.mxu0 %v1560
        %2044 = vmatpush1.bf16.msra.mxu0 %v1559
        %2045 = vmatprep.subr.bf16.mxu0 %v1556
        %2046 = vmatpush1.bf16.msra.mxu0 %v1555
        %2047 = vmatprep.subr.bf16.mxu0 %v1552
        %2048 = vmatpush1.bf16.msra.mxu0 %v1551
        %2049 = vmatprep.subr.bf16.mxu0 %v1612
        %2050 = vmatpush2.bf16.msra.mxu0 %v1611
        %2051 = vmatprep.subr.bf16.mxu0 %v1608
        %2052 = vmatpush2.bf16.msra.mxu0 %v1607
        %2053 = vmatprep.subr.bf16.mxu0 %v1604
        %2054 = vmatpush2.bf16.msra.mxu0 %v1603
        %2055 = vmatprep.subr.bf16.mxu0 %v1600
        %2056 = vmatpush2.bf16.msra.mxu0 %v1599
        %2057 = vmatprep.subr.bf16.mxu0 %v1596
        %2058 = vmatpush2.bf16.msra.mxu0 %v1595
        %2059 = vmatprep.subr.bf16.mxu0 %v1592
        %2060 = vmatpush2.bf16.msra.mxu0 %v1591
        %2061 = vmatprep.subr.bf16.mxu0 %v1588
        %2062 = vmatpush2.bf16.msra.mxu0 %v1587
        %2063 = vmatprep.subr.bf16.mxu0 %v1584
        %2064 = vmatpush2.bf16.msra.mxu0 %v1583
        %2065 = vmatprep.mubr.bf16.mxu0 %v692
        %2066 = vmatmul.mubr.bf16.gmra.mxu0 %v691
        %v2067 = vpop.f32.mrf.mxu0
        %v2068 = vadd.f32 %v2027, %v2067
        %v2069 = vpop.f32.mrf.mxu0
        %v2070 = vadd.f32 %v2029, %v2069
        %v2071 = vpop.f32.mrf.mxu0
        %v2072 = vpop.f32.mrf.mxu0
        %2073 = vdwg.mxu0
        %2074 = vmatprep.subr.bf16.mxu0 %v1644
        %2075 = vmatpush1.bf16.msra.mxu0 %v1643
        %2076 = vmatprep.subr.bf16.mxu0 %v1640
        %2077 = vmatpush1.bf16.msra.mxu0 %v1639
        %2078 = vmatprep.subr.bf16.mxu0 %v1636
        %2079 = vmatpush1.bf16.msra.mxu0 %v1635
        %2080 = vmatprep.subr.bf16.mxu0 %v1632
        %2081 = vmatpush1.bf16.msra.mxu0 %v1631
        %2082 = vmatprep.subr.bf16.mxu0 %v1628
        %2083 = vmatpush1.bf16.msra.mxu0 %v1627
        %2084 = vmatprep.subr.bf16.mxu0 %v1624
        %2085 = vmatpush1.bf16.msra.mxu0 %v1623
        %2086 = vmatprep.subr.bf16.mxu0 %v1620
        %2087 = vmatpush1.bf16.msra.mxu0 %v1619
        %2088 = vmatprep.subr.bf16.mxu0 %v1616
        %2089 = vmatpush1.bf16.msra.mxu0 %v1615
        %2090 = vmatprep.subr.bf16.mxu0 %v1676
        %2091 = vmatpush2.bf16.msra.mxu0 %v1675
        %2092 = vmatprep.subr.bf16.mxu0 %v1672
        %2093 = vmatpush2.bf16.msra.mxu0 %v1671
        %2094 = vmatprep.subr.bf16.mxu0 %v1668
        %2095 = vmatpush2.bf16.msra.mxu0 %v1667
        %2096 = vmatprep.subr.bf16.mxu0 %v1664
        %2097 = vmatpush2.bf16.msra.mxu0 %v1663
        %2098 = vmatprep.subr.bf16.mxu0 %v1660
        %2099 = vmatpush2.bf16.msra.mxu0 %v1659
        %2100 = vmatprep.subr.bf16.mxu0 %v1656
        %2101 = vmatpush2.bf16.msra.mxu0 %v1655
        %2102 = vmatprep.subr.bf16.mxu0 %v1652
        %2103 = vmatpush2.bf16.msra.mxu0 %v1651
        %2104 = vmatprep.subr.bf16.mxu0 %v1648
        %2105 = vmatpush2.bf16.msra.mxu0 %v1647
        %2106 = vmatprep.mubr.bf16.mxu0 %v694
        %2107 = vmatmul.mubr.bf16.gmra.mxu0 %v693
        %v2108 = vpop.f32.mrf.mxu0
        %v2109 = vadd.f32 %v2068, %v2108
        %v2110 = vpop.f32.mrf.mxu0
        %v2111 = vadd.f32 %v2070, %v2110
        %v2112 = vpop.f32.mrf.mxu0
        %v2113 = vpop.f32.mrf.mxu0
        %2114 = vdwg.mxu0
        %v2115 = vmax.f32 %v1986, 0.0
        %v2116 = vmax.f32 %v1988, 0.0
        %v2117 = vmax.f32 %v2109, 0.0
        %v2118 = vmax.f32 %v2111, 0.0
        %v2119 = vpack.c.bf16 %v2115, %v2115
        %v2120 = vpack.c.bf16 %v2116, %v2116
        %v2121 = vpack.c.bf16 %v2117, %v2117
        %v2122 = vpack.c.bf16 %v2118, %v2118
        %v2123 = vld [vmem:[#allocation7] sm:$0xf]
        %v2124 = vld [vmem:[#allocation7 + $0x4] sm:$0xf]
        %v2125 = vld [vmem:[#allocation7 + $0x8] sm:$0xf]
        %v2126 = vld [vmem:[#allocation7 + $0xc] sm:$0xf]
        %v2127 = vld [vmem:[#allocation7 + $0x10] sm:$0xf]
        %v2128 = vld [vmem:[#allocation7 + $0x14] sm:$0xf]
        %v2129 = vld [vmem:[#allocation7 + $0x18] sm:$0xf]
        %v2130 = vld [vmem:[#allocation7 + $0x1c] sm:$0xf]
        %v2131 = vld [vmem:[#allocation7 + $0x20] sm:$0xf]
        %v2132 = vld [vmem:[#allocation7 + $0x24] sm:$0xf]
        %v2133 = vld [vmem:[#allocation7 + $0x28] sm:$0xf]
        %v2134 = vld [vmem:[#allocation7 + $0x2c] sm:$0xf]
        %v2135 = vld [vmem:[#allocation7 + $0x30] sm:$0xf]
        %v2136 = vld [vmem:[#allocation7 + $0x34] sm:$0xf]
        %v2137 = vld [vmem:[#allocation7 + $0x38] sm:$0xf]
        %v2138 = vld [vmem:[#allocation7 + $0x3c] sm:$0xf]
        %v2139 = vld [vmem:[#allocation7 + $0x40] sm:$0xf]
        %v2140 = vld [vmem:[#allocation7 + $0x44] sm:$0xf]
        %v2141 = vld [vmem:[#allocation7 + $0x48] sm:$0xf]
        %v2142 = vld [vmem:[#allocation7 + $0x4c] sm:$0xf]
        %v2143 = vld [vmem:[#allocation7 + $0x50] sm:$0xf]
        %v2144 = vld [vmem:[#allocation7 + $0x54] sm:$0xf]
        %v2145 = vld [vmem:[#allocation7 + $0x58] sm:$0xf]
        %v2146 = vld [vmem:[#allocation7 + $0x5c] sm:$0xf]
        %v2147 = vld [vmem:[#allocation7 + $0x60] sm:$0xf]
        %v2148 = vld [vmem:[#allocation7 + $0x64] sm:$0xf]
        %v2149 = vld [vmem:[#allocation7 + $0x68] sm:$0xf]
        %v2150 = vld [vmem:[#allocation7 + $0x6c] sm:$0xf]
        %v2151 = vld [vmem:[#allocation7 + $0x70] sm:$0xf]
        %v2152 = vld [vmem:[#allocation7 + $0x74] sm:$0xf]
        %v2153 = vld [vmem:[#allocation7 + $0x78] sm:$0xf]
        %v2154 = vld [vmem:[#allocation7 + $0x7c] sm:$0xf]
        %v2155 = vld [vmem:[#allocation7 + $0x80] sm:$0xf]
        %v2156 = vld [vmem:[#allocation7 + $0x84] sm:$0xf]
        %v2157 = vld [vmem:[#allocation7 + $0x88] sm:$0xf]
        %v2158 = vld [vmem:[#allocation7 + $0x8c] sm:$0xf]
        %v2159 = vld [vmem:[#allocation7 + $0x90] sm:$0xf]
        %v2160 = vld [vmem:[#allocation7 + $0x94] sm:$0xf]
        %v2161 = vld [vmem:[#allocation7 + $0x98] sm:$0xf]
        %v2162 = vld [vmem:[#allocation7 + $0x9c] sm:$0xf]
        %v2163 = vld [vmem:[#allocation7 + $0xa0] sm:$0xf]
        %v2164 = vld [vmem:[#allocation7 + $0xa4] sm:$0xf]
        %v2165 = vld [vmem:[#allocation7 + $0xa8] sm:$0xf]
        %v2166 = vld [vmem:[#allocation7 + $0xac] sm:$0xf]
        %v2167 = vld [vmem:[#allocation7 + $0xb0] sm:$0xf]
        %v2168 = vld [vmem:[#allocation7 + $0xb4] sm:$0xf]
        %v2169 = vld [vmem:[#allocation7 + $0xb8] sm:$0xf]
        %v2170 = vld [vmem:[#allocation7 + $0xbc] sm:$0xf]
        %v2171 = vld [vmem:[#allocation7 + $0xc0] sm:$0xf]
        %v2172 = vld [vmem:[#allocation7 + $0xc4] sm:$0xf]
        %v2173 = vld [vmem:[#allocation7 + $0xc8] sm:$0xf]
        %v2174 = vld [vmem:[#allocation7 + $0xcc] sm:$0xf]
        %v2175 = vld [vmem:[#allocation7 + $0xd0] sm:$0xf]
        %v2176 = vld [vmem:[#allocation7 + $0xd4] sm:$0xf]
        %v2177 = vld [vmem:[#allocation7 + $0xd8] sm:$0xf]
        %v2178 = vld [vmem:[#allocation7 + $0xdc] sm:$0xf]
        %v2179 = vld [vmem:[#allocation7 + $0xe0] sm:$0xf]
        %v2180 = vld [vmem:[#allocation7 + $0xe4] sm:$0xf]
        %v2181 = vld [vmem:[#allocation7 + $0xe8] sm:$0xf]
        %v2182 = vld [vmem:[#allocation7 + $0xec] sm:$0xf]
        %v2183 = vld [vmem:[#allocation7 + $0xf0] sm:$0xf]
        %v2184 = vld [vmem:[#allocation7 + $0xf4] sm:$0xf]
        %v2185 = vld [vmem:[#allocation7 + $0xf8] sm:$0xf]
        %v2186 = vld [vmem:[#allocation7 + $0xfc] sm:$0xf]
        %v2187 = vld [vmem:[#allocation8] sm:$0x1]
        %v2189 = vlaneseq
        %v2190 = vshrl.u32 %v2189, 7
        %v2191 = vsub.s32 0, %v2190
        %v2192 = vrot.slane %v2187, %v2191
        %v2258 = vunpack.c.l.b16 %v2123
        %v2259 = vunpack.c.l.b16 %v2124
        %v2260 = vunpack.c.l.b16 %v2125
        %v2261 = vunpack.c.l.b16 %v2126
        %v2262 = vunpack.c.l.b16 %v2127
        %v2263 = vunpack.c.l.b16 %v2128
        %v2264 = vunpack.c.l.b16 %v2129
        %v2265 = vunpack.c.l.b16 %v2130
        %v2266 = vunpack.c.l.b16 %v2131
        %v2267 = vunpack.c.l.b16 %v2132
        %v2268 = vunpack.c.l.b16 %v2133
        %v2269 = vunpack.c.l.b16 %v2134
        %v2270 = vunpack.c.l.b16 %v2135
        %v2271 = vunpack.c.l.b16 %v2136
        %v2272 = vunpack.c.l.b16 %v2137
        %v2273 = vunpack.c.l.b16 %v2138
        %v2274 = vunpack.c.l.b16 %v2139
        %v2275 = vunpack.c.l.b16 %v2140
        %v2276 = vunpack.c.l.b16 %v2141
        %v2277 = vunpack.c.l.b16 %v2142
        %v2278 = vunpack.c.l.b16 %v2143
        %v2279 = vunpack.c.l.b16 %v2144
        %v2280 = vunpack.c.l.b16 %v2145
        %v2281 = vunpack.c.l.b16 %v2146
        %v2282 = vunpack.c.l.b16 %v2147
        %v2283 = vunpack.c.l.b16 %v2148
        %v2284 = vunpack.c.l.b16 %v2149
        %v2285 = vunpack.c.l.b16 %v2150
        %v2286 = vunpack.c.l.b16 %v2151
        %v2287 = vunpack.c.l.b16 %v2152
        %v2288 = vunpack.c.l.b16 %v2153
        %v2289 = vunpack.c.l.b16 %v2154
        %v2290 = vunpack.c.l.b16 %v2155
        %v2291 = vunpack.c.l.b16 %v2156
        %v2292 = vunpack.c.l.b16 %v2157
        %v2293 = vunpack.c.l.b16 %v2158
        %v2294 = vunpack.c.l.b16 %v2159
        %v2295 = vunpack.c.l.b16 %v2160
        %v2296 = vunpack.c.l.b16 %v2161
        %v2297 = vunpack.c.l.b16 %v2162
        %v2298 = vunpack.c.l.b16 %v2163
        %v2299 = vunpack.c.l.b16 %v2164
        %v2300 = vunpack.c.l.b16 %v2165
        %v2301 = vunpack.c.l.b16 %v2166
        %v2302 = vunpack.c.l.b16 %v2167
        %v2303 = vunpack.c.l.b16 %v2168
        %v2304 = vunpack.c.l.b16 %v2169
        %v2305 = vunpack.c.l.b16 %v2170
        %v2306 = vunpack.c.l.b16 %v2171
        %v2307 = vunpack.c.l.b16 %v2172
        %v2308 = vunpack.c.l.b16 %v2173
        %v2309 = vunpack.c.l.b16 %v2174
        %v2310 = vunpack.c.l.b16 %v2175
        %v2311 = vunpack.c.l.b16 %v2176
        %v2312 = vunpack.c.l.b16 %v2177
        %v2313 = vunpack.c.l.b16 %v2178
        %v2314 = vunpack.c.l.b16 %v2179
        %v2315 = vunpack.c.l.b16 %v2180
        %v2316 = vunpack.c.l.b16 %v2181
        %v2317 = vunpack.c.l.b16 %v2182
        %v2318 = vunpack.c.l.b16 %v2183
        %v2319 = vunpack.c.l.b16 %v2184
        %v2320 = vunpack.c.l.b16 %v2185
        %v2321 = vunpack.c.l.b16 %v2186
        %v2322 = vpack.c.b16 %v2259, %v2258
        %v2323 = vpack.c.b16 %v2261, %v2260
        %v2324 = vpack.c.b16 %v2263, %v2262
        %v2325 = vpack.c.b16 %v2265, %v2264
        %v2326 = vpack.c.b16 %v2267, %v2266
        %v2327 = vpack.c.b16 %v2269, %v2268
        %v2328 = vpack.c.b16 %v2271, %v2270
        %v2329 = vpack.c.b16 %v2273, %v2272
        %v2330 = vpack.c.b16 %v2275, %v2274
        %v2331 = vpack.c.b16 %v2277, %v2276
        %v2332 = vpack.c.b16 %v2279, %v2278
        %v2333 = vpack.c.b16 %v2281, %v2280
        %v2334 = vpack.c.b16 %v2283, %v2282
        %v2335 = vpack.c.b16 %v2285, %v2284
        %v2336 = vpack.c.b16 %v2287, %v2286
        %v2337 = vpack.c.b16 %v2289, %v2288
        %v2338 = vpack.c.b16 %v2291, %v2290
        %v2339 = vpack.c.b16 %v2293, %v2292
        %v2340 = vpack.c.b16 %v2295, %v2294
        %v2341 = vpack.c.b16 %v2297, %v2296
        %v2342 = vpack.c.b16 %v2299, %v2298
        %v2343 = vpack.c.b16 %v2301, %v2300
        %v2344 = vpack.c.b16 %v2303, %v2302
        %v2345 = vpack.c.b16 %v2305, %v2304
        %v2346 = vpack.c.b16 %v2307, %v2306
        %v2347 = vpack.c.b16 %v2309, %v2308
        %v2348 = vpack.c.b16 %v2311, %v2310
        %v2349 = vpack.c.b16 %v2313, %v2312
        %v2350 = vpack.c.b16 %v2315, %v2314
        %v2351 = vpack.c.b16 %v2317, %v2316
        %v2352 = vpack.c.b16 %v2319, %v2318
        %v2353 = vpack.c.b16 %v2321, %v2320
        %2386 = vmatprep.subr.bf16.mxu0 0
        %2387 = vmatpush1.bf16.msra.mxu0 %v2329
        %2388 = vmatprep.subr.bf16.mxu0 0
        %2389 = vmatpush1.bf16.msra.mxu0 %v2328
        %2390 = vmatprep.subr.bf16.mxu0 0
        %2391 = vmatpush1.bf16.msra.mxu0 %v2327
        %2392 = vmatprep.subr.bf16.mxu0 0
        %2393 = vmatpush1.bf16.msra.mxu0 %v2326
        %2394 = vmatprep.subr.bf16.mxu0 0
        %2395 = vmatpush1.bf16.msra.mxu0 %v2325
        %2396 = vmatprep.subr.bf16.mxu0 0
        %2397 = vmatpush1.bf16.msra.mxu0 %v2324
        %2398 = vmatprep.subr.bf16.mxu0 0
        %2399 = vmatpush1.bf16.msra.mxu0 %v2323
        %2400 = vmatprep.subr.bf16.mxu0 0
        %2401 = vmatpush1.bf16.msra.mxu0 %v2322
        %2402 = vmatprep.subr.bf16.mxu0 0
        %2403 = vmatpush2.bf16.msra.mxu0 %v2337
        %2404 = vmatprep.subr.bf16.mxu0 0
        %2405 = vmatpush2.bf16.msra.mxu0 %v2336
        %2406 = vmatprep.subr.bf16.mxu0 0
        %2407 = vmatpush2.bf16.msra.mxu0 %v2335
        %2408 = vmatprep.subr.bf16.mxu0 0
        %2409 = vmatpush2.bf16.msra.mxu0 %v2334
        %2410 = vmatprep.subr.bf16.mxu0 0
        %2411 = vmatpush2.bf16.msra.mxu0 %v2333
        %2412 = vmatprep.subr.bf16.mxu0 0
        %2413 = vmatpush2.bf16.msra.mxu0 %v2332
        %2414 = vmatprep.subr.bf16.mxu0 0
        %2415 = vmatpush2.bf16.msra.mxu0 %v2331
        %2416 = vmatprep.subr.bf16.mxu0 0
        %2417 = vmatpush2.bf16.msra.mxu0 %v2330
        %2418 = vmatprep.mubr.bf16.mxu0 %v2120
        %2419 = vmatmul.mubr.bf16.gmra.mxu0 %v2119
        %v2420 = vpop.f32.mrf.mxu0
        %v2421 = vadd.f32 %v2192, %v2420
        %v2422 = vpop.f32.mrf.mxu0
        %v2423 = vpop.f32.mrf.mxu0
        %v2424 = vpop.f32.mrf.mxu0
        %2425 = vdwg.mxu0
        %2426 = vmatprep.subr.bf16.mxu0 0
        %2427 = vmatpush1.bf16.msra.mxu0 %v2345
        %2428 = vmatprep.subr.bf16.mxu0 0
        %2429 = vmatpush1.bf16.msra.mxu0 %v2344
        %2430 = vmatprep.subr.bf16.mxu0 0
        %2431 = vmatpush1.bf16.msra.mxu0 %v2343
        %2432 = vmatprep.subr.bf16.mxu0 0
        %2433 = vmatpush1.bf16.msra.mxu0 %v2342
        %2434 = vmatprep.subr.bf16.mxu0 0
        %2435 = vmatpush1.bf16.msra.mxu0 %v2341
        %2436 = vmatprep.subr.bf16.mxu0 0
        %2437 = vmatpush1.bf16.msra.mxu0 %v2340
        %2438 = vmatprep.subr.bf16.mxu0 0
        %2439 = vmatpush1.bf16.msra.mxu0 %v2339
        %2440 = vmatprep.subr.bf16.mxu0 0
        %2441 = vmatpush1.bf16.msra.mxu0 %v2338
        %2442 = vmatprep.subr.bf16.mxu0 0
        %2443 = vmatpush2.bf16.msra.mxu0 %v2353
        %2444 = vmatprep.subr.bf16.mxu0 0
        %2445 = vmatpush2.bf16.msra.mxu0 %v2352
        %2446 = vmatprep.subr.bf16.mxu0 0
        %2447 = vmatpush2.bf16.msra.mxu0 %v2351
        %2448 = vmatprep.subr.bf16.mxu0 0
        %2449 = vmatpush2.bf16.msra.mxu0 %v2350
        %2450 = vmatprep.subr.bf16.mxu0 0
        %2451 = vmatpush2.bf16.msra.mxu0 %v2349
        %2452 = vmatprep.subr.bf16.mxu0 0
        %2453 = vmatpush2.bf16.msra.mxu0 %v2348
        %2454 = vmatprep.subr.bf16.mxu0 0
        %2455 = vmatpush2.bf16.msra.mxu0 %v2347
        %2456 = vmatprep.subr.bf16.mxu0 0
        %2457 = vmatpush2.bf16.msra.mxu0 %v2346
        %2458 = vmatprep.mubr.bf16.mxu0 %v2122
        %2459 = vmatmul.mubr.bf16.gmra.mxu0 %v2121
        %v2460 = vpop.f32.mrf.mxu0
        %v2461 = vadd.f32 %v2421, %v2460
        %v2462 = vpop.f32.mrf.mxu0
        %v2463 = vpop.f32.mrf.mxu0
        %v2464 = vpop.f32.mrf.mxu0
        %2465 = vdwg.mxu0
        %v2466 = vlaneseq
        %v2467 = vshrl.u32 %v2466, 7
        %vm2468 = vcmp.lt.s32.totalorder %v2467, 0
        %v2469 = vsub.s32 0, %v2467
        %v2470 = vsel %vm2468, %v2469, %v2467
        %v2471 = vshrl.u32 %v2470, 3
        %v2472 = vand.u32 %v2470, 7
        %v2473 = vsub.s32 0, %v2472
        %v2474 = vsel %vm2468, %v2473, %v2472
        %vm2475 = vcmp.ne.s32.totalorder %v2474, 0
        %vm2476 = vcmp.lt.s32.totalorder %v2474, 0
        %vm2477 = vmand %vm2476, %vm2475
        %v2478 = vadd.s32 %v2474, 8
        %v2479 = vsel %vm2477, %v2478, %v2474
        %vm2480 = vcmp.eq.s32.totalorder %v2479, 0
        %vm2481 = vcmp.eq.s32.totalorder %v2479, 7
        %v2482 = vrot.slane %v2461, 7
        %v2483 = vsel %vm2480, 0.0, %v2482
        %v2484 = vpack.c.bf16 %v2483, %v2483
        %v2485 = vld [vmem:[#allocation10] sm:$0xf]
        %v2486 = vld [vmem:[#allocation10 + $0x4] sm:$0xf]
        %v2487 = vld [vmem:[#allocation10 + $0x8] sm:$0xf]
        %v2488 = vld [vmem:[#allocation10 + $0xc] sm:$0xf]
        %v2489 = vld [vmem:[#allocation10 + $0x10] sm:$0xf]
        %v2490 = vld [vmem:[#allocation10 + $0x14] sm:$0xf]
        %v2491 = vld [vmem:[#allocation10 + $0x18] sm:$0xf]
        %v2492 = vld [vmem:[#allocation10 + $0x1c] sm:$0xf]
        %v2493 = vld [vmem:[#allocation10 + $0x20] sm:$0xf]
        %v2494 = vld [vmem:[#allocation10 + $0x24] sm:$0xf]
        %v2495 = vld [vmem:[#allocation10 + $0x28] sm:$0xf]
        %v2496 = vld [vmem:[#allocation10 + $0x2c] sm:$0xf]
        %v2497 = vld [vmem:[#allocation10 + $0x30] sm:$0xf]
        %v2498 = vld [vmem:[#allocation10 + $0x34] sm:$0xf]
        %v2499 = vld [vmem:[#allocation10 + $0x38] sm:$0xf]
        %v2500 = vld [vmem:[#allocation10 + $0x3c] sm:$0xf]
        %v2501 = vpack.c.bf16 %v2461, %v2461
        %s2502 = scalar_lea.vmem [#allocation10], 64
        %v2503 = vld [vmem:[%s2502] sm:$0xf]
        %v2504 = vld [vmem:[%s2502 + $0x4] sm:$0xf]
        %v2505 = vld [vmem:[%s2502 + $0x8] sm:$0xf]
        %v2506 = vld [vmem:[%s2502 + $0xc] sm:$0xf]
        %v2507 = vld [vmem:[%s2502 + $0x10] sm:$0xf]
        %v2508 = vld [vmem:[%s2502 + $0x14] sm:$0xf]
        %v2509 = vld [vmem:[%s2502 + $0x18] sm:$0xf]
        %v2510 = vld [vmem:[%s2502 + $0x1c] sm:$0xf]
        %v2511 = vld [vmem:[%s2502 + $0x20] sm:$0xf]
        %v2512 = vld [vmem:[%s2502 + $0x24] sm:$0xf]
        %v2513 = vld [vmem:[%s2502 + $0x28] sm:$0xf]
        %v2514 = vld [vmem:[%s2502 + $0x2c] sm:$0xf]
        %v2515 = vld [vmem:[%s2502 + $0x30] sm:$0xf]
        %v2516 = vld [vmem:[%s2502 + $0x34] sm:$0xf]
        %v2517 = vld [vmem:[%s2502 + $0x38] sm:$0xf]
        %v2518 = vld [vmem:[%s2502 + $0x3c] sm:$0xf]
        %v2535 = vunpack.c.l.b16 %v2503
        %v2536 = vunpack.c.l.b16 %v2504
        %v2537 = vunpack.c.l.b16 %v2505
        %v2538 = vunpack.c.l.b16 %v2506
        %v2539 = vunpack.c.l.b16 %v2507
        %v2540 = vunpack.c.l.b16 %v2508
        %v2541 = vunpack.c.l.b16 %v2509
        %v2542 = vunpack.c.l.b16 %v2510
        %v2543 = vunpack.c.l.b16 %v2511
        %v2544 = vunpack.c.l.b16 %v2512
        %v2545 = vunpack.c.l.b16 %v2513
        %v2546 = vunpack.c.l.b16 %v2514
        %v2547 = vunpack.c.l.b16 %v2515
        %v2548 = vunpack.c.l.b16 %v2516
        %v2549 = vunpack.c.l.b16 %v2517
        %v2550 = vunpack.c.l.b16 %v2518
        %v2551 = vpack.c.b16 %v2536, %v2535
        %v2552 = vpack.c.b16 %v2538, %v2537
        %v2553 = vpack.c.b16 %v2540, %v2539
        %v2554 = vpack.c.b16 %v2542, %v2541
        %v2555 = vpack.c.b16 %v2544, %v2543
        %v2556 = vpack.c.b16 %v2546, %v2545
        %v2557 = vpack.c.b16 %v2548, %v2547
        %v2558 = vpack.c.b16 %v2550, %v2549
        %2567 = vmatprep.subr.bf16.mxu0 0
        %2568 = vmatpush1.bf16.msra.mxu0 %v2558
        %2569 = vmatprep.subr.bf16.mxu0 0
        %2570 = vmatpush1.bf16.msra.mxu0 %v2557
        %2571 = vmatprep.subr.bf16.mxu0 0
        %2572 = vmatpush1.bf16.msra.mxu0 %v2556
        %2573 = vmatprep.subr.bf16.mxu0 0
        %2574 = vmatpush1.bf16.msra.mxu0 %v2555
        %2575 = vmatprep.subr.bf16.mxu0 0
        %2576 = vmatpush1.bf16.msra.mxu0 %v2554
        %2577 = vmatprep.subr.bf16.mxu0 0
        %2578 = vmatpush1.bf16.msra.mxu0 %v2553
        %2579 = vmatprep.subr.bf16.mxu0 0
        %2580 = vmatpush1.bf16.msra.mxu0 %v2552
        %2581 = vmatprep.subr.bf16.mxu0 0
        %2582 = vmatpush1.bf16.msra.mxu0 %v2551
        %2583 = vmatprep.subr.bf16.mxu0 0
        %2584 = vmatpush2.bf16.msra.mxu0 0
        %2585 = vmatprep.subr.bf16.mxu0 0
        %2586 = vmatpush2.bf16.msra.mxu0 0
        %2587 = vmatprep.subr.bf16.mxu0 0
        %2588 = vmatpush2.bf16.msra.mxu0 0
        %2589 = vmatprep.subr.bf16.mxu0 0
        %2590 = vmatpush2.bf16.msra.mxu0 0
        %2591 = vmatprep.subr.bf16.mxu0 0
        %2592 = vmatpush2.bf16.msra.mxu0 0
        %2593 = vmatprep.subr.bf16.mxu0 0
        %2594 = vmatpush2.bf16.msra.mxu0 0
        %2595 = vmatprep.subr.bf16.mxu0 0
        %2596 = vmatpush2.bf16.msra.mxu0 0
        %2597 = vmatprep.subr.bf16.mxu0 0
        %2598 = vmatpush2.bf16.msra.mxu0 0
        %2599 = vmatprep.mubr.bf16.mxu0 0
        %2600 = vmatmul.mubr.bf16.gmra.mxu0 %v2501
        %v2601 = vpop.f32.mrf.mxu0
        %v2602 = vadd.f32 0.0, %v2601
        %v2603 = vpop.f32.mrf.mxu0
        %v2604 = vpop.f32.mrf.mxu0
        %v2605 = vpop.f32.mrf.mxu0
        %2606 = vdwg.mxu0
        %v2623 = vunpack.c.l.b16 %v2485
        %v2624 = vunpack.c.l.b16 %v2486
        %v2625 = vunpack.c.l.b16 %v2487
        %v2626 = vunpack.c.l.b16 %v2488
        %v2627 = vunpack.c.l.b16 %v2489
        %v2628 = vunpack.c.l.b16 %v2490
        %v2629 = vunpack.c.l.b16 %v2491
        %v2630 = vunpack.c.l.b16 %v2492
        %v2631 = vunpack.c.l.b16 %v2493
        %v2632 = vunpack.c.l.b16 %v2494
        %v2633 = vunpack.c.l.b16 %v2495
        %v2634 = vunpack.c.l.b16 %v2496
        %v2635 = vunpack.c.l.b16 %v2497
        %v2636 = vunpack.c.l.b16 %v2498
        %v2637 = vunpack.c.l.b16 %v2499
        %v2638 = vunpack.c.l.b16 %v2500
        %v2639 = vpack.c.b16 %v2624, %v2623
        %v2640 = vpack.c.b16 %v2626, %v2625
        %v2641 = vpack.c.b16 %v2628, %v2627
        %v2642 = vpack.c.b16 %v2630, %v2629
        %v2643 = vpack.c.b16 %v2632, %v2631
        %v2644 = vpack.c.b16 %v2634, %v2633
        %v2645 = vpack.c.b16 %v2636, %v2635
        %v2646 = vpack.c.b16 %v2638, %v2637
        %2655 = vmatprep.subr.bf16.mxu0 0
        %2656 = vmatpush1.bf16.msra.mxu0 %v2646
        %2657 = vmatprep.subr.bf16.mxu0 0
        %2658 = vmatpush1.bf16.msra.mxu0 %v2645
        %2659 = vmatprep.subr.bf16.mxu0 0
        %2660 = vmatpush1.bf16.msra.mxu0 %v2644
        %2661 = vmatprep.subr.bf16.mxu0 0
        %2662 = vmatpush1.bf16.msra.mxu0 %v2643
        %2663 = vmatprep.subr.bf16.mxu0 0
        %2664 = vmatpush1.bf16.msra.mxu0 %v2642
        %2665 = vmatprep.subr.bf16.mxu0 0
        %2666 = vmatpush1.bf16.msra.mxu0 %v2641
        %2667 = vmatprep.subr.bf16.mxu0 0
        %2668 = vmatpush1.bf16.msra.mxu0 %v2640
        %2669 = vmatprep.subr.bf16.mxu0 0
        %2670 = vmatpush1.bf16.msra.mxu0 %v2639
        %2671 = vmatprep.subr.bf16.mxu0 0
        %2672 = vmatpush2.bf16.msra.mxu0 0
        %2673 = vmatprep.subr.bf16.mxu0 0
        %2674 = vmatpush2.bf16.msra.mxu0 0
        %2675 = vmatprep.subr.bf16.mxu0 0
        %2676 = vmatpush2.bf16.msra.mxu0 0
        %2677 = vmatprep.subr.bf16.mxu0 0
        %2678 = vmatpush2.bf16.msra.mxu0 0
        %2679 = vmatprep.subr.bf16.mxu0 0
        %2680 = vmatpush2.bf16.msra.mxu0 0
        %2681 = vmatprep.subr.bf16.mxu0 0
        %2682 = vmatpush2.bf16.msra.mxu0 0
        %2683 = vmatprep.subr.bf16.mxu0 0
        %2684 = vmatpush2.bf16.msra.mxu0 0
        %2685 = vmatprep.subr.bf16.mxu0 0
        %2686 = vmatpush2.bf16.msra.mxu0 0
        %2687 = vmatprep.mubr.bf16.mxu0 0
        %2688 = vmatmul.mubr.bf16.gmra.mxu0 %v2484
        %v2689 = vpop.f32.mrf.mxu0
        %v2690 = vadd.f32 %v2602, %v2689
        %v2691 = vpop.f32.mrf.mxu0
        %v2692 = vpop.f32.mrf.mxu0
        %v2693 = vpop.f32.mrf.mxu0
        %2694 = vdwg.mxu0
        %v2695 = vrot.slane %v2461, 1
        %v2696 = vsel %vm2481, 0.0, %v2695
        %v2697 = vpack.c.bf16 %v2696, %v2696
        %s2698 = scalar_lea.vmem [#allocation10], 128
        %v2699 = vld [vmem:[%s2698] sm:$0xf]
        %v2700 = vld [vmem:[%s2698 + $0x4] sm:$0xf]
        %v2701 = vld [vmem:[%s2698 + $0x8] sm:$0xf]
        %v2702 = vld [vmem:[%s2698 + $0xc] sm:$0xf]
        %v2703 = vld [vmem:[%s2698 + $0x10] sm:$0xf]
        %v2704 = vld [vmem:[%s2698 + $0x14] sm:$0xf]
        %v2705 = vld [vmem:[%s2698 + $0x18] sm:$0xf]
        %v2706 = vld [vmem:[%s2698 + $0x1c] sm:$0xf]
        %v2707 = vld [vmem:[%s2698 + $0x20] sm:$0xf]
        %v2708 = vld [vmem:[%s2698 + $0x24] sm:$0xf]
        %v2709 = vld [vmem:[%s2698 + $0x28] sm:$0xf]
        %v2710 = vld [vmem:[%s2698 + $0x2c] sm:$0xf]
        %v2711 = vld [vmem:[%s2698 + $0x30] sm:$0xf]
        %v2712 = vld [vmem:[%s2698 + $0x34] sm:$0xf]
        %v2713 = vld [vmem:[%s2698 + $0x38] sm:$0xf]
        %v2714 = vld [vmem:[%s2698 + $0x3c] sm:$0xf]
        %v2731 = vunpack.c.l.b16 %v2699
        %v2732 = vunpack.c.l.b16 %v2700
        %v2733 = vunpack.c.l.b16 %v2701
        %v2734 = vunpack.c.l.b16 %v2702
        %v2735 = vunpack.c.l.b16 %v2703
        %v2736 = vunpack.c.l.b16 %v2704
        %v2737 = vunpack.c.l.b16 %v2705
        %v2738 = vunpack.c.l.b16 %v2706
        %v2739 = vunpack.c.l.b16 %v2707
        %v2740 = vunpack.c.l.b16 %v2708
        %v2741 = vunpack.c.l.b16 %v2709
        %v2742 = vunpack.c.l.b16 %v2710
        %v2743 = vunpack.c.l.b16 %v2711
        %v2744 = vunpack.c.l.b16 %v2712
        %v2745 = vunpack.c.l.b16 %v2713
        %v2746 = vunpack.c.l.b16 %v2714
        %v2747 = vpack.c.b16 %v2732, %v2731
        %v2748 = vpack.c.b16 %v2734, %v2733
        %v2749 = vpack.c.b16 %v2736, %v2735
        %v2750 = vpack.c.b16 %v2738, %v2737
        %v2751 = vpack.c.b16 %v2740, %v2739
        %v2752 = vpack.c.b16 %v2742, %v2741
        %v2753 = vpack.c.b16 %v2744, %v2743
        %v2754 = vpack.c.b16 %v2746, %v2745
        %2763 = vmatprep.subr.bf16.mxu0 0
        %2764 = vmatpush1.bf16.msra.mxu0 %v2754
        %2765 = vmatprep.subr.bf16.mxu0 0
        %2766 = vmatpush1.bf16.msra.mxu0 %v2753
        %2767 = vmatprep.subr.bf16.mxu0 0
        %2768 = vmatpush1.bf16.msra.mxu0 %v2752
        %2769 = vmatprep.subr.bf16.mxu0 0
        %2770 = vmatpush1.bf16.msra.mxu0 %v2751
        %2771 = vmatprep.subr.bf16.mxu0 0
        %2772 = vmatpush1.bf16.msra.mxu0 %v2750
        %2773 = vmatprep.subr.bf16.mxu0 0
        %2774 = vmatpush1.bf16.msra.mxu0 %v2749
        %2775 = vmatprep.subr.bf16.mxu0 0
        %2776 = vmatpush1.bf16.msra.mxu0 %v2748
        %2777 = vmatprep.subr.bf16.mxu0 0
        %2778 = vmatpush1.bf16.msra.mxu0 %v2747
        %2779 = vmatprep.subr.bf16.mxu0 0
        %2780 = vmatpush2.bf16.msra.mxu0 0
        %2781 = vmatprep.subr.bf16.mxu0 0
        %2782 = vmatpush2.bf16.msra.mxu0 0
        %2783 = vmatprep.subr.bf16.mxu0 0
        %2784 = vmatpush2.bf16.msra.mxu0 0
        %2785 = vmatprep.subr.bf16.mxu0 0
        %2786 = vmatpush2.bf16.msra.mxu0 0
        %2787 = vmatprep.subr.bf16.mxu0 0
        %2788 = vmatpush2.bf16.msra.mxu0 0
        %2789 = vmatprep.subr.bf16.mxu0 0
        %2790 = vmatpush2.bf16.msra.mxu0 0
        %2791 = vmatprep.subr.bf16.mxu0 0
        %2792 = vmatpush2.bf16.msra.mxu0 0
        %2793 = vmatprep.subr.bf16.mxu0 0
        %2794 = vmatpush2.bf16.msra.mxu0 0
        %2795 = vmatprep.mubr.bf16.mxu0 0
        %2796 = vmatmul.mubr.bf16.gmra.mxu0 %v2697
        %v2797 = vpop.f32.mrf.mxu0
        %v2798 = vadd.f32 0.0, %v2797
        %v2799 = vpop.f32.mrf.mxu0
        %v2800 = vpop.f32.mrf.mxu0
        %v2801 = vpop.f32.mrf.mxu0
        %2802 = vdwg.mxu0
        %v2803 = vadd.f32 %v2690, %v2798
        %v2804 = vld [vmem:[#allocation11] sm:$0x1]
        %v2806 = vlaneseq
        %v2807 = vshrl.u32 %v2806, 7
        %v2808 = vsub.s32 0, %v2807
        %v2809 = vrot.slane %v2804, %v2808
        %v2811 = vadd.f32 %v2803, %v2809
        %v2812 = vmax.f32 %v2811, 0.0
        %v2813 = vld [vmem:[#allocation13] sm:$0xff]
        %v2814 = vld [vmem:[#allocation13 + $0x8] sm:$0xff]
        %v2815 = vld [vmem:[#allocation13 + $0x10] sm:$0xff]
        %v2816 = vld [vmem:[#allocation13 + $0x18] sm:$0xff]
        %v2817 = vld [vmem:[#allocation13 + $0x20] sm:$0xff]
        %v2818 = vld [vmem:[#allocation13 + $0x28] sm:$0xff]
        %v2819 = vld [vmem:[#allocation13 + $0x30] sm:$0xff]
        %v2820 = vld [vmem:[#allocation13 + $0x38] sm:$0xff]
        %v2821 = vld [vmem:[#allocation13 + $0x40] sm:$0xff]
        %v2822 = vld [vmem:[#allocation13 + $0x48] sm:$0xff]
        %v2823 = vld [vmem:[#allocation13 + $0x50] sm:$0xff]
        %v2824 = vld [vmem:[#allocation13 + $0x58] sm:$0xff]
        %v2825 = vld [vmem:[#allocation13 + $0x60] sm:$0xff]
        %v2826 = vld [vmem:[#allocation13 + $0x68] sm:$0xff]
        %v2827 = vld [vmem:[#allocation13 + $0x70] sm:$0xff]
        %v2828 = vld [vmem:[#allocation13 + $0x78] sm:$0xff]
        %v2829 = vld [vmem:[#allocation13 + $0x80] sm:$0xff]
        %v2830 = vld [vmem:[#allocation13 + $0x88] sm:$0xff]
        %v2831 = vld [vmem:[#allocation13 + $0x90] sm:$0xff]
        %v2832 = vld [vmem:[#allocation13 + $0x98] sm:$0xff]
        %v2833 = vld [vmem:[#allocation13 + $0xa0] sm:$0xff]
        %v2834 = vld [vmem:[#allocation13 + $0xa8] sm:$0xff]
        %v2835 = vld [vmem:[#allocation13 + $0xb0] sm:$0xff]
        %v2836 = vld [vmem:[#allocation13 + $0xb8] sm:$0xff]
        %v2837 = vld [vmem:[#allocation13 + $0xc0] sm:$0xff]
        %v2838 = vld [vmem:[#allocation13 + $0xc8] sm:$0xff]
        %v2839 = vld [vmem:[#allocation13 + $0xd0] sm:$0xff]
        %v2840 = vld [vmem:[#allocation13 + $0xd8] sm:$0xff]
        %v2841 = vld [vmem:[#allocation13 + $0xe0] sm:$0xff]
        %v2842 = vld [vmem:[#allocation13 + $0xe8] sm:$0xff]
        %v2843 = vld [vmem:[#allocation13 + $0xf0] sm:$0xff]
        %v2844 = vld [vmem:[#allocation13 + $0xf8] sm:$0xff]
        %v2845 = vld [vmem:[#allocation13 + $0x100] sm:$0xff]
        %v2846 = vld [vmem:[#allocation13 + $0x108] sm:$0xff]
        %v2847 = vld [vmem:[#allocation13 + $0x110] sm:$0xff]
        %v2848 = vld [vmem:[#allocation13 + $0x118] sm:$0xff]
        %v2849 = vld [vmem:[#allocation13 + $0x120] sm:$0xff]
        %v2850 = vld [vmem:[#allocation13 + $0x128] sm:$0xff]
        %v2851 = vld [vmem:[#allocation13 + $0x130] sm:$0xff]
        %v2852 = vld [vmem:[#allocation13 + $0x138] sm:$0xff]
        %v2853 = vld [vmem:[#allocation13 + $0x140] sm:$0xff]
        %v2854 = vld [vmem:[#allocation13 + $0x148] sm:$0xff]
        %v2855 = vld [vmem:[#allocation13 + $0x150] sm:$0xff]
        %v2856 = vld [vmem:[#allocation13 + $0x158] sm:$0xff]
        %v2857 = vld [vmem:[#allocation13 + $0x160] sm:$0xff]
        %v2858 = vld [vmem:[#allocation13 + $0x168] sm:$0xff]
        %v2859 = vld [vmem:[#allocation13 + $0x170] sm:$0xff]
        %v2860 = vld [vmem:[#allocation13 + $0x178] sm:$0xff]
        %v2861 = vld [vmem:[#allocation13 + $0x180] sm:$0xff]
        %v2862 = vld [vmem:[#allocation13 + $0x188] sm:$0xff]
        %v2863 = vld [vmem:[#allocation13 + $0x190] sm:$0xff]
        %v2864 = vld [vmem:[#allocation13 + $0x198] sm:$0xff]
        %v2865 = vld [vmem:[#allocation13 + $0x1a0] sm:$0xff]
        %v2866 = vld [vmem:[#allocation13 + $0x1a8] sm:$0xff]
        %v2867 = vld [vmem:[#allocation13 + $0x1b0] sm:$0xff]
        %v2868 = vld [vmem:[#allocation13 + $0x1b8] sm:$0xff]
        %v2869 = vld [vmem:[#allocation13 + $0x1c0] sm:$0xff]
        %v2870 = vld [vmem:[#allocation13 + $0x1c8] sm:$0xff]
        %v2871 = vld [vmem:[#allocation13 + $0x1d0] sm:$0xff]
        %v2872 = vld [vmem:[#allocation13 + $0x1d8] sm:$0xff]
        %v2873 = vld [vmem:[#allocation13 + $0x1e0] sm:$0xff]
        %v2874 = vld [vmem:[#allocation13 + $0x1e8] sm:$0xff]
        %v2875 = vld [vmem:[#allocation13 + $0x1f0] sm:$0xff]
        %v2876 = vld [vmem:[#allocation13 + $0x1f8] sm:$0xff]
        %v2877 = vld [vmem:[#allocation13 + $0x200] sm:$0xff]
        %v2878 = vld [vmem:[#allocation13 + $0x208] sm:$0xff]
        %v2879 = vld [vmem:[#allocation13 + $0x210] sm:$0xff]
        %v2880 = vld [vmem:[#allocation13 + $0x218] sm:$0xff]
        %v2881 = vld [vmem:[#allocation13 + $0x220] sm:$0xff]
        %v2882 = vld [vmem:[#allocation13 + $0x228] sm:$0xff]
        %v2883 = vld [vmem:[#allocation13 + $0x230] sm:$0xff]
        %v2884 = vld [vmem:[#allocation13 + $0x238] sm:$0xff]
        %v2885 = vld [vmem:[#allocation13 + $0x240] sm:$0xff]
        %v2886 = vld [vmem:[#allocation13 + $0x248] sm:$0xff]
        %v2887 = vld [vmem:[#allocation13 + $0x250] sm:$0xff]
        %v2888 = vld [vmem:[#allocation13 + $0x258] sm:$0xff]
        %v2889 = vld [vmem:[#allocation13 + $0x260] sm:$0xff]
        %v2890 = vld [vmem:[#allocation13 + $0x268] sm:$0xff]
        %v2891 = vld [vmem:[#allocation13 + $0x270] sm:$0xff]
        %v2892 = vld [vmem:[#allocation13 + $0x278] sm:$0xff]
        %v2893 = vld [vmem:[#allocation13 + $0x280] sm:$0xff]
        %v2894 = vld [vmem:[#allocation13 + $0x288] sm:$0xff]
        %v2895 = vld [vmem:[#allocation13 + $0x290] sm:$0xff]
        %v2896 = vld [vmem:[#allocation13 + $0x298] sm:$0xff]
        %v2897 = vld [vmem:[#allocation13 + $0x2a0] sm:$0xff]
        %v2898 = vld [vmem:[#allocation13 + $0x2a8] sm:$0xff]
        %v2899 = vld [vmem:[#allocation13 + $0x2b0] sm:$0xff]
        %v2900 = vld [vmem:[#allocation13 + $0x2b8] sm:$0xff]
        %v2901 = vld [vmem:[#allocation13 + $0x2c0] sm:$0xff]
        %v2902 = vld [vmem:[#allocation13 + $0x2c8] sm:$0xff]
        %v2903 = vld [vmem:[#allocation13 + $0x2d0] sm:$0xff]
        %v2904 = vld [vmem:[#allocation13 + $0x2d8] sm:$0xff]
        %v2905 = vld [vmem:[#allocation13 + $0x2e0] sm:$0xff]
        %v2906 = vld [vmem:[#allocation13 + $0x2e8] sm:$0xff]
        %v2907 = vld [vmem:[#allocation13 + $0x2f0] sm:$0xff]
        %v2908 = vld [vmem:[#allocation13 + $0x2f8] sm:$0xff]
        %v2909 = vld [vmem:[#allocation13 + $0x300] sm:$0xff]
        %v2910 = vld [vmem:[#allocation13 + $0x308] sm:$0xff]
        %v2911 = vld [vmem:[#allocation13 + $0x310] sm:$0xff]
        %v2912 = vld [vmem:[#allocation13 + $0x318] sm:$0xff]
        %v2913 = vld [vmem:[#allocation13 + $0x320] sm:$0xff]
        %v2914 = vld [vmem:[#allocation13 + $0x328] sm:$0xff]
        %v2915 = vld [vmem:[#allocation13 + $0x330] sm:$0xff]
        %v2916 = vld [vmem:[#allocation13 + $0x338] sm:$0xff]
        %v2917 = vld [vmem:[#allocation13 + $0x340] sm:$0xff]
        %v2918 = vld [vmem:[#allocation13 + $0x348] sm:$0xff]
        %v2919 = vld [vmem:[#allocation13 + $0x350] sm:$0xff]
        %v2920 = vld [vmem:[#allocation13 + $0x358] sm:$0xff]
        %v2921 = vld [vmem:[#allocation13 + $0x360] sm:$0xff]
        %v2922 = vld [vmem:[#allocation13 + $0x368] sm:$0xff]
        %v2923 = vld [vmem:[#allocation13 + $0x370] sm:$0xff]
        %v2924 = vld [vmem:[#allocation13 + $0x378] sm:$0xff]
        %v2925 = vld [vmem:[#allocation13 + $0x380] sm:$0xff]
        %v2926 = vld [vmem:[#allocation13 + $0x388] sm:$0xff]
        %v2927 = vld [vmem:[#allocation13 + $0x390] sm:$0xff]
        %v2928 = vld [vmem:[#allocation13 + $0x398] sm:$0xff]
        %v2929 = vld [vmem:[#allocation13 + $0x3a0] sm:$0xff]
        %v2930 = vld [vmem:[#allocation13 + $0x3a8] sm:$0xff]
        %v2931 = vld [vmem:[#allocation13 + $0x3b0] sm:$0xff]
        %v2932 = vld [vmem:[#allocation13 + $0x3b8] sm:$0xff]
        %v2933 = vld [vmem:[#allocation13 + $0x3c0] sm:$0xff]
        %v2934 = vld [vmem:[#allocation13 + $0x3c8] sm:$0xff]
        %v2935 = vld [vmem:[#allocation13 + $0x3d0] sm:$0xff]
        %v2936 = vld [vmem:[#allocation13 + $0x3d8] sm:$0xff]
        %v2937 = vld [vmem:[#allocation13 + $0x3e0] sm:$0xff]
        %v2938 = vld [vmem:[#allocation13 + $0x3e8] sm:$0xff]
        %v2939 = vld [vmem:[#allocation13 + $0x3f0] sm:$0xff]
        %v2940 = vld [vmem:[#allocation13 + $0x3f8] sm:$0xff]
        %v2941 = vld [vmem:[#allocation13 + $0x400] sm:$0xff]
        %v2942 = vld [vmem:[#allocation13 + $0x408] sm:$0xff]
        %v2943 = vld [vmem:[#allocation13 + $0x410] sm:$0xff]
        %v2944 = vld [vmem:[#allocation13 + $0x418] sm:$0xff]
        %v2945 = vld [vmem:[#allocation13 + $0x420] sm:$0xff]
        %v2946 = vld [vmem:[#allocation13 + $0x428] sm:$0xff]
        %v2947 = vld [vmem:[#allocation13 + $0x430] sm:$0xff]
        %v2948 = vld [vmem:[#allocation13 + $0x438] sm:$0xff]
        %v2949 = vld [vmem:[#allocation13 + $0x440] sm:$0xff]
        %v2950 = vld [vmem:[#allocation13 + $0x448] sm:$0xff]
        %v2951 = vld [vmem:[#allocation13 + $0x450] sm:$0xff]
        %v2952 = vld [vmem:[#allocation13 + $0x458] sm:$0xff]
        %v2953 = vld [vmem:[#allocation13 + $0x460] sm:$0xff]
        %v2954 = vld [vmem:[#allocation13 + $0x468] sm:$0xff]
        %v2955 = vld [vmem:[#allocation13 + $0x470] sm:$0xff]
        %v2956 = vld [vmem:[#allocation13 + $0x478] sm:$0xff]
        %v2957 = vld [vmem:[#allocation13 + $0x480] sm:$0xff]
        %v2958 = vld [vmem:[#allocation13 + $0x488] sm:$0xff]
        %v2959 = vld [vmem:[#allocation13 + $0x490] sm:$0xff]
        %v2960 = vld [vmem:[#allocation13 + $0x498] sm:$0xff]
        %v2961 = vld [vmem:[#allocation13 + $0x4a0] sm:$0xff]
        %v2962 = vld [vmem:[#allocation13 + $0x4a8] sm:$0xff]
        %v2963 = vld [vmem:[#allocation13 + $0x4b0] sm:$0xff]
        %v2964 = vld [vmem:[#allocation13 + $0x4b8] sm:$0xff]
        %v2965 = vld [vmem:[#allocation13 + $0x4c0] sm:$0xff]
        %v2966 = vld [vmem:[#allocation13 + $0x4c8] sm:$0xff]
        %v2967 = vld [vmem:[#allocation13 + $0x4d0] sm:$0xff]
        %v2968 = vld [vmem:[#allocation13 + $0x4d8] sm:$0xff]
        %v2969 = vld [vmem:[#allocation13 + $0x4e0] sm:$0xff]
        %v2970 = vld [vmem:[#allocation13 + $0x4e8] sm:$0xff]
        %v2971 = vld [vmem:[#allocation13 + $0x4f0] sm:$0xff]
        %v2972 = vld [vmem:[#allocation13 + $0x4f8] sm:$0xff]
        %v2973 = vld [vmem:[#allocation13 + $0x500] sm:$0xff]
        %v2974 = vld [vmem:[#allocation13 + $0x508] sm:$0xff]
        %v2975 = vld [vmem:[#allocation13 + $0x510] sm:$0xff]
        %v2976 = vld [vmem:[#allocation13 + $0x518] sm:$0xff]
        %v2977 = vld [vmem:[#allocation13 + $0x520] sm:$0xff]
        %v2978 = vld [vmem:[#allocation13 + $0x528] sm:$0xff]
        %v2979 = vld [vmem:[#allocation13 + $0x530] sm:$0xff]
        %v2980 = vld [vmem:[#allocation13 + $0x538] sm:$0xff]
        %v2981 = vld [vmem:[#allocation13 + $0x540] sm:$0xff]
        %v2982 = vld [vmem:[#allocation13 + $0x548] sm:$0xff]
        %v2983 = vld [vmem:[#allocation13 + $0x550] sm:$0xff]
        %v2984 = vld [vmem:[#allocation13 + $0x558] sm:$0xff]
        %v2985 = vld [vmem:[#allocation13 + $0x560] sm:$0xff]
        %v2986 = vld [vmem:[#allocation13 + $0x568] sm:$0xff]
        %v2987 = vld [vmem:[#allocation13 + $0x570] sm:$0xff]
        %v2988 = vld [vmem:[#allocation13 + $0x578] sm:$0xff]
        %v2989 = vld [vmem:[#allocation13 + $0x580] sm:$0xff]
        %v2990 = vld [vmem:[#allocation13 + $0x588] sm:$0xff]
        %v2991 = vld [vmem:[#allocation13 + $0x590] sm:$0xff]
        %v2992 = vld [vmem:[#allocation13 + $0x598] sm:$0xff]
        %v2993 = vld [vmem:[#allocation13 + $0x5a0] sm:$0xff]
        %v2994 = vld [vmem:[#allocation13 + $0x5a8] sm:$0xff]
        %v2995 = vld [vmem:[#allocation13 + $0x5b0] sm:$0xff]
        %v2996 = vld [vmem:[#allocation13 + $0x5b8] sm:$0xff]
        %v2997 = vld [vmem:[#allocation13 + $0x5c0] sm:$0xff]
        %v2998 = vld [vmem:[#allocation13 + $0x5c8] sm:$0xff]
        %v2999 = vld [vmem:[#allocation13 + $0x5d0] sm:$0xff]
        %v3000 = vld [vmem:[#allocation13 + $0x5d8] sm:$0xff]
        %v3001 = vld [vmem:[#allocation13 + $0x5e0] sm:$0xff]
        %v3002 = vld [vmem:[#allocation13 + $0x5e8] sm:$0xff]
        %v3003 = vld [vmem:[#allocation13 + $0x5f0] sm:$0xff]
        %v3004 = vld [vmem:[#allocation13 + $0x5f8] sm:$0xff]
        %v3005 = vld [vmem:[#allocation13 + $0x600] sm:$0xff]
        %v3006 = vld [vmem:[#allocation13 + $0x608] sm:$0xff]
        %v3007 = vld [vmem:[#allocation13 + $0x610] sm:$0xff]
        %v3008 = vld [vmem:[#allocation13 + $0x618] sm:$0xff]
        %v3009 = vld [vmem:[#allocation13 + $0x620] sm:$0xff]
        %v3010 = vld [vmem:[#allocation13 + $0x628] sm:$0xff]
        %v3011 = vld [vmem:[#allocation13 + $0x630] sm:$0xff]
        %v3012 = vld [vmem:[#allocation13 + $0x638] sm:$0xff]
        %v3013 = vld [vmem:[#allocation13 + $0x640] sm:$0xff]
        %v3014 = vld [vmem:[#allocation13 + $0x648] sm:$0xff]
        %v3015 = vld [vmem:[#allocation13 + $0x650] sm:$0xff]
        %v3016 = vld [vmem:[#allocation13 + $0x658] sm:$0xff]
        %v3017 = vld [vmem:[#allocation13 + $0x660] sm:$0xff]
        %v3018 = vld [vmem:[#allocation13 + $0x668] sm:$0xff]
        %v3019 = vld [vmem:[#allocation13 + $0x670] sm:$0xff]
        %v3020 = vld [vmem:[#allocation13 + $0x678] sm:$0xff]
        %v3021 = vld [vmem:[#allocation13 + $0x680] sm:$0xff]
        %v3022 = vld [vmem:[#allocation13 + $0x688] sm:$0xff]
        %v3023 = vld [vmem:[#allocation13 + $0x690] sm:$0xff]
        %v3024 = vld [vmem:[#allocation13 + $0x698] sm:$0xff]
        %v3025 = vld [vmem:[#allocation13 + $0x6a0] sm:$0xff]
        %v3026 = vld [vmem:[#allocation13 + $0x6a8] sm:$0xff]
        %v3027 = vld [vmem:[#allocation13 + $0x6b0] sm:$0xff]
        %v3028 = vld [vmem:[#allocation13 + $0x6b8] sm:$0xff]
        %v3029 = vld [vmem:[#allocation13 + $0x6c0] sm:$0xff]
        %v3030 = vld [vmem:[#allocation13 + $0x6c8] sm:$0xff]
        %v3031 = vld [vmem:[#allocation13 + $0x6d0] sm:$0xff]
        %v3032 = vld [vmem:[#allocation13 + $0x6d8] sm:$0xff]
        %v3033 = vld [vmem:[#allocation13 + $0x6e0] sm:$0xff]
        %v3034 = vld [vmem:[#allocation13 + $0x6e8] sm:$0xff]
        %v3035 = vld [vmem:[#allocation13 + $0x6f0] sm:$0xff]
        %v3036 = vld [vmem:[#allocation13 + $0x6f8] sm:$0xff]
        %v3037 = vld [vmem:[#allocation13 + $0x700] sm:$0xff]
        %v3038 = vld [vmem:[#allocation13 + $0x708] sm:$0xff]
        %v3039 = vld [vmem:[#allocation13 + $0x710] sm:$0xff]
        %v3040 = vld [vmem:[#allocation13 + $0x718] sm:$0xff]
        %v3041 = vld [vmem:[#allocation13 + $0x720] sm:$0xff]
        %v3042 = vld [vmem:[#allocation13 + $0x728] sm:$0xff]
        %v3043 = vld [vmem:[#allocation13 + $0x730] sm:$0xff]
        %v3044 = vld [vmem:[#allocation13 + $0x738] sm:$0xff]
        %v3045 = vld [vmem:[#allocation13 + $0x740] sm:$0xff]
        %v3046 = vld [vmem:[#allocation13 + $0x748] sm:$0xff]
        %v3047 = vld [vmem:[#allocation13 + $0x750] sm:$0xff]
        %v3048 = vld [vmem:[#allocation13 + $0x758] sm:$0xff]
        %v3049 = vld [vmem:[#allocation13 + $0x760] sm:$0xff]
        %v3050 = vld [vmem:[#allocation13 + $0x768] sm:$0xff]
        %v3051 = vld [vmem:[#allocation13 + $0x770] sm:$0xff]
        %v3052 = vld [vmem:[#allocation13 + $0x778] sm:$0xff]
        %v3053 = vld [vmem:[#allocation13 + $0x780] sm:$0xff]
        %v3054 = vld [vmem:[#allocation13 + $0x788] sm:$0xff]
        %v3055 = vld [vmem:[#allocation13 + $0x790] sm:$0xff]
        %v3056 = vld [vmem:[#allocation13 + $0x798] sm:$0xff]
        %v3057 = vld [vmem:[#allocation13 + $0x7a0] sm:$0xff]
        %v3058 = vld [vmem:[#allocation13 + $0x7a8] sm:$0xff]
        %v3059 = vld [vmem:[#allocation13 + $0x7b0] sm:$0xff]
        %v3060 = vld [vmem:[#allocation13 + $0x7b8] sm:$0xff]
        %v3061 = vld [vmem:[#allocation13 + $0x7c0] sm:$0xff]
        %v3062 = vld [vmem:[#allocation13 + $0x7c8] sm:$0xff]
        %v3063 = vld [vmem:[#allocation13 + $0x7d0] sm:$0xff]
        %v3064 = vld [vmem:[#allocation13 + $0x7d8] sm:$0xff]
        %v3065 = vld [vmem:[#allocation13 + $0x7e0] sm:$0xff]
        %v3066 = vld [vmem:[#allocation13 + $0x7e8] sm:$0xff]
        %v3067 = vld [vmem:[#allocation13 + $0x7f0] sm:$0xff]
        %v3068 = vld [vmem:[#allocation13 + $0x7f8] sm:$0xff]
        %v3069 = vld [vmem:[#allocation13 + $0x800] sm:$0xff]
        %v3070 = vld [vmem:[#allocation13 + $0x808] sm:$0xff]
        %v3071 = vld [vmem:[#allocation13 + $0x810] sm:$0xff]
        %v3072 = vld [vmem:[#allocation13 + $0x818] sm:$0xff]
        %v3073 = vld [vmem:[#allocation13 + $0x820] sm:$0xff]
        %v3074 = vld [vmem:[#allocation13 + $0x828] sm:$0xff]
        %v3075 = vld [vmem:[#allocation13 + $0x830] sm:$0xff]
        %v3076 = vld [vmem:[#allocation13 + $0x838] sm:$0xff]
        %v3077 = vld [vmem:[#allocation13 + $0x840] sm:$0xff]
        %v3078 = vld [vmem:[#allocation13 + $0x848] sm:$0xff]
        %v3079 = vld [vmem:[#allocation13 + $0x850] sm:$0xff]
        %v3080 = vld [vmem:[#allocation13 + $0x858] sm:$0xff]
        %v3081 = vld [vmem:[#allocation13 + $0x860] sm:$0xff]
        %v3082 = vld [vmem:[#allocation13 + $0x868] sm:$0xff]
        %v3083 = vld [vmem:[#allocation13 + $0x870] sm:$0xff]
        %v3084 = vld [vmem:[#allocation13 + $0x878] sm:$0xff]
        %v3085 = vld [vmem:[#allocation13 + $0x880] sm:$0xff]
        %v3086 = vld [vmem:[#allocation13 + $0x888] sm:$0xff]
        %v3087 = vld [vmem:[#allocation13 + $0x890] sm:$0xff]
        %v3088 = vld [vmem:[#allocation13 + $0x898] sm:$0xff]
        %v3089 = vld [vmem:[#allocation13 + $0x8a0] sm:$0xff]
        %v3090 = vld [vmem:[#allocation13 + $0x8a8] sm:$0xff]
        %v3091 = vld [vmem:[#allocation13 + $0x8b0] sm:$0xff]
        %v3092 = vld [vmem:[#allocation13 + $0x8b8] sm:$0xff]
        %v3093 = vld [vmem:[#allocation13 + $0x8c0] sm:$0xff]
        %v3094 = vld [vmem:[#allocation13 + $0x8c8] sm:$0xff]
        %v3095 = vld [vmem:[#allocation13 + $0x8d0] sm:$0xff]
        %v3096 = vld [vmem:[#allocation13 + $0x8d8] sm:$0xff]
        %v3097 = vld [vmem:[#allocation13 + $0x8e0] sm:$0xff]
        %v3098 = vld [vmem:[#allocation13 + $0x8e8] sm:$0xff]
        %v3099 = vld [vmem:[#allocation13 + $0x8f0] sm:$0xff]
        %v3100 = vld [vmem:[#allocation13 + $0x8f8] sm:$0xff]
        %v3101 = vld [vmem:[#allocation13 + $0x900] sm:$0xff]
        %v3102 = vld [vmem:[#allocation13 + $0x908] sm:$0xff]
        %v3103 = vld [vmem:[#allocation13 + $0x910] sm:$0xff]
        %v3104 = vld [vmem:[#allocation13 + $0x918] sm:$0xff]
        %v3105 = vld [vmem:[#allocation13 + $0x920] sm:$0xff]
        %v3106 = vld [vmem:[#allocation13 + $0x928] sm:$0xff]
        %v3107 = vld [vmem:[#allocation13 + $0x930] sm:$0xff]
        %v3108 = vld [vmem:[#allocation13 + $0x938] sm:$0xff]
        %v3109 = vld [vmem:[#allocation13 + $0x940] sm:$0xff]
        %v3110 = vld [vmem:[#allocation13 + $0x948] sm:$0xff]
        %v3111 = vld [vmem:[#allocation13 + $0x950] sm:$0xff]
        %v3112 = vld [vmem:[#allocation13 + $0x958] sm:$0xff]
        %v3113 = vld [vmem:[#allocation13 + $0x960] sm:$0xff]
        %v3114 = vld [vmem:[#allocation13 + $0x968] sm:$0xff]
        %v3115 = vld [vmem:[#allocation13 + $0x970] sm:$0xff]
        %v3116 = vld [vmem:[#allocation13 + $0x978] sm:$0xff]
        %v3117 = vld [vmem:[#allocation13 + $0x980] sm:$0xff]
        %v3118 = vld [vmem:[#allocation13 + $0x988] sm:$0xff]
        %v3119 = vld [vmem:[#allocation13 + $0x990] sm:$0xff]
        %v3120 = vld [vmem:[#allocation13 + $0x998] sm:$0xff]
        %v3121 = vld [vmem:[#allocation13 + $0x9a0] sm:$0xff]
        %v3122 = vld [vmem:[#allocation13 + $0x9a8] sm:$0xff]
        %v3123 = vld [vmem:[#allocation13 + $0x9b0] sm:$0xff]
        %v3124 = vld [vmem:[#allocation13 + $0x9b8] sm:$0xff]
        %v3125 = vld [vmem:[#allocation13 + $0x9c0] sm:$0xff]
        %v3126 = vld [vmem:[#allocation13 + $0x9c8] sm:$0xff]
        %v3127 = vld [vmem:[#allocation13 + $0x9d0] sm:$0xff]
        %v3128 = vld [vmem:[#allocation13 + $0x9d8] sm:$0xff]
        %v3129 = vld [vmem:[#allocation13 + $0x9e0] sm:$0xff]
        %v3130 = vld [vmem:[#allocation13 + $0x9e8] sm:$0xff]
        %v3131 = vld [vmem:[#allocation13 + $0x9f0] sm:$0xff]
        %v3132 = vld [vmem:[#allocation13 + $0x9f8] sm:$0xff]
        %v3133 = vld [vmem:[#allocation13 + $0xa00] sm:$0xff]
        %v3134 = vld [vmem:[#allocation13 + $0xa08] sm:$0xff]
        %v3135 = vld [vmem:[#allocation13 + $0xa10] sm:$0xff]
        %v3136 = vld [vmem:[#allocation13 + $0xa18] sm:$0xff]
        %v3137 = vld [vmem:[#allocation13 + $0xa20] sm:$0xff]
        %v3138 = vld [vmem:[#allocation13 + $0xa28] sm:$0xff]
        %v3139 = vld [vmem:[#allocation13 + $0xa30] sm:$0xff]
        %v3140 = vld [vmem:[#allocation13 + $0xa38] sm:$0xff]
        %v3141 = vld [vmem:[#allocation13 + $0xa40] sm:$0xff]
        %v3142 = vld [vmem:[#allocation13 + $0xa48] sm:$0xff]
        %v3143 = vld [vmem:[#allocation13 + $0xa50] sm:$0xff]
        %v3144 = vld [vmem:[#allocation13 + $0xa58] sm:$0xff]
        %v3145 = vld [vmem:[#allocation13 + $0xa60] sm:$0xff]
        %v3146 = vld [vmem:[#allocation13 + $0xa68] sm:$0xff]
        %v3147 = vld [vmem:[#allocation13 + $0xa70] sm:$0xff]
        %v3148 = vld [vmem:[#allocation13 + $0xa78] sm:$0xff]
        %v3149 = vld [vmem:[#allocation13 + $0xa80] sm:$0xff]
        %v3150 = vld [vmem:[#allocation13 + $0xa88] sm:$0xff]
        %v3151 = vld [vmem:[#allocation13 + $0xa90] sm:$0xff]
        %v3152 = vld [vmem:[#allocation13 + $0xa98] sm:$0xff]
        %v3153 = vld [vmem:[#allocation13 + $0xaa0] sm:$0xff]
        %v3154 = vld [vmem:[#allocation13 + $0xaa8] sm:$0xff]
        %v3155 = vld [vmem:[#allocation13 + $0xab0] sm:$0xff]
        %v3156 = vld [vmem:[#allocation13 + $0xab8] sm:$0xff]
        %v3157 = vld [vmem:[#allocation13 + $0xac0] sm:$0xff]
        %v3158 = vld [vmem:[#allocation13 + $0xac8] sm:$0xff]
        %v3159 = vld [vmem:[#allocation13 + $0xad0] sm:$0xff]
        %v3160 = vld [vmem:[#allocation13 + $0xad8] sm:$0xff]
        %v3161 = vld [vmem:[#allocation13 + $0xae0] sm:$0xff]
        %v3162 = vld [vmem:[#allocation13 + $0xae8] sm:$0xff]
        %v3163 = vld [vmem:[#allocation13 + $0xaf0] sm:$0xff]
        %v3164 = vld [vmem:[#allocation13 + $0xaf8] sm:$0xff]
        %v3165 = vld [vmem:[#allocation13 + $0xb00] sm:$0xff]
        %v3166 = vld [vmem:[#allocation13 + $0xb08] sm:$0xff]
        %v3167 = vld [vmem:[#allocation13 + $0xb10] sm:$0xff]
        %v3168 = vld [vmem:[#allocation13 + $0xb18] sm:$0xff]
        %v3169 = vld [vmem:[#allocation13 + $0xb20] sm:$0xff]
        %v3170 = vld [vmem:[#allocation13 + $0xb28] sm:$0xff]
        %v3171 = vld [vmem:[#allocation13 + $0xb30] sm:$0xff]
        %v3172 = vld [vmem:[#allocation13 + $0xb38] sm:$0xff]
        %v3173 = vld [vmem:[#allocation13 + $0xb40] sm:$0xff]
        %v3174 = vld [vmem:[#allocation13 + $0xb48] sm:$0xff]
        %v3175 = vld [vmem:[#allocation13 + $0xb50] sm:$0xff]
        %v3176 = vld [vmem:[#allocation13 + $0xb58] sm:$0xff]
        %v3177 = vld [vmem:[#allocation13 + $0xb60] sm:$0xff]
        %v3178 = vld [vmem:[#allocation13 + $0xb68] sm:$0xff]
        %v3179 = vld [vmem:[#allocation13 + $0xb70] sm:$0xff]
        %v3180 = vld [vmem:[#allocation13 + $0xb78] sm:$0xff]
        %v3181 = vld [vmem:[#allocation13 + $0xb80] sm:$0xff]
        %v3182 = vld [vmem:[#allocation13 + $0xb88] sm:$0xff]
        %v3183 = vld [vmem:[#allocation13 + $0xb90] sm:$0xff]
        %v3184 = vld [vmem:[#allocation13 + $0xb98] sm:$0xff]
        %v3185 = vld [vmem:[#allocation13 + $0xba0] sm:$0xff]
        %v3186 = vld [vmem:[#allocation13 + $0xba8] sm:$0xff]
        %v3187 = vld [vmem:[#allocation13 + $0xbb0] sm:$0xff]
        %v3188 = vld [vmem:[#allocation13 + $0xbb8] sm:$0xff]
        %v3189 = vld [vmem:[#allocation13 + $0xbc0] sm:$0xff]
        %v3190 = vld [vmem:[#allocation13 + $0xbc8] sm:$0xff]
        %v3191 = vld [vmem:[#allocation13 + $0xbd0] sm:$0xff]
        %v3192 = vld [vmem:[#allocation13 + $0xbd8] sm:$0xff]
        %v3193 = vld [vmem:[#allocation13 + $0xbe0] sm:$0xff]
        %v3194 = vld [vmem:[#allocation13 + $0xbe8] sm:$0xff]
        %v3195 = vld [vmem:[#allocation13 + $0xbf0] sm:$0xff]
        %v3196 = vld [vmem:[#allocation13 + $0xbf8] sm:$0xff]
        %v3197 = vld [vmem:[#allocation13 + $0xc00] sm:$0xff]
        %v3198 = vld [vmem:[#allocation13 + $0xc08] sm:$0xff]
        %v3199 = vld [vmem:[#allocation13 + $0xc10] sm:$0xff]
        %v3200 = vld [vmem:[#allocation13 + $0xc18] sm:$0xff]
        %v3201 = vld [vmem:[#allocation13 + $0xc20] sm:$0xff]
        %v3202 = vld [vmem:[#allocation13 + $0xc28] sm:$0xff]
        %v3203 = vld [vmem:[#allocation13 + $0xc30] sm:$0xff]
        %v3204 = vld [vmem:[#allocation13 + $0xc38] sm:$0xff]
        %v3205 = vld [vmem:[#allocation13 + $0xc40] sm:$0xff]
        %v3206 = vld [vmem:[#allocation13 + $0xc48] sm:$0xff]
        %v3207 = vld [vmem:[#allocation13 + $0xc50] sm:$0xff]
        %v3208 = vld [vmem:[#allocation13 + $0xc58] sm:$0xff]
        %v3209 = vld [vmem:[#allocation13 + $0xc60] sm:$0xff]
        %v3210 = vld [vmem:[#allocation13 + $0xc68] sm:$0xff]
        %v3211 = vld [vmem:[#allocation13 + $0xc70] sm:$0xff]
        %v3212 = vld [vmem:[#allocation13 + $0xc78] sm:$0xff]
        %v3213 = vld [vmem:[#allocation13 + $0xc80] sm:$0xff]
        %v3214 = vld [vmem:[#allocation13 + $0xc88] sm:$0xff]
        %v3215 = vld [vmem:[#allocation13 + $0xc90] sm:$0xff]
        %v3216 = vld [vmem:[#allocation13 + $0xc98] sm:$0xff]
        %v3217 = vld [vmem:[#allocation13 + $0xca0] sm:$0xff]
        %v3218 = vld [vmem:[#allocation13 + $0xca8] sm:$0xff]
        %v3219 = vld [vmem:[#allocation13 + $0xcb0] sm:$0xff]
        %v3220 = vld [vmem:[#allocation13 + $0xcb8] sm:$0xff]
        %v3221 = vld [vmem:[#allocation13 + $0xcc0] sm:$0xff]
        %v3222 = vld [vmem:[#allocation13 + $0xcc8] sm:$0xff]
        %v3223 = vld [vmem:[#allocation13 + $0xcd0] sm:$0xff]
        %v3224 = vld [vmem:[#allocation13 + $0xcd8] sm:$0xff]
        %v3225 = vld [vmem:[#allocation13 + $0xce0] sm:$0xff]
        %v3226 = vld [vmem:[#allocation13 + $0xce8] sm:$0xff]
        %v3227 = vld [vmem:[#allocation13 + $0xcf0] sm:$0xff]
        %v3228 = vld [vmem:[#allocation13 + $0xcf8] sm:$0xff]
        %v3229 = vld [vmem:[#allocation13 + $0xd00] sm:$0xff]
        %v3230 = vld [vmem:[#allocation13 + $0xd08] sm:$0xff]
        %v3231 = vld [vmem:[#allocation13 + $0xd10] sm:$0xff]
        %v3232 = vld [vmem:[#allocation13 + $0xd18] sm:$0xff]
        %v3233 = vld [vmem:[#allocation13 + $0xd20] sm:$0xff]
        %v3234 = vld [vmem:[#allocation13 + $0xd28] sm:$0xff]
        %v3235 = vld [vmem:[#allocation13 + $0xd30] sm:$0xff]
        %v3236 = vld [vmem:[#allocation13 + $0xd38] sm:$0xff]
        %v3237 = vld [vmem:[#allocation13 + $0xd40] sm:$0xff]
        %v3238 = vld [vmem:[#allocation13 + $0xd48] sm:$0xff]
        %v3239 = vld [vmem:[#allocation13 + $0xd50] sm:$0xff]
        %v3240 = vld [vmem:[#allocation13 + $0xd58] sm:$0xff]
        %v3241 = vld [vmem:[#allocation13 + $0xd60] sm:$0xff]
        %v3242 = vld [vmem:[#allocation13 + $0xd68] sm:$0xff]
        %v3243 = vld [vmem:[#allocation13 + $0xd70] sm:$0xff]
        %v3244 = vld [vmem:[#allocation13 + $0xd78] sm:$0xff]
        %v3245 = vld [vmem:[#allocation13 + $0xd80] sm:$0xff]
        %v3246 = vld [vmem:[#allocation13 + $0xd88] sm:$0xff]
        %v3247 = vld [vmem:[#allocation13 + $0xd90] sm:$0xff]
        %v3248 = vld [vmem:[#allocation13 + $0xd98] sm:$0xff]
        %v3249 = vld [vmem:[#allocation13 + $0xda0] sm:$0xff]
        %v3250 = vld [vmem:[#allocation13 + $0xda8] sm:$0xff]
        %v3251 = vld [vmem:[#allocation13 + $0xdb0] sm:$0xff]
        %v3252 = vld [vmem:[#allocation13 + $0xdb8] sm:$0xff]
        %v3253 = vld [vmem:[#allocation13 + $0xdc0] sm:$0xff]
        %v3254 = vld [vmem:[#allocation13 + $0xdc8] sm:$0xff]
        %v3255 = vld [vmem:[#allocation13 + $0xdd0] sm:$0xff]
        %v3256 = vld [vmem:[#allocation13 + $0xdd8] sm:$0xff]
        %v3257 = vld [vmem:[#allocation13 + $0xde0] sm:$0xff]
        %v3258 = vld [vmem:[#allocation13 + $0xde8] sm:$0xff]
        %v3259 = vld [vmem:[#allocation13 + $0xdf0] sm:$0xff]
        %v3260 = vld [vmem:[#allocation13 + $0xdf8] sm:$0xff]
        %v3261 = vld [vmem:[#allocation13 + $0xe00] sm:$0xff]
        %v3262 = vld [vmem:[#allocation13 + $0xe08] sm:$0xff]
        %v3263 = vld [vmem:[#allocation13 + $0xe10] sm:$0xff]
        %v3264 = vld [vmem:[#allocation13 + $0xe18] sm:$0xff]
        %v3265 = vld [vmem:[#allocation13 + $0xe20] sm:$0xff]
        %v3266 = vld [vmem:[#allocation13 + $0xe28] sm:$0xff]
        %v3267 = vld [vmem:[#allocation13 + $0xe30] sm:$0xff]
        %v3268 = vld [vmem:[#allocation13 + $0xe38] sm:$0xff]
        %v3269 = vld [vmem:[#allocation13 + $0xe40] sm:$0xff]
        %v3270 = vld [vmem:[#allocation13 + $0xe48] sm:$0xff]
        %v3271 = vld [vmem:[#allocation13 + $0xe50] sm:$0xff]
        %v3272 = vld [vmem:[#allocation13 + $0xe58] sm:$0xff]
        %v3273 = vld [vmem:[#allocation13 + $0xe60] sm:$0xff]
        %v3274 = vld [vmem:[#allocation13 + $0xe68] sm:$0xff]
        %v3275 = vld [vmem:[#allocation13 + $0xe70] sm:$0xff]
        %v3276 = vld [vmem:[#allocation13 + $0xe78] sm:$0xff]
        %v3277 = vld [vmem:[#allocation13 + $0xe80] sm:$0xff]
        %v3278 = vld [vmem:[#allocation13 + $0xe88] sm:$0xff]
        %v3279 = vld [vmem:[#allocation13 + $0xe90] sm:$0xff]
        %v3280 = vld [vmem:[#allocation13 + $0xe98] sm:$0xff]
        %v3281 = vld [vmem:[#allocation13 + $0xea0] sm:$0xff]
        %v3282 = vld [vmem:[#allocation13 + $0xea8] sm:$0xff]
        %v3283 = vld [vmem:[#allocation13 + $0xeb0] sm:$0xff]
        %v3284 = vld [vmem:[#allocation13 + $0xeb8] sm:$0xff]
        %v3285 = vld [vmem:[#allocation13 + $0xec0] sm:$0xff]
        %v3286 = vld [vmem:[#allocation13 + $0xec8] sm:$0xff]
        %v3287 = vld [vmem:[#allocation13 + $0xed0] sm:$0xff]
        %v3288 = vld [vmem:[#allocation13 + $0xed8] sm:$0xff]
        %v3289 = vld [vmem:[#allocation13 + $0xee0] sm:$0xff]
        %v3290 = vld [vmem:[#allocation13 + $0xee8] sm:$0xff]
        %v3291 = vld [vmem:[#allocation13 + $0xef0] sm:$0xff]
        %v3292 = vld [vmem:[#allocation13 + $0xef8] sm:$0xff]
        %v3293 = vld [vmem:[#allocation13 + $0xf00] sm:$0xff]
        %v3294 = vld [vmem:[#allocation13 + $0xf08] sm:$0xff]
        %v3295 = vld [vmem:[#allocation13 + $0xf10] sm:$0xff]
        %v3296 = vld [vmem:[#allocation13 + $0xf18] sm:$0xff]
        %v3297 = vld [vmem:[#allocation13 + $0xf20] sm:$0xff]
        %v3298 = vld [vmem:[#allocation13 + $0xf28] sm:$0xff]
        %v3299 = vld [vmem:[#allocation13 + $0xf30] sm:$0xff]
        %v3300 = vld [vmem:[#allocation13 + $0xf38] sm:$0xff]
        %v3301 = vld [vmem:[#allocation13 + $0xf40] sm:$0xff]
        %v3302 = vld [vmem:[#allocation13 + $0xf48] sm:$0xff]
        %v3303 = vld [vmem:[#allocation13 + $0xf50] sm:$0xff]
        %v3304 = vld [vmem:[#allocation13 + $0xf58] sm:$0xff]
        %v3305 = vld [vmem:[#allocation13 + $0xf60] sm:$0xff]
        %v3306 = vld [vmem:[#allocation13 + $0xf68] sm:$0xff]
        %v3307 = vld [vmem:[#allocation13 + $0xf70] sm:$0xff]
        %v3308 = vld [vmem:[#allocation13 + $0xf78] sm:$0xff]
        %v3309 = vld [vmem:[#allocation13 + $0xf80] sm:$0xff]
        %v3310 = vld [vmem:[#allocation13 + $0xf88] sm:$0xff]
        %v3311 = vld [vmem:[#allocation13 + $0xf90] sm:$0xff]
        %v3312 = vld [vmem:[#allocation13 + $0xf98] sm:$0xff]
        %v3313 = vld [vmem:[#allocation13 + $0xfa0] sm:$0xff]
        %v3314 = vld [vmem:[#allocation13 + $0xfa8] sm:$0xff]
        %v3315 = vld [vmem:[#allocation13 + $0xfb0] sm:$0xff]
        %v3316 = vld [vmem:[#allocation13 + $0xfb8] sm:$0xff]
        %v3317 = vld [vmem:[#allocation13 + $0xfc0] sm:$0xff]
        %v3318 = vld [vmem:[#allocation13 + $0xfc8] sm:$0xff]
        %v3319 = vld [vmem:[#allocation13 + $0xfd0] sm:$0xff]
        %v3320 = vld [vmem:[#allocation13 + $0xfd8] sm:$0xff]
        %v3321 = vld [vmem:[#allocation13 + $0xfe0] sm:$0xff]
        %v3322 = vld [vmem:[#allocation13 + $0xfe8] sm:$0xff]
        %v3323 = vld [vmem:[#allocation13 + $0xff0] sm:$0xff]
        %v3324 = vld [vmem:[#allocation13 + $0xff8] sm:$0xff]
        %v3325 = vld [vmem:[#allocation14] sm:$0xff]
        %v3326 = vld [vmem:[#allocation14 + $0x8] sm:$0xff]
        %v3329 = vlaneseq
        %v3330 = vshrl.u32 %v3329, 7
        %v3331 = vsub.s32 0, %v3330
        %v3332 = vrot.slane %v3325, %v3331
        %v3333 = vlaneseq
        %v3334 = vshrl.u32 %v3333, 7
        %v3335 = vsub.s32 1, %v3334
        %v3336 = vrot.slane %v3325, %v3335
        %v3337 = vlaneseq
        %v3338 = vshrl.u32 %v3337, 7
        %v3339 = vsub.s32 2, %v3338
        %v3340 = vrot.slane %v3325, %v3339
        %v3341 = vlaneseq
        %v3342 = vshrl.u32 %v3341, 7
        %v3343 = vsub.s32 3, %v3342
        %v3344 = vrot.slane %v3325, %v3343
        %v3345 = vlaneseq
        %v3346 = vshrl.u32 %v3345, 7
        %v3347 = vsub.s32 4, %v3346
        %v3348 = vrot.slane %v3325, %v3347
        %v3349 = vlaneseq
        %v3350 = vshrl.u32 %v3349, 7
        %v3351 = vsub.s32 5, %v3350
        %v3352 = vrot.slane %v3325, %v3351
        %v3353 = vlaneseq
        %v3354 = vshrl.u32 %v3353, 7
        %v3355 = vsub.s32 6, %v3354
        %v3356 = vrot.slane %v3325, %v3355
        %v3357 = vlaneseq
        %v3358 = vshrl.u32 %v3357, 7
        %v3359 = vsub.s32 7, %v3358
        %v3360 = vrot.slane %v3325, %v3359
        %v3361 = vlaneseq
        %v3362 = vshrl.u32 %v3361, 7
        %v3363 = vsub.s32 0, %v3362
        %v3364 = vrot.slane %v3326, %v3363
        %v3365 = vlaneseq
        %v3366 = vshrl.u32 %v3365, 7
        %v3367 = vsub.s32 1, %v3366
        %v3368 = vrot.slane %v3326, %v3367
        %v3369 = vlaneseq
        %v3370 = vshrl.u32 %v3369, 7
        %v3371 = vsub.s32 2, %v3370
        %v3372 = vrot.slane %v3326, %v3371
        %v3373 = vlaneseq
        %v3374 = vshrl.u32 %v3373, 7
        %v3375 = vsub.s32 3, %v3374
        %v3376 = vrot.slane %v3326, %v3375
        %v3377 = vlaneseq
        %v3378 = vshrl.u32 %v3377, 7
        %v3379 = vsub.s32 4, %v3378
        %v3380 = vrot.slane %v3326, %v3379
        %v3381 = vlaneseq
        %v3382 = vshrl.u32 %v3381, 7
        %v3383 = vsub.s32 5, %v3382
        %v3384 = vrot.slane %v3326, %v3383
        %v3385 = vlaneseq
        %v3386 = vshrl.u32 %v3385, 7
        %v3387 = vsub.s32 6, %v3386
        %v3388 = vrot.slane %v3326, %v3387
        %v3389 = vlaneseq
        %v3390 = vshrl.u32 %v3389, 7
        %v3391 = vsub.s32 7, %v3390
        %v3392 = vrot.slane %v3326, %v3391
        %v3921 = vunpack.c.l.b16 %v2813
        %v3922 = vunpack.c.h.b16 %v2813
        %v3923 = vunpack.c.l.b16 %v2814
        %v3924 = vunpack.c.h.b16 %v2814
        %v3925 = vunpack.c.l.b16 %v2815
        %v3926 = vunpack.c.h.b16 %v2815
        %v3927 = vunpack.c.l.b16 %v2816
        %v3928 = vunpack.c.h.b16 %v2816
        %v3929 = vunpack.c.l.b16 %v2817
        %v3930 = vunpack.c.h.b16 %v2817
        %v3931 = vunpack.c.l.b16 %v2818
        %v3932 = vunpack.c.h.b16 %v2818
        %v3933 = vunpack.c.l.b16 %v2819
        %v3934 = vunpack.c.h.b16 %v2819
        %v3935 = vunpack.c.l.b16 %v2820
        %v3936 = vunpack.c.h.b16 %v2820
        %v3937 = vunpack.c.l.b16 %v2821
        %v3938 = vunpack.c.h.b16 %v2821
        %v3939 = vunpack.c.l.b16 %v2822
        %v3940 = vunpack.c.h.b16 %v2822
        %v3941 = vunpack.c.l.b16 %v2823
        %v3942 = vunpack.c.h.b16 %v2823
        %v3943 = vunpack.c.l.b16 %v2824
        %v3944 = vunpack.c.h.b16 %v2824
        %v3945 = vunpack.c.l.b16 %v2825
        %v3946 = vunpack.c.h.b16 %v2825
        %v3947 = vunpack.c.l.b16 %v2826
        %v3948 = vunpack.c.h.b16 %v2826
        %v3949 = vunpack.c.l.b16 %v2827
        %v3950 = vunpack.c.h.b16 %v2827
        %v3951 = vunpack.c.l.b16 %v2828
        %v3952 = vunpack.c.h.b16 %v2828
        %v3953 = vunpack.c.l.b16 %v2829
        %v3954 = vunpack.c.h.b16 %v2829
        %v3955 = vunpack.c.l.b16 %v2830
        %v3956 = vunpack.c.h.b16 %v2830
        %v3957 = vunpack.c.l.b16 %v2831
        %v3958 = vunpack.c.h.b16 %v2831
        %v3959 = vunpack.c.l.b16 %v2832
        %v3960 = vunpack.c.h.b16 %v2832
        %v3961 = vunpack.c.l.b16 %v2833
        %v3962 = vunpack.c.h.b16 %v2833
        %v3963 = vunpack.c.l.b16 %v2834
        %v3964 = vunpack.c.h.b16 %v2834
        %v3965 = vunpack.c.l.b16 %v2835
        %v3966 = vunpack.c.h.b16 %v2835
        %v3967 = vunpack.c.l.b16 %v2836
        %v3968 = vunpack.c.h.b16 %v2836
        %v3969 = vunpack.c.l.b16 %v2837
        %v3970 = vunpack.c.h.b16 %v2837
        %v3971 = vunpack.c.l.b16 %v2838
        %v3972 = vunpack.c.h.b16 %v2838
        %v3973 = vunpack.c.l.b16 %v2839
        %v3974 = vunpack.c.h.b16 %v2839
        %v3975 = vunpack.c.l.b16 %v2840
        %v3976 = vunpack.c.h.b16 %v2840
        %v3977 = vunpack.c.l.b16 %v2841
        %v3978 = vunpack.c.h.b16 %v2841
        %v3979 = vunpack.c.l.b16 %v2842
        %v3980 = vunpack.c.h.b16 %v2842
        %v3981 = vunpack.c.l.b16 %v2843
        %v3982 = vunpack.c.h.b16 %v2843
        %v3983 = vunpack.c.l.b16 %v2844
        %v3984 = vunpack.c.h.b16 %v2844
        %v3985 = vunpack.c.l.b16 %v2845
        %v3986 = vunpack.c.h.b16 %v2845
        %v3987 = vunpack.c.l.b16 %v2846
        %v3988 = vunpack.c.h.b16 %v2846
        %v3989 = vunpack.c.l.b16 %v2847
        %v3990 = vunpack.c.h.b16 %v2847
        %v3991 = vunpack.c.l.b16 %v2848
        %v3992 = vunpack.c.h.b16 %v2848
        %v3993 = vunpack.c.l.b16 %v2849
        %v3994 = vunpack.c.h.b16 %v2849
        %v3995 = vunpack.c.l.b16 %v2850
        %v3996 = vunpack.c.h.b16 %v2850
        %v3997 = vunpack.c.l.b16 %v2851
        %v3998 = vunpack.c.h.b16 %v2851
        %v3999 = vunpack.c.l.b16 %v2852
        %v4000 = vunpack.c.h.b16 %v2852
        %v4001 = vunpack.c.l.b16 %v2853
        %v4002 = vunpack.c.h.b16 %v2853
        %v4003 = vunpack.c.l.b16 %v2854
        %v4004 = vunpack.c.h.b16 %v2854
        %v4005 = vunpack.c.l.b16 %v2855
        %v4006 = vunpack.c.h.b16 %v2855
        %v4007 = vunpack.c.l.b16 %v2856
        %v4008 = vunpack.c.h.b16 %v2856
        %v4009 = vunpack.c.l.b16 %v2857
        %v4010 = vunpack.c.h.b16 %v2857
        %v4011 = vunpack.c.l.b16 %v2858
        %v4012 = vunpack.c.h.b16 %v2858
        %v4013 = vunpack.c.l.b16 %v2859
        %v4014 = vunpack.c.h.b16 %v2859
        %v4015 = vunpack.c.l.b16 %v2860
        %v4016 = vunpack.c.h.b16 %v2860
        %v4017 = vunpack.c.l.b16 %v2861
        %v4018 = vunpack.c.h.b16 %v2861
        %v4019 = vunpack.c.l.b16 %v2862
        %v4020 = vunpack.c.h.b16 %v2862
        %v4021 = vunpack.c.l.b16 %v2863
        %v4022 = vunpack.c.h.b16 %v2863
        %v4023 = vunpack.c.l.b16 %v2864
        %v4024 = vunpack.c.h.b16 %v2864
        %v4025 = vunpack.c.l.b16 %v2865
        %v4026 = vunpack.c.h.b16 %v2865
        %v4027 = vunpack.c.l.b16 %v2866
        %v4028 = vunpack.c.h.b16 %v2866
        %v4029 = vunpack.c.l.b16 %v2867
        %v4030 = vunpack.c.h.b16 %v2867
        %v4031 = vunpack.c.l.b16 %v2868
        %v4032 = vunpack.c.h.b16 %v2868
        %v4033 = vunpack.c.l.b16 %v2869
        %v4034 = vunpack.c.h.b16 %v2869
        %v4035 = vunpack.c.l.b16 %v2870
        %v4036 = vunpack.c.h.b16 %v2870
        %v4037 = vunpack.c.l.b16 %v2871
        %v4038 = vunpack.c.h.b16 %v2871
        %v4039 = vunpack.c.l.b16 %v2872
        %v4040 = vunpack.c.h.b16 %v2872
        %v4041 = vunpack.c.l.b16 %v2873
        %v4042 = vunpack.c.h.b16 %v2873
        %v4043 = vunpack.c.l.b16 %v2874
        %v4044 = vunpack.c.h.b16 %v2874
        %v4045 = vunpack.c.l.b16 %v2875
        %v4046 = vunpack.c.h.b16 %v2875
        %v4047 = vunpack.c.l.b16 %v2876
        %v4048 = vunpack.c.h.b16 %v2876
        %v4049 = vunpack.c.l.b16 %v2877
        %v4050 = vunpack.c.h.b16 %v2877
        %v4051 = vunpack.c.l.b16 %v2878
        %v4052 = vunpack.c.h.b16 %v2878
        %v4053 = vunpack.c.l.b16 %v2879
        %v4054 = vunpack.c.h.b16 %v2879
        %v4055 = vunpack.c.l.b16 %v2880
        %v4056 = vunpack.c.h.b16 %v2880
        %v4057 = vunpack.c.l.b16 %v2881
        %v4058 = vunpack.c.h.b16 %v2881
        %v4059 = vunpack.c.l.b16 %v2882
        %v4060 = vunpack.c.h.b16 %v2882
        %v4061 = vunpack.c.l.b16 %v2883
        %v4062 = vunpack.c.h.b16 %v2883
        %v4063 = vunpack.c.l.b16 %v2884
        %v4064 = vunpack.c.h.b16 %v2884
        %v4065 = vunpack.c.l.b16 %v2885
        %v4066 = vunpack.c.h.b16 %v2885
        %v4067 = vunpack.c.l.b16 %v2886
        %v4068 = vunpack.c.h.b16 %v2886
        %v4069 = vunpack.c.l.b16 %v2887
        %v4070 = vunpack.c.h.b16 %v2887
        %v4071 = vunpack.c.l.b16 %v2888
        %v4072 = vunpack.c.h.b16 %v2888
        %v4073 = vunpack.c.l.b16 %v2889
        %v4074 = vunpack.c.h.b16 %v2889
        %v4075 = vunpack.c.l.b16 %v2890
        %v4076 = vunpack.c.h.b16 %v2890
        %v4077 = vunpack.c.l.b16 %v2891
        %v4078 = vunpack.c.h.b16 %v2891
        %v4079 = vunpack.c.l.b16 %v2892
        %v4080 = vunpack.c.h.b16 %v2892
        %v4081 = vunpack.c.l.b16 %v2893
        %v4082 = vunpack.c.h.b16 %v2893
        %v4083 = vunpack.c.l.b16 %v2894
        %v4084 = vunpack.c.h.b16 %v2894
        %v4085 = vunpack.c.l.b16 %v2895
        %v4086 = vunpack.c.h.b16 %v2895
        %v4087 = vunpack.c.l.b16 %v2896
        %v4088 = vunpack.c.h.b16 %v2896
        %v4089 = vunpack.c.l.b16 %v2897
        %v4090 = vunpack.c.h.b16 %v2897
        %v4091 = vunpack.c.l.b16 %v2898
        %v4092 = vunpack.c.h.b16 %v2898
        %v4093 = vunpack.c.l.b16 %v2899
        %v4094 = vunpack.c.h.b16 %v2899
        %v4095 = vunpack.c.l.b16 %v2900
        %v4096 = vunpack.c.h.b16 %v2900
        %v4097 = vunpack.c.l.b16 %v2901
        %v4098 = vunpack.c.h.b16 %v2901
        %v4099 = vunpack.c.l.b16 %v2902
        %v4100 = vunpack.c.h.b16 %v2902
        %v4101 = vunpack.c.l.b16 %v2903
        %v4102 = vunpack.c.h.b16 %v2903
        %v4103 = vunpack.c.l.b16 %v2904
        %v4104 = vunpack.c.h.b16 %v2904
        %v4105 = vunpack.c.l.b16 %v2905
        %v4106 = vunpack.c.h.b16 %v2905
        %v4107 = vunpack.c.l.b16 %v2906
        %v4108 = vunpack.c.h.b16 %v2906
        %v4109 = vunpack.c.l.b16 %v2907
        %v4110 = vunpack.c.h.b16 %v2907
        %v4111 = vunpack.c.l.b16 %v2908
        %v4112 = vunpack.c.h.b16 %v2908
        %v4113 = vunpack.c.l.b16 %v2909
        %v4114 = vunpack.c.h.b16 %v2909
        %v4115 = vunpack.c.l.b16 %v2910
        %v4116 = vunpack.c.h.b16 %v2910
        %v4117 = vunpack.c.l.b16 %v2911
        %v4118 = vunpack.c.h.b16 %v2911
        %v4119 = vunpack.c.l.b16 %v2912
        %v4120 = vunpack.c.h.b16 %v2912
        %v4121 = vunpack.c.l.b16 %v2913
        %v4122 = vunpack.c.h.b16 %v2913
        %v4123 = vunpack.c.l.b16 %v2914
        %v4124 = vunpack.c.h.b16 %v2914
        %v4125 = vunpack.c.l.b16 %v2915
        %v4126 = vunpack.c.h.b16 %v2915
        %v4127 = vunpack.c.l.b16 %v2916
        %v4128 = vunpack.c.h.b16 %v2916
        %v4129 = vunpack.c.l.b16 %v2917
        %v4130 = vunpack.c.h.b16 %v2917
        %v4131 = vunpack.c.l.b16 %v2918
        %v4132 = vunpack.c.h.b16 %v2918
        %v4133 = vunpack.c.l.b16 %v2919
        %v4134 = vunpack.c.h.b16 %v2919
        %v4135 = vunpack.c.l.b16 %v2920
        %v4136 = vunpack.c.h.b16 %v2920
        %v4137 = vunpack.c.l.b16 %v2921
        %v4138 = vunpack.c.h.b16 %v2921
        %v4139 = vunpack.c.l.b16 %v2922
        %v4140 = vunpack.c.h.b16 %v2922
        %v4141 = vunpack.c.l.b16 %v2923
        %v4142 = vunpack.c.h.b16 %v2923
        %v4143 = vunpack.c.l.b16 %v2924
        %v4144 = vunpack.c.h.b16 %v2924
        %v4145 = vunpack.c.l.b16 %v2925
        %v4146 = vunpack.c.h.b16 %v2925
        %v4147 = vunpack.c.l.b16 %v2926
        %v4148 = vunpack.c.h.b16 %v2926
        %v4149 = vunpack.c.l.b16 %v2927
        %v4150 = vunpack.c.h.b16 %v2927
        %v4151 = vunpack.c.l.b16 %v2928
        %v4152 = vunpack.c.h.b16 %v2928
        %v4153 = vunpack.c.l.b16 %v2929
        %v4154 = vunpack.c.h.b16 %v2929
        %v4155 = vunpack.c.l.b16 %v2930
        %v4156 = vunpack.c.h.b16 %v2930
        %v4157 = vunpack.c.l.b16 %v2931
        %v4158 = vunpack.c.h.b16 %v2931
        %v4159 = vunpack.c.l.b16 %v2932
        %v4160 = vunpack.c.h.b16 %v2932
        %v4161 = vunpack.c.l.b16 %v2933
        %v4162 = vunpack.c.h.b16 %v2933
        %v4163 = vunpack.c.l.b16 %v2934
        %v4164 = vunpack.c.h.b16 %v2934
        %v4165 = vunpack.c.l.b16 %v2935
        %v4166 = vunpack.c.h.b16 %v2935
        %v4167 = vunpack.c.l.b16 %v2936
        %v4168 = vunpack.c.h.b16 %v2936
        %v4169 = vunpack.c.l.b16 %v2937
        %v4170 = vunpack.c.h.b16 %v2937
        %v4171 = vunpack.c.l.b16 %v2938
        %v4172 = vunpack.c.h.b16 %v2938
        %v4173 = vunpack.c.l.b16 %v2939
        %v4174 = vunpack.c.h.b16 %v2939
        %v4175 = vunpack.c.l.b16 %v2940
        %v4176 = vunpack.c.h.b16 %v2940
        %v4177 = vunpack.c.l.b16 %v2941
        %v4178 = vunpack.c.h.b16 %v2941
        %v4179 = vunpack.c.l.b16 %v2942
        %v4180 = vunpack.c.h.b16 %v2942
        %v4181 = vunpack.c.l.b16 %v2943
        %v4182 = vunpack.c.h.b16 %v2943
        %v4183 = vunpack.c.l.b16 %v2944
        %v4184 = vunpack.c.h.b16 %v2944
        %v4185 = vunpack.c.l.b16 %v2945
        %v4186 = vunpack.c.h.b16 %v2945
        %v4187 = vunpack.c.l.b16 %v2946
        %v4188 = vunpack.c.h.b16 %v2946
        %v4189 = vunpack.c.l.b16 %v2947
        %v4190 = vunpack.c.h.b16 %v2947
        %v4191 = vunpack.c.l.b16 %v2948
        %v4192 = vunpack.c.h.b16 %v2948
        %v4193 = vunpack.c.l.b16 %v2949
        %v4194 = vunpack.c.h.b16 %v2949
        %v4195 = vunpack.c.l.b16 %v2950
        %v4196 = vunpack.c.h.b16 %v2950
        %v4197 = vunpack.c.l.b16 %v2951
        %v4198 = vunpack.c.h.b16 %v2951
        %v4199 = vunpack.c.l.b16 %v2952
        %v4200 = vunpack.c.h.b16 %v2952
        %v4201 = vunpack.c.l.b16 %v2953
        %v4202 = vunpack.c.h.b16 %v2953
        %v4203 = vunpack.c.l.b16 %v2954
        %v4204 = vunpack.c.h.b16 %v2954
        %v4205 = vunpack.c.l.b16 %v2955
        %v4206 = vunpack.c.h.b16 %v2955
        %v4207 = vunpack.c.l.b16 %v2956
        %v4208 = vunpack.c.h.b16 %v2956
        %v4209 = vunpack.c.l.b16 %v2957
        %v4210 = vunpack.c.h.b16 %v2957
        %v4211 = vunpack.c.l.b16 %v2958
        %v4212 = vunpack.c.h.b16 %v2958
        %v4213 = vunpack.c.l.b16 %v2959
        %v4214 = vunpack.c.h.b16 %v2959
        %v4215 = vunpack.c.l.b16 %v2960
        %v4216 = vunpack.c.h.b16 %v2960
        %v4217 = vunpack.c.l.b16 %v2961
        %v4218 = vunpack.c.h.b16 %v2961
        %v4219 = vunpack.c.l.b16 %v2962
        %v4220 = vunpack.c.h.b16 %v2962
        %v4221 = vunpack.c.l.b16 %v2963
        %v4222 = vunpack.c.h.b16 %v2963
        %v4223 = vunpack.c.l.b16 %v2964
        %v4224 = vunpack.c.h.b16 %v2964
        %v4225 = vunpack.c.l.b16 %v2965
        %v4226 = vunpack.c.h.b16 %v2965
        %v4227 = vunpack.c.l.b16 %v2966
        %v4228 = vunpack.c.h.b16 %v2966
        %v4229 = vunpack.c.l.b16 %v2967
        %v4230 = vunpack.c.h.b16 %v2967
        %v4231 = vunpack.c.l.b16 %v2968
        %v4232 = vunpack.c.h.b16 %v2968
        %v4233 = vunpack.c.l.b16 %v2969
        %v4234 = vunpack.c.h.b16 %v2969
        %v4235 = vunpack.c.l.b16 %v2970
        %v4236 = vunpack.c.h.b16 %v2970
        %v4237 = vunpack.c.l.b16 %v2971
        %v4238 = vunpack.c.h.b16 %v2971
        %v4239 = vunpack.c.l.b16 %v2972
        %v4240 = vunpack.c.h.b16 %v2972
        %v4241 = vunpack.c.l.b16 %v2973
        %v4242 = vunpack.c.h.b16 %v2973
        %v4243 = vunpack.c.l.b16 %v2974
        %v4244 = vunpack.c.h.b16 %v2974
        %v4245 = vunpack.c.l.b16 %v2975
        %v4246 = vunpack.c.h.b16 %v2975
        %v4247 = vunpack.c.l.b16 %v2976
        %v4248 = vunpack.c.h.b16 %v2976
        %v4249 = vunpack.c.l.b16 %v2977
        %v4250 = vunpack.c.h.b16 %v2977
        %v4251 = vunpack.c.l.b16 %v2978
        %v4252 = vunpack.c.h.b16 %v2978
        %v4253 = vunpack.c.l.b16 %v2979
        %v4254 = vunpack.c.h.b16 %v2979
        %v4255 = vunpack.c.l.b16 %v2980
        %v4256 = vunpack.c.h.b16 %v2980
        %v4257 = vunpack.c.l.b16 %v2981
        %v4258 = vunpack.c.h.b16 %v2981
        %v4259 = vunpack.c.l.b16 %v2982
        %v4260 = vunpack.c.h.b16 %v2982
        %v4261 = vunpack.c.l.b16 %v2983
        %v4262 = vunpack.c.h.b16 %v2983
        %v4263 = vunpack.c.l.b16 %v2984
        %v4264 = vunpack.c.h.b16 %v2984
        %v4265 = vunpack.c.l.b16 %v2985
        %v4266 = vunpack.c.h.b16 %v2985
        %v4267 = vunpack.c.l.b16 %v2986
        %v4268 = vunpack.c.h.b16 %v2986
        %v4269 = vunpack.c.l.b16 %v2987
        %v4270 = vunpack.c.h.b16 %v2987
        %v4271 = vunpack.c.l.b16 %v2988
        %v4272 = vunpack.c.h.b16 %v2988
        %v4273 = vunpack.c.l.b16 %v2989
        %v4274 = vunpack.c.h.b16 %v2989
        %v4275 = vunpack.c.l.b16 %v2990
        %v4276 = vunpack.c.h.b16 %v2990
        %v4277 = vunpack.c.l.b16 %v2991
        %v4278 = vunpack.c.h.b16 %v2991
        %v4279 = vunpack.c.l.b16 %v2992
        %v4280 = vunpack.c.h.b16 %v2992
        %v4281 = vunpack.c.l.b16 %v2993
        %v4282 = vunpack.c.h.b16 %v2993
        %v4283 = vunpack.c.l.b16 %v2994
        %v4284 = vunpack.c.h.b16 %v2994
        %v4285 = vunpack.c.l.b16 %v2995
        %v4286 = vunpack.c.h.b16 %v2995
        %v4287 = vunpack.c.l.b16 %v2996
        %v4288 = vunpack.c.h.b16 %v2996
        %v4289 = vunpack.c.l.b16 %v2997
        %v4290 = vunpack.c.h.b16 %v2997
        %v4291 = vunpack.c.l.b16 %v2998
        %v4292 = vunpack.c.h.b16 %v2998
        %v4293 = vunpack.c.l.b16 %v2999
        %v4294 = vunpack.c.h.b16 %v2999
        %v4295 = vunpack.c.l.b16 %v3000
        %v4296 = vunpack.c.h.b16 %v3000
        %v4297 = vunpack.c.l.b16 %v3001
        %v4298 = vunpack.c.h.b16 %v3001
        %v4299 = vunpack.c.l.b16 %v3002
        %v4300 = vunpack.c.h.b16 %v3002
        %v4301 = vunpack.c.l.b16 %v3003
        %v4302 = vunpack.c.h.b16 %v3003
        %v4303 = vunpack.c.l.b16 %v3004
        %v4304 = vunpack.c.h.b16 %v3004
        %v4305 = vunpack.c.l.b16 %v3005
        %v4306 = vunpack.c.h.b16 %v3005
        %v4307 = vunpack.c.l.b16 %v3006
        %v4308 = vunpack.c.h.b16 %v3006
        %v4309 = vunpack.c.l.b16 %v3007
        %v4310 = vunpack.c.h.b16 %v3007
        %v4311 = vunpack.c.l.b16 %v3008
        %v4312 = vunpack.c.h.b16 %v3008
        %v4313 = vunpack.c.l.b16 %v3009
        %v4314 = vunpack.c.h.b16 %v3009
        %v4315 = vunpack.c.l.b16 %v3010
        %v4316 = vunpack.c.h.b16 %v3010
        %v4317 = vunpack.c.l.b16 %v3011
        %v4318 = vunpack.c.h.b16 %v3011
        %v4319 = vunpack.c.l.b16 %v3012
        %v4320 = vunpack.c.h.b16 %v3012
        %v4321 = vunpack.c.l.b16 %v3013
        %v4322 = vunpack.c.h.b16 %v3013
        %v4323 = vunpack.c.l.b16 %v3014
        %v4324 = vunpack.c.h.b16 %v3014
        %v4325 = vunpack.c.l.b16 %v3015
        %v4326 = vunpack.c.h.b16 %v3015
        %v4327 = vunpack.c.l.b16 %v3016
        %v4328 = vunpack.c.h.b16 %v3016
        %v4329 = vunpack.c.l.b16 %v3017
        %v4330 = vunpack.c.h.b16 %v3017
        %v4331 = vunpack.c.l.b16 %v3018
        %v4332 = vunpack.c.h.b16 %v3018
        %v4333 = vunpack.c.l.b16 %v3019
        %v4334 = vunpack.c.h.b16 %v3019
        %v4335 = vunpack.c.l.b16 %v3020
        %v4336 = vunpack.c.h.b16 %v3020
        %v4337 = vunpack.c.l.b16 %v3021
        %v4338 = vunpack.c.h.b16 %v3021
        %v4339 = vunpack.c.l.b16 %v3022
        %v4340 = vunpack.c.h.b16 %v3022
        %v4341 = vunpack.c.l.b16 %v3023
        %v4342 = vunpack.c.h.b16 %v3023
        %v4343 = vunpack.c.l.b16 %v3024
        %v4344 = vunpack.c.h.b16 %v3024
        %v4345 = vunpack.c.l.b16 %v3025
        %v4346 = vunpack.c.h.b16 %v3025
        %v4347 = vunpack.c.l.b16 %v3026
        %v4348 = vunpack.c.h.b16 %v3026
        %v4349 = vunpack.c.l.b16 %v3027
        %v4350 = vunpack.c.h.b16 %v3027
        %v4351 = vunpack.c.l.b16 %v3028
        %v4352 = vunpack.c.h.b16 %v3028
        %v4353 = vunpack.c.l.b16 %v3029
        %v4354 = vunpack.c.h.b16 %v3029
        %v4355 = vunpack.c.l.b16 %v3030
        %v4356 = vunpack.c.h.b16 %v3030
        %v4357 = vunpack.c.l.b16 %v3031
        %v4358 = vunpack.c.h.b16 %v3031
        %v4359 = vunpack.c.l.b16 %v3032
        %v4360 = vunpack.c.h.b16 %v3032
        %v4361 = vunpack.c.l.b16 %v3033
        %v4362 = vunpack.c.h.b16 %v3033
        %v4363 = vunpack.c.l.b16 %v3034
        %v4364 = vunpack.c.h.b16 %v3034
        %v4365 = vunpack.c.l.b16 %v3035
        %v4366 = vunpack.c.h.b16 %v3035
        %v4367 = vunpack.c.l.b16 %v3036
        %v4368 = vunpack.c.h.b16 %v3036
        %v4369 = vunpack.c.l.b16 %v3037
        %v4370 = vunpack.c.h.b16 %v3037
        %v4371 = vunpack.c.l.b16 %v3038
        %v4372 = vunpack.c.h.b16 %v3038
        %v4373 = vunpack.c.l.b16 %v3039
        %v4374 = vunpack.c.h.b16 %v3039
        %v4375 = vunpack.c.l.b16 %v3040
        %v4376 = vunpack.c.h.b16 %v3040
        %v4377 = vunpack.c.l.b16 %v3041
        %v4378 = vunpack.c.h.b16 %v3041
        %v4379 = vunpack.c.l.b16 %v3042
        %v4380 = vunpack.c.h.b16 %v3042
        %v4381 = vunpack.c.l.b16 %v3043
        %v4382 = vunpack.c.h.b16 %v3043
        %v4383 = vunpack.c.l.b16 %v3044
        %v4384 = vunpack.c.h.b16 %v3044
        %v4385 = vunpack.c.l.b16 %v3045
        %v4386 = vunpack.c.h.b16 %v3045
        %v4387 = vunpack.c.l.b16 %v3046
        %v4388 = vunpack.c.h.b16 %v3046
        %v4389 = vunpack.c.l.b16 %v3047
        %v4390 = vunpack.c.h.b16 %v3047
        %v4391 = vunpack.c.l.b16 %v3048
        %v4392 = vunpack.c.h.b16 %v3048
        %v4393 = vunpack.c.l.b16 %v3049
        %v4394 = vunpack.c.h.b16 %v3049
        %v4395 = vunpack.c.l.b16 %v3050
        %v4396 = vunpack.c.h.b16 %v3050
        %v4397 = vunpack.c.l.b16 %v3051
        %v4398 = vunpack.c.h.b16 %v3051
        %v4399 = vunpack.c.l.b16 %v3052
        %v4400 = vunpack.c.h.b16 %v3052
        %v4401 = vunpack.c.l.b16 %v3053
        %v4402 = vunpack.c.h.b16 %v3053
        %v4403 = vunpack.c.l.b16 %v3054
        %v4404 = vunpack.c.h.b16 %v3054
        %v4405 = vunpack.c.l.b16 %v3055
        %v4406 = vunpack.c.h.b16 %v3055
        %v4407 = vunpack.c.l.b16 %v3056
        %v4408 = vunpack.c.h.b16 %v3056
        %v4409 = vunpack.c.l.b16 %v3057
        %v4410 = vunpack.c.h.b16 %v3057
        %v4411 = vunpack.c.l.b16 %v3058
        %v4412 = vunpack.c.h.b16 %v3058
        %v4413 = vunpack.c.l.b16 %v3059
        %v4414 = vunpack.c.h.b16 %v3059
        %v4415 = vunpack.c.l.b16 %v3060
        %v4416 = vunpack.c.h.b16 %v3060
        %v4417 = vunpack.c.l.b16 %v3061
        %v4418 = vunpack.c.h.b16 %v3061
        %v4419 = vunpack.c.l.b16 %v3062
        %v4420 = vunpack.c.h.b16 %v3062
        %v4421 = vunpack.c.l.b16 %v3063
        %v4422 = vunpack.c.h.b16 %v3063
        %v4423 = vunpack.c.l.b16 %v3064
        %v4424 = vunpack.c.h.b16 %v3064
        %v4425 = vunpack.c.l.b16 %v3065
        %v4426 = vunpack.c.h.b16 %v3065
        %v4427 = vunpack.c.l.b16 %v3066
        %v4428 = vunpack.c.h.b16 %v3066
        %v4429 = vunpack.c.l.b16 %v3067
        %v4430 = vunpack.c.h.b16 %v3067
        %v4431 = vunpack.c.l.b16 %v3068
        %v4432 = vunpack.c.h.b16 %v3068
        %v4433 = vunpack.c.l.b16 %v3069
        %v4434 = vunpack.c.h.b16 %v3069
        %v4435 = vunpack.c.l.b16 %v3070
        %v4436 = vunpack.c.h.b16 %v3070
        %v4437 = vunpack.c.l.b16 %v3071
        %v4438 = vunpack.c.h.b16 %v3071
        %v4439 = vunpack.c.l.b16 %v3072
        %v4440 = vunpack.c.h.b16 %v3072
        %v4441 = vunpack.c.l.b16 %v3073
        %v4442 = vunpack.c.h.b16 %v3073
        %v4443 = vunpack.c.l.b16 %v3074
        %v4444 = vunpack.c.h.b16 %v3074
        %v4445 = vunpack.c.l.b16 %v3075
        %v4446 = vunpack.c.h.b16 %v3075
        %v4447 = vunpack.c.l.b16 %v3076
        %v4448 = vunpack.c.h.b16 %v3076
        %v4449 = vunpack.c.l.b16 %v3077
        %v4450 = vunpack.c.h.b16 %v3077
        %v4451 = vunpack.c.l.b16 %v3078
        %v4452 = vunpack.c.h.b16 %v3078
        %v4453 = vunpack.c.l.b16 %v3079
        %v4454 = vunpack.c.h.b16 %v3079
        %v4455 = vunpack.c.l.b16 %v3080
        %v4456 = vunpack.c.h.b16 %v3080
        %v4457 = vunpack.c.l.b16 %v3081
        %v4458 = vunpack.c.h.b16 %v3081
        %v4459 = vunpack.c.l.b16 %v3082
        %v4460 = vunpack.c.h.b16 %v3082
        %v4461 = vunpack.c.l.b16 %v3083
        %v4462 = vunpack.c.h.b16 %v3083
        %v4463 = vunpack.c.l.b16 %v3084
        %v4464 = vunpack.c.h.b16 %v3084
        %v4465 = vunpack.c.l.b16 %v3085
        %v4466 = vunpack.c.h.b16 %v3085
        %v4467 = vunpack.c.l.b16 %v3086
        %v4468 = vunpack.c.h.b16 %v3086
        %v4469 = vunpack.c.l.b16 %v3087
        %v4470 = vunpack.c.h.b16 %v3087
        %v4471 = vunpack.c.l.b16 %v3088
        %v4472 = vunpack.c.h.b16 %v3088
        %v4473 = vunpack.c.l.b16 %v3089
        %v4474 = vunpack.c.h.b16 %v3089
        %v4475 = vunpack.c.l.b16 %v3090
        %v4476 = vunpack.c.h.b16 %v3090
        %v4477 = vunpack.c.l.b16 %v3091
        %v4478 = vunpack.c.h.b16 %v3091
        %v4479 = vunpack.c.l.b16 %v3092
        %v4480 = vunpack.c.h.b16 %v3092
        %v4481 = vunpack.c.l.b16 %v3093
        %v4482 = vunpack.c.h.b16 %v3093
        %v4483 = vunpack.c.l.b16 %v3094
        %v4484 = vunpack.c.h.b16 %v3094
        %v4485 = vunpack.c.l.b16 %v3095
        %v4486 = vunpack.c.h.b16 %v3095
        %v4487 = vunpack.c.l.b16 %v3096
        %v4488 = vunpack.c.h.b16 %v3096
        %v4489 = vunpack.c.l.b16 %v3097
        %v4490 = vunpack.c.h.b16 %v3097
        %v4491 = vunpack.c.l.b16 %v3098
        %v4492 = vunpack.c.h.b16 %v3098
        %v4493 = vunpack.c.l.b16 %v3099
        %v4494 = vunpack.c.h.b16 %v3099
        %v4495 = vunpack.c.l.b16 %v3100
        %v4496 = vunpack.c.h.b16 %v3100
        %v4497 = vunpack.c.l.b16 %v3101
        %v4498 = vunpack.c.h.b16 %v3101
        %v4499 = vunpack.c.l.b16 %v3102
        %v4500 = vunpack.c.h.b16 %v3102
        %v4501 = vunpack.c.l.b16 %v3103
        %v4502 = vunpack.c.h.b16 %v3103
        %v4503 = vunpack.c.l.b16 %v3104
        %v4504 = vunpack.c.h.b16 %v3104
        %v4505 = vunpack.c.l.b16 %v3105
        %v4506 = vunpack.c.h.b16 %v3105
        %v4507 = vunpack.c.l.b16 %v3106
        %v4508 = vunpack.c.h.b16 %v3106
        %v4509 = vunpack.c.l.b16 %v3107
        %v4510 = vunpack.c.h.b16 %v3107
        %v4511 = vunpack.c.l.b16 %v3108
        %v4512 = vunpack.c.h.b16 %v3108
        %v4513 = vunpack.c.l.b16 %v3109
        %v4514 = vunpack.c.h.b16 %v3109
        %v4515 = vunpack.c.l.b16 %v3110
        %v4516 = vunpack.c.h.b16 %v3110
        %v4517 = vunpack.c.l.b16 %v3111
        %v4518 = vunpack.c.h.b16 %v3111
        %v4519 = vunpack.c.l.b16 %v3112
        %v4520 = vunpack.c.h.b16 %v3112
        %v4521 = vunpack.c.l.b16 %v3113
        %v4522 = vunpack.c.h.b16 %v3113
        %v4523 = vunpack.c.l.b16 %v3114
        %v4524 = vunpack.c.h.b16 %v3114
        %v4525 = vunpack.c.l.b16 %v3115
        %v4526 = vunpack.c.h.b16 %v3115
        %v4527 = vunpack.c.l.b16 %v3116
        %v4528 = vunpack.c.h.b16 %v3116
        %v4529 = vunpack.c.l.b16 %v3117
        %v4530 = vunpack.c.h.b16 %v3117
        %v4531 = vunpack.c.l.b16 %v3118
        %v4532 = vunpack.c.h.b16 %v3118
        %v4533 = vunpack.c.l.b16 %v3119
        %v4534 = vunpack.c.h.b16 %v3119
        %v4535 = vunpack.c.l.b16 %v3120
        %v4536 = vunpack.c.h.b16 %v3120
        %v4537 = vunpack.c.l.b16 %v3121
        %v4538 = vunpack.c.h.b16 %v3121
        %v4539 = vunpack.c.l.b16 %v3122
        %v4540 = vunpack.c.h.b16 %v3122
        %v4541 = vunpack.c.l.b16 %v3123
        %v4542 = vunpack.c.h.b16 %v3123
        %v4543 = vunpack.c.l.b16 %v3124
        %v4544 = vunpack.c.h.b16 %v3124
        %v4545 = vunpack.c.l.b16 %v3125
        %v4546 = vunpack.c.h.b16 %v3125
        %v4547 = vunpack.c.l.b16 %v3126
        %v4548 = vunpack.c.h.b16 %v3126
        %v4549 = vunpack.c.l.b16 %v3127
        %v4550 = vunpack.c.h.b16 %v3127
        %v4551 = vunpack.c.l.b16 %v3128
        %v4552 = vunpack.c.h.b16 %v3128
        %v4553 = vunpack.c.l.b16 %v3129
        %v4554 = vunpack.c.h.b16 %v3129
        %v4555 = vunpack.c.l.b16 %v3130
        %v4556 = vunpack.c.h.b16 %v3130
        %v4557 = vunpack.c.l.b16 %v3131
        %v4558 = vunpack.c.h.b16 %v3131
        %v4559 = vunpack.c.l.b16 %v3132
        %v4560 = vunpack.c.h.b16 %v3132
        %v4561 = vunpack.c.l.b16 %v3133
        %v4562 = vunpack.c.h.b16 %v3133
        %v4563 = vunpack.c.l.b16 %v3134
        %v4564 = vunpack.c.h.b16 %v3134
        %v4565 = vunpack.c.l.b16 %v3135
        %v4566 = vunpack.c.h.b16 %v3135
        %v4567 = vunpack.c.l.b16 %v3136
        %v4568 = vunpack.c.h.b16 %v3136
        %v4569 = vunpack.c.l.b16 %v3137
        %v4570 = vunpack.c.h.b16 %v3137
        %v4571 = vunpack.c.l.b16 %v3138
        %v4572 = vunpack.c.h.b16 %v3138
        %v4573 = vunpack.c.l.b16 %v3139
        %v4574 = vunpack.c.h.b16 %v3139
        %v4575 = vunpack.c.l.b16 %v3140
        %v4576 = vunpack.c.h.b16 %v3140
        %v4577 = vunpack.c.l.b16 %v3141
        %v4578 = vunpack.c.h.b16 %v3141
        %v4579 = vunpack.c.l.b16 %v3142
        %v4580 = vunpack.c.h.b16 %v3142
        %v4581 = vunpack.c.l.b16 %v3143
        %v4582 = vunpack.c.h.b16 %v3143
        %v4583 = vunpack.c.l.b16 %v3144
        %v4584 = vunpack.c.h.b16 %v3144
        %v4585 = vunpack.c.l.b16 %v3145
        %v4586 = vunpack.c.h.b16 %v3145
        %v4587 = vunpack.c.l.b16 %v3146
        %v4588 = vunpack.c.h.b16 %v3146
        %v4589 = vunpack.c.l.b16 %v3147
        %v4590 = vunpack.c.h.b16 %v3147
        %v4591 = vunpack.c.l.b16 %v3148
        %v4592 = vunpack.c.h.b16 %v3148
        %v4593 = vunpack.c.l.b16 %v3149
        %v4594 = vunpack.c.h.b16 %v3149
        %v4595 = vunpack.c.l.b16 %v3150
        %v4596 = vunpack.c.h.b16 %v3150
        %v4597 = vunpack.c.l.b16 %v3151
        %v4598 = vunpack.c.h.b16 %v3151
        %v4599 = vunpack.c.l.b16 %v3152
        %v4600 = vunpack.c.h.b16 %v3152
        %v4601 = vunpack.c.l.b16 %v3153
        %v4602 = vunpack.c.h.b16 %v3153
        %v4603 = vunpack.c.l.b16 %v3154
        %v4604 = vunpack.c.h.b16 %v3154
        %v4605 = vunpack.c.l.b16 %v3155
        %v4606 = vunpack.c.h.b16 %v3155
        %v4607 = vunpack.c.l.b16 %v3156
        %v4608 = vunpack.c.h.b16 %v3156
        %v4609 = vunpack.c.l.b16 %v3157
        %v4610 = vunpack.c.h.b16 %v3157
        %v4611 = vunpack.c.l.b16 %v3158
        %v4612 = vunpack.c.h.b16 %v3158
        %v4613 = vunpack.c.l.b16 %v3159
        %v4614 = vunpack.c.h.b16 %v3159
        %v4615 = vunpack.c.l.b16 %v3160
        %v4616 = vunpack.c.h.b16 %v3160
        %v4617 = vunpack.c.l.b16 %v3161
        %v4618 = vunpack.c.h.b16 %v3161
        %v4619 = vunpack.c.l.b16 %v3162
        %v4620 = vunpack.c.h.b16 %v3162
        %v4621 = vunpack.c.l.b16 %v3163
        %v4622 = vunpack.c.h.b16 %v3163
        %v4623 = vunpack.c.l.b16 %v3164
        %v4624 = vunpack.c.h.b16 %v3164
        %v4625 = vunpack.c.l.b16 %v3165
        %v4626 = vunpack.c.h.b16 %v3165
        %v4627 = vunpack.c.l.b16 %v3166
        %v4628 = vunpack.c.h.b16 %v3166
        %v4629 = vunpack.c.l.b16 %v3167
        %v4630 = vunpack.c.h.b16 %v3167
        %v4631 = vunpack.c.l.b16 %v3168
        %v4632 = vunpack.c.h.b16 %v3168
        %v4633 = vunpack.c.l.b16 %v3169
        %v4634 = vunpack.c.h.b16 %v3169
        %v4635 = vunpack.c.l.b16 %v3170
        %v4636 = vunpack.c.h.b16 %v3170
        %v4637 = vunpack.c.l.b16 %v3171
        %v4638 = vunpack.c.h.b16 %v3171
        %v4639 = vunpack.c.l.b16 %v3172
        %v4640 = vunpack.c.h.b16 %v3172
        %v4641 = vunpack.c.l.b16 %v3173
        %v4642 = vunpack.c.h.b16 %v3173
        %v4643 = vunpack.c.l.b16 %v3174
        %v4644 = vunpack.c.h.b16 %v3174
        %v4645 = vunpack.c.l.b16 %v3175
        %v4646 = vunpack.c.h.b16 %v3175
        %v4647 = vunpack.c.l.b16 %v3176
        %v4648 = vunpack.c.h.b16 %v3176
        %v4649 = vunpack.c.l.b16 %v3177
        %v4650 = vunpack.c.h.b16 %v3177
        %v4651 = vunpack.c.l.b16 %v3178
        %v4652 = vunpack.c.h.b16 %v3178
        %v4653 = vunpack.c.l.b16 %v3179
        %v4654 = vunpack.c.h.b16 %v3179
        %v4655 = vunpack.c.l.b16 %v3180
        %v4656 = vunpack.c.h.b16 %v3180
        %v4657 = vunpack.c.l.b16 %v3181
        %v4658 = vunpack.c.h.b16 %v3181
        %v4659 = vunpack.c.l.b16 %v3182
        %v4660 = vunpack.c.h.b16 %v3182
        %v4661 = vunpack.c.l.b16 %v3183
        %v4662 = vunpack.c.h.b16 %v3183
        %v4663 = vunpack.c.l.b16 %v3184
        %v4664 = vunpack.c.h.b16 %v3184
        %v4665 = vunpack.c.l.b16 %v3185
        %v4666 = vunpack.c.h.b16 %v3185
        %v4667 = vunpack.c.l.b16 %v3186
        %v4668 = vunpack.c.h.b16 %v3186
        %v4669 = vunpack.c.l.b16 %v3187
        %v4670 = vunpack.c.h.b16 %v3187
        %v4671 = vunpack.c.l.b16 %v3188
        %v4672 = vunpack.c.h.b16 %v3188
        %v4673 = vunpack.c.l.b16 %v3189
        %v4674 = vunpack.c.h.b16 %v3189
        %v4675 = vunpack.c.l.b16 %v3190
        %v4676 = vunpack.c.h.b16 %v3190
        %v4677 = vunpack.c.l.b16 %v3191
        %v4678 = vunpack.c.h.b16 %v3191
        %v4679 = vunpack.c.l.b16 %v3192
        %v4680 = vunpack.c.h.b16 %v3192
        %v4681 = vunpack.c.l.b16 %v3193
        %v4682 = vunpack.c.h.b16 %v3193
        %v4683 = vunpack.c.l.b16 %v3194
        %v4684 = vunpack.c.h.b16 %v3194
        %v4685 = vunpack.c.l.b16 %v3195
        %v4686 = vunpack.c.h.b16 %v3195
        %v4687 = vunpack.c.l.b16 %v3196
        %v4688 = vunpack.c.h.b16 %v3196
        %v4689 = vunpack.c.l.b16 %v3197
        %v4690 = vunpack.c.h.b16 %v3197
        %v4691 = vunpack.c.l.b16 %v3198
        %v4692 = vunpack.c.h.b16 %v3198
        %v4693 = vunpack.c.l.b16 %v3199
        %v4694 = vunpack.c.h.b16 %v3199
        %v4695 = vunpack.c.l.b16 %v3200
        %v4696 = vunpack.c.h.b16 %v3200
        %v4697 = vunpack.c.l.b16 %v3201
        %v4698 = vunpack.c.h.b16 %v3201
        %v4699 = vunpack.c.l.b16 %v3202
        %v4700 = vunpack.c.h.b16 %v3202
        %v4701 = vunpack.c.l.b16 %v3203
        %v4702 = vunpack.c.h.b16 %v3203
        %v4703 = vunpack.c.l.b16 %v3204
        %v4704 = vunpack.c.h.b16 %v3204
        %v4705 = vunpack.c.l.b16 %v3205
        %v4706 = vunpack.c.h.b16 %v3205
        %v4707 = vunpack.c.l.b16 %v3206
        %v4708 = vunpack.c.h.b16 %v3206
        %v4709 = vunpack.c.l.b16 %v3207
        %v4710 = vunpack.c.h.b16 %v3207
        %v4711 = vunpack.c.l.b16 %v3208
        %v4712 = vunpack.c.h.b16 %v3208
        %v4713 = vunpack.c.l.b16 %v3209
        %v4714 = vunpack.c.h.b16 %v3209
        %v4715 = vunpack.c.l.b16 %v3210
        %v4716 = vunpack.c.h.b16 %v3210
        %v4717 = vunpack.c.l.b16 %v3211
        %v4718 = vunpack.c.h.b16 %v3211
        %v4719 = vunpack.c.l.b16 %v3212
        %v4720 = vunpack.c.h.b16 %v3212
        %v4721 = vunpack.c.l.b16 %v3213
        %v4722 = vunpack.c.h.b16 %v3213
        %v4723 = vunpack.c.l.b16 %v3214
        %v4724 = vunpack.c.h.b16 %v3214
        %v4725 = vunpack.c.l.b16 %v3215
        %v4726 = vunpack.c.h.b16 %v3215
        %v4727 = vunpack.c.l.b16 %v3216
        %v4728 = vunpack.c.h.b16 %v3216
        %v4729 = vunpack.c.l.b16 %v3217
        %v4730 = vunpack.c.h.b16 %v3217
        %v4731 = vunpack.c.l.b16 %v3218
        %v4732 = vunpack.c.h.b16 %v3218
        %v4733 = vunpack.c.l.b16 %v3219
        %v4734 = vunpack.c.h.b16 %v3219
        %v4735 = vunpack.c.l.b16 %v3220
        %v4736 = vunpack.c.h.b16 %v3220
        %v4737 = vunpack.c.l.b16 %v3221
        %v4738 = vunpack.c.h.b16 %v3221
        %v4739 = vunpack.c.l.b16 %v3222
        %v4740 = vunpack.c.h.b16 %v3222
        %v4741 = vunpack.c.l.b16 %v3223
        %v4742 = vunpack.c.h.b16 %v3223
        %v4743 = vunpack.c.l.b16 %v3224
        %v4744 = vunpack.c.h.b16 %v3224
        %v4745 = vunpack.c.l.b16 %v3225
        %v4746 = vunpack.c.h.b16 %v3225
        %v4747 = vunpack.c.l.b16 %v3226
        %v4748 = vunpack.c.h.b16 %v3226
        %v4749 = vunpack.c.l.b16 %v3227
        %v4750 = vunpack.c.h.b16 %v3227
        %v4751 = vunpack.c.l.b16 %v3228
        %v4752 = vunpack.c.h.b16 %v3228
        %v4753 = vunpack.c.l.b16 %v3229
        %v4754 = vunpack.c.h.b16 %v3229
        %v4755 = vunpack.c.l.b16 %v3230
        %v4756 = vunpack.c.h.b16 %v3230
        %v4757 = vunpack.c.l.b16 %v3231
        %v4758 = vunpack.c.h.b16 %v3231
        %v4759 = vunpack.c.l.b16 %v3232
        %v4760 = vunpack.c.h.b16 %v3232
        %v4761 = vunpack.c.l.b16 %v3233
        %v4762 = vunpack.c.h.b16 %v3233
        %v4763 = vunpack.c.l.b16 %v3234
        %v4764 = vunpack.c.h.b16 %v3234
        %v4765 = vunpack.c.l.b16 %v3235
        %v4766 = vunpack.c.h.b16 %v3235
        %v4767 = vunpack.c.l.b16 %v3236
        %v4768 = vunpack.c.h.b16 %v3236
        %v4769 = vunpack.c.l.b16 %v3237
        %v4770 = vunpack.c.h.b16 %v3237
        %v4771 = vunpack.c.l.b16 %v3238
        %v4772 = vunpack.c.h.b16 %v3238
        %v4773 = vunpack.c.l.b16 %v3239
        %v4774 = vunpack.c.h.b16 %v3239
        %v4775 = vunpack.c.l.b16 %v3240
        %v4776 = vunpack.c.h.b16 %v3240
        %v4777 = vunpack.c.l.b16 %v3241
        %v4778 = vunpack.c.h.b16 %v3241
        %v4779 = vunpack.c.l.b16 %v3242
        %v4780 = vunpack.c.h.b16 %v3242
        %v4781 = vunpack.c.l.b16 %v3243
        %v4782 = vunpack.c.h.b16 %v3243
        %v4783 = vunpack.c.l.b16 %v3244
        %v4784 = vunpack.c.h.b16 %v3244
        %v4785 = vunpack.c.l.b16 %v3245
        %v4786 = vunpack.c.h.b16 %v3245
        %v4787 = vunpack.c.l.b16 %v3246
        %v4788 = vunpack.c.h.b16 %v3246
        %v4789 = vunpack.c.l.b16 %v3247
        %v4790 = vunpack.c.h.b16 %v3247
        %v4791 = vunpack.c.l.b16 %v3248
        %v4792 = vunpack.c.h.b16 %v3248
        %v4793 = vunpack.c.l.b16 %v3249
        %v4794 = vunpack.c.h.b16 %v3249
        %v4795 = vunpack.c.l.b16 %v3250
        %v4796 = vunpack.c.h.b16 %v3250
        %v4797 = vunpack.c.l.b16 %v3251
        %v4798 = vunpack.c.h.b16 %v3251
        %v4799 = vunpack.c.l.b16 %v3252
        %v4800 = vunpack.c.h.b16 %v3252
        %v4801 = vunpack.c.l.b16 %v3253
        %v4802 = vunpack.c.h.b16 %v3253
        %v4803 = vunpack.c.l.b16 %v3254
        %v4804 = vunpack.c.h.b16 %v3254
        %v4805 = vunpack.c.l.b16 %v3255
        %v4806 = vunpack.c.h.b16 %v3255
        %v4807 = vunpack.c.l.b16 %v3256
        %v4808 = vunpack.c.h.b16 %v3256
        %v4809 = vunpack.c.l.b16 %v3257
        %v4810 = vunpack.c.h.b16 %v3257
        %v4811 = vunpack.c.l.b16 %v3258
        %v4812 = vunpack.c.h.b16 %v3258
        %v4813 = vunpack.c.l.b16 %v3259
        %v4814 = vunpack.c.h.b16 %v3259
        %v4815 = vunpack.c.l.b16 %v3260
        %v4816 = vunpack.c.h.b16 %v3260
        %v4817 = vunpack.c.l.b16 %v3261
        %v4818 = vunpack.c.h.b16 %v3261
        %v4819 = vunpack.c.l.b16 %v3262
        %v4820 = vunpack.c.h.b16 %v3262
        %v4821 = vunpack.c.l.b16 %v3263
        %v4822 = vunpack.c.h.b16 %v3263
        %v4823 = vunpack.c.l.b16 %v3264
        %v4824 = vunpack.c.h.b16 %v3264
        %v4825 = vunpack.c.l.b16 %v3265
        %v4826 = vunpack.c.h.b16 %v3265
        %v4827 = vunpack.c.l.b16 %v3266
        %v4828 = vunpack.c.h.b16 %v3266
        %v4829 = vunpack.c.l.b16 %v3267
        %v4830 = vunpack.c.h.b16 %v3267
        %v4831 = vunpack.c.l.b16 %v3268
        %v4832 = vunpack.c.h.b16 %v3268
        %v4833 = vunpack.c.l.b16 %v3269
        %v4834 = vunpack.c.h.b16 %v3269
        %v4835 = vunpack.c.l.b16 %v3270
        %v4836 = vunpack.c.h.b16 %v3270
        %v4837 = vunpack.c.l.b16 %v3271
        %v4838 = vunpack.c.h.b16 %v3271
        %v4839 = vunpack.c.l.b16 %v3272
        %v4840 = vunpack.c.h.b16 %v3272
        %v4841 = vunpack.c.l.b16 %v3273
        %v4842 = vunpack.c.h.b16 %v3273
        %v4843 = vunpack.c.l.b16 %v3274
        %v4844 = vunpack.c.h.b16 %v3274
        %v4845 = vunpack.c.l.b16 %v3275
        %v4846 = vunpack.c.h.b16 %v3275
        %v4847 = vunpack.c.l.b16 %v3276
        %v4848 = vunpack.c.h.b16 %v3276
        %v4849 = vunpack.c.l.b16 %v3277
        %v4850 = vunpack.c.h.b16 %v3277
        %v4851 = vunpack.c.l.b16 %v3278
        %v4852 = vunpack.c.h.b16 %v3278
        %v4853 = vunpack.c.l.b16 %v3279
        %v4854 = vunpack.c.h.b16 %v3279
        %v4855 = vunpack.c.l.b16 %v3280
        %v4856 = vunpack.c.h.b16 %v3280
        %v4857 = vunpack.c.l.b16 %v3281
        %v4858 = vunpack.c.h.b16 %v3281
        %v4859 = vunpack.c.l.b16 %v3282
        %v4860 = vunpack.c.h.b16 %v3282
        %v4861 = vunpack.c.l.b16 %v3283
        %v4862 = vunpack.c.h.b16 %v3283
        %v4863 = vunpack.c.l.b16 %v3284
        %v4864 = vunpack.c.h.b16 %v3284
        %v4865 = vunpack.c.l.b16 %v3285
        %v4866 = vunpack.c.h.b16 %v3285
        %v4867 = vunpack.c.l.b16 %v3286
        %v4868 = vunpack.c.h.b16 %v3286
        %v4869 = vunpack.c.l.b16 %v3287
        %v4870 = vunpack.c.h.b16 %v3287
        %v4871 = vunpack.c.l.b16 %v3288
        %v4872 = vunpack.c.h.b16 %v3288
        %v4873 = vunpack.c.l.b16 %v3289
        %v4874 = vunpack.c.h.b16 %v3289
        %v4875 = vunpack.c.l.b16 %v3290
        %v4876 = vunpack.c.h.b16 %v3290
        %v4877 = vunpack.c.l.b16 %v3291
        %v4878 = vunpack.c.h.b16 %v3291
        %v4879 = vunpack.c.l.b16 %v3292
        %v4880 = vunpack.c.h.b16 %v3292
        %v4881 = vunpack.c.l.b16 %v3293
        %v4882 = vunpack.c.h.b16 %v3293
        %v4883 = vunpack.c.l.b16 %v3294
        %v4884 = vunpack.c.h.b16 %v3294
        %v4885 = vunpack.c.l.b16 %v3295
        %v4886 = vunpack.c.h.b16 %v3295
        %v4887 = vunpack.c.l.b16 %v3296
        %v4888 = vunpack.c.h.b16 %v3296
        %v4889 = vunpack.c.l.b16 %v3297
        %v4890 = vunpack.c.h.b16 %v3297
        %v4891 = vunpack.c.l.b16 %v3298
        %v4892 = vunpack.c.h.b16 %v3298
        %v4893 = vunpack.c.l.b16 %v3299
        %v4894 = vunpack.c.h.b16 %v3299
        %v4895 = vunpack.c.l.b16 %v3300
        %v4896 = vunpack.c.h.b16 %v3300
        %v4897 = vunpack.c.l.b16 %v3301
        %v4898 = vunpack.c.h.b16 %v3301
        %v4899 = vunpack.c.l.b16 %v3302
        %v4900 = vunpack.c.h.b16 %v3302
        %v4901 = vunpack.c.l.b16 %v3303
        %v4902 = vunpack.c.h.b16 %v3303
        %v4903 = vunpack.c.l.b16 %v3304
        %v4904 = vunpack.c.h.b16 %v3304
        %v4905 = vunpack.c.l.b16 %v3305
        %v4906 = vunpack.c.h.b16 %v3305
        %v4907 = vunpack.c.l.b16 %v3306
        %v4908 = vunpack.c.h.b16 %v3306
        %v4909 = vunpack.c.l.b16 %v3307
        %v4910 = vunpack.c.h.b16 %v3307
        %v4911 = vunpack.c.l.b16 %v3308
        %v4912 = vunpack.c.h.b16 %v3308
        %v4913 = vunpack.c.l.b16 %v3309
        %v4914 = vunpack.c.h.b16 %v3309
        %v4915 = vunpack.c.l.b16 %v3310
        %v4916 = vunpack.c.h.b16 %v3310
        %v4917 = vunpack.c.l.b16 %v3311
        %v4918 = vunpack.c.h.b16 %v3311
        %v4919 = vunpack.c.l.b16 %v3312
        %v4920 = vunpack.c.h.b16 %v3312
        %v4921 = vunpack.c.l.b16 %v3313
        %v4922 = vunpack.c.h.b16 %v3313
        %v4923 = vunpack.c.l.b16 %v3314
        %v4924 = vunpack.c.h.b16 %v3314
        %v4925 = vunpack.c.l.b16 %v3315
        %v4926 = vunpack.c.h.b16 %v3315
        %v4927 = vunpack.c.l.b16 %v3316
        %v4928 = vunpack.c.h.b16 %v3316
        %v4929 = vunpack.c.l.b16 %v3317
        %v4930 = vunpack.c.h.b16 %v3317
        %v4931 = vunpack.c.l.b16 %v3318
        %v4932 = vunpack.c.h.b16 %v3318
        %v4933 = vunpack.c.l.b16 %v3319
        %v4934 = vunpack.c.h.b16 %v3319
        %v4935 = vunpack.c.l.b16 %v3320
        %v4936 = vunpack.c.h.b16 %v3320
        %v4937 = vunpack.c.l.b16 %v3321
        %v4938 = vunpack.c.h.b16 %v3321
        %v4939 = vunpack.c.l.b16 %v3322
        %v4940 = vunpack.c.h.b16 %v3322
        %v4941 = vunpack.c.l.b16 %v3323
        %v4942 = vunpack.c.h.b16 %v3323
        %v4943 = vunpack.c.l.b16 %v3324
        %v4944 = vunpack.c.h.b16 %v3324
        %v4945 = vpack.c.b16 %v3937, %v3921
        %v4946 = vpack.c.b16 %v3938, %v3922
        %v4947 = vpack.c.b16 %v3939, %v3923
        %v4948 = vpack.c.b16 %v3940, %v3924
        %v4949 = vpack.c.b16 %v3941, %v3925
        %v4950 = vpack.c.b16 %v3942, %v3926
        %v4951 = vpack.c.b16 %v3943, %v3927
        %v4952 = vpack.c.b16 %v3944, %v3928
        %v4953 = vpack.c.b16 %v3945, %v3929
        %v4954 = vpack.c.b16 %v3946, %v3930
        %v4955 = vpack.c.b16 %v3947, %v3931
        %v4956 = vpack.c.b16 %v3948, %v3932
        %v4957 = vpack.c.b16 %v3949, %v3933
        %v4958 = vpack.c.b16 %v3950, %v3934
        %v4959 = vpack.c.b16 %v3951, %v3935
        %v4960 = vpack.c.b16 %v3952, %v3936
        %v4961 = vpack.c.b16 %v3969, %v3953
        %v4962 = vpack.c.b16 %v3970, %v3954
        %v4963 = vpack.c.b16 %v3971, %v3955
        %v4964 = vpack.c.b16 %v3972, %v3956
        %v4965 = vpack.c.b16 %v3973, %v3957
        %v4966 = vpack.c.b16 %v3974, %v3958
        %v4967 = vpack.c.b16 %v3975, %v3959
        %v4968 = vpack.c.b16 %v3976, %v3960
        %v4969 = vpack.c.b16 %v3977, %v3961
        %v4970 = vpack.c.b16 %v3978, %v3962
        %v4971 = vpack.c.b16 %v3979, %v3963
        %v4972 = vpack.c.b16 %v3980, %v3964
        %v4973 = vpack.c.b16 %v3981, %v3965
        %v4974 = vpack.c.b16 %v3982, %v3966
        %v4975 = vpack.c.b16 %v3983, %v3967
        %v4976 = vpack.c.b16 %v3984, %v3968
        %v4977 = vpack.c.b16 %v4001, %v3985
        %v4978 = vpack.c.b16 %v4002, %v3986
        %v4979 = vpack.c.b16 %v4003, %v3987
        %v4980 = vpack.c.b16 %v4004, %v3988
        %v4981 = vpack.c.b16 %v4005, %v3989
        %v4982 = vpack.c.b16 %v4006, %v3990
        %v4983 = vpack.c.b16 %v4007, %v3991
        %v4984 = vpack.c.b16 %v4008, %v3992
        %v4985 = vpack.c.b16 %v4009, %v3993
        %v4986 = vpack.c.b16 %v4010, %v3994
        %v4987 = vpack.c.b16 %v4011, %v3995
        %v4988 = vpack.c.b16 %v4012, %v3996
        %v4989 = vpack.c.b16 %v4013, %v3997
        %v4990 = vpack.c.b16 %v4014, %v3998
        %v4991 = vpack.c.b16 %v4015, %v3999
        %v4992 = vpack.c.b16 %v4016, %v4000
        %v4993 = vpack.c.b16 %v4033, %v4017
        %v4994 = vpack.c.b16 %v4034, %v4018
        %v4995 = vpack.c.b16 %v4035, %v4019
        %v4996 = vpack.c.b16 %v4036, %v4020
        %v4997 = vpack.c.b16 %v4037, %v4021
        %v4998 = vpack.c.b16 %v4038, %v4022
        %v4999 = vpack.c.b16 %v4039, %v4023
        %v5000 = vpack.c.b16 %v4040, %v4024
        %v5001 = vpack.c.b16 %v4041, %v4025
        %v5002 = vpack.c.b16 %v4042, %v4026
        %v5003 = vpack.c.b16 %v4043, %v4027
        %v5004 = vpack.c.b16 %v4044, %v4028
        %v5005 = vpack.c.b16 %v4045, %v4029
        %v5006 = vpack.c.b16 %v4046, %v4030
        %v5007 = vpack.c.b16 %v4047, %v4031
        %v5008 = vpack.c.b16 %v4048, %v4032
        %v5009 = vpack.c.b16 %v4065, %v4049
        %v5010 = vpack.c.b16 %v4066, %v4050
        %v5011 = vpack.c.b16 %v4067, %v4051
        %v5012 = vpack.c.b16 %v4068, %v4052
        %v5013 = vpack.c.b16 %v4069, %v4053
        %v5014 = vpack.c.b16 %v4070, %v4054
        %v5015 = vpack.c.b16 %v4071, %v4055
        %v5016 = vpack.c.b16 %v4072, %v4056
        %v5017 = vpack.c.b16 %v4073, %v4057
        %v5018 = vpack.c.b16 %v4074, %v4058
        %v5019 = vpack.c.b16 %v4075, %v4059
        %v5020 = vpack.c.b16 %v4076, %v4060
        %v5021 = vpack.c.b16 %v4077, %v4061
        %v5022 = vpack.c.b16 %v4078, %v4062
        %v5023 = vpack.c.b16 %v4079, %v4063
        %v5024 = vpack.c.b16 %v4080, %v4064
        %v5025 = vpack.c.b16 %v4097, %v4081
        %v5026 = vpack.c.b16 %v4098, %v4082
        %v5027 = vpack.c.b16 %v4099, %v4083
        %v5028 = vpack.c.b16 %v4100, %v4084
        %v5029 = vpack.c.b16 %v4101, %v4085
        %v5030 = vpack.c.b16 %v4102, %v4086
        %v5031 = vpack.c.b16 %v4103, %v4087
        %v5032 = vpack.c.b16 %v4104, %v4088
        %v5033 = vpack.c.b16 %v4105, %v4089
        %v5034 = vpack.c.b16 %v4106, %v4090
        %v5035 = vpack.c.b16 %v4107, %v4091
        %v5036 = vpack.c.b16 %v4108, %v4092
        %v5037 = vpack.c.b16 %v4109, %v4093
        %v5038 = vpack.c.b16 %v4110, %v4094
        %v5039 = vpack.c.b16 %v4111, %v4095
        %v5040 = vpack.c.b16 %v4112, %v4096
        %v5041 = vpack.c.b16 %v4129, %v4113
        %v5042 = vpack.c.b16 %v4130, %v4114
        %v5043 = vpack.c.b16 %v4131, %v4115
        %v5044 = vpack.c.b16 %v4132, %v4116
        %v5045 = vpack.c.b16 %v4133, %v4117
        %v5046 = vpack.c.b16 %v4134, %v4118
        %v5047 = vpack.c.b16 %v4135, %v4119
        %v5048 = vpack.c.b16 %v4136, %v4120
        %v5049 = vpack.c.b16 %v4137, %v4121
        %v5050 = vpack.c.b16 %v4138, %v4122
        %v5051 = vpack.c.b16 %v4139, %v4123
        %v5052 = vpack.c.b16 %v4140, %v4124
        %v5053 = vpack.c.b16 %v4141, %v4125
        %v5054 = vpack.c.b16 %v4142, %v4126
        %v5055 = vpack.c.b16 %v4143, %v4127
        %v5056 = vpack.c.b16 %v4144, %v4128
        %v5057 = vpack.c.b16 %v4161, %v4145
        %v5058 = vpack.c.b16 %v4162, %v4146
        %v5059 = vpack.c.b16 %v4163, %v4147
        %v5060 = vpack.c.b16 %v4164, %v4148
        %v5061 = vpack.c.b16 %v4165, %v4149
        %v5062 = vpack.c.b16 %v4166, %v4150
        %v5063 = vpack.c.b16 %v4167, %v4151
        %v5064 = vpack.c.b16 %v4168, %v4152
        %v5065 = vpack.c.b16 %v4169, %v4153
        %v5066 = vpack.c.b16 %v4170, %v4154
        %v5067 = vpack.c.b16 %v4171, %v4155
        %v5068 = vpack.c.b16 %v4172, %v4156
        %v5069 = vpack.c.b16 %v4173, %v4157
        %v5070 = vpack.c.b16 %v4174, %v4158
        %v5071 = vpack.c.b16 %v4175, %v4159
        %v5072 = vpack.c.b16 %v4176, %v4160
        %v5073 = vpack.c.b16 %v4193, %v4177
        %v5074 = vpack.c.b16 %v4194, %v4178
        %v5075 = vpack.c.b16 %v4195, %v4179
        %v5076 = vpack.c.b16 %v4196, %v4180
        %v5077 = vpack.c.b16 %v4197, %v4181
        %v5078 = vpack.c.b16 %v4198, %v4182
        %v5079 = vpack.c.b16 %v4199, %v4183
        %v5080 = vpack.c.b16 %v4200, %v4184
        %v5081 = vpack.c.b16 %v4201, %v4185
        %v5082 = vpack.c.b16 %v4202, %v4186
        %v5083 = vpack.c.b16 %v4203, %v4187
        %v5084 = vpack.c.b16 %v4204, %v4188
        %v5085 = vpack.c.b16 %v4205, %v4189
        %v5086 = vpack.c.b16 %v4206, %v4190
        %v5087 = vpack.c.b16 %v4207, %v4191
        %v5088 = vpack.c.b16 %v4208, %v4192
        %v5089 = vpack.c.b16 %v4225, %v4209
        %v5090 = vpack.c.b16 %v4226, %v4210
        %v5091 = vpack.c.b16 %v4227, %v4211
        %v5092 = vpack.c.b16 %v4228, %v4212
        %v5093 = vpack.c.b16 %v4229, %v4213
        %v5094 = vpack.c.b16 %v4230, %v4214
        %v5095 = vpack.c.b16 %v4231, %v4215
        %v5096 = vpack.c.b16 %v4232, %v4216
        %v5097 = vpack.c.b16 %v4233, %v4217
        %v5098 = vpack.c.b16 %v4234, %v4218
        %v5099 = vpack.c.b16 %v4235, %v4219
        %v5100 = vpack.c.b16 %v4236, %v4220
        %v5101 = vpack.c.b16 %v4237, %v4221
        %v5102 = vpack.c.b16 %v4238, %v4222
        %v5103 = vpack.c.b16 %v4239, %v4223
        %v5104 = vpack.c.b16 %v4240, %v4224
        %v5105 = vpack.c.b16 %v4257, %v4241
        %v5106 = vpack.c.b16 %v4258, %v4242
        %v5107 = vpack.c.b16 %v4259, %v4243
        %v5108 = vpack.c.b16 %v4260, %v4244
        %v5109 = vpack.c.b16 %v4261, %v4245
        %v5110 = vpack.c.b16 %v4262, %v4246
        %v5111 = vpack.c.b16 %v4263, %v4247
        %v5112 = vpack.c.b16 %v4264, %v4248
        %v5113 = vpack.c.b16 %v4265, %v4249
        %v5114 = vpack.c.b16 %v4266, %v4250
        %v5115 = vpack.c.b16 %v4267, %v4251
        %v5116 = vpack.c.b16 %v4268, %v4252
        %v5117 = vpack.c.b16 %v4269, %v4253
        %v5118 = vpack.c.b16 %v4270, %v4254
        %v5119 = vpack.c.b16 %v4271, %v4255
        %v5120 = vpack.c.b16 %v4272, %v4256
        %v5121 = vpack.c.b16 %v4289, %v4273
        %v5122 = vpack.c.b16 %v4290, %v4274
        %v5123 = vpack.c.b16 %v4291, %v4275
        %v5124 = vpack.c.b16 %v4292, %v4276
        %v5125 = vpack.c.b16 %v4293, %v4277
        %v5126 = vpack.c.b16 %v4294, %v4278
        %v5127 = vpack.c.b16 %v4295, %v4279
        %v5128 = vpack.c.b16 %v4296, %v4280
        %v5129 = vpack.c.b16 %v4297, %v4281
        %v5130 = vpack.c.b16 %v4298, %v4282
        %v5131 = vpack.c.b16 %v4299, %v4283
        %v5132 = vpack.c.b16 %v4300, %v4284
        %v5133 = vpack.c.b16 %v4301, %v4285
        %v5134 = vpack.c.b16 %v4302, %v4286
        %v5135 = vpack.c.b16 %v4303, %v4287
        %v5136 = vpack.c.b16 %v4304, %v4288
        %v5137 = vpack.c.b16 %v4321, %v4305
        %v5138 = vpack.c.b16 %v4322, %v4306
        %v5139 = vpack.c.b16 %v4323, %v4307
        %v5140 = vpack.c.b16 %v4324, %v4308
        %v5141 = vpack.c.b16 %v4325, %v4309
        %v5142 = vpack.c.b16 %v4326, %v4310
        %v5143 = vpack.c.b16 %v4327, %v4311
        %v5144 = vpack.c.b16 %v4328, %v4312
        %v5145 = vpack.c.b16 %v4329, %v4313
        %v5146 = vpack.c.b16 %v4330, %v4314
        %v5147 = vpack.c.b16 %v4331, %v4315
        %v5148 = vpack.c.b16 %v4332, %v4316
        %v5149 = vpack.c.b16 %v4333, %v4317
        %v5150 = vpack.c.b16 %v4334, %v4318
        %v5151 = vpack.c.b16 %v4335, %v4319
        %v5152 = vpack.c.b16 %v4336, %v4320
        %v5153 = vpack.c.b16 %v4353, %v4337
        %v5154 = vpack.c.b16 %v4354, %v4338
        %v5155 = vpack.c.b16 %v4355, %v4339
        %v5156 = vpack.c.b16 %v4356, %v4340
        %v5157 = vpack.c.b16 %v4357, %v4341
        %v5158 = vpack.c.b16 %v4358, %v4342
        %v5159 = vpack.c.b16 %v4359, %v4343
        %v5160 = vpack.c.b16 %v4360, %v4344
        %v5161 = vpack.c.b16 %v4361, %v4345
        %v5162 = vpack.c.b16 %v4362, %v4346
        %v5163 = vpack.c.b16 %v4363, %v4347
        %v5164 = vpack.c.b16 %v4364, %v4348
        %v5165 = vpack.c.b16 %v4365, %v4349
        %v5166 = vpack.c.b16 %v4366, %v4350
        %v5167 = vpack.c.b16 %v4367, %v4351
        %v5168 = vpack.c.b16 %v4368, %v4352
        %v5169 = vpack.c.b16 %v4385, %v4369
        %v5170 = vpack.c.b16 %v4386, %v4370
        %v5171 = vpack.c.b16 %v4387, %v4371
        %v5172 = vpack.c.b16 %v4388, %v4372
        %v5173 = vpack.c.b16 %v4389, %v4373
        %v5174 = vpack.c.b16 %v4390, %v4374
        %v5175 = vpack.c.b16 %v4391, %v4375
        %v5176 = vpack.c.b16 %v4392, %v4376
        %v5177 = vpack.c.b16 %v4393, %v4377
        %v5178 = vpack.c.b16 %v4394, %v4378
        %v5179 = vpack.c.b16 %v4395, %v4379
        %v5180 = vpack.c.b16 %v4396, %v4380
        %v5181 = vpack.c.b16 %v4397, %v4381
        %v5182 = vpack.c.b16 %v4398, %v4382
        %v5183 = vpack.c.b16 %v4399, %v4383
        %v5184 = vpack.c.b16 %v4400, %v4384
        %v5185 = vpack.c.b16 %v4417, %v4401
        %v5186 = vpack.c.b16 %v4418, %v4402
        %v5187 = vpack.c.b16 %v4419, %v4403
        %v5188 = vpack.c.b16 %v4420, %v4404
        %v5189 = vpack.c.b16 %v4421, %v4405
        %v5190 = vpack.c.b16 %v4422, %v4406
        %v5191 = vpack.c.b16 %v4423, %v4407
        %v5192 = vpack.c.b16 %v4424, %v4408
        %v5193 = vpack.c.b16 %v4425, %v4409
        %v5194 = vpack.c.b16 %v4426, %v4410
        %v5195 = vpack.c.b16 %v4427, %v4411
        %v5196 = vpack.c.b16 %v4428, %v4412
        %v5197 = vpack.c.b16 %v4429, %v4413
        %v5198 = vpack.c.b16 %v4430, %v4414
        %v5199 = vpack.c.b16 %v4431, %v4415
        %v5200 = vpack.c.b16 %v4432, %v4416
        %v5201 = vpack.c.b16 %v4449, %v4433
        %v5202 = vpack.c.b16 %v4450, %v4434
        %v5203 = vpack.c.b16 %v4451, %v4435
        %v5204 = vpack.c.b16 %v4452, %v4436
        %v5205 = vpack.c.b16 %v4453, %v4437
        %v5206 = vpack.c.b16 %v4454, %v4438
        %v5207 = vpack.c.b16 %v4455, %v4439
        %v5208 = vpack.c.b16 %v4456, %v4440
        %v5209 = vpack.c.b16 %v4457, %v4441
        %v5210 = vpack.c.b16 %v4458, %v4442
        %v5211 = vpack.c.b16 %v4459, %v4443
        %v5212 = vpack.c.b16 %v4460, %v4444
        %v5213 = vpack.c.b16 %v4461, %v4445
        %v5214 = vpack.c.b16 %v4462, %v4446
        %v5215 = vpack.c.b16 %v4463, %v4447
        %v5216 = vpack.c.b16 %v4464, %v4448
        %v5217 = vpack.c.b16 %v4481, %v4465
        %v5218 = vpack.c.b16 %v4482, %v4466
        %v5219 = vpack.c.b16 %v4483, %v4467
        %v5220 = vpack.c.b16 %v4484, %v4468
        %v5221 = vpack.c.b16 %v4485, %v4469
        %v5222 = vpack.c.b16 %v4486, %v4470
        %v5223 = vpack.c.b16 %v4487, %v4471
        %v5224 = vpack.c.b16 %v4488, %v4472
        %v5225 = vpack.c.b16 %v4489, %v4473
        %v5226 = vpack.c.b16 %v4490, %v4474
        %v5227 = vpack.c.b16 %v4491, %v4475
        %v5228 = vpack.c.b16 %v4492, %v4476
        %v5229 = vpack.c.b16 %v4493, %v4477
        %v5230 = vpack.c.b16 %v4494, %v4478
        %v5231 = vpack.c.b16 %v4495, %v4479
        %v5232 = vpack.c.b16 %v4496, %v4480
        %v5233 = vpack.c.b16 %v4513, %v4497
        %v5234 = vpack.c.b16 %v4514, %v4498
        %v5235 = vpack.c.b16 %v4515, %v4499
        %v5236 = vpack.c.b16 %v4516, %v4500
        %v5237 = vpack.c.b16 %v4517, %v4501
        %v5238 = vpack.c.b16 %v4518, %v4502
        %v5239 = vpack.c.b16 %v4519, %v4503
        %v5240 = vpack.c.b16 %v4520, %v4504
        %v5241 = vpack.c.b16 %v4521, %v4505
        %v5242 = vpack.c.b16 %v4522, %v4506
        %v5243 = vpack.c.b16 %v4523, %v4507
        %v5244 = vpack.c.b16 %v4524, %v4508
        %v5245 = vpack.c.b16 %v4525, %v4509
        %v5246 = vpack.c.b16 %v4526, %v4510
        %v5247 = vpack.c.b16 %v4527, %v4511
        %v5248 = vpack.c.b16 %v4528, %v4512
        %v5249 = vpack.c.b16 %v4545, %v4529
        %v5250 = vpack.c.b16 %v4546, %v4530
        %v5251 = vpack.c.b16 %v4547, %v4531
        %v5252 = vpack.c.b16 %v4548, %v4532
        %v5253 = vpack.c.b16 %v4549, %v4533
        %v5254 = vpack.c.b16 %v4550, %v4534
        %v5255 = vpack.c.b16 %v4551, %v4535
        %v5256 = vpack.c.b16 %v4552, %v4536
        %v5257 = vpack.c.b16 %v4553, %v4537
        %v5258 = vpack.c.b16 %v4554, %v4538
        %v5259 = vpack.c.b16 %v4555, %v4539
        %v5260 = vpack.c.b16 %v4556, %v4540
        %v5261 = vpack.c.b16 %v4557, %v4541
        %v5262 = vpack.c.b16 %v4558, %v4542
        %v5263 = vpack.c.b16 %v4559, %v4543
        %v5264 = vpack.c.b16 %v4560, %v4544
        %v5265 = vpack.c.b16 %v4577, %v4561
        %v5266 = vpack.c.b16 %v4578, %v4562
        %v5267 = vpack.c.b16 %v4579, %v4563
        %v5268 = vpack.c.b16 %v4580, %v4564
        %v5269 = vpack.c.b16 %v4581, %v4565
        %v5270 = vpack.c.b16 %v4582, %v4566
        %v5271 = vpack.c.b16 %v4583, %v4567
        %v5272 = vpack.c.b16 %v4584, %v4568
        %v5273 = vpack.c.b16 %v4585, %v4569
        %v5274 = vpack.c.b16 %v4586, %v4570
        %v5275 = vpack.c.b16 %v4587, %v4571
        %v5276 = vpack.c.b16 %v4588, %v4572
        %v5277 = vpack.c.b16 %v4589, %v4573
        %v5278 = vpack.c.b16 %v4590, %v4574
        %v5279 = vpack.c.b16 %v4591, %v4575
        %v5280 = vpack.c.b16 %v4592, %v4576
        %v5281 = vpack.c.b16 %v4609, %v4593
        %v5282 = vpack.c.b16 %v4610, %v4594
        %v5283 = vpack.c.b16 %v4611, %v4595
        %v5284 = vpack.c.b16 %v4612, %v4596
        %v5285 = vpack.c.b16 %v4613, %v4597
        %v5286 = vpack.c.b16 %v4614, %v4598
        %v5287 = vpack.c.b16 %v4615, %v4599
        %v5288 = vpack.c.b16 %v4616, %v4600
        %v5289 = vpack.c.b16 %v4617, %v4601
        %v5290 = vpack.c.b16 %v4618, %v4602
        %v5291 = vpack.c.b16 %v4619, %v4603
        %v5292 = vpack.c.b16 %v4620, %v4604
        %v5293 = vpack.c.b16 %v4621, %v4605
        %v5294 = vpack.c.b16 %v4622, %v4606
        %v5295 = vpack.c.b16 %v4623, %v4607
        %v5296 = vpack.c.b16 %v4624, %v4608
        %v5297 = vpack.c.b16 %v4641, %v4625
        %v5298 = vpack.c.b16 %v4642, %v4626
        %v5299 = vpack.c.b16 %v4643, %v4627
        %v5300 = vpack.c.b16 %v4644, %v4628
        %v5301 = vpack.c.b16 %v4645, %v4629
        %v5302 = vpack.c.b16 %v4646, %v4630
        %v5303 = vpack.c.b16 %v4647, %v4631
        %v5304 = vpack.c.b16 %v4648, %v4632
        %v5305 = vpack.c.b16 %v4649, %v4633
        %v5306 = vpack.c.b16 %v4650, %v4634
        %v5307 = vpack.c.b16 %v4651, %v4635
        %v5308 = vpack.c.b16 %v4652, %v4636
        %v5309 = vpack.c.b16 %v4653, %v4637
        %v5310 = vpack.c.b16 %v4654, %v4638
        %v5311 = vpack.c.b16 %v4655, %v4639
        %v5312 = vpack.c.b16 %v4656, %v4640
        %v5313 = vpack.c.b16 %v4673, %v4657
        %v5314 = vpack.c.b16 %v4674, %v4658
        %v5315 = vpack.c.b16 %v4675, %v4659
        %v5316 = vpack.c.b16 %v4676, %v4660
        %v5317 = vpack.c.b16 %v4677, %v4661
        %v5318 = vpack.c.b16 %v4678, %v4662
        %v5319 = vpack.c.b16 %v4679, %v4663
        %v5320 = vpack.c.b16 %v4680, %v4664
        %v5321 = vpack.c.b16 %v4681, %v4665
        %v5322 = vpack.c.b16 %v4682, %v4666
        %v5323 = vpack.c.b16 %v4683, %v4667
        %v5324 = vpack.c.b16 %v4684, %v4668
        %v5325 = vpack.c.b16 %v4685, %v4669
        %v5326 = vpack.c.b16 %v4686, %v4670
        %v5327 = vpack.c.b16 %v4687, %v4671
        %v5328 = vpack.c.b16 %v4688, %v4672
        %v5329 = vpack.c.b16 %v4705, %v4689
        %v5330 = vpack.c.b16 %v4706, %v4690
        %v5331 = vpack.c.b16 %v4707, %v4691
        %v5332 = vpack.c.b16 %v4708, %v4692
        %v5333 = vpack.c.b16 %v4709, %v4693
        %v5334 = vpack.c.b16 %v4710, %v4694
        %v5335 = vpack.c.b16 %v4711, %v4695
        %v5336 = vpack.c.b16 %v4712, %v4696
        %v5337 = vpack.c.b16 %v4713, %v4697
        %v5338 = vpack.c.b16 %v4714, %v4698
        %v5339 = vpack.c.b16 %v4715, %v4699
        %v5340 = vpack.c.b16 %v4716, %v4700
        %v5341 = vpack.c.b16 %v4717, %v4701
        %v5342 = vpack.c.b16 %v4718, %v4702
        %v5343 = vpack.c.b16 %v4719, %v4703
        %v5344 = vpack.c.b16 %v4720, %v4704
        %v5345 = vpack.c.b16 %v4737, %v4721
        %v5346 = vpack.c.b16 %v4738, %v4722
        %v5347 = vpack.c.b16 %v4739, %v4723
        %v5348 = vpack.c.b16 %v4740, %v4724
        %v5349 = vpack.c.b16 %v4741, %v4725
        %v5350 = vpack.c.b16 %v4742, %v4726
        %v5351 = vpack.c.b16 %v4743, %v4727
        %v5352 = vpack.c.b16 %v4744, %v4728
        %v5353 = vpack.c.b16 %v4745, %v4729
        %v5354 = vpack.c.b16 %v4746, %v4730
        %v5355 = vpack.c.b16 %v4747, %v4731
        %v5356 = vpack.c.b16 %v4748, %v4732
        %v5357 = vpack.c.b16 %v4749, %v4733
        %v5358 = vpack.c.b16 %v4750, %v4734
        %v5359 = vpack.c.b16 %v4751, %v4735
        %v5360 = vpack.c.b16 %v4752, %v4736
        %v5361 = vpack.c.b16 %v4769, %v4753
        %v5362 = vpack.c.b16 %v4770, %v4754
        %v5363 = vpack.c.b16 %v4771, %v4755
        %v5364 = vpack.c.b16 %v4772, %v4756
        %v5365 = vpack.c.b16 %v4773, %v4757
        %v5366 = vpack.c.b16 %v4774, %v4758
        %v5367 = vpack.c.b16 %v4775, %v4759
        %v5368 = vpack.c.b16 %v4776, %v4760
        %v5369 = vpack.c.b16 %v4777, %v4761
        %v5370 = vpack.c.b16 %v4778, %v4762
        %v5371 = vpack.c.b16 %v4779, %v4763
        %v5372 = vpack.c.b16 %v4780, %v4764
        %v5373 = vpack.c.b16 %v4781, %v4765
        %v5374 = vpack.c.b16 %v4782, %v4766
        %v5375 = vpack.c.b16 %v4783, %v4767
        %v5376 = vpack.c.b16 %v4784, %v4768
        %v5377 = vpack.c.b16 %v4801, %v4785
        %v5378 = vpack.c.b16 %v4802, %v4786
        %v5379 = vpack.c.b16 %v4803, %v4787
        %v5380 = vpack.c.b16 %v4804, %v4788
        %v5381 = vpack.c.b16 %v4805, %v4789
        %v5382 = vpack.c.b16 %v4806, %v4790
        %v5383 = vpack.c.b16 %v4807, %v4791
        %v5384 = vpack.c.b16 %v4808, %v4792
        %v5385 = vpack.c.b16 %v4809, %v4793
        %v5386 = vpack.c.b16 %v4810, %v4794
        %v5387 = vpack.c.b16 %v4811, %v4795
        %v5388 = vpack.c.b16 %v4812, %v4796
        %v5389 = vpack.c.b16 %v4813, %v4797
        %v5390 = vpack.c.b16 %v4814, %v4798
        %v5391 = vpack.c.b16 %v4815, %v4799
        %v5392 = vpack.c.b16 %v4816, %v4800
        %v5393 = vpack.c.b16 %v4833, %v4817
        %v5394 = vpack.c.b16 %v4834, %v4818
        %v5395 = vpack.c.b16 %v4835, %v4819
        %v5396 = vpack.c.b16 %v4836, %v4820
        %v5397 = vpack.c.b16 %v4837, %v4821
        %v5398 = vpack.c.b16 %v4838, %v4822
        %v5399 = vpack.c.b16 %v4839, %v4823
        %v5400 = vpack.c.b16 %v4840, %v4824
        %v5401 = vpack.c.b16 %v4841, %v4825
        %v5402 = vpack.c.b16 %v4842, %v4826
        %v5403 = vpack.c.b16 %v4843, %v4827
        %v5404 = vpack.c.b16 %v4844, %v4828
        %v5405 = vpack.c.b16 %v4845, %v4829
        %v5406 = vpack.c.b16 %v4846, %v4830
        %v5407 = vpack.c.b16 %v4847, %v4831
        %v5408 = vpack.c.b16 %v4848, %v4832
        %v5409 = vpack.c.b16 %v4865, %v4849
        %v5410 = vpack.c.b16 %v4866, %v4850
        %v5411 = vpack.c.b16 %v4867, %v4851
        %v5412 = vpack.c.b16 %v4868, %v4852
        %v5413 = vpack.c.b16 %v4869, %v4853
        %v5414 = vpack.c.b16 %v4870, %v4854
        %v5415 = vpack.c.b16 %v4871, %v4855
        %v5416 = vpack.c.b16 %v4872, %v4856
        %v5417 = vpack.c.b16 %v4873, %v4857
        %v5418 = vpack.c.b16 %v4874, %v4858
        %v5419 = vpack.c.b16 %v4875, %v4859
        %v5420 = vpack.c.b16 %v4876, %v4860
        %v5421 = vpack.c.b16 %v4877, %v4861
        %v5422 = vpack.c.b16 %v4878, %v4862
        %v5423 = vpack.c.b16 %v4879, %v4863
        %v5424 = vpack.c.b16 %v4880, %v4864
        %v5425 = vpack.c.b16 %v4897, %v4881
        %v5426 = vpack.c.b16 %v4898, %v4882
        %v5427 = vpack.c.b16 %v4899, %v4883
        %v5428 = vpack.c.b16 %v4900, %v4884
        %v5429 = vpack.c.b16 %v4901, %v4885
        %v5430 = vpack.c.b16 %v4902, %v4886
        %v5431 = vpack.c.b16 %v4903, %v4887
        %v5432 = vpack.c.b16 %v4904, %v4888
        %v5433 = vpack.c.b16 %v4905, %v4889
        %v5434 = vpack.c.b16 %v4906, %v4890
        %v5435 = vpack.c.b16 %v4907, %v4891
        %v5436 = vpack.c.b16 %v4908, %v4892
        %v5437 = vpack.c.b16 %v4909, %v4893
        %v5438 = vpack.c.b16 %v4910, %v4894
        %v5439 = vpack.c.b16 %v4911, %v4895
        %v5440 = vpack.c.b16 %v4912, %v4896
        %v5441 = vpack.c.b16 %v4929, %v4913
        %v5442 = vpack.c.b16 %v4930, %v4914
        %v5443 = vpack.c.b16 %v4931, %v4915
        %v5444 = vpack.c.b16 %v4932, %v4916
        %v5445 = vpack.c.b16 %v4933, %v4917
        %v5446 = vpack.c.b16 %v4934, %v4918
        %v5447 = vpack.c.b16 %v4935, %v4919
        %v5448 = vpack.c.b16 %v4936, %v4920
        %v5449 = vpack.c.b16 %v4937, %v4921
        %v5450 = vpack.c.b16 %v4938, %v4922
        %v5451 = vpack.c.b16 %v4939, %v4923
        %v5452 = vpack.c.b16 %v4940, %v4924
        %v5453 = vpack.c.b16 %v4941, %v4925
        %v5454 = vpack.c.b16 %v4942, %v4926
        %v5455 = vpack.c.b16 %v4943, %v4927
        %v5456 = vpack.c.b16 %v4944, %v4928
        %5969 = vmatprep.subr.bf16.mxu0 %v5058
        %5970 = vmatpush1.bf16.msra.mxu0 %v5057
        %5971 = vmatprep.subr.bf16.mxu0 %v5042
        %5972 = vmatpush1.bf16.msra.mxu0 %v5041
        %5973 = vmatprep.subr.bf16.mxu0 %v5026
        %5974 = vmatpush1.bf16.msra.mxu0 %v5025
        %5975 = vmatprep.subr.bf16.mxu0 %v5010
        %5976 = vmatpush1.bf16.msra.mxu0 %v5009
        %5977 = vmatprep.subr.bf16.mxu0 %v4994
        %5978 = vmatpush1.bf16.msra.mxu0 %v4993
        %5979 = vmatprep.subr.bf16.mxu0 %v4978
        %5980 = vmatpush1.bf16.msra.mxu0 %v4977
        %5981 = vmatprep.subr.bf16.mxu0 %v4962
        %5982 = vmatpush1.bf16.msra.mxu0 %v4961
        %5983 = vmatprep.subr.bf16.mxu0 %v4946
        %5984 = vmatpush1.bf16.msra.mxu0 %v4945
        %5985 = vmatprep.subr.bf16.mxu0 %v5186
        %5986 = vmatpush2.bf16.msra.mxu0 %v5185
        %5987 = vmatprep.subr.bf16.mxu0 %v5170
        %5988 = vmatpush2.bf16.msra.mxu0 %v5169
        %5989 = vmatprep.subr.bf16.mxu0 %v5154
        %5990 = vmatpush2.bf16.msra.mxu0 %v5153
        %5991 = vmatprep.subr.bf16.mxu0 %v5138
        %5992 = vmatpush2.bf16.msra.mxu0 %v5137
        %5993 = vmatprep.subr.bf16.mxu0 %v5122
        %5994 = vmatpush2.bf16.msra.mxu0 %v5121
        %5995 = vmatprep.subr.bf16.mxu0 %v5106
        %5996 = vmatpush2.bf16.msra.mxu0 %v5105
        %5997 = vmatprep.subr.bf16.mxu0 %v5090
        %5998 = vmatpush2.bf16.msra.mxu0 %v5089
        %5999 = vmatprep.subr.bf16.mxu0 %v5074
        %6000 = vmatpush2.bf16.msra.mxu0 %v5073
        %6001 = vmatprep.mubr.bf16.mxu0 %v2120
        %6002 = vmatmul.mubr.bf16.gmra.mxu0 %v2119
        %v6003 = vpop.f32.mrf.mxu0
        %v6004 = vadd.f32 %v3332, %v6003
        %v6005 = vpop.f32.mrf.mxu0
        %v6006 = vadd.f32 %v3336, %v6005
        %v6007 = vpop.f32.mrf.mxu0
        %v6008 = vpop.f32.mrf.mxu0
        %6009 = vdwg.mxu0
        %6010 = vmatprep.subr.bf16.mxu0 %v5314
        %6011 = vmatpush1.bf16.msra.mxu0 %v5313
        %6012 = vmatprep.subr.bf16.mxu0 %v5298
        %6013 = vmatpush1.bf16.msra.mxu0 %v5297
        %6014 = vmatprep.subr.bf16.mxu0 %v5282
        %6015 = vmatpush1.bf16.msra.mxu0 %v5281
        %6016 = vmatprep.subr.bf16.mxu0 %v5266
        %6017 = vmatpush1.bf16.msra.mxu0 %v5265
        %6018 = vmatprep.subr.bf16.mxu0 %v5250
        %6019 = vmatpush1.bf16.msra.mxu0 %v5249
        %6020 = vmatprep.subr.bf16.mxu0 %v5234
        %6021 = vmatpush1.bf16.msra.mxu0 %v5233
        %6022 = vmatprep.subr.bf16.mxu0 %v5218
        %6023 = vmatpush1.bf16.msra.mxu0 %v5217
        %6024 = vmatprep.subr.bf16.mxu0 %v5202
        %6025 = vmatpush1.bf16.msra.mxu0 %v5201
        %6026 = vmatprep.subr.bf16.mxu0 %v5442
        %6027 = vmatpush2.bf16.msra.mxu0 %v5441
        %6028 = vmatprep.subr.bf16.mxu0 %v5426
        %6029 = vmatpush2.bf16.msra.mxu0 %v5425
        %6030 = vmatprep.subr.bf16.mxu0 %v5410
        %6031 = vmatpush2.bf16.msra.mxu0 %v5409
        %6032 = vmatprep.subr.bf16.mxu0 %v5394
        %6033 = vmatpush2.bf16.msra.mxu0 %v5393
        %6034 = vmatprep.subr.bf16.mxu0 %v5378
        %6035 = vmatpush2.bf16.msra.mxu0 %v5377
        %6036 = vmatprep.subr.bf16.mxu0 %v5362
        %6037 = vmatpush2.bf16.msra.mxu0 %v5361
        %6038 = vmatprep.subr.bf16.mxu0 %v5346
        %6039 = vmatpush2.bf16.msra.mxu0 %v5345
        %6040 = vmatprep.subr.bf16.mxu0 %v5330
        %6041 = vmatpush2.bf16.msra.mxu0 %v5329
        %6042 = vmatprep.mubr.bf16.mxu0 %v2122
        %6043 = vmatmul.mubr.bf16.gmra.mxu0 %v2121
        %v6044 = vpop.f32.mrf.mxu0
        %v6045 = vadd.f32 %v6004, %v6044
        %v6046 = vpop.f32.mrf.mxu0
        %v6047 = vadd.f32 %v6006, %v6046
        %v6048 = vpop.f32.mrf.mxu0
        %v6049 = vpop.f32.mrf.mxu0
        %6050 = vdwg.mxu0
        %6051 = vmatprep.subr.bf16.mxu0 %v5060
        %6052 = vmatpush1.bf16.msra.mxu0 %v5059
        %6053 = vmatprep.subr.bf16.mxu0 %v5044
        %6054 = vmatpush1.bf16.msra.mxu0 %v5043
        %6055 = vmatprep.subr.bf16.mxu0 %v5028
        %6056 = vmatpush1.bf16.msra.mxu0 %v5027
        %6057 = vmatprep.subr.bf16.mxu0 %v5012
        %6058 = vmatpush1.bf16.msra.mxu0 %v5011
        %6059 = vmatprep.subr.bf16.mxu0 %v4996
        %6060 = vmatpush1.bf16.msra.mxu0 %v4995
        %6061 = vmatprep.subr.bf16.mxu0 %v4980
        %6062 = vmatpush1.bf16.msra.mxu0 %v4979
        %6063 = vmatprep.subr.bf16.mxu0 %v4964
        %6064 = vmatpush1.bf16.msra.mxu0 %v4963
        %6065 = vmatprep.subr.bf16.mxu0 %v4948
        %6066 = vmatpush1.bf16.msra.mxu0 %v4947
        %6067 = vmatprep.subr.bf16.mxu0 %v5188
        %6068 = vmatpush2.bf16.msra.mxu0 %v5187
        %6069 = vmatprep.subr.bf16.mxu0 %v5172
        %6070 = vmatpush2.bf16.msra.mxu0 %v5171
        %6071 = vmatprep.subr.bf16.mxu0 %v5156
        %6072 = vmatpush2.bf16.msra.mxu0 %v5155
        %6073 = vmatprep.subr.bf16.mxu0 %v5140
        %6074 = vmatpush2.bf16.msra.mxu0 %v5139
        %6075 = vmatprep.subr.bf16.mxu0 %v5124
        %6076 = vmatpush2.bf16.msra.mxu0 %v5123
        %6077 = vmatprep.subr.bf16.mxu0 %v5108
        %6078 = vmatpush2.bf16.msra.mxu0 %v5107
        %6079 = vmatprep.subr.bf16.mxu0 %v5092
        %6080 = vmatpush2.bf16.msra.mxu0 %v5091
        %6081 = vmatprep.subr.bf16.mxu0 %v5076
        %6082 = vmatpush2.bf16.msra.mxu0 %v5075
        %6083 = vmatprep.mubr.bf16.mxu0 %v2120
        %6084 = vmatmul.mubr.bf16.gmra.mxu0 %v2119
        %v6085 = vpop.f32.mrf.mxu0
        %v6086 = vadd.f32 %v3340, %v6085
        %v6087 = vpop.f32.mrf.mxu0
        %v6088 = vadd.f32 %v3344, %v6087
        %v6089 = vpop.f32.mrf.mxu0
        %v6090 = vpop.f32.mrf.mxu0
        %6091 = vdwg.mxu0
        %6092 = vmatprep.subr.bf16.mxu0 %v5316
        %6093 = vmatpush1.bf16.msra.mxu0 %v5315
        %6094 = vmatprep.subr.bf16.mxu0 %v5300
        %6095 = vmatpush1.bf16.msra.mxu0 %v5299
        %6096 = vmatprep.subr.bf16.mxu0 %v5284
        %6097 = vmatpush1.bf16.msra.mxu0 %v5283
        %6098 = vmatprep.subr.bf16.mxu0 %v5268
        %6099 = vmatpush1.bf16.msra.mxu0 %v5267
        %6100 = vmatprep.subr.bf16.mxu0 %v5252
        %6101 = vmatpush1.bf16.msra.mxu0 %v5251
        %6102 = vmatprep.subr.bf16.mxu0 %v5236
        %6103 = vmatpush1.bf16.msra.mxu0 %v5235
        %6104 = vmatprep.subr.bf16.mxu0 %v5220
        %6105 = vmatpush1.bf16.msra.mxu0 %v5219
        %6106 = vmatprep.subr.bf16.mxu0 %v5204
        %6107 = vmatpush1.bf16.msra.mxu0 %v5203
        %6108 = vmatprep.subr.bf16.mxu0 %v5444
        %6109 = vmatpush2.bf16.msra.mxu0 %v5443
        %6110 = vmatprep.subr.bf16.mxu0 %v5428
        %6111 = vmatpush2.bf16.msra.mxu0 %v5427
        %6112 = vmatprep.subr.bf16.mxu0 %v5412
        %6113 = vmatpush2.bf16.msra.mxu0 %v5411
        %6114 = vmatprep.subr.bf16.mxu0 %v5396
        %6115 = vmatpush2.bf16.msra.mxu0 %v5395
        %6116 = vmatprep.subr.bf16.mxu0 %v5380
        %6117 = vmatpush2.bf16.msra.mxu0 %v5379
        %6118 = vmatprep.subr.bf16.mxu0 %v5364
        %6119 = vmatpush2.bf16.msra.mxu0 %v5363
        %6120 = vmatprep.subr.bf16.mxu0 %v5348
        %6121 = vmatpush2.bf16.msra.mxu0 %v5347
        %6122 = vmatprep.subr.bf16.mxu0 %v5332
        %6123 = vmatpush2.bf16.msra.mxu0 %v5331
        %6124 = vmatprep.mubr.bf16.mxu0 %v2122
        %6125 = vmatmul.mubr.bf16.gmra.mxu0 %v2121
        %v6126 = vpop.f32.mrf.mxu0
        %v6127 = vadd.f32 %v6086, %v6126
        %v6128 = vpop.f32.mrf.mxu0
        %v6129 = vadd.f32 %v6088, %v6128
        %v6130 = vpop.f32.mrf.mxu0
        %v6131 = vpop.f32.mrf.mxu0
        %6132 = vdwg.mxu0
        %6133 = vmatprep.subr.bf16.mxu0 %v5062
        %6134 = vmatpush1.bf16.msra.mxu0 %v5061
        %6135 = vmatprep.subr.bf16.mxu0 %v5046
        %6136 = vmatpush1.bf16.msra.mxu0 %v5045
        %6137 = vmatprep.subr.bf16.mxu0 %v5030
        %6138 = vmatpush1.bf16.msra.mxu0 %v5029
        %6139 = vmatprep.subr.bf16.mxu0 %v5014
        %6140 = vmatpush1.bf16.msra.mxu0 %v5013
        %6141 = vmatprep.subr.bf16.mxu0 %v4998
        %6142 = vmatpush1.bf16.msra.mxu0 %v4997
        %6143 = vmatprep.subr.bf16.mxu0 %v4982
        %6144 = vmatpush1.bf16.msra.mxu0 %v4981
        %6145 = vmatprep.subr.bf16.mxu0 %v4966
        %6146 = vmatpush1.bf16.msra.mxu0 %v4965
        %6147 = vmatprep.subr.bf16.mxu0 %v4950
        %6148 = vmatpush1.bf16.msra.mxu0 %v4949
        %6149 = vmatprep.subr.bf16.mxu0 %v5190
        %6150 = vmatpush2.bf16.msra.mxu0 %v5189
        %6151 = vmatprep.subr.bf16.mxu0 %v5174
        %6152 = vmatpush2.bf16.msra.mxu0 %v5173
        %6153 = vmatprep.subr.bf16.mxu0 %v5158
        %6154 = vmatpush2.bf16.msra.mxu0 %v5157
        %6155 = vmatprep.subr.bf16.mxu0 %v5142
        %6156 = vmatpush2.bf16.msra.mxu0 %v5141
        %6157 = vmatprep.subr.bf16.mxu0 %v5126
        %6158 = vmatpush2.bf16.msra.mxu0 %v5125
        %6159 = vmatprep.subr.bf16.mxu0 %v5110
        %6160 = vmatpush2.bf16.msra.mxu0 %v5109
        %6161 = vmatprep.subr.bf16.mxu0 %v5094
        %6162 = vmatpush2.bf16.msra.mxu0 %v5093
        %6163 = vmatprep.subr.bf16.mxu0 %v5078
        %6164 = vmatpush2.bf16.msra.mxu0 %v5077
        %6165 = vmatprep.mubr.bf16.mxu0 %v2120
        %6166 = vmatmul.mubr.bf16.gmra.mxu0 %v2119
        %v6167 = vpop.f32.mrf.mxu0
        %v6168 = vadd.f32 %v3348, %v6167
        %v6169 = vpop.f32.mrf.mxu0
        %v6170 = vadd.f32 %v3352, %v6169
        %v6171 = vpop.f32.mrf.mxu0
        %v6172 = vpop.f32.mrf.mxu0
        %6173 = vdwg.mxu0
        %6174 = vmatprep.subr.bf16.mxu0 %v5318
        %6175 = vmatpush1.bf16.msra.mxu0 %v5317
        %6176 = vmatprep.subr.bf16.mxu0 %v5302
        %6177 = vmatpush1.bf16.msra.mxu0 %v5301
        %6178 = vmatprep.subr.bf16.mxu0 %v5286
        %6179 = vmatpush1.bf16.msra.mxu0 %v5285
        %6180 = vmatprep.subr.bf16.mxu0 %v5270
        %6181 = vmatpush1.bf16.msra.mxu0 %v5269
        %6182 = vmatprep.subr.bf16.mxu0 %v5254
        %6183 = vmatpush1.bf16.msra.mxu0 %v5253
        %6184 = vmatprep.subr.bf16.mxu0 %v5238
        %6185 = vmatpush1.bf16.msra.mxu0 %v5237
        %6186 = vmatprep.subr.bf16.mxu0 %v5222
        %6187 = vmatpush1.bf16.msra.mxu0 %v5221
        %6188 = vmatprep.subr.bf16.mxu0 %v5206
        %6189 = vmatpush1.bf16.msra.mxu0 %v5205
        %6190 = vmatprep.subr.bf16.mxu0 %v5446
        %6191 = vmatpush2.bf16.msra.mxu0 %v5445
        %6192 = vmatprep.subr.bf16.mxu0 %v5430
        %6193 = vmatpush2.bf16.msra.mxu0 %v5429
        %6194 = vmatprep.subr.bf16.mxu0 %v5414
        %6195 = vmatpush2.bf16.msra.mxu0 %v5413
        %6196 = vmatprep.subr.bf16.mxu0 %v5398
        %6197 = vmatpush2.bf16.msra.mxu0 %v5397
        %6198 = vmatprep.subr.bf16.mxu0 %v5382
        %6199 = vmatpush2.bf16.msra.mxu0 %v5381
        %6200 = vmatprep.subr.bf16.mxu0 %v5366
        %6201 = vmatpush2.bf16.msra.mxu0 %v5365
        %6202 = vmatprep.subr.bf16.mxu0 %v5350
        %6203 = vmatpush2.bf16.msra.mxu0 %v5349
        %6204 = vmatprep.subr.bf16.mxu0 %v5334
        %6205 = vmatpush2.bf16.msra.mxu0 %v5333
        %6206 = vmatprep.mubr.bf16.mxu0 %v2122
        %6207 = vmatmul.mubr.bf16.gmra.mxu0 %v2121
        %v6208 = vpop.f32.mrf.mxu0
        %v6209 = vadd.f32 %v6168, %v6208
        %v6210 = vpop.f32.mrf.mxu0
        %v6211 = vadd.f32 %v6170, %v6210
        %v6212 = vpop.f32.mrf.mxu0
        %v6213 = vpop.f32.mrf.mxu0
        %6214 = vdwg.mxu0
        %6215 = vmatprep.subr.bf16.mxu0 %v5064
        %6216 = vmatpush1.bf16.msra.mxu0 %v5063
        %6217 = vmatprep.subr.bf16.mxu0 %v5048
        %6218 = vmatpush1.bf16.msra.mxu0 %v5047
        %6219 = vmatprep.subr.bf16.mxu0 %v5032
        %6220 = vmatpush1.bf16.msra.mxu0 %v5031
        %6221 = vmatprep.subr.bf16.mxu0 %v5016
        %6222 = vmatpush1.bf16.msra.mxu0 %v5015
        %6223 = vmatprep.subr.bf16.mxu0 %v5000
        %6224 = vmatpush1.bf16.msra.mxu0 %v4999
        %6225 = vmatprep.subr.bf16.mxu0 %v4984
        %6226 = vmatpush1.bf16.msra.mxu0 %v4983
        %6227 = vmatprep.subr.bf16.mxu0 %v4968
        %6228 = vmatpush1.bf16.msra.mxu0 %v4967
        %6229 = vmatprep.subr.bf16.mxu0 %v4952
        %6230 = vmatpush1.bf16.msra.mxu0 %v4951
        %6231 = vmatprep.subr.bf16.mxu0 %v5192
        %6232 = vmatpush2.bf16.msra.mxu0 %v5191
        %6233 = vmatprep.subr.bf16.mxu0 %v5176
        %6234 = vmatpush2.bf16.msra.mxu0 %v5175
        %6235 = vmatprep.subr.bf16.mxu0 %v5160
        %6236 = vmatpush2.bf16.msra.mxu0 %v5159
        %6237 = vmatprep.subr.bf16.mxu0 %v5144
        %6238 = vmatpush2.bf16.msra.mxu0 %v5143
        %6239 = vmatprep.subr.bf16.mxu0 %v5128
        %6240 = vmatpush2.bf16.msra.mxu0 %v5127
        %6241 = vmatprep.subr.bf16.mxu0 %v5112
        %6242 = vmatpush2.bf16.msra.mxu0 %v5111
        %6243 = vmatprep.subr.bf16.mxu0 %v5096
        %6244 = vmatpush2.bf16.msra.mxu0 %v5095
        %6245 = vmatprep.subr.bf16.mxu0 %v5080
        %6246 = vmatpush2.bf16.msra.mxu0 %v5079
        %6247 = vmatprep.mubr.bf16.mxu0 %v2120
        %6248 = vmatmul.mubr.bf16.gmra.mxu0 %v2119
        %v6249 = vpop.f32.mrf.mxu0
        %v6250 = vadd.f32 %v3356, %v6249
        %v6251 = vpop.f32.mrf.mxu0
        %v6252 = vadd.f32 %v3360, %v6251
        %v6253 = vpop.f32.mrf.mxu0
        %v6254 = vpop.f32.mrf.mxu0
        %6255 = vdwg.mxu0
        %6256 = vmatprep.subr.bf16.mxu0 %v5320
        %6257 = vmatpush1.bf16.msra.mxu0 %v5319
        %6258 = vmatprep.subr.bf16.mxu0 %v5304
        %6259 = vmatpush1.bf16.msra.mxu0 %v5303
        %6260 = vmatprep.subr.bf16.mxu0 %v5288
        %6261 = vmatpush1.bf16.msra.mxu0 %v5287
        %6262 = vmatprep.subr.bf16.mxu0 %v5272
        %6263 = vmatpush1.bf16.msra.mxu0 %v5271
        %6264 = vmatprep.subr.bf16.mxu0 %v5256
        %6265 = vmatpush1.bf16.msra.mxu0 %v5255
        %6266 = vmatprep.subr.bf16.mxu0 %v5240
        %6267 = vmatpush1.bf16.msra.mxu0 %v5239
        %6268 = vmatprep.subr.bf16.mxu0 %v5224
        %6269 = vmatpush1.bf16.msra.mxu0 %v5223
        %6270 = vmatprep.subr.bf16.mxu0 %v5208
        %6271 = vmatpush1.bf16.msra.mxu0 %v5207
        %6272 = vmatprep.subr.bf16.mxu0 %v5448
        %6273 = vmatpush2.bf16.msra.mxu0 %v5447
        %6274 = vmatprep.subr.bf16.mxu0 %v5432
        %6275 = vmatpush2.bf16.msra.mxu0 %v5431
        %6276 = vmatprep.subr.bf16.mxu0 %v5416
        %6277 = vmatpush2.bf16.msra.mxu0 %v5415
        %6278 = vmatprep.subr.bf16.mxu0 %v5400
        %6279 = vmatpush2.bf16.msra.mxu0 %v5399
        %6280 = vmatprep.subr.bf16.mxu0 %v5384
        %6281 = vmatpush2.bf16.msra.mxu0 %v5383
        %6282 = vmatprep.subr.bf16.mxu0 %v5368
        %6283 = vmatpush2.bf16.msra.mxu0 %v5367
        %6284 = vmatprep.subr.bf16.mxu0 %v5352
        %6285 = vmatpush2.bf16.msra.mxu0 %v5351
        %6286 = vmatprep.subr.bf16.mxu0 %v5336
        %6287 = vmatpush2.bf16.msra.mxu0 %v5335
        %6288 = vmatprep.mubr.bf16.mxu0 %v2122
        %6289 = vmatmul.mubr.bf16.gmra.mxu0 %v2121
        %v6290 = vpop.f32.mrf.mxu0
        %v6291 = vadd.f32 %v6250, %v6290
        %v6292 = vpop.f32.mrf.mxu0
        %v6293 = vadd.f32 %v6252, %v6292
        %v6294 = vpop.f32.mrf.mxu0
        %v6295 = vpop.f32.mrf.mxu0
        %6296 = vdwg.mxu0
        %6297 = vmatprep.subr.bf16.mxu0 %v5066
        %6298 = vmatpush1.bf16.msra.mxu0 %v5065
        %6299 = vmatprep.subr.bf16.mxu0 %v5050
        %6300 = vmatpush1.bf16.msra.mxu0 %v5049
        %6301 = vmatprep.subr.bf16.mxu0 %v5034
        %6302 = vmatpush1.bf16.msra.mxu0 %v5033
        %6303 = vmatprep.subr.bf16.mxu0 %v5018
        %6304 = vmatpush1.bf16.msra.mxu0 %v5017
        %6305 = vmatprep.subr.bf16.mxu0 %v5002
        %6306 = vmatpush1.bf16.msra.mxu0 %v5001
        %6307 = vmatprep.subr.bf16.mxu0 %v4986
        %6308 = vmatpush1.bf16.msra.mxu0 %v4985
        %6309 = vmatprep.subr.bf16.mxu0 %v4970
        %6310 = vmatpush1.bf16.msra.mxu0 %v4969
        %6311 = vmatprep.subr.bf16.mxu0 %v4954
        %6312 = vmatpush1.bf16.msra.mxu0 %v4953
        %6313 = vmatprep.subr.bf16.mxu0 %v5194
        %6314 = vmatpush2.bf16.msra.mxu0 %v5193
        %6315 = vmatprep.subr.bf16.mxu0 %v5178
        %6316 = vmatpush2.bf16.msra.mxu0 %v5177
        %6317 = vmatprep.subr.bf16.mxu0 %v5162
        %6318 = vmatpush2.bf16.msra.mxu0 %v5161
        %6319 = vmatprep.subr.bf16.mxu0 %v5146
        %6320 = vmatpush2.bf16.msra.mxu0 %v5145
        %6321 = vmatprep.subr.bf16.mxu0 %v5130
        %6322 = vmatpush2.bf16.msra.mxu0 %v5129
        %6323 = vmatprep.subr.bf16.mxu0 %v5114
        %6324 = vmatpush2.bf16.msra.mxu0 %v5113
        %6325 = vmatprep.subr.bf16.mxu0 %v5098
        %6326 = vmatpush2.bf16.msra.mxu0 %v5097
        %6327 = vmatprep.subr.bf16.mxu0 %v5082
        %6328 = vmatpush2.bf16.msra.mxu0 %v5081
        %6329 = vmatprep.mubr.bf16.mxu0 %v2120
        %6330 = vmatmul.mubr.bf16.gmra.mxu0 %v2119
        %v6331 = vpop.f32.mrf.mxu0
        %v6332 = vadd.f32 %v3364, %v6331
        %v6333 = vpop.f32.mrf.mxu0
        %v6334 = vadd.f32 %v3368, %v6333
        %v6335 = vpop.f32.mrf.mxu0
        %v6336 = vpop.f32.mrf.mxu0
        %6337 = vdwg.mxu0
        %6338 = vmatprep.subr.bf16.mxu0 %v5322
        %6339 = vmatpush1.bf16.msra.mxu0 %v5321
        %6340 = vmatprep.subr.bf16.mxu0 %v5306
        %6341 = vmatpush1.bf16.msra.mxu0 %v5305
        %6342 = vmatprep.subr.bf16.mxu0 %v5290
        %6343 = vmatpush1.bf16.msra.mxu0 %v5289
        %6344 = vmatprep.subr.bf16.mxu0 %v5274
        %6345 = vmatpush1.bf16.msra.mxu0 %v5273
        %6346 = vmatprep.subr.bf16.mxu0 %v5258
        %6347 = vmatpush1.bf16.msra.mxu0 %v5257
        %6348 = vmatprep.subr.bf16.mxu0 %v5242
        %6349 = vmatpush1.bf16.msra.mxu0 %v5241
        %6350 = vmatprep.subr.bf16.mxu0 %v5226
        %6351 = vmatpush1.bf16.msra.mxu0 %v5225
        %6352 = vmatprep.subr.bf16.mxu0 %v5210
        %6353 = vmatpush1.bf16.msra.mxu0 %v5209
        %6354 = vmatprep.subr.bf16.mxu0 %v5450
        %6355 = vmatpush2.bf16.msra.mxu0 %v5449
        %6356 = vmatprep.subr.bf16.mxu0 %v5434
        %6357 = vmatpush2.bf16.msra.mxu0 %v5433
        %6358 = vmatprep.subr.bf16.mxu0 %v5418
        %6359 = vmatpush2.bf16.msra.mxu0 %v5417
        %6360 = vmatprep.subr.bf16.mxu0 %v5402
        %6361 = vmatpush2.bf16.msra.mxu0 %v5401
        %6362 = vmatprep.subr.bf16.mxu0 %v5386
        %6363 = vmatpush2.bf16.msra.mxu0 %v5385
        %6364 = vmatprep.subr.bf16.mxu0 %v5370
        %6365 = vmatpush2.bf16.msra.mxu0 %v5369
        %6366 = vmatprep.subr.bf16.mxu0 %v5354
        %6367 = vmatpush2.bf16.msra.mxu0 %v5353
        %6368 = vmatprep.subr.bf16.mxu0 %v5338
        %6369 = vmatpush2.bf16.msra.mxu0 %v5337
        %6370 = vmatprep.mubr.bf16.mxu0 %v2122
        %6371 = vmatmul.mubr.bf16.gmra.mxu0 %v2121
        %v6372 = vpop.f32.mrf.mxu0
        %v6373 = vadd.f32 %v6332, %v6372
        %v6374 = vpop.f32.mrf.mxu0
        %v6375 = vadd.f32 %v6334, %v6374
        %v6376 = vpop.f32.mrf.mxu0
        %v6377 = vpop.f32.mrf.mxu0
        %6378 = vdwg.mxu0
        %6379 = vmatprep.subr.bf16.mxu0 %v5068
        %6380 = vmatpush1.bf16.msra.mxu0 %v5067
        %6381 = vmatprep.subr.bf16.mxu0 %v5052
        %6382 = vmatpush1.bf16.msra.mxu0 %v5051
        %6383 = vmatprep.subr.bf16.mxu0 %v5036
        %6384 = vmatpush1.bf16.msra.mxu0 %v5035
        %6385 = vmatprep.subr.bf16.mxu0 %v5020
        %6386 = vmatpush1.bf16.msra.mxu0 %v5019
        %6387 = vmatprep.subr.bf16.mxu0 %v5004
        %6388 = vmatpush1.bf16.msra.mxu0 %v5003
        %6389 = vmatprep.subr.bf16.mxu0 %v4988
        %6390 = vmatpush1.bf16.msra.mxu0 %v4987
        %6391 = vmatprep.subr.bf16.mxu0 %v4972
        %6392 = vmatpush1.bf16.msra.mxu0 %v4971
        %6393 = vmatprep.subr.bf16.mxu0 %v4956
        %6394 = vmatpush1.bf16.msra.mxu0 %v4955
        %6395 = vmatprep.subr.bf16.mxu0 %v5196
        %6396 = vmatpush2.bf16.msra.mxu0 %v5195
        %6397 = vmatprep.subr.bf16.mxu0 %v5180
        %6398 = vmatpush2.bf16.msra.mxu0 %v5179
        %6399 = vmatprep.subr.bf16.mxu0 %v5164
        %6400 = vmatpush2.bf16.msra.mxu0 %v5163
        %6401 = vmatprep.subr.bf16.mxu0 %v5148
        %6402 = vmatpush2.bf16.msra.mxu0 %v5147
        %6403 = vmatprep.subr.bf16.mxu0 %v5132
        %6404 = vmatpush2.bf16.msra.mxu0 %v5131
        %6405 = vmatprep.subr.bf16.mxu0 %v5116
        %6406 = vmatpush2.bf16.msra.mxu0 %v5115
        %6407 = vmatprep.subr.bf16.mxu0 %v5100
        %6408 = vmatpush2.bf16.msra.mxu0 %v5099
        %6409 = vmatprep.subr.bf16.mxu0 %v5084
        %6410 = vmatpush2.bf16.msra.mxu0 %v5083
        %6411 = vmatprep.mubr.bf16.mxu0 %v2120
        %6412 = vmatmul.mubr.bf16.gmra.mxu0 %v2119
        %v6413 = vpop.f32.mrf.mxu0
        %v6414 = vadd.f32 %v3372, %v6413
        %v6415 = vpop.f32.mrf.mxu0
        %v6416 = vadd.f32 %v3376, %v6415
        %v6417 = vpop.f32.mrf.mxu0
        %v6418 = vpop.f32.mrf.mxu0
        %6419 = vdwg.mxu0
        %6420 = vmatprep.subr.bf16.mxu0 %v5324
        %6421 = vmatpush1.bf16.msra.mxu0 %v5323
        %6422 = vmatprep.subr.bf16.mxu0 %v5308
        %6423 = vmatpush1.bf16.msra.mxu0 %v5307
        %6424 = vmatprep.subr.bf16.mxu0 %v5292
        %6425 = vmatpush1.bf16.msra.mxu0 %v5291
        %6426 = vmatprep.subr.bf16.mxu0 %v5276
        %6427 = vmatpush1.bf16.msra.mxu0 %v5275
        %6428 = vmatprep.subr.bf16.mxu0 %v5260
        %6429 = vmatpush1.bf16.msra.mxu0 %v5259
        %6430 = vmatprep.subr.bf16.mxu0 %v5244
        %6431 = vmatpush1.bf16.msra.mxu0 %v5243
        %6432 = vmatprep.subr.bf16.mxu0 %v5228
        %6433 = vmatpush1.bf16.msra.mxu0 %v5227
        %6434 = vmatprep.subr.bf16.mxu0 %v5212
        %6435 = vmatpush1.bf16.msra.mxu0 %v5211
        %6436 = vmatprep.subr.bf16.mxu0 %v5452
        %6437 = vmatpush2.bf16.msra.mxu0 %v5451
        %6438 = vmatprep.subr.bf16.mxu0 %v5436
        %6439 = vmatpush2.bf16.msra.mxu0 %v5435
        %6440 = vmatprep.subr.bf16.mxu0 %v5420
        %6441 = vmatpush2.bf16.msra.mxu0 %v5419
        %6442 = vmatprep.subr.bf16.mxu0 %v5404
        %6443 = vmatpush2.bf16.msra.mxu0 %v5403
        %6444 = vmatprep.subr.bf16.mxu0 %v5388
        %6445 = vmatpush2.bf16.msra.mxu0 %v5387
        %6446 = vmatprep.subr.bf16.mxu0 %v5372
        %6447 = vmatpush2.bf16.msra.mxu0 %v5371
        %6448 = vmatprep.subr.bf16.mxu0 %v5356
        %6449 = vmatpush2.bf16.msra.mxu0 %v5355
        %6450 = vmatprep.subr.bf16.mxu0 %v5340
        %6451 = vmatpush2.bf16.msra.mxu0 %v5339
        %6452 = vmatprep.mubr.bf16.mxu0 %v2122
        %6453 = vmatmul.mubr.bf16.gmra.mxu0 %v2121
        %v6454 = vpop.f32.mrf.mxu0
        %v6455 = vadd.f32 %v6414, %v6454
        %v6456 = vpop.f32.mrf.mxu0
        %v6457 = vadd.f32 %v6416, %v6456
        %v6458 = vpop.f32.mrf.mxu0
        %v6459 = vpop.f32.mrf.mxu0
        %6460 = vdwg.mxu0
        %6461 = vmatprep.subr.bf16.mxu0 %v5070
        %6462 = vmatpush1.bf16.msra.mxu0 %v5069
        %6463 = vmatprep.subr.bf16.mxu0 %v5054
        %6464 = vmatpush1.bf16.msra.mxu0 %v5053
        %6465 = vmatprep.subr.bf16.mxu0 %v5038
        %6466 = vmatpush1.bf16.msra.mxu0 %v5037
        %6467 = vmatprep.subr.bf16.mxu0 %v5022
        %6468 = vmatpush1.bf16.msra.mxu0 %v5021
        %6469 = vmatprep.subr.bf16.mxu0 %v5006
        %6470 = vmatpush1.bf16.msra.mxu0 %v5005
        %6471 = vmatprep.subr.bf16.mxu0 %v4990
        %6472 = vmatpush1.bf16.msra.mxu0 %v4989
        %6473 = vmatprep.subr.bf16.mxu0 %v4974
        %6474 = vmatpush1.bf16.msra.mxu0 %v4973
        %6475 = vmatprep.subr.bf16.mxu0 %v4958
        %6476 = vmatpush1.bf16.msra.mxu0 %v4957
        %6477 = vmatprep.subr.bf16.mxu0 %v5198
        %6478 = vmatpush2.bf16.msra.mxu0 %v5197
        %6479 = vmatprep.subr.bf16.mxu0 %v5182
        %6480 = vmatpush2.bf16.msra.mxu0 %v5181
        %6481 = vmatprep.subr.bf16.mxu0 %v5166
        %6482 = vmatpush2.bf16.msra.mxu0 %v5165
        %6483 = vmatprep.subr.bf16.mxu0 %v5150
        %6484 = vmatpush2.bf16.msra.mxu0 %v5149
        %6485 = vmatprep.subr.bf16.mxu0 %v5134
        %6486 = vmatpush2.bf16.msra.mxu0 %v5133
        %6487 = vmatprep.subr.bf16.mxu0 %v5118
        %6488 = vmatpush2.bf16.msra.mxu0 %v5117
        %6489 = vmatprep.subr.bf16.mxu0 %v5102
        %6490 = vmatpush2.bf16.msra.mxu0 %v5101
        %6491 = vmatprep.subr.bf16.mxu0 %v5086
        %6492 = vmatpush2.bf16.msra.mxu0 %v5085
        %6493 = vmatprep.mubr.bf16.mxu0 %v2120
        %6494 = vmatmul.mubr.bf16.gmra.mxu0 %v2119
        %v6495 = vpop.f32.mrf.mxu0
        %v6496 = vadd.f32 %v3380, %v6495
        %v6497 = vpop.f32.mrf.mxu0
        %v6498 = vadd.f32 %v3384, %v6497
        %v6499 = vpop.f32.mrf.mxu0
        %v6500 = vpop.f32.mrf.mxu0
        %6501 = vdwg.mxu0
        %6502 = vmatprep.subr.bf16.mxu0 %v5326
        %6503 = vmatpush1.bf16.msra.mxu0 %v5325
        %6504 = vmatprep.subr.bf16.mxu0 %v5310
        %6505 = vmatpush1.bf16.msra.mxu0 %v5309
        %6506 = vmatprep.subr.bf16.mxu0 %v5294
        %6507 = vmatpush1.bf16.msra.mxu0 %v5293
        %6508 = vmatprep.subr.bf16.mxu0 %v5278
        %6509 = vmatpush1.bf16.msra.mxu0 %v5277
        %6510 = vmatprep.subr.bf16.mxu0 %v5262
        %6511 = vmatpush1.bf16.msra.mxu0 %v5261
        %6512 = vmatprep.subr.bf16.mxu0 %v5246
        %6513 = vmatpush1.bf16.msra.mxu0 %v5245
        %6514 = vmatprep.subr.bf16.mxu0 %v5230
        %6515 = vmatpush1.bf16.msra.mxu0 %v5229
        %6516 = vmatprep.subr.bf16.mxu0 %v5214
        %6517 = vmatpush1.bf16.msra.mxu0 %v5213
        %6518 = vmatprep.subr.bf16.mxu0 %v5454
        %6519 = vmatpush2.bf16.msra.mxu0 %v5453
        %6520 = vmatprep.subr.bf16.mxu0 %v5438
        %6521 = vmatpush2.bf16.msra.mxu0 %v5437
        %6522 = vmatprep.subr.bf16.mxu0 %v5422
        %6523 = vmatpush2.bf16.msra.mxu0 %v5421
        %6524 = vmatprep.subr.bf16.mxu0 %v5406
        %6525 = vmatpush2.bf16.msra.mxu0 %v5405
        %6526 = vmatprep.subr.bf16.mxu0 %v5390
        %6527 = vmatpush2.bf16.msra.mxu0 %v5389
        %6528 = vmatprep.subr.bf16.mxu0 %v5374
        %6529 = vmatpush2.bf16.msra.mxu0 %v5373
        %6530 = vmatprep.subr.bf16.mxu0 %v5358
        %6531 = vmatpush2.bf16.msra.mxu0 %v5357
        %6532 = vmatprep.subr.bf16.mxu0 %v5342
        %6533 = vmatpush2.bf16.msra.mxu0 %v5341
        %6534 = vmatprep.mubr.bf16.mxu0 %v2122
        %6535 = vmatmul.mubr.bf16.gmra.mxu0 %v2121
        %v6536 = vpop.f32.mrf.mxu0
        %v6537 = vadd.f32 %v6496, %v6536
        %v6538 = vpop.f32.mrf.mxu0
        %v6539 = vadd.f32 %v6498, %v6538
        %v6540 = vpop.f32.mrf.mxu0
        %v6541 = vpop.f32.mrf.mxu0
        %6542 = vdwg.mxu0
        %6543 = vmatprep.subr.bf16.mxu0 %v5072
        %6544 = vmatpush1.bf16.msra.mxu0 %v5071
        %6545 = vmatprep.subr.bf16.mxu0 %v5056
        %6546 = vmatpush1.bf16.msra.mxu0 %v5055
        %6547 = vmatprep.subr.bf16.mxu0 %v5040
        %6548 = vmatpush1.bf16.msra.mxu0 %v5039
        %6549 = vmatprep.subr.bf16.mxu0 %v5024
        %6550 = vmatpush1.bf16.msra.mxu0 %v5023
        %6551 = vmatprep.subr.bf16.mxu0 %v5008
        %6552 = vmatpush1.bf16.msra.mxu0 %v5007
        %6553 = vmatprep.subr.bf16.mxu0 %v4992
        %6554 = vmatpush1.bf16.msra.mxu0 %v4991
        %6555 = vmatprep.subr.bf16.mxu0 %v4976
        %6556 = vmatpush1.bf16.msra.mxu0 %v4975
        %6557 = vmatprep.subr.bf16.mxu0 %v4960
        %6558 = vmatpush1.bf16.msra.mxu0 %v4959
        %6559 = vmatprep.subr.bf16.mxu0 %v5200
        %6560 = vmatpush2.bf16.msra.mxu0 %v5199
        %6561 = vmatprep.subr.bf16.mxu0 %v5184
        %6562 = vmatpush2.bf16.msra.mxu0 %v5183
        %6563 = vmatprep.subr.bf16.mxu0 %v5168
        %6564 = vmatpush2.bf16.msra.mxu0 %v5167
        %6565 = vmatprep.subr.bf16.mxu0 %v5152
        %6566 = vmatpush2.bf16.msra.mxu0 %v5151
        %6567 = vmatprep.subr.bf16.mxu0 %v5136
        %6568 = vmatpush2.bf16.msra.mxu0 %v5135
        %6569 = vmatprep.subr.bf16.mxu0 %v5120
        %6570 = vmatpush2.bf16.msra.mxu0 %v5119
        %6571 = vmatprep.subr.bf16.mxu0 %v5104
        %6572 = vmatpush2.bf16.msra.mxu0 %v5103
        %6573 = vmatprep.subr.bf16.mxu0 %v5088
        %6574 = vmatpush2.bf16.msra.mxu0 %v5087
        %6575 = vmatprep.mubr.bf16.mxu0 %v2120
        %6576 = vmatmul.mubr.bf16.gmra.mxu0 %v2119
        %v6577 = vpop.f32.mrf.mxu0
        %v6578 = vadd.f32 %v3388, %v6577
        %v6579 = vpop.f32.mrf.mxu0
        %v6580 = vadd.f32 %v3392, %v6579
        %v6581 = vpop.f32.mrf.mxu0
        %v6582 = vpop.f32.mrf.mxu0
        %6583 = vdwg.mxu0
        %6584 = vmatprep.subr.bf16.mxu0 %v5328
        %6585 = vmatpush1.bf16.msra.mxu0 %v5327
        %6586 = vmatprep.subr.bf16.mxu0 %v5312
        %6587 = vmatpush1.bf16.msra.mxu0 %v5311
        %6588 = vmatprep.subr.bf16.mxu0 %v5296
        %6589 = vmatpush1.bf16.msra.mxu0 %v5295
        %6590 = vmatprep.subr.bf16.mxu0 %v5280
        %6591 = vmatpush1.bf16.msra.mxu0 %v5279
        %6592 = vmatprep.subr.bf16.mxu0 %v5264
        %6593 = vmatpush1.bf16.msra.mxu0 %v5263
        %6594 = vmatprep.subr.bf16.mxu0 %v5248
        %6595 = vmatpush1.bf16.msra.mxu0 %v5247
        %6596 = vmatprep.subr.bf16.mxu0 %v5232
        %6597 = vmatpush1.bf16.msra.mxu0 %v5231
        %6598 = vmatprep.subr.bf16.mxu0 %v5216
        %6599 = vmatpush1.bf16.msra.mxu0 %v5215
        %6600 = vmatprep.subr.bf16.mxu0 %v5456
        %6601 = vmatpush2.bf16.msra.mxu0 %v5455
        %6602 = vmatprep.subr.bf16.mxu0 %v5440
        %6603 = vmatpush2.bf16.msra.mxu0 %v5439
        %6604 = vmatprep.subr.bf16.mxu0 %v5424
        %6605 = vmatpush2.bf16.msra.mxu0 %v5423
        %6606 = vmatprep.subr.bf16.mxu0 %v5408
        %6607 = vmatpush2.bf16.msra.mxu0 %v5407
        %6608 = vmatprep.subr.bf16.mxu0 %v5392
        %6609 = vmatpush2.bf16.msra.mxu0 %v5391
        %6610 = vmatprep.subr.bf16.mxu0 %v5376
        %6611 = vmatpush2.bf16.msra.mxu0 %v5375
        %6612 = vmatprep.subr.bf16.mxu0 %v5360
        %6613 = vmatpush2.bf16.msra.mxu0 %v5359
        %6614 = vmatprep.subr.bf16.mxu0 %v5344
        %6615 = vmatpush2.bf16.msra.mxu0 %v5343
        %6616 = vmatprep.mubr.bf16.mxu0 %v2122
        %6617 = vmatmul.mubr.bf16.gmra.mxu0 %v2121
        %v6618 = vpop.f32.mrf.mxu0
        %v6619 = vadd.f32 %v6578, %v6618
        %v6620 = vpop.f32.mrf.mxu0
        %v6621 = vadd.f32 %v6580, %v6620
        %v6622 = vpop.f32.mrf.mxu0
        %v6623 = vpop.f32.mrf.mxu0
        %6624 = vdwg.mxu0
        %v6625 = vtanh.pop %v6045
        %v6626 = vtanh.pop %v6047
        %v6627 = vtanh.pop %v6127
        %v6628 = vtanh.pop %v6129
        %v6629 = vtanh.pop %v6209
        %v6630 = vtanh.pop %v6211
        %v6631 = vtanh.pop %v6291
        %v6632 = vtanh.pop %v6293
        %v6633 = vtanh.pop %v6373
        %v6634 = vtanh.pop %v6375
        %v6635 = vtanh.pop %v6455
        %v6636 = vtanh.pop %v6457
        %v6637 = vtanh.pop %v6537
        %v6638 = vtanh.pop %v6539
        %v6639 = vtanh.pop %v6619
        %v6640 = vtanh.pop %v6621
        %v6641 = vpack.c.bf16 %v6625, %v6625
        %v6642 = vpack.c.bf16 %v6626, %v6626
        %v6643 = vpack.c.bf16 %v6627, %v6627
        %v6644 = vpack.c.bf16 %v6628, %v6628
        %v6645 = vpack.c.bf16 %v6629, %v6629
        %v6646 = vpack.c.bf16 %v6630, %v6630
        %v6647 = vpack.c.bf16 %v6631, %v6631
        %v6648 = vpack.c.bf16 %v6632, %v6632
        %v6649 = vpack.c.bf16 %v6633, %v6633
        %v6650 = vpack.c.bf16 %v6634, %v6634
        %v6651 = vpack.c.bf16 %v6635, %v6635
        %v6652 = vpack.c.bf16 %v6636, %v6636
        %v6653 = vpack.c.bf16 %v6637, %v6637
        %v6654 = vpack.c.bf16 %v6638, %v6638
        %v6655 = vpack.c.bf16 %v6639, %v6639
        %v6656 = vpack.c.bf16 %v6640, %v6640
        %v6657 = vld [vmem:[#allocation16] sm:$0xf]
        %v6658 = vld [vmem:[#allocation16 + $0x4] sm:$0xf]
        %v6659 = vld [vmem:[#allocation16 + $0x8] sm:$0xf]
        %v6660 = vld [vmem:[#allocation16 + $0xc] sm:$0xf]
        %v6661 = vld [vmem:[#allocation16 + $0x10] sm:$0xf]
        %v6662 = vld [vmem:[#allocation16 + $0x14] sm:$0xf]
        %v6663 = vld [vmem:[#allocation16 + $0x18] sm:$0xf]
        %v6664 = vld [vmem:[#allocation16 + $0x1c] sm:$0xf]
        %v6665 = vld [vmem:[#allocation16 + $0x20] sm:$0xf]
        %v6666 = vld [vmem:[#allocation16 + $0x24] sm:$0xf]
        %v6667 = vld [vmem:[#allocation16 + $0x28] sm:$0xf]
        %v6668 = vld [vmem:[#allocation16 + $0x2c] sm:$0xf]
        %v6669 = vld [vmem:[#allocation16 + $0x30] sm:$0xf]
        %v6670 = vld [vmem:[#allocation16 + $0x34] sm:$0xf]
        %v6671 = vld [vmem:[#allocation16 + $0x38] sm:$0xf]
        %v6672 = vld [vmem:[#allocation16 + $0x3c] sm:$0xf]
        %v6673 = vld [vmem:[#allocation16 + $0x40] sm:$0xf]
        %v6674 = vld [vmem:[#allocation16 + $0x44] sm:$0xf]
        %v6675 = vld [vmem:[#allocation16 + $0x48] sm:$0xf]
        %v6676 = vld [vmem:[#allocation16 + $0x4c] sm:$0xf]
        %v6677 = vld [vmem:[#allocation16 + $0x50] sm:$0xf]
        %v6678 = vld [vmem:[#allocation16 + $0x54] sm:$0xf]
        %v6679 = vld [vmem:[#allocation16 + $0x58] sm:$0xf]
        %v6680 = vld [vmem:[#allocation16 + $0x5c] sm:$0xf]
        %v6681 = vld [vmem:[#allocation16 + $0x60] sm:$0xf]
        %v6682 = vld [vmem:[#allocation16 + $0x64] sm:$0xf]
        %v6683 = vld [vmem:[#allocation16 + $0x68] sm:$0xf]
        %v6684 = vld [vmem:[#allocation16 + $0x6c] sm:$0xf]
        %v6685 = vld [vmem:[#allocation16 + $0x70] sm:$0xf]
        %v6686 = vld [vmem:[#allocation16 + $0x74] sm:$0xf]
        %v6687 = vld [vmem:[#allocation16 + $0x78] sm:$0xf]
        %v6688 = vld [vmem:[#allocation16 + $0x7c] sm:$0xf]
        %v6689 = vld [vmem:[#allocation16 + $0x80] sm:$0xf]
        %v6690 = vld [vmem:[#allocation16 + $0x84] sm:$0xf]
        %v6691 = vld [vmem:[#allocation16 + $0x88] sm:$0xf]
        %v6692 = vld [vmem:[#allocation16 + $0x8c] sm:$0xf]
        %v6693 = vld [vmem:[#allocation16 + $0x90] sm:$0xf]
        %v6694 = vld [vmem:[#allocation16 + $0x94] sm:$0xf]
        %v6695 = vld [vmem:[#allocation16 + $0x98] sm:$0xf]
        %v6696 = vld [vmem:[#allocation16 + $0x9c] sm:$0xf]
        %v6697 = vld [vmem:[#allocation16 + $0xa0] sm:$0xf]
        %v6698 = vld [vmem:[#allocation16 + $0xa4] sm:$0xf]
        %v6699 = vld [vmem:[#allocation16 + $0xa8] sm:$0xf]
        %v6700 = vld [vmem:[#allocation16 + $0xac] sm:$0xf]
        %v6701 = vld [vmem:[#allocation16 + $0xb0] sm:$0xf]
        %v6702 = vld [vmem:[#allocation16 + $0xb4] sm:$0xf]
        %v6703 = vld [vmem:[#allocation16 + $0xb8] sm:$0xf]
        %v6704 = vld [vmem:[#allocation16 + $0xbc] sm:$0xf]
        %v6705 = vld [vmem:[#allocation16 + $0xc0] sm:$0xf]
        %v6706 = vld [vmem:[#allocation16 + $0xc4] sm:$0xf]
        %v6707 = vld [vmem:[#allocation16 + $0xc8] sm:$0xf]
        %v6708 = vld [vmem:[#allocation16 + $0xcc] sm:$0xf]
        %v6709 = vld [vmem:[#allocation16 + $0xd0] sm:$0xf]
        %v6710 = vld [vmem:[#allocation16 + $0xd4] sm:$0xf]
        %v6711 = vld [vmem:[#allocation16 + $0xd8] sm:$0xf]
        %v6712 = vld [vmem:[#allocation16 + $0xdc] sm:$0xf]
        %v6713 = vld [vmem:[#allocation16 + $0xe0] sm:$0xf]
        %v6714 = vld [vmem:[#allocation16 + $0xe4] sm:$0xf]
        %v6715 = vld [vmem:[#allocation16 + $0xe8] sm:$0xf]
        %v6716 = vld [vmem:[#allocation16 + $0xec] sm:$0xf]
        %v6717 = vld [vmem:[#allocation16 + $0xf0] sm:$0xf]
        %v6718 = vld [vmem:[#allocation16 + $0xf4] sm:$0xf]
        %v6719 = vld [vmem:[#allocation16 + $0xf8] sm:$0xf]
        %v6720 = vld [vmem:[#allocation16 + $0xfc] sm:$0xf]
        %v6721 = vld [vmem:[#allocation16 + $0x100] sm:$0xf]
        %v6722 = vld [vmem:[#allocation16 + $0x104] sm:$0xf]
        %v6723 = vld [vmem:[#allocation16 + $0x108] sm:$0xf]
        %v6724 = vld [vmem:[#allocation16 + $0x10c] sm:$0xf]
        %v6725 = vld [vmem:[#allocation16 + $0x110] sm:$0xf]
        %v6726 = vld [vmem:[#allocation16 + $0x114] sm:$0xf]
        %v6727 = vld [vmem:[#allocation16 + $0x118] sm:$0xf]
        %v6728 = vld [vmem:[#allocation16 + $0x11c] sm:$0xf]
        %v6729 = vld [vmem:[#allocation16 + $0x120] sm:$0xf]
        %v6730 = vld [vmem:[#allocation16 + $0x124] sm:$0xf]
        %v6731 = vld [vmem:[#allocation16 + $0x128] sm:$0xf]
        %v6732 = vld [vmem:[#allocation16 + $0x12c] sm:$0xf]
        %v6733 = vld [vmem:[#allocation16 + $0x130] sm:$0xf]
        %v6734 = vld [vmem:[#allocation16 + $0x134] sm:$0xf]
        %v6735 = vld [vmem:[#allocation16 + $0x138] sm:$0xf]
        %v6736 = vld [vmem:[#allocation16 + $0x13c] sm:$0xf]
        %v6737 = vld [vmem:[#allocation16 + $0x140] sm:$0xf]
        %v6738 = vld [vmem:[#allocation16 + $0x144] sm:$0xf]
        %v6739 = vld [vmem:[#allocation16 + $0x148] sm:$0xf]
        %v6740 = vld [vmem:[#allocation16 + $0x14c] sm:$0xf]
        %v6741 = vld [vmem:[#allocation16 + $0x150] sm:$0xf]
        %v6742 = vld [vmem:[#allocation16 + $0x154] sm:$0xf]
        %v6743 = vld [vmem:[#allocation16 + $0x158] sm:$0xf]
        %v6744 = vld [vmem:[#allocation16 + $0x15c] sm:$0xf]
        %v6745 = vld [vmem:[#allocation16 + $0x160] sm:$0xf]
        %v6746 = vld [vmem:[#allocation16 + $0x164] sm:$0xf]
        %v6747 = vld [vmem:[#allocation16 + $0x168] sm:$0xf]
        %v6748 = vld [vmem:[#allocation16 + $0x16c] sm:$0xf]
        %v6749 = vld [vmem:[#allocation16 + $0x170] sm:$0xf]
        %v6750 = vld [vmem:[#allocation16 + $0x174] sm:$0xf]
        %v6751 = vld [vmem:[#allocation16 + $0x178] sm:$0xf]
        %v6752 = vld [vmem:[#allocation16 + $0x17c] sm:$0xf]
        %v6753 = vld [vmem:[#allocation16 + $0x180] sm:$0xf]
        %v6754 = vld [vmem:[#allocation16 + $0x184] sm:$0xf]
        %v6755 = vld [vmem:[#allocation16 + $0x188] sm:$0xf]
        %v6756 = vld [vmem:[#allocation16 + $0x18c] sm:$0xf]
        %v6757 = vld [vmem:[#allocation16 + $0x190] sm:$0xf]
        %v6758 = vld [vmem:[#allocation16 + $0x194] sm:$0xf]
        %v6759 = vld [vmem:[#allocation16 + $0x198] sm:$0xf]
        %v6760 = vld [vmem:[#allocation16 + $0x19c] sm:$0xf]
        %v6761 = vld [vmem:[#allocation16 + $0x1a0] sm:$0xf]
        %v6762 = vld [vmem:[#allocation16 + $0x1a4] sm:$0xf]
        %v6763 = vld [vmem:[#allocation16 + $0x1a8] sm:$0xf]
        %v6764 = vld [vmem:[#allocation16 + $0x1ac] sm:$0xf]
        %v6765 = vld [vmem:[#allocation16 + $0x1b0] sm:$0xf]
        %v6766 = vld [vmem:[#allocation16 + $0x1b4] sm:$0xf]
        %v6767 = vld [vmem:[#allocation16 + $0x1b8] sm:$0xf]
        %v6768 = vld [vmem:[#allocation16 + $0x1bc] sm:$0xf]
        %v6769 = vld [vmem:[#allocation16 + $0x1c0] sm:$0xf]
        %v6770 = vld [vmem:[#allocation16 + $0x1c4] sm:$0xf]
        %v6771 = vld [vmem:[#allocation16 + $0x1c8] sm:$0xf]
        %v6772 = vld [vmem:[#allocation16 + $0x1cc] sm:$0xf]
        %v6773 = vld [vmem:[#allocation16 + $0x1d0] sm:$0xf]
        %v6774 = vld [vmem:[#allocation16 + $0x1d4] sm:$0xf]
        %v6775 = vld [vmem:[#allocation16 + $0x1d8] sm:$0xf]
        %v6776 = vld [vmem:[#allocation16 + $0x1dc] sm:$0xf]
        %v6777 = vld [vmem:[#allocation16 + $0x1e0] sm:$0xf]
        %v6778 = vld [vmem:[#allocation16 + $0x1e4] sm:$0xf]
        %v6779 = vld [vmem:[#allocation16 + $0x1e8] sm:$0xf]
        %v6780 = vld [vmem:[#allocation16 + $0x1ec] sm:$0xf]
        %v6781 = vld [vmem:[#allocation16 + $0x1f0] sm:$0xf]
        %v6782 = vld [vmem:[#allocation16 + $0x1f4] sm:$0xf]
        %v6783 = vld [vmem:[#allocation16 + $0x1f8] sm:$0xf]
        %v6784 = vld [vmem:[#allocation16 + $0x1fc] sm:$0xf]
        %v6785 = vld [vmem:[#allocation16 + $0x200] sm:$0xf]
        %v6786 = vld [vmem:[#allocation16 + $0x204] sm:$0xf]
        %v6787 = vld [vmem:[#allocation16 + $0x208] sm:$0xf]
        %v6788 = vld [vmem:[#allocation16 + $0x20c] sm:$0xf]
        %v6789 = vld [vmem:[#allocation16 + $0x210] sm:$0xf]
        %v6790 = vld [vmem:[#allocation16 + $0x214] sm:$0xf]
        %v6791 = vld [vmem:[#allocation16 + $0x218] sm:$0xf]
        %v6792 = vld [vmem:[#allocation16 + $0x21c] sm:$0xf]
        %v6793 = vld [vmem:[#allocation16 + $0x220] sm:$0xf]
        %v6794 = vld [vmem:[#allocation16 + $0x224] sm:$0xf]
        %v6795 = vld [vmem:[#allocation16 + $0x228] sm:$0xf]
        %v6796 = vld [vmem:[#allocation16 + $0x22c] sm:$0xf]
        %v6797 = vld [vmem:[#allocation16 + $0x230] sm:$0xf]
        %v6798 = vld [vmem:[#allocation16 + $0x234] sm:$0xf]
        %v6799 = vld [vmem:[#allocation16 + $0x238] sm:$0xf]
        %v6800 = vld [vmem:[#allocation16 + $0x23c] sm:$0xf]
        %v6801 = vld [vmem:[#allocation16 + $0x240] sm:$0xf]
        %v6802 = vld [vmem:[#allocation16 + $0x244] sm:$0xf]
        %v6803 = vld [vmem:[#allocation16 + $0x248] sm:$0xf]
        %v6804 = vld [vmem:[#allocation16 + $0x24c] sm:$0xf]
        %v6805 = vld [vmem:[#allocation16 + $0x250] sm:$0xf]
        %v6806 = vld [vmem:[#allocation16 + $0x254] sm:$0xf]
        %v6807 = vld [vmem:[#allocation16 + $0x258] sm:$0xf]
        %v6808 = vld [vmem:[#allocation16 + $0x25c] sm:$0xf]
        %v6809 = vld [vmem:[#allocation16 + $0x260] sm:$0xf]
        %v6810 = vld [vmem:[#allocation16 + $0x264] sm:$0xf]
        %v6811 = vld [vmem:[#allocation16 + $0x268] sm:$0xf]
        %v6812 = vld [vmem:[#allocation16 + $0x26c] sm:$0xf]
        %v6813 = vld [vmem:[#allocation16 + $0x270] sm:$0xf]
        %v6814 = vld [vmem:[#allocation16 + $0x274] sm:$0xf]
        %v6815 = vld [vmem:[#allocation16 + $0x278] sm:$0xf]
        %v6816 = vld [vmem:[#allocation16 + $0x27c] sm:$0xf]
        %v6817 = vld [vmem:[#allocation16 + $0x280] sm:$0xf]
        %v6818 = vld [vmem:[#allocation16 + $0x284] sm:$0xf]
        %v6819 = vld [vmem:[#allocation16 + $0x288] sm:$0xf]
        %v6820 = vld [vmem:[#allocation16 + $0x28c] sm:$0xf]
        %v6821 = vld [vmem:[#allocation16 + $0x290] sm:$0xf]
        %v6822 = vld [vmem:[#allocation16 + $0x294] sm:$0xf]
        %v6823 = vld [vmem:[#allocation16 + $0x298] sm:$0xf]
        %v6824 = vld [vmem:[#allocation16 + $0x29c] sm:$0xf]
        %v6825 = vld [vmem:[#allocation16 + $0x2a0] sm:$0xf]
        %v6826 = vld [vmem:[#allocation16 + $0x2a4] sm:$0xf]
        %v6827 = vld [vmem:[#allocation16 + $0x2a8] sm:$0xf]
        %v6828 = vld [vmem:[#allocation16 + $0x2ac] sm:$0xf]
        %v6829 = vld [vmem:[#allocation16 + $0x2b0] sm:$0xf]
        %v6830 = vld [vmem:[#allocation16 + $0x2b4] sm:$0xf]
        %v6831 = vld [vmem:[#allocation16 + $0x2b8] sm:$0xf]
        %v6832 = vld [vmem:[#allocation16 + $0x2bc] sm:$0xf]
        %v6833 = vld [vmem:[#allocation16 + $0x2c0] sm:$0xf]
        %v6834 = vld [vmem:[#allocation16 + $0x2c4] sm:$0xf]
        %v6835 = vld [vmem:[#allocation16 + $0x2c8] sm:$0xf]
        %v6836 = vld [vmem:[#allocation16 + $0x2cc] sm:$0xf]
        %v6837 = vld [vmem:[#allocation16 + $0x2d0] sm:$0xf]
        %v6838 = vld [vmem:[#allocation16 + $0x2d4] sm:$0xf]
        %v6839 = vld [vmem:[#allocation16 + $0x2d8] sm:$0xf]
        %v6840 = vld [vmem:[#allocation16 + $0x2dc] sm:$0xf]
        %v6841 = vld [vmem:[#allocation16 + $0x2e0] sm:$0xf]
        %v6842 = vld [vmem:[#allocation16 + $0x2e4] sm:$0xf]
        %v6843 = vld [vmem:[#allocation16 + $0x2e8] sm:$0xf]
        %v6844 = vld [vmem:[#allocation16 + $0x2ec] sm:$0xf]
        %v6845 = vld [vmem:[#allocation16 + $0x2f0] sm:$0xf]
        %v6846 = vld [vmem:[#allocation16 + $0x2f4] sm:$0xf]
        %v6847 = vld [vmem:[#allocation16 + $0x2f8] sm:$0xf]
        %v6848 = vld [vmem:[#allocation16 + $0x2fc] sm:$0xf]
        %v6849 = vld [vmem:[#allocation16 + $0x300] sm:$0xf]
        %v6850 = vld [vmem:[#allocation16 + $0x304] sm:$0xf]
        %v6851 = vld [vmem:[#allocation16 + $0x308] sm:$0xf]
        %v6852 = vld [vmem:[#allocation16 + $0x30c] sm:$0xf]
        %v6853 = vld [vmem:[#allocation16 + $0x310] sm:$0xf]
        %v6854 = vld [vmem:[#allocation16 + $0x314] sm:$0xf]
        %v6855 = vld [vmem:[#allocation16 + $0x318] sm:$0xf]
        %v6856 = vld [vmem:[#allocation16 + $0x31c] sm:$0xf]
        %v6857 = vld [vmem:[#allocation16 + $0x320] sm:$0xf]
        %v6858 = vld [vmem:[#allocation16 + $0x324] sm:$0xf]
        %v6859 = vld [vmem:[#allocation16 + $0x328] sm:$0xf]
        %v6860 = vld [vmem:[#allocation16 + $0x32c] sm:$0xf]
        %v6861 = vld [vmem:[#allocation16 + $0x330] sm:$0xf]
        %v6862 = vld [vmem:[#allocation16 + $0x334] sm:$0xf]
        %v6863 = vld [vmem:[#allocation16 + $0x338] sm:$0xf]
        %v6864 = vld [vmem:[#allocation16 + $0x33c] sm:$0xf]
        %v6865 = vld [vmem:[#allocation16 + $0x340] sm:$0xf]
        %v6866 = vld [vmem:[#allocation16 + $0x344] sm:$0xf]
        %v6867 = vld [vmem:[#allocation16 + $0x348] sm:$0xf]
        %v6868 = vld [vmem:[#allocation16 + $0x34c] sm:$0xf]
        %v6869 = vld [vmem:[#allocation16 + $0x350] sm:$0xf]
        %v6870 = vld [vmem:[#allocation16 + $0x354] sm:$0xf]
        %v6871 = vld [vmem:[#allocation16 + $0x358] sm:$0xf]
        %v6872 = vld [vmem:[#allocation16 + $0x35c] sm:$0xf]
        %v6873 = vld [vmem:[#allocation16 + $0x360] sm:$0xf]
        %v6874 = vld [vmem:[#allocation16 + $0x364] sm:$0xf]
        %v6875 = vld [vmem:[#allocation16 + $0x368] sm:$0xf]
        %v6876 = vld [vmem:[#allocation16 + $0x36c] sm:$0xf]
        %v6877 = vld [vmem:[#allocation16 + $0x370] sm:$0xf]
        %v6878 = vld [vmem:[#allocation16 + $0x374] sm:$0xf]
        %v6879 = vld [vmem:[#allocation16 + $0x378] sm:$0xf]
        %v6880 = vld [vmem:[#allocation16 + $0x37c] sm:$0xf]
        %v6881 = vld [vmem:[#allocation16 + $0x380] sm:$0xf]
        %v6882 = vld [vmem:[#allocation16 + $0x384] sm:$0xf]
        %v6883 = vld [vmem:[#allocation16 + $0x388] sm:$0xf]
        %v6884 = vld [vmem:[#allocation16 + $0x38c] sm:$0xf]
        %v6885 = vld [vmem:[#allocation16 + $0x390] sm:$0xf]
        %v6886 = vld [vmem:[#allocation16 + $0x394] sm:$0xf]
        %v6887 = vld [vmem:[#allocation16 + $0x398] sm:$0xf]
        %v6888 = vld [vmem:[#allocation16 + $0x39c] sm:$0xf]
        %v6889 = vld [vmem:[#allocation16 + $0x3a0] sm:$0xf]
        %v6890 = vld [vmem:[#allocation16 + $0x3a4] sm:$0xf]
        %v6891 = vld [vmem:[#allocation16 + $0x3a8] sm:$0xf]
        %v6892 = vld [vmem:[#allocation16 + $0x3ac] sm:$0xf]
        %v6893 = vld [vmem:[#allocation16 + $0x3b0] sm:$0xf]
        %v6894 = vld [vmem:[#allocation16 + $0x3b4] sm:$0xf]
        %v6895 = vld [vmem:[#allocation16 + $0x3b8] sm:$0xf]
        %v6896 = vld [vmem:[#allocation16 + $0x3bc] sm:$0xf]
        %v6897 = vld [vmem:[#allocation16 + $0x3c0] sm:$0xf]
        %v6898 = vld [vmem:[#allocation16 + $0x3c4] sm:$0xf]
        %v6899 = vld [vmem:[#allocation16 + $0x3c8] sm:$0xf]
        %v6900 = vld [vmem:[#allocation16 + $0x3cc] sm:$0xf]
        %v6901 = vld [vmem:[#allocation16 + $0x3d0] sm:$0xf]
        %v6902 = vld [vmem:[#allocation16 + $0x3d4] sm:$0xf]
        %v6903 = vld [vmem:[#allocation16 + $0x3d8] sm:$0xf]
        %v6904 = vld [vmem:[#allocation16 + $0x3dc] sm:$0xf]
        %v6905 = vld [vmem:[#allocation16 + $0x3e0] sm:$0xf]
        %v6906 = vld [vmem:[#allocation16 + $0x3e4] sm:$0xf]
        %v6907 = vld [vmem:[#allocation16 + $0x3e8] sm:$0xf]
        %v6908 = vld [vmem:[#allocation16 + $0x3ec] sm:$0xf]
        %v6909 = vld [vmem:[#allocation16 + $0x3f0] sm:$0xf]
        %v6910 = vld [vmem:[#allocation16 + $0x3f4] sm:$0xf]
        %v6911 = vld [vmem:[#allocation16 + $0x3f8] sm:$0xf]
        %v6912 = vld [vmem:[#allocation16 + $0x3fc] sm:$0xf]
        %v6913 = vld [vmem:[#allocation17] sm:$0x1]
        %v6915 = vlaneseq
        %v6916 = vshrl.u32 %v6915, 7
        %v6917 = vsub.s32 0, %v6916
        %v6918 = vrot.slane %v6913, %v6917
        %v7176 = vunpack.c.l.b16 %v6657
        %v7177 = vunpack.c.l.b16 %v6658
        %v7178 = vunpack.c.l.b16 %v6659
        %v7179 = vunpack.c.l.b16 %v6660
        %v7180 = vunpack.c.l.b16 %v6661
        %v7181 = vunpack.c.l.b16 %v6662
        %v7182 = vunpack.c.l.b16 %v6663
        %v7183 = vunpack.c.l.b16 %v6664
        %v7184 = vunpack.c.l.b16 %v6665
        %v7185 = vunpack.c.l.b16 %v6666
        %v7186 = vunpack.c.l.b16 %v6667
        %v7187 = vunpack.c.l.b16 %v6668
        %v7188 = vunpack.c.l.b16 %v6669
        %v7189 = vunpack.c.l.b16 %v6670
        %v7190 = vunpack.c.l.b16 %v6671
        %v7191 = vunpack.c.l.b16 %v6672
        %v7192 = vunpack.c.l.b16 %v6673
        %v7193 = vunpack.c.l.b16 %v6674
        %v7194 = vunpack.c.l.b16 %v6675
        %v7195 = vunpack.c.l.b16 %v6676
        %v7196 = vunpack.c.l.b16 %v6677
        %v7197 = vunpack.c.l.b16 %v6678
        %v7198 = vunpack.c.l.b16 %v6679
        %v7199 = vunpack.c.l.b16 %v6680
        %v7200 = vunpack.c.l.b16 %v6681
        %v7201 = vunpack.c.l.b16 %v6682
        %v7202 = vunpack.c.l.b16 %v6683
        %v7203 = vunpack.c.l.b16 %v6684
        %v7204 = vunpack.c.l.b16 %v6685
        %v7205 = vunpack.c.l.b16 %v6686
        %v7206 = vunpack.c.l.b16 %v6687
        %v7207 = vunpack.c.l.b16 %v6688
        %v7208 = vunpack.c.l.b16 %v6689
        %v7209 = vunpack.c.l.b16 %v6690
        %v7210 = vunpack.c.l.b16 %v6691
        %v7211 = vunpack.c.l.b16 %v6692
        %v7212 = vunpack.c.l.b16 %v6693
        %v7213 = vunpack.c.l.b16 %v6694
        %v7214 = vunpack.c.l.b16 %v6695
        %v7215 = vunpack.c.l.b16 %v6696
        %v7216 = vunpack.c.l.b16 %v6697
        %v7217 = vunpack.c.l.b16 %v6698
        %v7218 = vunpack.c.l.b16 %v6699
        %v7219 = vunpack.c.l.b16 %v6700
        %v7220 = vunpack.c.l.b16 %v6701
        %v7221 = vunpack.c.l.b16 %v6702
        %v7222 = vunpack.c.l.b16 %v6703
        %v7223 = vunpack.c.l.b16 %v6704
        %v7224 = vunpack.c.l.b16 %v6705
        %v7225 = vunpack.c.l.b16 %v6706
        %v7226 = vunpack.c.l.b16 %v6707
        %v7227 = vunpack.c.l.b16 %v6708
        %v7228 = vunpack.c.l.b16 %v6709
        %v7229 = vunpack.c.l.b16 %v6710
        %v7230 = vunpack.c.l.b16 %v6711
        %v7231 = vunpack.c.l.b16 %v6712
        %v7232 = vunpack.c.l.b16 %v6713
        %v7233 = vunpack.c.l.b16 %v6714
        %v7234 = vunpack.c.l.b16 %v6715
        %v7235 = vunpack.c.l.b16 %v6716
        %v7236 = vunpack.c.l.b16 %v6717
        %v7237 = vunpack.c.l.b16 %v6718
        %v7238 = vunpack.c.l.b16 %v6719
        %v7239 = vunpack.c.l.b16 %v6720
        %v7240 = vunpack.c.l.b16 %v6721
        %v7241 = vunpack.c.l.b16 %v6722
        %v7242 = vunpack.c.l.b16 %v6723
        %v7243 = vunpack.c.l.b16 %v6724
        %v7244 = vunpack.c.l.b16 %v6725
        %v7245 = vunpack.c.l.b16 %v6726
        %v7246 = vunpack.c.l.b16 %v6727
        %v7247 = vunpack.c.l.b16 %v6728
        %v7248 = vunpack.c.l.b16 %v6729
        %v7249 = vunpack.c.l.b16 %v6730
        %v7250 = vunpack.c.l.b16 %v6731
        %v7251 = vunpack.c.l.b16 %v6732
        %v7252 = vunpack.c.l.b16 %v6733
        %v7253 = vunpack.c.l.b16 %v6734
        %v7254 = vunpack.c.l.b16 %v6735
        %v7255 = vunpack.c.l.b16 %v6736
        %v7256 = vunpack.c.l.b16 %v6737
        %v7257 = vunpack.c.l.b16 %v6738
        %v7258 = vunpack.c.l.b16 %v6739
        %v7259 = vunpack.c.l.b16 %v6740
        %v7260 = vunpack.c.l.b16 %v6741
        %v7261 = vunpack.c.l.b16 %v6742
        %v7262 = vunpack.c.l.b16 %v6743
        %v7263 = vunpack.c.l.b16 %v6744
        %v7264 = vunpack.c.l.b16 %v6745
        %v7265 = vunpack.c.l.b16 %v6746
        %v7266 = vunpack.c.l.b16 %v6747
        %v7267 = vunpack.c.l.b16 %v6748
        %v7268 = vunpack.c.l.b16 %v6749
        %v7269 = vunpack.c.l.b16 %v6750
        %v7270 = vunpack.c.l.b16 %v6751
        %v7271 = vunpack.c.l.b16 %v6752
        %v7272 = vunpack.c.l.b16 %v6753
        %v7273 = vunpack.c.l.b16 %v6754
        %v7274 = vunpack.c.l.b16 %v6755
        %v7275 = vunpack.c.l.b16 %v6756
        %v7276 = vunpack.c.l.b16 %v6757
        %v7277 = vunpack.c.l.b16 %v6758
        %v7278 = vunpack.c.l.b16 %v6759
        %v7279 = vunpack.c.l.b16 %v6760
        %v7280 = vunpack.c.l.b16 %v6761
        %v7281 = vunpack.c.l.b16 %v6762
        %v7282 = vunpack.c.l.b16 %v6763
        %v7283 = vunpack.c.l.b16 %v6764
        %v7284 = vunpack.c.l.b16 %v6765
        %v7285 = vunpack.c.l.b16 %v6766
        %v7286 = vunpack.c.l.b16 %v6767
        %v7287 = vunpack.c.l.b16 %v6768
        %v7288 = vunpack.c.l.b16 %v6769
        %v7289 = vunpack.c.l.b16 %v6770
        %v7290 = vunpack.c.l.b16 %v6771
        %v7291 = vunpack.c.l.b16 %v6772
        %v7292 = vunpack.c.l.b16 %v6773
        %v7293 = vunpack.c.l.b16 %v6774
        %v7294 = vunpack.c.l.b16 %v6775
        %v7295 = vunpack.c.l.b16 %v6776
        %v7296 = vunpack.c.l.b16 %v6777
        %v7297 = vunpack.c.l.b16 %v6778
        %v7298 = vunpack.c.l.b16 %v6779
        %v7299 = vunpack.c.l.b16 %v6780
        %v7300 = vunpack.c.l.b16 %v6781
        %v7301 = vunpack.c.l.b16 %v6782
        %v7302 = vunpack.c.l.b16 %v6783
        %v7303 = vunpack.c.l.b16 %v6784
        %v7304 = vunpack.c.l.b16 %v6785
        %v7305 = vunpack.c.l.b16 %v6786
        %v7306 = vunpack.c.l.b16 %v6787
        %v7307 = vunpack.c.l.b16 %v6788
        %v7308 = vunpack.c.l.b16 %v6789
        %v7309 = vunpack.c.l.b16 %v6790
        %v7310 = vunpack.c.l.b16 %v6791
        %v7311 = vunpack.c.l.b16 %v6792
        %v7312 = vunpack.c.l.b16 %v6793
        %v7313 = vunpack.c.l.b16 %v6794
        %v7314 = vunpack.c.l.b16 %v6795
        %v7315 = vunpack.c.l.b16 %v6796
        %v7316 = vunpack.c.l.b16 %v6797
        %v7317 = vunpack.c.l.b16 %v6798
        %v7318 = vunpack.c.l.b16 %v6799
        %v7319 = vunpack.c.l.b16 %v6800
        %v7320 = vunpack.c.l.b16 %v6801
        %v7321 = vunpack.c.l.b16 %v6802
        %v7322 = vunpack.c.l.b16 %v6803
        %v7323 = vunpack.c.l.b16 %v6804
        %v7324 = vunpack.c.l.b16 %v6805
        %v7325 = vunpack.c.l.b16 %v6806
        %v7326 = vunpack.c.l.b16 %v6807
        %v7327 = vunpack.c.l.b16 %v6808
        %v7328 = vunpack.c.l.b16 %v6809
        %v7329 = vunpack.c.l.b16 %v6810
        %v7330 = vunpack.c.l.b16 %v6811
        %v7331 = vunpack.c.l.b16 %v6812
        %v7332 = vunpack.c.l.b16 %v6813
        %v7333 = vunpack.c.l.b16 %v6814
        %v7334 = vunpack.c.l.b16 %v6815
        %v7335 = vunpack.c.l.b16 %v6816
        %v7336 = vunpack.c.l.b16 %v6817
        %v7337 = vunpack.c.l.b16 %v6818
        %v7338 = vunpack.c.l.b16 %v6819
        %v7339 = vunpack.c.l.b16 %v6820
        %v7340 = vunpack.c.l.b16 %v6821
        %v7341 = vunpack.c.l.b16 %v6822
        %v7342 = vunpack.c.l.b16 %v6823
        %v7343 = vunpack.c.l.b16 %v6824
        %v7344 = vunpack.c.l.b16 %v6825
        %v7345 = vunpack.c.l.b16 %v6826
        %v7346 = vunpack.c.l.b16 %v6827
        %v7347 = vunpack.c.l.b16 %v6828
        %v7348 = vunpack.c.l.b16 %v6829
        %v7349 = vunpack.c.l.b16 %v6830
        %v7350 = vunpack.c.l.b16 %v6831
        %v7351 = vunpack.c.l.b16 %v6832
        %v7352 = vunpack.c.l.b16 %v6833
        %v7353 = vunpack.c.l.b16 %v6834
        %v7354 = vunpack.c.l.b16 %v6835
        %v7355 = vunpack.c.l.b16 %v6836
        %v7356 = vunpack.c.l.b16 %v6837
        %v7357 = vunpack.c.l.b16 %v6838
        %v7358 = vunpack.c.l.b16 %v6839
        %v7359 = vunpack.c.l.b16 %v6840
        %v7360 = vunpack.c.l.b16 %v6841
        %v7361 = vunpack.c.l.b16 %v6842
        %v7362 = vunpack.c.l.b16 %v6843
        %v7363 = vunpack.c.l.b16 %v6844
        %v7364 = vunpack.c.l.b16 %v6845
        %v7365 = vunpack.c.l.b16 %v6846
        %v7366 = vunpack.c.l.b16 %v6847
        %v7367 = vunpack.c.l.b16 %v6848
        %v7368 = vunpack.c.l.b16 %v6849
        %v7369 = vunpack.c.l.b16 %v6850
        %v7370 = vunpack.c.l.b16 %v6851
        %v7371 = vunpack.c.l.b16 %v6852
        %v7372 = vunpack.c.l.b16 %v6853
        %v7373 = vunpack.c.l.b16 %v6854
        %v7374 = vunpack.c.l.b16 %v6855
        %v7375 = vunpack.c.l.b16 %v6856
        %v7376 = vunpack.c.l.b16 %v6857
        %v7377 = vunpack.c.l.b16 %v6858
        %v7378 = vunpack.c.l.b16 %v6859
        %v7379 = vunpack.c.l.b16 %v6860
        %v7380 = vunpack.c.l.b16 %v6861
        %v7381 = vunpack.c.l.b16 %v6862
        %v7382 = vunpack.c.l.b16 %v6863
        %v7383 = vunpack.c.l.b16 %v6864
        %v7384 = vunpack.c.l.b16 %v6865
        %v7385 = vunpack.c.l.b16 %v6866
        %v7386 = vunpack.c.l.b16 %v6867
        %v7387 = vunpack.c.l.b16 %v6868
        %v7388 = vunpack.c.l.b16 %v6869
        %v7389 = vunpack.c.l.b16 %v6870
        %v7390 = vunpack.c.l.b16 %v6871
        %v7391 = vunpack.c.l.b16 %v6872
        %v7392 = vunpack.c.l.b16 %v6873
        %v7393 = vunpack.c.l.b16 %v6874
        %v7394 = vunpack.c.l.b16 %v6875
        %v7395 = vunpack.c.l.b16 %v6876
        %v7396 = vunpack.c.l.b16 %v6877
        %v7397 = vunpack.c.l.b16 %v6878
        %v7398 = vunpack.c.l.b16 %v6879
        %v7399 = vunpack.c.l.b16 %v6880
        %v7400 = vunpack.c.l.b16 %v6881
        %v7401 = vunpack.c.l.b16 %v6882
        %v7402 = vunpack.c.l.b16 %v6883
        %v7403 = vunpack.c.l.b16 %v6884
        %v7404 = vunpack.c.l.b16 %v6885
        %v7405 = vunpack.c.l.b16 %v6886
        %v7406 = vunpack.c.l.b16 %v6887
        %v7407 = vunpack.c.l.b16 %v6888
        %v7408 = vunpack.c.l.b16 %v6889
        %v7409 = vunpack.c.l.b16 %v6890
        %v7410 = vunpack.c.l.b16 %v6891
        %v7411 = vunpack.c.l.b16 %v6892
        %v7412 = vunpack.c.l.b16 %v6893
        %v7413 = vunpack.c.l.b16 %v6894
        %v7414 = vunpack.c.l.b16 %v6895
        %v7415 = vunpack.c.l.b16 %v6896
        %v7416 = vunpack.c.l.b16 %v6897
        %v7417 = vunpack.c.l.b16 %v6898
        %v7418 = vunpack.c.l.b16 %v6899
        %v7419 = vunpack.c.l.b16 %v6900
        %v7420 = vunpack.c.l.b16 %v6901
        %v7421 = vunpack.c.l.b16 %v6902
        %v7422 = vunpack.c.l.b16 %v6903
        %v7423 = vunpack.c.l.b16 %v6904
        %v7424 = vunpack.c.l.b16 %v6905
        %v7425 = vunpack.c.l.b16 %v6906
        %v7426 = vunpack.c.l.b16 %v6907
        %v7427 = vunpack.c.l.b16 %v6908
        %v7428 = vunpack.c.l.b16 %v6909
        %v7429 = vunpack.c.l.b16 %v6910
        %v7430 = vunpack.c.l.b16 %v6911
        %v7431 = vunpack.c.l.b16 %v6912
        %v7432 = vpack.c.b16 %v7177, %v7176
        %v7433 = vpack.c.b16 %v7179, %v7178
        %v7434 = vpack.c.b16 %v7181, %v7180
        %v7435 = vpack.c.b16 %v7183, %v7182
        %v7436 = vpack.c.b16 %v7185, %v7184
        %v7437 = vpack.c.b16 %v7187, %v7186
        %v7438 = vpack.c.b16 %v7189, %v7188
        %v7439 = vpack.c.b16 %v7191, %v7190
        %v7440 = vpack.c.b16 %v7193, %v7192
        %v7441 = vpack.c.b16 %v7195, %v7194
        %v7442 = vpack.c.b16 %v7197, %v7196
        %v7443 = vpack.c.b16 %v7199, %v7198
        %v7444 = vpack.c.b16 %v7201, %v7200
        %v7445 = vpack.c.b16 %v7203, %v7202
        %v7446 = vpack.c.b16 %v7205, %v7204
        %v7447 = vpack.c.b16 %v7207, %v7206
        %v7448 = vpack.c.b16 %v7209, %v7208
        %v7449 = vpack.c.b16 %v7211, %v7210
        %v7450 = vpack.c.b16 %v7213, %v7212
        %v7451 = vpack.c.b16 %v7215, %v7214
        %v7452 = vpack.c.b16 %v7217, %v7216
        %v7453 = vpack.c.b16 %v7219, %v7218
        %v7454 = vpack.c.b16 %v7221, %v7220
        %v7455 = vpack.c.b16 %v7223, %v7222
        %v7456 = vpack.c.b16 %v7225, %v7224
        %v7457 = vpack.c.b16 %v7227, %v7226
        %v7458 = vpack.c.b16 %v7229, %v7228
        %v7459 = vpack.c.b16 %v7231, %v7230
        %v7460 = vpack.c.b16 %v7233, %v7232
        %v7461 = vpack.c.b16 %v7235, %v7234
        %v7462 = vpack.c.b16 %v7237, %v7236
        %v7463 = vpack.c.b16 %v7239, %v7238
        %v7464 = vpack.c.b16 %v7241, %v7240
        %v7465 = vpack.c.b16 %v7243, %v7242
        %v7466 = vpack.c.b16 %v7245, %v7244
        %v7467 = vpack.c.b16 %v7247, %v7246
        %v7468 = vpack.c.b16 %v7249, %v7248
        %v7469 = vpack.c.b16 %v7251, %v7250
        %v7470 = vpack.c.b16 %v7253, %v7252
        %v7471 = vpack.c.b16 %v7255, %v7254
        %v7472 = vpack.c.b16 %v7257, %v7256
        %v7473 = vpack.c.b16 %v7259, %v7258
        %v7474 = vpack.c.b16 %v7261, %v7260
        %v7475 = vpack.c.b16 %v7263, %v7262
        %v7476 = vpack.c.b16 %v7265, %v7264
        %v7477 = vpack.c.b16 %v7267, %v7266
        %v7478 = vpack.c.b16 %v7269, %v7268
        %v7479 = vpack.c.b16 %v7271, %v7270
        %v7480 = vpack.c.b16 %v7273, %v7272
        %v7481 = vpack.c.b16 %v7275, %v7274
        %v7482 = vpack.c.b16 %v7277, %v7276
        %v7483 = vpack.c.b16 %v7279, %v7278
        %v7484 = vpack.c.b16 %v7281, %v7280
        %v7485 = vpack.c.b16 %v7283, %v7282
        %v7486 = vpack.c.b16 %v7285, %v7284
        %v7487 = vpack.c.b16 %v7287, %v7286
        %v7488 = vpack.c.b16 %v7289, %v7288
        %v7489 = vpack.c.b16 %v7291, %v7290
        %v7490 = vpack.c.b16 %v7293, %v7292
        %v7491 = vpack.c.b16 %v7295, %v7294
        %v7492 = vpack.c.b16 %v7297, %v7296
        %v7493 = vpack.c.b16 %v7299, %v7298
        %v7494 = vpack.c.b16 %v7301, %v7300
        %v7495 = vpack.c.b16 %v7303, %v7302
        %v7496 = vpack.c.b16 %v7305, %v7304
        %v7497 = vpack.c.b16 %v7307, %v7306
        %v7498 = vpack.c.b16 %v7309, %v7308
        %v7499 = vpack.c.b16 %v7311, %v7310
        %v7500 = vpack.c.b16 %v7313, %v7312
        %v7501 = vpack.c.b16 %v7315, %v7314
        %v7502 = vpack.c.b16 %v7317, %v7316
        %v7503 = vpack.c.b16 %v7319, %v7318
        %v7504 = vpack.c.b16 %v7321, %v7320
        %v7505 = vpack.c.b16 %v7323, %v7322
        %v7506 = vpack.c.b16 %v7325, %v7324
        %v7507 = vpack.c.b16 %v7327, %v7326
        %v7508 = vpack.c.b16 %v7329, %v7328
        %v7509 = vpack.c.b16 %v7331, %v7330
        %v7510 = vpack.c.b16 %v7333, %v7332
        %v7511 = vpack.c.b16 %v7335, %v7334
        %v7512 = vpack.c.b16 %v7337, %v7336
        %v7513 = vpack.c.b16 %v7339, %v7338
        %v7514 = vpack.c.b16 %v7341, %v7340
        %v7515 = vpack.c.b16 %v7343, %v7342
        %v7516 = vpack.c.b16 %v7345, %v7344
        %v7517 = vpack.c.b16 %v7347, %v7346
        %v7518 = vpack.c.b16 %v7349, %v7348
        %v7519 = vpack.c.b16 %v7351, %v7350
        %v7520 = vpack.c.b16 %v7353, %v7352
        %v7521 = vpack.c.b16 %v7355, %v7354
        %v7522 = vpack.c.b16 %v7357, %v7356
        %v7523 = vpack.c.b16 %v7359, %v7358
        %v7524 = vpack.c.b16 %v7361, %v7360
        %v7525 = vpack.c.b16 %v7363, %v7362
        %v7526 = vpack.c.b16 %v7365, %v7364
        %v7527 = vpack.c.b16 %v7367, %v7366
        %v7528 = vpack.c.b16 %v7369, %v7368
        %v7529 = vpack.c.b16 %v7371, %v7370
        %v7530 = vpack.c.b16 %v7373, %v7372
        %v7531 = vpack.c.b16 %v7375, %v7374
        %v7532 = vpack.c.b16 %v7377, %v7376
        %v7533 = vpack.c.b16 %v7379, %v7378
        %v7534 = vpack.c.b16 %v7381, %v7380
        %v7535 = vpack.c.b16 %v7383, %v7382
        %v7536 = vpack.c.b16 %v7385, %v7384
        %v7537 = vpack.c.b16 %v7387, %v7386
        %v7538 = vpack.c.b16 %v7389, %v7388
        %v7539 = vpack.c.b16 %v7391, %v7390
        %v7540 = vpack.c.b16 %v7393, %v7392
        %v7541 = vpack.c.b16 %v7395, %v7394
        %v7542 = vpack.c.b16 %v7397, %v7396
        %v7543 = vpack.c.b16 %v7399, %v7398
        %v7544 = vpack.c.b16 %v7401, %v7400
        %v7545 = vpack.c.b16 %v7403, %v7402
        %v7546 = vpack.c.b16 %v7405, %v7404
        %v7547 = vpack.c.b16 %v7407, %v7406
        %v7548 = vpack.c.b16 %v7409, %v7408
        %v7549 = vpack.c.b16 %v7411, %v7410
        %v7550 = vpack.c.b16 %v7413, %v7412
        %v7551 = vpack.c.b16 %v7415, %v7414
        %v7552 = vpack.c.b16 %v7417, %v7416
        %v7553 = vpack.c.b16 %v7419, %v7418
        %v7554 = vpack.c.b16 %v7421, %v7420
        %v7555 = vpack.c.b16 %v7423, %v7422
        %v7556 = vpack.c.b16 %v7425, %v7424
        %v7557 = vpack.c.b16 %v7427, %v7426
        %v7558 = vpack.c.b16 %v7429, %v7428
        %v7559 = vpack.c.b16 %v7431, %v7430
        %7688 = vmatprep.subr.bf16.mxu0 0
        %7689 = vmatpush1.bf16.msra.mxu0 %v7439
        %7690 = vmatprep.subr.bf16.mxu0 0
        %7691 = vmatpush1.bf16.msra.mxu0 %v7438
        %7692 = vmatprep.subr.bf16.mxu0 0
        %7693 = vmatpush1.bf16.msra.mxu0 %v7437
        %7694 = vmatprep.subr.bf16.mxu0 0
        %7695 = vmatpush1.bf16.msra.mxu0 %v7436
        %7696 = vmatprep.subr.bf16.mxu0 0
        %7697 = vmatpush1.bf16.msra.mxu0 %v7435
        %7698 = vmatprep.subr.bf16.mxu0 0
        %7699 = vmatpush1.bf16.msra.mxu0 %v7434
        %7700 = vmatprep.subr.bf16.mxu0 0
        %7701 = vmatpush1.bf16.msra.mxu0 %v7433
        %7702 = vmatprep.subr.bf16.mxu0 0
        %7703 = vmatpush1.bf16.msra.mxu0 %v7432
        %7704 = vmatprep.subr.bf16.mxu0 0
        %7705 = vmatpush2.bf16.msra.mxu0 %v7447
        %7706 = vmatprep.subr.bf16.mxu0 0
        %7707 = vmatpush2.bf16.msra.mxu0 %v7446
        %7708 = vmatprep.subr.bf16.mxu0 0
        %7709 = vmatpush2.bf16.msra.mxu0 %v7445
        %7710 = vmatprep.subr.bf16.mxu0 0
        %7711 = vmatpush2.bf16.msra.mxu0 %v7444
        %7712 = vmatprep.subr.bf16.mxu0 0
        %7713 = vmatpush2.bf16.msra.mxu0 %v7443
        %7714 = vmatprep.subr.bf16.mxu0 0
        %7715 = vmatpush2.bf16.msra.mxu0 %v7442
        %7716 = vmatprep.subr.bf16.mxu0 0
        %7717 = vmatpush2.bf16.msra.mxu0 %v7441
        %7718 = vmatprep.subr.bf16.mxu0 0
        %7719 = vmatpush2.bf16.msra.mxu0 %v7440
        %7720 = vmatprep.mubr.bf16.mxu0 %v6642
        %7721 = vmatmul.mubr.bf16.gmra.mxu0 %v6641
        %v7722 = vpop.f32.mrf.mxu0
        %v7723 = vadd.f32 %v6918, %v7722
        %v7724 = vpop.f32.mrf.mxu0
        %v7725 = vpop.f32.mrf.mxu0
        %v7726 = vpop.f32.mrf.mxu0
        %7727 = vdwg.mxu0
        %7728 = vmatprep.subr.bf16.mxu0 0
        %7729 = vmatpush1.bf16.msra.mxu0 %v7455
        %7730 = vmatprep.subr.bf16.mxu0 0
        %7731 = vmatpush1.bf16.msra.mxu0 %v7454
        %7732 = vmatprep.subr.bf16.mxu0 0
        %7733 = vmatpush1.bf16.msra.mxu0 %v7453
        %7734 = vmatprep.subr.bf16.mxu0 0
        %7735 = vmatpush1.bf16.msra.mxu0 %v7452
        %7736 = vmatprep.subr.bf16.mxu0 0
        %7737 = vmatpush1.bf16.msra.mxu0 %v7451
        %7738 = vmatprep.subr.bf16.mxu0 0
        %7739 = vmatpush1.bf16.msra.mxu0 %v7450
        %7740 = vmatprep.subr.bf16.mxu0 0
        %7741 = vmatpush1.bf16.msra.mxu0 %v7449
        %7742 = vmatprep.subr.bf16.mxu0 0
        %7743 = vmatpush1.bf16.msra.mxu0 %v7448
        %7744 = vmatprep.subr.bf16.mxu0 0
        %7745 = vmatpush2.bf16.msra.mxu0 %v7463
        %7746 = vmatprep.subr.bf16.mxu0 0
        %7747 = vmatpush2.bf16.msra.mxu0 %v7462
        %7748 = vmatprep.subr.bf16.mxu0 0
        %7749 = vmatpush2.bf16.msra.mxu0 %v7461
        %7750 = vmatprep.subr.bf16.mxu0 0
        %7751 = vmatpush2.bf16.msra.mxu0 %v7460
        %7752 = vmatprep.subr.bf16.mxu0 0
        %7753 = vmatpush2.bf16.msra.mxu0 %v7459
        %7754 = vmatprep.subr.bf16.mxu0 0
        %7755 = vmatpush2.bf16.msra.mxu0 %v7458
        %7756 = vmatprep.subr.bf16.mxu0 0
        %7757 = vmatpush2.bf16.msra.mxu0 %v7457
        %7758 = vmatprep.subr.bf16.mxu0 0
        %7759 = vmatpush2.bf16.msra.mxu0 %v7456
        %7760 = vmatprep.mubr.bf16.mxu0 %v6644
        %7761 = vmatmul.mubr.bf16.gmra.mxu0 %v6643
        %v7762 = vpop.f32.mrf.mxu0
        %v7763 = vadd.f32 %v7723, %v7762
        %v7764 = vpop.f32.mrf.mxu0
        %v7765 = vpop.f32.mrf.mxu0
        %v7766 = vpop.f32.mrf.mxu0
        %7767 = vdwg.mxu0
        %7768 = vmatprep.subr.bf16.mxu0 0
        %7769 = vmatpush1.bf16.msra.mxu0 %v7471
        %7770 = vmatprep.subr.bf16.mxu0 0
        %7771 = vmatpush1.bf16.msra.mxu0 %v7470
        %7772 = vmatprep.subr.bf16.mxu0 0
        %7773 = vmatpush1.bf16.msra.mxu0 %v7469
        %7774 = vmatprep.subr.bf16.mxu0 0
        %7775 = vmatpush1.bf16.msra.mxu0 %v7468
        %7776 = vmatprep.subr.bf16.mxu0 0
        %7777 = vmatpush1.bf16.msra.mxu0 %v7467
        %7778 = vmatprep.subr.bf16.mxu0 0
        %7779 = vmatpush1.bf16.msra.mxu0 %v7466
        %7780 = vmatprep.subr.bf16.mxu0 0
        %7781 = vmatpush1.bf16.msra.mxu0 %v7465
        %7782 = vmatprep.subr.bf16.mxu0 0
        %7783 = vmatpush1.bf16.msra.mxu0 %v7464
        %7784 = vmatprep.subr.bf16.mxu0 0
        %7785 = vmatpush2.bf16.msra.mxu0 %v7479
        %7786 = vmatprep.subr.bf16.mxu0 0
        %7787 = vmatpush2.bf16.msra.mxu0 %v7478
        %7788 = vmatprep.subr.bf16.mxu0 0
        %7789 = vmatpush2.bf16.msra.mxu0 %v7477
        %7790 = vmatprep.subr.bf16.mxu0 0
        %7791 = vmatpush2.bf16.msra.mxu0 %v7476
        %7792 = vmatprep.subr.bf16.mxu0 0
        %7793 = vmatpush2.bf16.msra.mxu0 %v7475
        %7794 = vmatprep.subr.bf16.mxu0 0
        %7795 = vmatpush2.bf16.msra.mxu0 %v7474
        %7796 = vmatprep.subr.bf16.mxu0 0
        %7797 = vmatpush2.bf16.msra.mxu0 %v7473
        %7798 = vmatprep.subr.bf16.mxu0 0
        %7799 = vmatpush2.bf16.msra.mxu0 %v7472
        %7800 = vmatprep.mubr.bf16.mxu0 %v6646
        %7801 = vmatmul.mubr.bf16.gmra.mxu0 %v6645
        %v7802 = vpop.f32.mrf.mxu0
        %v7803 = vadd.f32 %v7763, %v7802
        %v7804 = vpop.f32.mrf.mxu0
        %v7805 = vpop.f32.mrf.mxu0
        %v7806 = vpop.f32.mrf.mxu0
        %7807 = vdwg.mxu0
        %7808 = vmatprep.subr.bf16.mxu0 0
        %7809 = vmatpush1.bf16.msra.mxu0 %v7487
        %7810 = vmatprep.subr.bf16.mxu0 0
        %7811 = vmatpush1.bf16.msra.mxu0 %v7486
        %7812 = vmatprep.subr.bf16.mxu0 0
        %7813 = vmatpush1.bf16.msra.mxu0 %v7485
        %7814 = vmatprep.subr.bf16.mxu0 0
        %7815 = vmatpush1.bf16.msra.mxu0 %v7484
        %7816 = vmatprep.subr.bf16.mxu0 0
        %7817 = vmatpush1.bf16.msra.mxu0 %v7483
        %7818 = vmatprep.subr.bf16.mxu0 0
        %7819 = vmatpush1.bf16.msra.mxu0 %v7482
        %7820 = vmatprep.subr.bf16.mxu0 0
        %7821 = vmatpush1.bf16.msra.mxu0 %v7481
        %7822 = vmatprep.subr.bf16.mxu0 0
        %7823 = vmatpush1.bf16.msra.mxu0 %v7480
        %7824 = vmatprep.subr.bf16.mxu0 0
        %7825 = vmatpush2.bf16.msra.mxu0 %v7495
        %7826 = vmatprep.subr.bf16.mxu0 0
        %7827 = vmatpush2.bf16.msra.mxu0 %v7494
        %7828 = vmatprep.subr.bf16.mxu0 0
        %7829 = vmatpush2.bf16.msra.mxu0 %v7493
        %7830 = vmatprep.subr.bf16.mxu0 0
        %7831 = vmatpush2.bf16.msra.mxu0 %v7492
        %7832 = vmatprep.subr.bf16.mxu0 0
        %7833 = vmatpush2.bf16.msra.mxu0 %v7491
        %7834 = vmatprep.subr.bf16.mxu0 0
        %7835 = vmatpush2.bf16.msra.mxu0 %v7490
        %7836 = vmatprep.subr.bf16.mxu0 0
        %7837 = vmatpush2.bf16.msra.mxu0 %v7489
        %7838 = vmatprep.subr.bf16.mxu0 0
        %7839 = vmatpush2.bf16.msra.mxu0 %v7488
        %7840 = vmatprep.mubr.bf16.mxu0 %v6648
        %7841 = vmatmul.mubr.bf16.gmra.mxu0 %v6647
        %v7842 = vpop.f32.mrf.mxu0
        %v7843 = vadd.f32 %v7803, %v7842
        %v7844 = vpop.f32.mrf.mxu0
        %v7845 = vpop.f32.mrf.mxu0
        %v7846 = vpop.f32.mrf.mxu0
        %7847 = vdwg.mxu0
        %7848 = vmatprep.subr.bf16.mxu0 0
        %7849 = vmatpush1.bf16.msra.mxu0 %v7503
        %7850 = vmatprep.subr.bf16.mxu0 0
        %7851 = vmatpush1.bf16.msra.mxu0 %v7502
        %7852 = vmatprep.subr.bf16.mxu0 0
        %7853 = vmatpush1.bf16.msra.mxu0 %v7501
        %7854 = vmatprep.subr.bf16.mxu0 0
        %7855 = vmatpush1.bf16.msra.mxu0 %v7500
        %7856 = vmatprep.subr.bf16.mxu0 0
        %7857 = vmatpush1.bf16.msra.mxu0 %v7499
        %7858 = vmatprep.subr.bf16.mxu0 0
        %7859 = vmatpush1.bf16.msra.mxu0 %v7498
        %7860 = vmatprep.subr.bf16.mxu0 0
        %7861 = vmatpush1.bf16.msra.mxu0 %v7497
        %7862 = vmatprep.subr.bf16.mxu0 0
        %7863 = vmatpush1.bf16.msra.mxu0 %v7496
        %7864 = vmatprep.subr.bf16.mxu0 0
        %7865 = vmatpush2.bf16.msra.mxu0 %v7511
        %7866 = vmatprep.subr.bf16.mxu0 0
        %7867 = vmatpush2.bf16.msra.mxu0 %v7510
        %7868 = vmatprep.subr.bf16.mxu0 0
        %7869 = vmatpush2.bf16.msra.mxu0 %v7509
        %7870 = vmatprep.subr.bf16.mxu0 0
        %7871 = vmatpush2.bf16.msra.mxu0 %v7508
        %7872 = vmatprep.subr.bf16.mxu0 0
        %7873 = vmatpush2.bf16.msra.mxu0 %v7507
        %7874 = vmatprep.subr.bf16.mxu0 0
        %7875 = vmatpush2.bf16.msra.mxu0 %v7506
        %7876 = vmatprep.subr.bf16.mxu0 0
        %7877 = vmatpush2.bf16.msra.mxu0 %v7505
        %7878 = vmatprep.subr.bf16.mxu0 0
        %7879 = vmatpush2.bf16.msra.mxu0 %v7504
        %7880 = vmatprep.mubr.bf16.mxu0 %v6650
        %7881 = vmatmul.mubr.bf16.gmra.mxu0 %v6649
        %v7882 = vpop.f32.mrf.mxu0
        %v7883 = vadd.f32 %v7843, %v7882
        %v7884 = vpop.f32.mrf.mxu0
        %v7885 = vpop.f32.mrf.mxu0
        %v7886 = vpop.f32.mrf.mxu0
        %7887 = vdwg.mxu0
        %7888 = vmatprep.subr.bf16.mxu0 0
        %7889 = vmatpush1.bf16.msra.mxu0 %v7519
        %7890 = vmatprep.subr.bf16.mxu0 0
        %7891 = vmatpush1.bf16.msra.mxu0 %v7518
        %7892 = vmatprep.subr.bf16.mxu0 0
        %7893 = vmatpush1.bf16.msra.mxu0 %v7517
        %7894 = vmatprep.subr.bf16.mxu0 0
        %7895 = vmatpush1.bf16.msra.mxu0 %v7516
        %7896 = vmatprep.subr.bf16.mxu0 0
        %7897 = vmatpush1.bf16.msra.mxu0 %v7515
        %7898 = vmatprep.subr.bf16.mxu0 0
        %7899 = vmatpush1.bf16.msra.mxu0 %v7514
        %7900 = vmatprep.subr.bf16.mxu0 0
        %7901 = vmatpush1.bf16.msra.mxu0 %v7513
        %7902 = vmatprep.subr.bf16.mxu0 0
        %7903 = vmatpush1.bf16.msra.mxu0 %v7512
        %7904 = vmatprep.subr.bf16.mxu0 0
        %7905 = vmatpush2.bf16.msra.mxu0 %v7527
        %7906 = vmatprep.subr.bf16.mxu0 0
        %7907 = vmatpush2.bf16.msra.mxu0 %v7526
        %7908 = vmatprep.subr.bf16.mxu0 0
        %7909 = vmatpush2.bf16.msra.mxu0 %v7525
        %7910 = vmatprep.subr.bf16.mxu0 0
        %7911 = vmatpush2.bf16.msra.mxu0 %v7524
        %7912 = vmatprep.subr.bf16.mxu0 0
        %7913 = vmatpush2.bf16.msra.mxu0 %v7523
        %7914 = vmatprep.subr.bf16.mxu0 0
        %7915 = vmatpush2.bf16.msra.mxu0 %v7522
        %7916 = vmatprep.subr.bf16.mxu0 0
        %7917 = vmatpush2.bf16.msra.mxu0 %v7521
        %7918 = vmatprep.subr.bf16.mxu0 0
        %7919 = vmatpush2.bf16.msra.mxu0 %v7520
        %7920 = vmatprep.mubr.bf16.mxu0 %v6652
        %7921 = vmatmul.mubr.bf16.gmra.mxu0 %v6651
        %v7922 = vpop.f32.mrf.mxu0
        %v7923 = vadd.f32 %v7883, %v7922
        %v7924 = vpop.f32.mrf.mxu0
        %v7925 = vpop.f32.mrf.mxu0
        %v7926 = vpop.f32.mrf.mxu0
        %7927 = vdwg.mxu0
        %7928 = vmatprep.subr.bf16.mxu0 0
        %7929 = vmatpush1.bf16.msra.mxu0 %v7535
        %7930 = vmatprep.subr.bf16.mxu0 0
        %7931 = vmatpush1.bf16.msra.mxu0 %v7534
        %7932 = vmatprep.subr.bf16.mxu0 0
        %7933 = vmatpush1.bf16.msra.mxu0 %v7533
        %7934 = vmatprep.subr.bf16.mxu0 0
        %7935 = vmatpush1.bf16.msra.mxu0 %v7532
        %7936 = vmatprep.subr.bf16.mxu0 0
        %7937 = vmatpush1.bf16.msra.mxu0 %v7531
        %7938 = vmatprep.subr.bf16.mxu0 0
        %7939 = vmatpush1.bf16.msra.mxu0 %v7530
        %7940 = vmatprep.subr.bf16.mxu0 0
        %7941 = vmatpush1.bf16.msra.mxu0 %v7529
        %7942 = vmatprep.subr.bf16.mxu0 0
        %7943 = vmatpush1.bf16.msra.mxu0 %v7528
        %7944 = vmatprep.subr.bf16.mxu0 0
        %7945 = vmatpush2.bf16.msra.mxu0 %v7543
        %7946 = vmatprep.subr.bf16.mxu0 0
        %7947 = vmatpush2.bf16.msra.mxu0 %v7542
        %7948 = vmatprep.subr.bf16.mxu0 0
        %7949 = vmatpush2.bf16.msra.mxu0 %v7541
        %7950 = vmatprep.subr.bf16.mxu0 0
        %7951 = vmatpush2.bf16.msra.mxu0 %v7540
        %7952 = vmatprep.subr.bf16.mxu0 0
        %7953 = vmatpush2.bf16.msra.mxu0 %v7539
        %7954 = vmatprep.subr.bf16.mxu0 0
        %7955 = vmatpush2.bf16.msra.mxu0 %v7538
        %7956 = vmatprep.subr.bf16.mxu0 0
        %7957 = vmatpush2.bf16.msra.mxu0 %v7537
        %7958 = vmatprep.subr.bf16.mxu0 0
        %7959 = vmatpush2.bf16.msra.mxu0 %v7536
        %7960 = vmatprep.mubr.bf16.mxu0 %v6654
        %7961 = vmatmul.mubr.bf16.gmra.mxu0 %v6653
        %v7962 = vpop.f32.mrf.mxu0
        %v7963 = vadd.f32 %v7923, %v7962
        %v7964 = vpop.f32.mrf.mxu0
        %v7965 = vpop.f32.mrf.mxu0
        %v7966 = vpop.f32.mrf.mxu0
        %7967 = vdwg.mxu0
        %7968 = vmatprep.subr.bf16.mxu0 0
        %7969 = vmatpush1.bf16.msra.mxu0 %v7551
        %7970 = vmatprep.subr.bf16.mxu0 0
        %7971 = vmatpush1.bf16.msra.mxu0 %v7550
        %7972 = vmatprep.subr.bf16.mxu0 0
        %7973 = vmatpush1.bf16.msra.mxu0 %v7549
        %7974 = vmatprep.subr.bf16.mxu0 0
        %7975 = vmatpush1.bf16.msra.mxu0 %v7548
        %7976 = vmatprep.subr.bf16.mxu0 0
        %7977 = vmatpush1.bf16.msra.mxu0 %v7547
        %7978 = vmatprep.subr.bf16.mxu0 0
        %7979 = vmatpush1.bf16.msra.mxu0 %v7546
        %7980 = vmatprep.subr.bf16.mxu0 0
        %7981 = vmatpush1.bf16.msra.mxu0 %v7545
        %7982 = vmatprep.subr.bf16.mxu0 0
        %7983 = vmatpush1.bf16.msra.mxu0 %v7544
        %7984 = vmatprep.subr.bf16.mxu0 0
        %7985 = vmatpush2.bf16.msra.mxu0 %v7559
        %7986 = vmatprep.subr.bf16.mxu0 0
        %7987 = vmatpush2.bf16.msra.mxu0 %v7558
        %7988 = vmatprep.subr.bf16.mxu0 0
        %7989 = vmatpush2.bf16.msra.mxu0 %v7557
        %7990 = vmatprep.subr.bf16.mxu0 0
        %7991 = vmatpush2.bf16.msra.mxu0 %v7556
        %7992 = vmatprep.subr.bf16.mxu0 0
        %7993 = vmatpush2.bf16.msra.mxu0 %v7555
        %7994 = vmatprep.subr.bf16.mxu0 0
        %7995 = vmatpush2.bf16.msra.mxu0 %v7554
        %7996 = vmatprep.subr.bf16.mxu0 0
        %7997 = vmatpush2.bf16.msra.mxu0 %v7553
        %7998 = vmatprep.subr.bf16.mxu0 0
        %7999 = vmatpush2.bf16.msra.mxu0 %v7552
        %8000 = vmatprep.mubr.bf16.mxu0 %v6656
        %8001 = vmatmul.mubr.bf16.gmra.mxu0 %v6655
        %v8002 = vpop.f32.mrf.mxu0
        %v8003 = vadd.f32 %v7963, %v8002
        %v8004 = vpop.f32.mrf.mxu0
        %v8005 = vpop.f32.mrf.mxu0
        %v8006 = vpop.f32.mrf.mxu0
        %8007 = vdwg.mxu0
        %v8008 = vrot.slane %v2812, 7
        %v8009 = vsel %vm2480, 0.0, %v8008
        %v8010 = vmul.f32 %v8009, %v2812
        %v8011 = vrot.slane %v2812, 1
        %v8012 = vsel %vm2481, 0.0, %v8011
        %v8013 = vmul.f32 %v2812, %v8012
        %v8014 = vadd.f32 %v8010, %v8013
        %vm8015 = vcmp.ge.s32.totalorder %v2479, 1
        %vm8016 = vcmp.le.s32.totalorder %v2479, 6
        %vm8017 = vmand %vm8015, %vm8016
        %v8018 = vadd.f32 %v8003, %v8014
        %v8019 = vmax.f32 %v8018, 0.0
        %v8020 = vsel %vm8017, %v8019, 0.0
        %v8021 = vrot.slane %v8020, 4
        %v8022 = vadd.f32 %v8020, %v8021
        %v8023 = vrot.slane %v8022, 2
        %v8024 = vadd.f32 %v8022, %v8023
        %v8025 = vrot.slane %v8024, 1
        %v8026 = vadd.f32 %v8024, %v8025
        %v8027 = vmul.f32 %v8026, 0.16666667
        %v8028 = vpack.c.bf16 %v8027, %v8027
        %v8029 = vld [vmem:[#allocation19] sm:$0xff]
        %v8030 = vld [vmem:[#allocation19 + $0x8] sm:$0xff]
        %v8031 = vld [vmem:[#allocation19 + $0x10] sm:$0xff]
        %v8032 = vld [vmem:[#allocation19 + $0x18] sm:$0xff]
        %v8033 = vld [vmem:[#allocation19 + $0x20] sm:$0xff]
        %v8034 = vld [vmem:[#allocation19 + $0x28] sm:$0xff]
        %v8035 = vld [vmem:[#allocation19 + $0x30] sm:$0xff]
        %v8036 = vld [vmem:[#allocation19 + $0x38] sm:$0xff]
        %v8037 = vld [vmem:[#allocation19 + $0x40] sm:$0xff]
        %v8038 = vld [vmem:[#allocation19 + $0x48] sm:$0xff]
        %v8039 = vld [vmem:[#allocation19 + $0x50] sm:$0xff]
        %v8040 = vld [vmem:[#allocation19 + $0x58] sm:$0xff]
        %v8041 = vld [vmem:[#allocation19 + $0x60] sm:$0xff]
        %v8042 = vld [vmem:[#allocation19 + $0x68] sm:$0xff]
        %v8043 = vld [vmem:[#allocation19 + $0x70] sm:$0xff]
        %v8044 = vld [vmem:[#allocation19 + $0x78] sm:$0xff]
        %v8045 = vld [vmem:[#allocation19 + $0x80] sm:$0xff]
        %v8046 = vld [vmem:[#allocation19 + $0x88] sm:$0xff]
        %v8047 = vld [vmem:[#allocation19 + $0x90] sm:$0xff]
        %v8048 = vld [vmem:[#allocation19 + $0x98] sm:$0xff]
        %v8049 = vld [vmem:[#allocation19 + $0xa0] sm:$0xff]
        %v8050 = vld [vmem:[#allocation19 + $0xa8] sm:$0xff]
        %v8051 = vld [vmem:[#allocation19 + $0xb0] sm:$0xff]
        %v8052 = vld [vmem:[#allocation19 + $0xb8] sm:$0xff]
        %v8053 = vld [vmem:[#allocation19 + $0xc0] sm:$0xff]
        %v8054 = vld [vmem:[#allocation19 + $0xc8] sm:$0xff]
        %v8055 = vld [vmem:[#allocation19 + $0xd0] sm:$0xff]
        %v8056 = vld [vmem:[#allocation19 + $0xd8] sm:$0xff]
        %v8057 = vld [vmem:[#allocation19 + $0xe0] sm:$0xff]
        %v8058 = vld [vmem:[#allocation19 + $0xe8] sm:$0xff]
        %v8059 = vld [vmem:[#allocation19 + $0xf0] sm:$0xff]
        %v8060 = vld [vmem:[#allocation19 + $0xf8] sm:$0xff]
        %v8061 = vld [vmem:[#allocation19 + $0x100] sm:$0xff]
        %v8062 = vld [vmem:[#allocation19 + $0x108] sm:$0xff]
        %v8063 = vld [vmem:[#allocation19 + $0x110] sm:$0xff]
        %v8064 = vld [vmem:[#allocation19 + $0x118] sm:$0xff]
        %v8065 = vld [vmem:[#allocation19 + $0x120] sm:$0xff]
        %v8066 = vld [vmem:[#allocation19 + $0x128] sm:$0xff]
        %v8067 = vld [vmem:[#allocation19 + $0x130] sm:$0xff]
        %v8068 = vld [vmem:[#allocation19 + $0x138] sm:$0xff]
        %v8069 = vld [vmem:[#allocation19 + $0x140] sm:$0xff]
        %v8070 = vld [vmem:[#allocation19 + $0x148] sm:$0xff]
        %v8071 = vld [vmem:[#allocation19 + $0x150] sm:$0xff]
        %v8072 = vld [vmem:[#allocation19 + $0x158] sm:$0xff]
        %v8073 = vld [vmem:[#allocation19 + $0x160] sm:$0xff]
        %v8074 = vld [vmem:[#allocation19 + $0x168] sm:$0xff]
        %v8075 = vld [vmem:[#allocation19 + $0x170] sm:$0xff]
        %v8076 = vld [vmem:[#allocation19 + $0x178] sm:$0xff]
        %v8077 = vld [vmem:[#allocation19 + $0x180] sm:$0xff]
        %v8078 = vld [vmem:[#allocation19 + $0x188] sm:$0xff]
        %v8079 = vld [vmem:[#allocation19 + $0x190] sm:$0xff]
        %v8080 = vld [vmem:[#allocation19 + $0x198] sm:$0xff]
        %v8081 = vld [vmem:[#allocation19 + $0x1a0] sm:$0xff]
        %v8082 = vld [vmem:[#allocation19 + $0x1a8] sm:$0xff]
        %v8083 = vld [vmem:[#allocation19 + $0x1b0] sm:$0xff]
        %v8084 = vld [vmem:[#allocation19 + $0x1b8] sm:$0xff]
        %v8085 = vld [vmem:[#allocation19 + $0x1c0] sm:$0xff]
        %v8086 = vld [vmem:[#allocation19 + $0x1c8] sm:$0xff]
        %v8087 = vld [vmem:[#allocation19 + $0x1d0] sm:$0xff]
        %v8088 = vld [vmem:[#allocation19 + $0x1d8] sm:$0xff]
        %v8089 = vld [vmem:[#allocation19 + $0x1e0] sm:$0xff]
        %v8090 = vld [vmem:[#allocation19 + $0x1e8] sm:$0xff]
        %v8091 = vld [vmem:[#allocation19 + $0x1f0] sm:$0xff]
        %v8092 = vld [vmem:[#allocation19 + $0x1f8] sm:$0xff]
        %v8093 = vld [vmem:[#allocation19 + $0x200] sm:$0xff]
        %v8094 = vld [vmem:[#allocation19 + $0x208] sm:$0xff]
        %v8095 = vld [vmem:[#allocation19 + $0x210] sm:$0xff]
        %v8096 = vld [vmem:[#allocation19 + $0x218] sm:$0xff]
        %v8097 = vld [vmem:[#allocation19 + $0x220] sm:$0xff]
        %v8098 = vld [vmem:[#allocation19 + $0x228] sm:$0xff]
        %v8099 = vld [vmem:[#allocation19 + $0x230] sm:$0xff]
        %v8100 = vld [vmem:[#allocation19 + $0x238] sm:$0xff]
        %v8101 = vld [vmem:[#allocation19 + $0x240] sm:$0xff]
        %v8102 = vld [vmem:[#allocation19 + $0x248] sm:$0xff]
        %v8103 = vld [vmem:[#allocation19 + $0x250] sm:$0xff]
        %v8104 = vld [vmem:[#allocation19 + $0x258] sm:$0xff]
        %v8105 = vld [vmem:[#allocation19 + $0x260] sm:$0xff]
        %v8106 = vld [vmem:[#allocation19 + $0x268] sm:$0xff]
        %v8107 = vld [vmem:[#allocation19 + $0x270] sm:$0xff]
        %v8108 = vld [vmem:[#allocation19 + $0x278] sm:$0xff]
        %v8109 = vld [vmem:[#allocation19 + $0x280] sm:$0xff]
        %v8110 = vld [vmem:[#allocation19 + $0x288] sm:$0xff]
        %v8111 = vld [vmem:[#allocation19 + $0x290] sm:$0xff]
        %v8112 = vld [vmem:[#allocation19 + $0x298] sm:$0xff]
        %v8113 = vld [vmem:[#allocation19 + $0x2a0] sm:$0xff]
        %v8114 = vld [vmem:[#allocation19 + $0x2a8] sm:$0xff]
        %v8115 = vld [vmem:[#allocation19 + $0x2b0] sm:$0xff]
        %v8116 = vld [vmem:[#allocation19 + $0x2b8] sm:$0xff]
        %v8117 = vld [vmem:[#allocation19 + $0x2c0] sm:$0xff]
        %v8118 = vld [vmem:[#allocation19 + $0x2c8] sm:$0xff]
        %v8119 = vld [vmem:[#allocation19 + $0x2d0] sm:$0xff]
        %v8120 = vld [vmem:[#allocation19 + $0x2d8] sm:$0xff]
        %v8121 = vld [vmem:[#allocation19 + $0x2e0] sm:$0xff]
        %v8122 = vld [vmem:[#allocation19 + $0x2e8] sm:$0xff]
        %v8123 = vld [vmem:[#allocation19 + $0x2f0] sm:$0xff]
        %v8124 = vld [vmem:[#allocation19 + $0x2f8] sm:$0xff]
        %v8125 = vld [vmem:[#allocation19 + $0x300] sm:$0xff]
        %v8126 = vld [vmem:[#allocation19 + $0x308] sm:$0xff]
        %v8127 = vld [vmem:[#allocation19 + $0x310] sm:$0xff]
        %v8128 = vld [vmem:[#allocation19 + $0x318] sm:$0xff]
        %v8129 = vld [vmem:[#allocation19 + $0x320] sm:$0xff]
        %v8130 = vld [vmem:[#allocation19 + $0x328] sm:$0xff]
        %v8131 = vld [vmem:[#allocation19 + $0x330] sm:$0xff]
        %v8132 = vld [vmem:[#allocation19 + $0x338] sm:$0xff]
        %v8133 = vld [vmem:[#allocation19 + $0x340] sm:$0xff]
        %v8134 = vld [vmem:[#allocation19 + $0x348] sm:$0xff]
        %v8135 = vld [vmem:[#allocation19 + $0x350] sm:$0xff]
        %v8136 = vld [vmem:[#allocation19 + $0x358] sm:$0xff]
        %v8137 = vld [vmem:[#allocation19 + $0x360] sm:$0xff]
        %v8138 = vld [vmem:[#allocation19 + $0x368] sm:$0xff]
        %v8139 = vld [vmem:[#allocation19 + $0x370] sm:$0xff]
        %v8140 = vld [vmem:[#allocation19 + $0x378] sm:$0xff]
        %v8141 = vld [vmem:[#allocation19 + $0x380] sm:$0xff]
        %v8142 = vld [vmem:[#allocation19 + $0x388] sm:$0xff]
        %v8143 = vld [vmem:[#allocation19 + $0x390] sm:$0xff]
        %v8144 = vld [vmem:[#allocation19 + $0x398] sm:$0xff]
        %v8145 = vld [vmem:[#allocation19 + $0x3a0] sm:$0xff]
        %v8146 = vld [vmem:[#allocation19 + $0x3a8] sm:$0xff]
        %v8147 = vld [vmem:[#allocation19 + $0x3b0] sm:$0xff]
        %v8148 = vld [vmem:[#allocation19 + $0x3b8] sm:$0xff]
        %v8149 = vld [vmem:[#allocation19 + $0x3c0] sm:$0xff]
        %v8150 = vld [vmem:[#allocation19 + $0x3c8] sm:$0xff]
        %v8151 = vld [vmem:[#allocation19 + $0x3d0] sm:$0xff]
        %v8152 = vld [vmem:[#allocation19 + $0x3d8] sm:$0xff]
        %v8153 = vld [vmem:[#allocation19 + $0x3e0] sm:$0xff]
        %v8154 = vld [vmem:[#allocation19 + $0x3e8] sm:$0xff]
        %v8155 = vld [vmem:[#allocation19 + $0x3f0] sm:$0xff]
        %v8156 = vld [vmem:[#allocation19 + $0x3f8] sm:$0xff]
        %v8157 = vld [vmem:[#allocation20] sm:$0xff]
        %v8158 = vld [vmem:[#allocation20 + $0x8] sm:$0xff]
        %v8287 = vunpack.c.l.b16 %v8029
        %v8288 = vunpack.c.h.b16 %v8029
        %v8289 = vunpack.c.l.b16 %v8030
        %v8290 = vunpack.c.h.b16 %v8030
        %v8291 = vunpack.c.l.b16 %v8031
        %v8292 = vunpack.c.h.b16 %v8031
        %v8293 = vunpack.c.l.b16 %v8032
        %v8294 = vunpack.c.h.b16 %v8032
        %v8295 = vunpack.c.l.b16 %v8033
        %v8296 = vunpack.c.h.b16 %v8033
        %v8297 = vunpack.c.l.b16 %v8034
        %v8298 = vunpack.c.h.b16 %v8034
        %v8299 = vunpack.c.l.b16 %v8035
        %v8300 = vunpack.c.h.b16 %v8035
        %v8301 = vunpack.c.l.b16 %v8036
        %v8302 = vunpack.c.h.b16 %v8036
        %v8303 = vunpack.c.l.b16 %v8037
        %v8304 = vunpack.c.h.b16 %v8037
        %v8305 = vunpack.c.l.b16 %v8038
        %v8306 = vunpack.c.h.b16 %v8038
        %v8307 = vunpack.c.l.b16 %v8039
        %v8308 = vunpack.c.h.b16 %v8039
        %v8309 = vunpack.c.l.b16 %v8040
        %v8310 = vunpack.c.h.b16 %v8040
        %v8311 = vunpack.c.l.b16 %v8041
        %v8312 = vunpack.c.h.b16 %v8041
        %v8313 = vunpack.c.l.b16 %v8042
        %v8314 = vunpack.c.h.b16 %v8042
        %v8315 = vunpack.c.l.b16 %v8043
        %v8316 = vunpack.c.h.b16 %v8043
        %v8317 = vunpack.c.l.b16 %v8044
        %v8318 = vunpack.c.h.b16 %v8044
        %v8319 = vunpack.c.l.b16 %v8045
        %v8320 = vunpack.c.h.b16 %v8045
        %v8321 = vunpack.c.l.b16 %v8046
        %v8322 = vunpack.c.h.b16 %v8046
        %v8323 = vunpack.c.l.b16 %v8047
        %v8324 = vunpack.c.h.b16 %v8047
        %v8325 = vunpack.c.l.b16 %v8048
        %v8326 = vunpack.c.h.b16 %v8048
        %v8327 = vunpack.c.l.b16 %v8049
        %v8328 = vunpack.c.h.b16 %v8049
        %v8329 = vunpack.c.l.b16 %v8050
        %v8330 = vunpack.c.h.b16 %v8050
        %v8331 = vunpack.c.l.b16 %v8051
        %v8332 = vunpack.c.h.b16 %v8051
        %v8333 = vunpack.c.l.b16 %v8052
        %v8334 = vunpack.c.h.b16 %v8052
        %v8335 = vunpack.c.l.b16 %v8053
        %v8336 = vunpack.c.h.b16 %v8053
        %v8337 = vunpack.c.l.b16 %v8054
        %v8338 = vunpack.c.h.b16 %v8054
        %v8339 = vunpack.c.l.b16 %v8055
        %v8340 = vunpack.c.h.b16 %v8055
        %v8341 = vunpack.c.l.b16 %v8056
        %v8342 = vunpack.c.h.b16 %v8056
        %v8343 = vunpack.c.l.b16 %v8057
        %v8344 = vunpack.c.h.b16 %v8057
        %v8345 = vunpack.c.l.b16 %v8058
        %v8346 = vunpack.c.h.b16 %v8058
        %v8347 = vunpack.c.l.b16 %v8059
        %v8348 = vunpack.c.h.b16 %v8059
        %v8349 = vunpack.c.l.b16 %v8060
        %v8350 = vunpack.c.h.b16 %v8060
        %v8351 = vunpack.c.l.b16 %v8061
        %v8352 = vunpack.c.h.b16 %v8061
        %v8353 = vunpack.c.l.b16 %v8062
        %v8354 = vunpack.c.h.b16 %v8062
        %v8355 = vunpack.c.l.b16 %v8063
        %v8356 = vunpack.c.h.b16 %v8063
        %v8357 = vunpack.c.l.b16 %v8064
        %v8358 = vunpack.c.h.b16 %v8064
        %v8359 = vunpack.c.l.b16 %v8065
        %v8360 = vunpack.c.h.b16 %v8065
        %v8361 = vunpack.c.l.b16 %v8066
        %v8362 = vunpack.c.h.b16 %v8066
        %v8363 = vunpack.c.l.b16 %v8067
        %v8364 = vunpack.c.h.b16 %v8067
        %v8365 = vunpack.c.l.b16 %v8068
        %v8366 = vunpack.c.h.b16 %v8068
        %v8367 = vunpack.c.l.b16 %v8069
        %v8368 = vunpack.c.h.b16 %v8069
        %v8369 = vunpack.c.l.b16 %v8070
        %v8370 = vunpack.c.h.b16 %v8070
        %v8371 = vunpack.c.l.b16 %v8071
        %v8372 = vunpack.c.h.b16 %v8071
        %v8373 = vunpack.c.l.b16 %v8072
        %v8374 = vunpack.c.h.b16 %v8072
        %v8375 = vunpack.c.l.b16 %v8073
        %v8376 = vunpack.c.h.b16 %v8073
        %v8377 = vunpack.c.l.b16 %v8074
        %v8378 = vunpack.c.h.b16 %v8074
        %v8379 = vunpack.c.l.b16 %v8075
        %v8380 = vunpack.c.h.b16 %v8075
        %v8381 = vunpack.c.l.b16 %v8076
        %v8382 = vunpack.c.h.b16 %v8076
        %v8383 = vunpack.c.l.b16 %v8077
        %v8384 = vunpack.c.h.b16 %v8077
        %v8385 = vunpack.c.l.b16 %v8078
        %v8386 = vunpack.c.h.b16 %v8078
        %v8387 = vunpack.c.l.b16 %v8079
        %v8388 = vunpack.c.h.b16 %v8079
        %v8389 = vunpack.c.l.b16 %v8080
        %v8390 = vunpack.c.h.b16 %v8080
        %v8391 = vunpack.c.l.b16 %v8081
        %v8392 = vunpack.c.h.b16 %v8081
        %v8393 = vunpack.c.l.b16 %v8082
        %v8394 = vunpack.c.h.b16 %v8082
        %v8395 = vunpack.c.l.b16 %v8083
        %v8396 = vunpack.c.h.b16 %v8083
        %v8397 = vunpack.c.l.b16 %v8084
        %v8398 = vunpack.c.h.b16 %v8084
        %v8399 = vunpack.c.l.b16 %v8085
        %v8400 = vunpack.c.h.b16 %v8085
        %v8401 = vunpack.c.l.b16 %v8086
        %v8402 = vunpack.c.h.b16 %v8086
        %v8403 = vunpack.c.l.b16 %v8087
        %v8404 = vunpack.c.h.b16 %v8087
        %v8405 = vunpack.c.l.b16 %v8088
        %v8406 = vunpack.c.h.b16 %v8088
        %v8407 = vunpack.c.l.b16 %v8089
        %v8408 = vunpack.c.h.b16 %v8089
        %v8409 = vunpack.c.l.b16 %v8090
        %v8410 = vunpack.c.h.b16 %v8090
        %v8411 = vunpack.c.l.b16 %v8091
        %v8412 = vunpack.c.h.b16 %v8091
        %v8413 = vunpack.c.l.b16 %v8092
        %v8414 = vunpack.c.h.b16 %v8092
        %v8415 = vunpack.c.l.b16 %v8093
        %v8416 = vunpack.c.h.b16 %v8093
        %v8417 = vunpack.c.l.b16 %v8094
        %v8418 = vunpack.c.h.b16 %v8094
        %v8419 = vunpack.c.l.b16 %v8095
        %v8420 = vunpack.c.h.b16 %v8095
        %v8421 = vunpack.c.l.b16 %v8096
        %v8422 = vunpack.c.h.b16 %v8096
        %v8423 = vunpack.c.l.b16 %v8097
        %v8424 = vunpack.c.h.b16 %v8097
        %v8425 = vunpack.c.l.b16 %v8098
        %v8426 = vunpack.c.h.b16 %v8098
        %v8427 = vunpack.c.l.b16 %v8099
        %v8428 = vunpack.c.h.b16 %v8099
        %v8429 = vunpack.c.l.b16 %v8100
        %v8430 = vunpack.c.h.b16 %v8100
        %v8431 = vunpack.c.l.b16 %v8101
        %v8432 = vunpack.c.h.b16 %v8101
        %v8433 = vunpack.c.l.b16 %v8102
        %v8434 = vunpack.c.h.b16 %v8102
        %v8435 = vunpack.c.l.b16 %v8103
        %v8436 = vunpack.c.h.b16 %v8103
        %v8437 = vunpack.c.l.b16 %v8104
        %v8438 = vunpack.c.h.b16 %v8104
        %v8439 = vunpack.c.l.b16 %v8105
        %v8440 = vunpack.c.h.b16 %v8105
        %v8441 = vunpack.c.l.b16 %v8106
        %v8442 = vunpack.c.h.b16 %v8106
        %v8443 = vunpack.c.l.b16 %v8107
        %v8444 = vunpack.c.h.b16 %v8107
        %v8445 = vunpack.c.l.b16 %v8108
        %v8446 = vunpack.c.h.b16 %v8108
        %v8447 = vunpack.c.l.b16 %v8109
        %v8448 = vunpack.c.h.b16 %v8109
        %v8449 = vunpack.c.l.b16 %v8110
        %v8450 = vunpack.c.h.b16 %v8110
        %v8451 = vunpack.c.l.b16 %v8111
        %v8452 = vunpack.c.h.b16 %v8111
        %v8453 = vunpack.c.l.b16 %v8112
        %v8454 = vunpack.c.h.b16 %v8112
        %v8455 = vunpack.c.l.b16 %v8113
        %v8456 = vunpack.c.h.b16 %v8113
        %v8457 = vunpack.c.l.b16 %v8114
        %v8458 = vunpack.c.h.b16 %v8114
        %v8459 = vunpack.c.l.b16 %v8115
        %v8460 = vunpack.c.h.b16 %v8115
        %v8461 = vunpack.c.l.b16 %v8116
        %v8462 = vunpack.c.h.b16 %v8116
        %v8463 = vunpack.c.l.b16 %v8117
        %v8464 = vunpack.c.h.b16 %v8117
        %v8465 = vunpack.c.l.b16 %v8118
        %v8466 = vunpack.c.h.b16 %v8118
        %v8467 = vunpack.c.l.b16 %v8119
        %v8468 = vunpack.c.h.b16 %v8119
        %v8469 = vunpack.c.l.b16 %v8120
        %v8470 = vunpack.c.h.b16 %v8120
        %v8471 = vunpack.c.l.b16 %v8121
        %v8472 = vunpack.c.h.b16 %v8121
        %v8473 = vunpack.c.l.b16 %v8122
        %v8474 = vunpack.c.h.b16 %v8122
        %v8475 = vunpack.c.l.b16 %v8123
        %v8476 = vunpack.c.h.b16 %v8123
        %v8477 = vunpack.c.l.b16 %v8124
        %v8478 = vunpack.c.h.b16 %v8124
        %v8479 = vunpack.c.l.b16 %v8125
        %v8480 = vunpack.c.h.b16 %v8125
        %v8481 = vunpack.c.l.b16 %v8126
        %v8482 = vunpack.c.h.b16 %v8126
        %v8483 = vunpack.c.l.b16 %v8127
        %v8484 = vunpack.c.h.b16 %v8127
        %v8485 = vunpack.c.l.b16 %v8128
        %v8486 = vunpack.c.h.b16 %v8128
        %v8487 = vunpack.c.l.b16 %v8129
        %v8488 = vunpack.c.h.b16 %v8129
        %v8489 = vunpack.c.l.b16 %v8130
        %v8490 = vunpack.c.h.b16 %v8130
        %v8491 = vunpack.c.l.b16 %v8131
        %v8492 = vunpack.c.h.b16 %v8131
        %v8493 = vunpack.c.l.b16 %v8132
        %v8494 = vunpack.c.h.b16 %v8132
        %v8495 = vunpack.c.l.b16 %v8133
        %v8496 = vunpack.c.h.b16 %v8133
        %v8497 = vunpack.c.l.b16 %v8134
        %v8498 = vunpack.c.h.b16 %v8134
        %v8499 = vunpack.c.l.b16 %v8135
        %v8500 = vunpack.c.h.b16 %v8135
        %v8501 = vunpack.c.l.b16 %v8136
        %v8502 = vunpack.c.h.b16 %v8136
        %v8503 = vunpack.c.l.b16 %v8137
        %v8504 = vunpack.c.h.b16 %v8137
        %v8505 = vunpack.c.l.b16 %v8138
        %v8506 = vunpack.c.h.b16 %v8138
        %v8507 = vunpack.c.l.b16 %v8139
        %v8508 = vunpack.c.h.b16 %v8139
        %v8509 = vunpack.c.l.b16 %v8140
        %v8510 = vunpack.c.h.b16 %v8140
        %v8511 = vunpack.c.l.b16 %v8141
        %v8512 = vunpack.c.h.b16 %v8141
        %v8513 = vunpack.c.l.b16 %v8142
        %v8514 = vunpack.c.h.b16 %v8142
        %v8515 = vunpack.c.l.b16 %v8143
        %v8516 = vunpack.c.h.b16 %v8143
        %v8517 = vunpack.c.l.b16 %v8144
        %v8518 = vunpack.c.h.b16 %v8144
        %v8519 = vunpack.c.l.b16 %v8145
        %v8520 = vunpack.c.h.b16 %v8145
        %v8521 = vunpack.c.l.b16 %v8146
        %v8522 = vunpack.c.h.b16 %v8146
        %v8523 = vunpack.c.l.b16 %v8147
        %v8524 = vunpack.c.h.b16 %v8147
        %v8525 = vunpack.c.l.b16 %v8148
        %v8526 = vunpack.c.h.b16 %v8148
        %v8527 = vunpack.c.l.b16 %v8149
        %v8528 = vunpack.c.h.b16 %v8149
        %v8529 = vunpack.c.l.b16 %v8150
        %v8530 = vunpack.c.h.b16 %v8150
        %v8531 = vunpack.c.l.b16 %v8151
        %v8532 = vunpack.c.h.b16 %v8151
        %v8533 = vunpack.c.l.b16 %v8152
        %v8534 = vunpack.c.h.b16 %v8152
        %v8535 = vunpack.c.l.b16 %v8153
        %v8536 = vunpack.c.h.b16 %v8153
        %v8537 = vunpack.c.l.b16 %v8154
        %v8538 = vunpack.c.h.b16 %v8154
        %v8539 = vunpack.c.l.b16 %v8155
        %v8540 = vunpack.c.h.b16 %v8155
        %v8541 = vunpack.c.l.b16 %v8156
        %v8542 = vunpack.c.h.b16 %v8156
        %v8543 = vpack.c.b16 %v8303, %v8287
        %v8544 = vpack.c.b16 %v8304, %v8288
        %v8545 = vpack.c.b16 %v8305, %v8289
        %v8546 = vpack.c.b16 %v8306, %v8290
        %v8547 = vpack.c.b16 %v8307, %v8291
        %v8548 = vpack.c.b16 %v8308, %v8292
        %v8549 = vpack.c.b16 %v8309, %v8293
        %v8550 = vpack.c.b16 %v8310, %v8294
        %v8551 = vpack.c.b16 %v8311, %v8295
        %v8552 = vpack.c.b16 %v8312, %v8296
        %v8553 = vpack.c.b16 %v8313, %v8297
        %v8554 = vpack.c.b16 %v8314, %v8298
        %v8555 = vpack.c.b16 %v8315, %v8299
        %v8556 = vpack.c.b16 %v8316, %v8300
        %v8557 = vpack.c.b16 %v8317, %v8301
        %v8558 = vpack.c.b16 %v8318, %v8302
        %v8559 = vpack.c.b16 %v8335, %v8319
        %v8560 = vpack.c.b16 %v8336, %v8320
        %v8561 = vpack.c.b16 %v8337, %v8321
        %v8562 = vpack.c.b16 %v8338, %v8322
        %v8563 = vpack.c.b16 %v8339, %v8323
        %v8564 = vpack.c.b16 %v8340, %v8324
        %v8565 = vpack.c.b16 %v8341, %v8325
        %v8566 = vpack.c.b16 %v8342, %v8326
        %v8567 = vpack.c.b16 %v8343, %v8327
        %v8568 = vpack.c.b16 %v8344, %v8328
        %v8569 = vpack.c.b16 %v8345, %v8329
        %v8570 = vpack.c.b16 %v8346, %v8330
        %v8571 = vpack.c.b16 %v8347, %v8331
        %v8572 = vpack.c.b16 %v8348, %v8332
        %v8573 = vpack.c.b16 %v8349, %v8333
        %v8574 = vpack.c.b16 %v8350, %v8334
        %v8575 = vpack.c.b16 %v8367, %v8351
        %v8576 = vpack.c.b16 %v8368, %v8352
        %v8577 = vpack.c.b16 %v8369, %v8353
        %v8578 = vpack.c.b16 %v8370, %v8354
        %v8579 = vpack.c.b16 %v8371, %v8355
        %v8580 = vpack.c.b16 %v8372, %v8356
        %v8581 = vpack.c.b16 %v8373, %v8357
        %v8582 = vpack.c.b16 %v8374, %v8358
        %v8583 = vpack.c.b16 %v8375, %v8359
        %v8584 = vpack.c.b16 %v8376, %v8360
        %v8585 = vpack.c.b16 %v8377, %v8361
        %v8586 = vpack.c.b16 %v8378, %v8362
        %v8587 = vpack.c.b16 %v8379, %v8363
        %v8588 = vpack.c.b16 %v8380, %v8364
        %v8589 = vpack.c.b16 %v8381, %v8365
        %v8590 = vpack.c.b16 %v8382, %v8366
        %v8591 = vpack.c.b16 %v8399, %v8383
        %v8592 = vpack.c.b16 %v8400, %v8384
        %v8593 = vpack.c.b16 %v8401, %v8385
        %v8594 = vpack.c.b16 %v8402, %v8386
        %v8595 = vpack.c.b16 %v8403, %v8387
        %v8596 = vpack.c.b16 %v8404, %v8388
        %v8597 = vpack.c.b16 %v8405, %v8389
        %v8598 = vpack.c.b16 %v8406, %v8390
        %v8599 = vpack.c.b16 %v8407, %v8391
        %v8600 = vpack.c.b16 %v8408, %v8392
        %v8601 = vpack.c.b16 %v8409, %v8393
        %v8602 = vpack.c.b16 %v8410, %v8394
        %v8603 = vpack.c.b16 %v8411, %v8395
        %v8604 = vpack.c.b16 %v8412, %v8396
        %v8605 = vpack.c.b16 %v8413, %v8397
        %v8606 = vpack.c.b16 %v8414, %v8398
        %v8607 = vpack.c.b16 %v8431, %v8415
        %v8608 = vpack.c.b16 %v8432, %v8416
        %v8609 = vpack.c.b16 %v8433, %v8417
        %v8610 = vpack.c.b16 %v8434, %v8418
        %v8611 = vpack.c.b16 %v8435, %v8419
        %v8612 = vpack.c.b16 %v8436, %v8420
        %v8613 = vpack.c.b16 %v8437, %v8421
        %v8614 = vpack.c.b16 %v8438, %v8422
        %v8615 = vpack.c.b16 %v8439, %v8423
        %v8616 = vpack.c.b16 %v8440, %v8424
        %v8617 = vpack.c.b16 %v8441, %v8425
        %v8618 = vpack.c.b16 %v8442, %v8426
        %v8619 = vpack.c.b16 %v8443, %v8427
        %v8620 = vpack.c.b16 %v8444, %v8428
        %v8621 = vpack.c.b16 %v8445, %v8429
        %v8622 = vpack.c.b16 %v8446, %v8430
        %v8623 = vpack.c.b16 %v8463, %v8447
        %v8624 = vpack.c.b16 %v8464, %v8448
        %v8625 = vpack.c.b16 %v8465, %v8449
        %v8626 = vpack.c.b16 %v8466, %v8450
        %v8627 = vpack.c.b16 %v8467, %v8451
        %v8628 = vpack.c.b16 %v8468, %v8452
        %v8629 = vpack.c.b16 %v8469, %v8453
        %v8630 = vpack.c.b16 %v8470, %v8454
        %v8631 = vpack.c.b16 %v8471, %v8455
        %v8632 = vpack.c.b16 %v8472, %v8456
        %v8633 = vpack.c.b16 %v8473, %v8457
        %v8634 = vpack.c.b16 %v8474, %v8458
        %v8635 = vpack.c.b16 %v8475, %v8459
        %v8636 = vpack.c.b16 %v8476, %v8460
        %v8637 = vpack.c.b16 %v8477, %v8461
        %v8638 = vpack.c.b16 %v8478, %v8462
        %v8639 = vpack.c.b16 %v8495, %v8479
        %v8640 = vpack.c.b16 %v8496, %v8480
        %v8641 = vpack.c.b16 %v8497, %v8481
        %v8642 = vpack.c.b16 %v8498, %v8482
        %v8643 = vpack.c.b16 %v8499, %v8483
        %v8644 = vpack.c.b16 %v8500, %v8484
        %v8645 = vpack.c.b16 %v8501, %v8485
        %v8646 = vpack.c.b16 %v8502, %v8486
        %v8647 = vpack.c.b16 %v8503, %v8487
        %v8648 = vpack.c.b16 %v8504, %v8488
        %v8649 = vpack.c.b16 %v8505, %v8489
        %v8650 = vpack.c.b16 %v8506, %v8490
        %v8651 = vpack.c.b16 %v8507, %v8491
        %v8652 = vpack.c.b16 %v8508, %v8492
        %v8653 = vpack.c.b16 %v8509, %v8493
        %v8654 = vpack.c.b16 %v8510, %v8494
        %v8655 = vpack.c.b16 %v8527, %v8511
        %v8656 = vpack.c.b16 %v8528, %v8512
        %v8657 = vpack.c.b16 %v8529, %v8513
        %v8658 = vpack.c.b16 %v8530, %v8514
        %v8659 = vpack.c.b16 %v8531, %v8515
        %v8660 = vpack.c.b16 %v8532, %v8516
        %v8661 = vpack.c.b16 %v8533, %v8517
        %v8662 = vpack.c.b16 %v8534, %v8518
        %v8663 = vpack.c.b16 %v8535, %v8519
        %v8664 = vpack.c.b16 %v8536, %v8520
        %v8665 = vpack.c.b16 %v8537, %v8521
        %v8666 = vpack.c.b16 %v8538, %v8522
        %v8667 = vpack.c.b16 %v8539, %v8523
        %v8668 = vpack.c.b16 %v8540, %v8524
        %v8669 = vpack.c.b16 %v8541, %v8525
        %v8670 = vpack.c.b16 %v8542, %v8526
        %v8801 = vlaneseq
        %v8802 = vshrl.u32 %v8801, 7
        %v8803 = vsub.s32 0, %v8802
        %v8804 = vrot.slane %v8157, %v8803
        %v8805 = vlaneseq
        %v8806 = vshrl.u32 %v8805, 7
        %v8807 = vsub.s32 1, %v8806
        %v8808 = vrot.slane %v8157, %v8807
        %v8809 = vlaneseq
        %v8810 = vshrl.u32 %v8809, 7
        %v8811 = vsub.s32 2, %v8810
        %v8812 = vrot.slane %v8157, %v8811
        %v8813 = vlaneseq
        %v8814 = vshrl.u32 %v8813, 7
        %v8815 = vsub.s32 3, %v8814
        %v8816 = vrot.slane %v8157, %v8815
        %v8817 = vlaneseq
        %v8818 = vshrl.u32 %v8817, 7
        %v8819 = vsub.s32 4, %v8818
        %v8820 = vrot.slane %v8157, %v8819
        %v8821 = vlaneseq
        %v8822 = vshrl.u32 %v8821, 7
        %v8823 = vsub.s32 5, %v8822
        %v8824 = vrot.slane %v8157, %v8823
        %v8825 = vlaneseq
        %v8826 = vshrl.u32 %v8825, 7
        %v8827 = vsub.s32 6, %v8826
        %v8828 = vrot.slane %v8157, %v8827
        %v8829 = vlaneseq
        %v8830 = vshrl.u32 %v8829, 7
        %v8831 = vsub.s32 7, %v8830
        %v8832 = vrot.slane %v8157, %v8831
        %v8833 = vlaneseq
        %v8834 = vshrl.u32 %v8833, 7
        %v8835 = vsub.s32 0, %v8834
        %v8836 = vrot.slane %v8158, %v8835
        %v8837 = vlaneseq
        %v8838 = vshrl.u32 %v8837, 7
        %v8839 = vsub.s32 1, %v8838
        %v8840 = vrot.slane %v8158, %v8839
        %v8841 = vlaneseq
        %v8842 = vshrl.u32 %v8841, 7
        %v8843 = vsub.s32 2, %v8842
        %v8844 = vrot.slane %v8158, %v8843
        %v8845 = vlaneseq
        %v8846 = vshrl.u32 %v8845, 7
        %v8847 = vsub.s32 3, %v8846
        %v8848 = vrot.slane %v8158, %v8847
        %v8849 = vlaneseq
        %v8850 = vshrl.u32 %v8849, 7
        %v8851 = vsub.s32 4, %v8850
        %v8852 = vrot.slane %v8158, %v8851
        %v8853 = vlaneseq
        %v8854 = vshrl.u32 %v8853, 7
        %v8855 = vsub.s32 5, %v8854
        %v8856 = vrot.slane %v8158, %v8855
        %v8857 = vlaneseq
        %v8858 = vshrl.u32 %v8857, 7
        %v8859 = vsub.s32 6, %v8858
        %v8860 = vrot.slane %v8158, %v8859
        %v8861 = vlaneseq
        %v8862 = vshrl.u32 %v8861, 7
        %v8863 = vsub.s32 7, %v8862
        %v8864 = vrot.slane %v8158, %v8863
        %8881 = vmatprep.subr.bf16.mxu0 %v8656
        %8882 = vmatpush1.bf16.msra.mxu0 %v8655
        %8883 = vmatprep.subr.bf16.mxu0 %v8640
        %8884 = vmatpush1.bf16.msra.mxu0 %v8639
        %8885 = vmatprep.subr.bf16.mxu0 %v8624
        %8886 = vmatpush1.bf16.msra.mxu0 %v8623
        %8887 = vmatprep.subr.bf16.mxu0 %v8608
        %8888 = vmatpush1.bf16.msra.mxu0 %v8607
        %8889 = vmatprep.subr.bf16.mxu0 %v8592
        %8890 = vmatpush1.bf16.msra.mxu0 %v8591
        %8891 = vmatprep.subr.bf16.mxu0 %v8576
        %8892 = vmatpush1.bf16.msra.mxu0 %v8575
        %8893 = vmatprep.subr.bf16.mxu0 %v8560
        %8894 = vmatpush1.bf16.msra.mxu0 %v8559
        %8895 = vmatprep.subr.bf16.mxu0 %v8544
        %8896 = vmatpush1.bf16.msra.mxu0 %v8543
        %8897 = vmatprep.subr.bf16.mxu0 0
        %8898 = vmatpush2.bf16.msra.mxu0 0
        %8899 = vmatprep.subr.bf16.mxu0 0
        %8900 = vmatpush2.bf16.msra.mxu0 0
        %8901 = vmatprep.subr.bf16.mxu0 0
        %8902 = vmatpush2.bf16.msra.mxu0 0
        %8903 = vmatprep.subr.bf16.mxu0 0
        %8904 = vmatpush2.bf16.msra.mxu0 0
        %8905 = vmatprep.subr.bf16.mxu0 0
        %8906 = vmatpush2.bf16.msra.mxu0 0
        %8907 = vmatprep.subr.bf16.mxu0 0
        %8908 = vmatpush2.bf16.msra.mxu0 0
        %8909 = vmatprep.subr.bf16.mxu0 0
        %8910 = vmatpush2.bf16.msra.mxu0 0
        %8911 = vmatprep.subr.bf16.mxu0 0
        %8912 = vmatpush2.bf16.msra.mxu0 0
        %8913 = vmatprep.mubr.bf16.mxu0 0
        %8914 = vmatmul.mubr.bf16.gmra.mxu0 %v8028
        %v8915 = vpop.f32.mrf.mxu0
        %v8916 = vadd.f32 %v8804, %v8915
        %v8917 = vpop.f32.mrf.mxu0
        %v8918 = vadd.f32 %v8808, %v8917
        %v8919 = vpop.f32.mrf.mxu0
        %v8920 = vpop.f32.mrf.mxu0
        %8921 = vdwg.mxu0
        %8922 = vmatprep.subr.bf16.mxu0 %v8658
        %8923 = vmatpush1.bf16.msra.mxu0 %v8657
        %8924 = vmatprep.subr.bf16.mxu0 %v8642
        %8925 = vmatpush1.bf16.msra.mxu0 %v8641
        %8926 = vmatprep.subr.bf16.mxu0 %v8626
        %8927 = vmatpush1.bf16.msra.mxu0 %v8625
        %8928 = vmatprep.subr.bf16.mxu0 %v8610
        %8929 = vmatpush1.bf16.msra.mxu0 %v8609
        %8930 = vmatprep.subr.bf16.mxu0 %v8594
        %8931 = vmatpush1.bf16.msra.mxu0 %v8593
        %8932 = vmatprep.subr.bf16.mxu0 %v8578
        %8933 = vmatpush1.bf16.msra.mxu0 %v8577
        %8934 = vmatprep.subr.bf16.mxu0 %v8562
        %8935 = vmatpush1.bf16.msra.mxu0 %v8561
        %8936 = vmatprep.subr.bf16.mxu0 %v8546
        %8937 = vmatpush1.bf16.msra.mxu0 %v8545
        %8938 = vmatprep.subr.bf16.mxu0 0
        %8939 = vmatpush2.bf16.msra.mxu0 0
        %8940 = vmatprep.subr.bf16.mxu0 0
        %8941 = vmatpush2.bf16.msra.mxu0 0
        %8942 = vmatprep.subr.bf16.mxu0 0
        %8943 = vmatpush2.bf16.msra.mxu0 0
        %8944 = vmatprep.subr.bf16.mxu0 0
        %8945 = vmatpush2.bf16.msra.mxu0 0
        %8946 = vmatprep.subr.bf16.mxu0 0
        %8947 = vmatpush2.bf16.msra.mxu0 0
        %8948 = vmatprep.subr.bf16.mxu0 0
        %8949 = vmatpush2.bf16.msra.mxu0 0
        %8950 = vmatprep.subr.bf16.mxu0 0
        %8951 = vmatpush2.bf16.msra.mxu0 0
        %8952 = vmatprep.subr.bf16.mxu0 0
        %8953 = vmatpush2.bf16.msra.mxu0 0
        %8954 = vmatprep.mubr.bf16.mxu0 0
        %8955 = vmatmul.mubr.bf16.gmra.mxu0 %v8028
        %v8956 = vpop.f32.mrf.mxu0
        %v8957 = vadd.f32 %v8812, %v8956
        %v8958 = vpop.f32.mrf.mxu0
        %v8959 = vadd.f32 %v8816, %v8958
        %v8960 = vpop.f32.mrf.mxu0
        %v8961 = vpop.f32.mrf.mxu0
        %8962 = vdwg.mxu0
        %8963 = vmatprep.subr.bf16.mxu0 %v8660
        %8964 = vmatpush1.bf16.msra.mxu0 %v8659
        %8965 = vmatprep.subr.bf16.mxu0 %v8644
        %8966 = vmatpush1.bf16.msra.mxu0 %v8643
        %8967 = vmatprep.subr.bf16.mxu0 %v8628
        %8968 = vmatpush1.bf16.msra.mxu0 %v8627
        %8969 = vmatprep.subr.bf16.mxu0 %v8612
        %8970 = vmatpush1.bf16.msra.mxu0 %v8611
        %8971 = vmatprep.subr.bf16.mxu0 %v8596
        %8972 = vmatpush1.bf16.msra.mxu0 %v8595
        %8973 = vmatprep.subr.bf16.mxu0 %v8580
        %8974 = vmatpush1.bf16.msra.mxu0 %v8579
        %8975 = vmatprep.subr.bf16.mxu0 %v8564
        %8976 = vmatpush1.bf16.msra.mxu0 %v8563
        %8977 = vmatprep.subr.bf16.mxu0 %v8548
        %8978 = vmatpush1.bf16.msra.mxu0 %v8547
        %8979 = vmatprep.subr.bf16.mxu0 0
        %8980 = vmatpush2.bf16.msra.mxu0 0
        %8981 = vmatprep.subr.bf16.mxu0 0
        %8982 = vmatpush2.bf16.msra.mxu0 0
        %8983 = vmatprep.subr.bf16.mxu0 0
        %8984 = vmatpush2.bf16.msra.mxu0 0
        %8985 = vmatprep.subr.bf16.mxu0 0
        %8986 = vmatpush2.bf16.msra.mxu0 0
        %8987 = vmatprep.subr.bf16.mxu0 0
        %8988 = vmatpush2.bf16.msra.mxu0 0
        %8989 = vmatprep.subr.bf16.mxu0 0
        %8990 = vmatpush2.bf16.msra.mxu0 0
        %8991 = vmatprep.subr.bf16.mxu0 0
        %8992 = vmatpush2.bf16.msra.mxu0 0
        %8993 = vmatprep.subr.bf16.mxu0 0
        %8994 = vmatpush2.bf16.msra.mxu0 0
        %8995 = vmatprep.mubr.bf16.mxu0 0
        %8996 = vmatmul.mubr.bf16.gmra.mxu0 %v8028
        %v8997 = vpop.f32.mrf.mxu0
        %v8998 = vadd.f32 %v8820, %v8997
        %v8999 = vpop.f32.mrf.mxu0
        %v9000 = vadd.f32 %v8824, %v8999
        %v9001 = vpop.f32.mrf.mxu0
        %v9002 = vpop.f32.mrf.mxu0
        %9003 = vdwg.mxu0
        %9004 = vmatprep.subr.bf16.mxu0 %v8662
        %9005 = vmatpush1.bf16.msra.mxu0 %v8661
        %9006 = vmatprep.subr.bf16.mxu0 %v8646
        %9007 = vmatpush1.bf16.msra.mxu0 %v8645
        %9008 = vmatprep.subr.bf16.mxu0 %v8630
        %9009 = vmatpush1.bf16.msra.mxu0 %v8629
        %9010 = vmatprep.subr.bf16.mxu0 %v8614
        %9011 = vmatpush1.bf16.msra.mxu0 %v8613
        %9012 = vmatprep.subr.bf16.mxu0 %v8598
        %9013 = vmatpush1.bf16.msra.mxu0 %v8597
        %9014 = vmatprep.subr.bf16.mxu0 %v8582
        %9015 = vmatpush1.bf16.msra.mxu0 %v8581
        %9016 = vmatprep.subr.bf16.mxu0 %v8566
        %9017 = vmatpush1.bf16.msra.mxu0 %v8565
        %9018 = vmatprep.subr.bf16.mxu0 %v8550
        %9019 = vmatpush1.bf16.msra.mxu0 %v8549
        %9020 = vmatprep.subr.bf16.mxu0 0
        %9021 = vmatpush2.bf16.msra.mxu0 0
        %9022 = vmatprep.subr.bf16.mxu0 0
        %9023 = vmatpush2.bf16.msra.mxu0 0
        %9024 = vmatprep.subr.bf16.mxu0 0
        %9025 = vmatpush2.bf16.msra.mxu0 0
        %9026 = vmatprep.subr.bf16.mxu0 0
        %9027 = vmatpush2.bf16.msra.mxu0 0
        %9028 = vmatprep.subr.bf16.mxu0 0
        %9029 = vmatpush2.bf16.msra.mxu0 0
        %9030 = vmatprep.subr.bf16.mxu0 0
        %9031 = vmatpush2.bf16.msra.mxu0 0
        %9032 = vmatprep.subr.bf16.mxu0 0
        %9033 = vmatpush2.bf16.msra.mxu0 0
        %9034 = vmatprep.subr.bf16.mxu0 0
        %9035 = vmatpush2.bf16.msra.mxu0 0
        %9036 = vmatprep.mubr.bf16.mxu0 0
        %9037 = vmatmul.mubr.bf16.gmra.mxu0 %v8028
        %v9038 = vpop.f32.mrf.mxu0
        %v9039 = vadd.f32 %v8828, %v9038
        %v9040 = vpop.f32.mrf.mxu0
        %v9041 = vadd.f32 %v8832, %v9040
        %v9042 = vpop.f32.mrf.mxu0
        %v9043 = vpop.f32.mrf.mxu0
        %9044 = vdwg.mxu0
        %9045 = vmatprep.subr.bf16.mxu0 %v8664
        %9046 = vmatpush1.bf16.msra.mxu0 %v8663
        %9047 = vmatprep.subr.bf16.mxu0 %v8648
        %9048 = vmatpush1.bf16.msra.mxu0 %v8647
        %9049 = vmatprep.subr.bf16.mxu0 %v8632
        %9050 = vmatpush1.bf16.msra.mxu0 %v8631
        %9051 = vmatprep.subr.bf16.mxu0 %v8616
        %9052 = vmatpush1.bf16.msra.mxu0 %v8615
        %9053 = vmatprep.subr.bf16.mxu0 %v8600
        %9054 = vmatpush1.bf16.msra.mxu0 %v8599
        %9055 = vmatprep.subr.bf16.mxu0 %v8584
        %9056 = vmatpush1.bf16.msra.mxu0 %v8583
        %9057 = vmatprep.subr.bf16.mxu0 %v8568
        %9058 = vmatpush1.bf16.msra.mxu0 %v8567
        %9059 = vmatprep.subr.bf16.mxu0 %v8552
        %9060 = vmatpush1.bf16.msra.mxu0 %v8551
        %9061 = vmatprep.subr.bf16.mxu0 0
        %9062 = vmatpush2.bf16.msra.mxu0 0
        %9063 = vmatprep.subr.bf16.mxu0 0
        %9064 = vmatpush2.bf16.msra.mxu0 0
        %9065 = vmatprep.subr.bf16.mxu0 0
        %9066 = vmatpush2.bf16.msra.mxu0 0
        %9067 = vmatprep.subr.bf16.mxu0 0
        %9068 = vmatpush2.bf16.msra.mxu0 0
        %9069 = vmatprep.subr.bf16.mxu0 0
        %9070 = vmatpush2.bf16.msra.mxu0 0
        %9071 = vmatprep.subr.bf16.mxu0 0
        %9072 = vmatpush2.bf16.msra.mxu0 0
        %9073 = vmatprep.subr.bf16.mxu0 0
        %9074 = vmatpush2.bf16.msra.mxu0 0
        %9075 = vmatprep.subr.bf16.mxu0 0
        %9076 = vmatpush2.bf16.msra.mxu0 0
        %9077 = vmatprep.mubr.bf16.mxu0 0
        %9078 = vmatmul.mubr.bf16.gmra.mxu0 %v8028
        %v9079 = vpop.f32.mrf.mxu0
        %v9080 = vadd.f32 %v8836, %v9079
        %v9081 = vpop.f32.mrf.mxu0
        %v9082 = vadd.f32 %v8840, %v9081
        %v9083 = vpop.f32.mrf.mxu0
        %v9084 = vpop.f32.mrf.mxu0
        %9085 = vdwg.mxu0
        %9086 = vmatprep.subr.bf16.mxu0 %v8666
        %9087 = vmatpush1.bf16.msra.mxu0 %v8665
        %9088 = vmatprep.subr.bf16.mxu0 %v8650
        %9089 = vmatpush1.bf16.msra.mxu0 %v8649
        %9090 = vmatprep.subr.bf16.mxu0 %v8634
        %9091 = vmatpush1.bf16.msra.mxu0 %v8633
        %9092 = vmatprep.subr.bf16.mxu0 %v8618
        %9093 = vmatpush1.bf16.msra.mxu0 %v8617
        %9094 = vmatprep.subr.bf16.mxu0 %v8602
        %9095 = vmatpush1.bf16.msra.mxu0 %v8601
        %9096 = vmatprep.subr.bf16.mxu0 %v8586
        %9097 = vmatpush1.bf16.msra.mxu0 %v8585
        %9098 = vmatprep.subr.bf16.mxu0 %v8570
        %9099 = vmatpush1.bf16.msra.mxu0 %v8569
        %9100 = vmatprep.subr.bf16.mxu0 %v8554
        %9101 = vmatpush1.bf16.msra.mxu0 %v8553
        %9102 = vmatprep.subr.bf16.mxu0 0
        %9103 = vmatpush2.bf16.msra.mxu0 0
        %9104 = vmatprep.subr.bf16.mxu0 0
        %9105 = vmatpush2.bf16.msra.mxu0 0
        %9106 = vmatprep.subr.bf16.mxu0 0
        %9107 = vmatpush2.bf16.msra.mxu0 0
        %9108 = vmatprep.subr.bf16.mxu0 0
        %9109 = vmatpush2.bf16.msra.mxu0 0
        %9110 = vmatprep.subr.bf16.mxu0 0
        %9111 = vmatpush2.bf16.msra.mxu0 0
        %9112 = vmatprep.subr.bf16.mxu0 0
        %9113 = vmatpush2.bf16.msra.mxu0 0
        %9114 = vmatprep.subr.bf16.mxu0 0
        %9115 = vmatpush2.bf16.msra.mxu0 0
        %9116 = vmatprep.subr.bf16.mxu0 0
        %9117 = vmatpush2.bf16.msra.mxu0 0
        %9118 = vmatprep.mubr.bf16.mxu0 0
        %9119 = vmatmul.mubr.bf16.gmra.mxu0 %v8028
        %v9120 = vpop.f32.mrf.mxu0
        %v9121 = vadd.f32 %v8844, %v9120
        %v9122 = vpop.f32.mrf.mxu0
        %v9123 = vadd.f32 %v8848, %v9122
        %v9124 = vpop.f32.mrf.mxu0
        %v9125 = vpop.f32.mrf.mxu0
        %9126 = vdwg.mxu0
        %9127 = vmatprep.subr.bf16.mxu0 %v8668
        %9128 = vmatpush1.bf16.msra.mxu0 %v8667
        %9129 = vmatprep.subr.bf16.mxu0 %v8652
        %9130 = vmatpush1.bf16.msra.mxu0 %v8651
        %9131 = vmatprep.subr.bf16.mxu0 %v8636
        %9132 = vmatpush1.bf16.msra.mxu0 %v8635
        %9133 = vmatprep.subr.bf16.mxu0 %v8620
        %9134 = vmatpush1.bf16.msra.mxu0 %v8619
        %9135 = vmatprep.subr.bf16.mxu0 %v8604
        %9136 = vmatpush1.bf16.msra.mxu0 %v8603
        %9137 = vmatprep.subr.bf16.mxu0 %v8588
        %9138 = vmatpush1.bf16.msra.mxu0 %v8587
        %9139 = vmatprep.subr.bf16.mxu0 %v8572
        %9140 = vmatpush1.bf16.msra.mxu0 %v8571
        %9141 = vmatprep.subr.bf16.mxu0 %v8556
        %9142 = vmatpush1.bf16.msra.mxu0 %v8555
        %9143 = vmatprep.subr.bf16.mxu0 0
        %9144 = vmatpush2.bf16.msra.mxu0 0
        %9145 = vmatprep.subr.bf16.mxu0 0
        %9146 = vmatpush2.bf16.msra.mxu0 0
        %9147 = vmatprep.subr.bf16.mxu0 0
        %9148 = vmatpush2.bf16.msra.mxu0 0
        %9149 = vmatprep.subr.bf16.mxu0 0
        %9150 = vmatpush2.bf16.msra.mxu0 0
        %9151 = vmatprep.subr.bf16.mxu0 0
        %9152 = vmatpush2.bf16.msra.mxu0 0
        %9153 = vmatprep.subr.bf16.mxu0 0
        %9154 = vmatpush2.bf16.msra.mxu0 0
        %9155 = vmatprep.subr.bf16.mxu0 0
        %9156 = vmatpush2.bf16.msra.mxu0 0
        %9157 = vmatprep.subr.bf16.mxu0 0
        %9158 = vmatpush2.bf16.msra.mxu0 0
        %9159 = vmatprep.mubr.bf16.mxu0 0
        %9160 = vmatmul.mubr.bf16.gmra.mxu0 %v8028
        %v9161 = vpop.f32.mrf.mxu0
        %v9162 = vadd.f32 %v8852, %v9161
        %v9163 = vpop.f32.mrf.mxu0
        %v9164 = vadd.f32 %v8856, %v9163
        %v9165 = vpop.f32.mrf.mxu0
        %v9166 = vpop.f32.mrf.mxu0
        %9167 = vdwg.mxu0
        %9168 = vmatprep.subr.bf16.mxu0 %v8670
        %9169 = vmatpush1.bf16.msra.mxu0 %v8669
        %9170 = vmatprep.subr.bf16.mxu0 %v8654
        %9171 = vmatpush1.bf16.msra.mxu0 %v8653
        %9172 = vmatprep.subr.bf16.mxu0 %v8638
        %9173 = vmatpush1.bf16.msra.mxu0 %v8637
        %9174 = vmatprep.subr.bf16.mxu0 %v8622
        %9175 = vmatpush1.bf16.msra.mxu0 %v8621
        %9176 = vmatprep.subr.bf16.mxu0 %v8606
        %9177 = vmatpush1.bf16.msra.mxu0 %v8605
        %9178 = vmatprep.subr.bf16.mxu0 %v8590
        %9179 = vmatpush1.bf16.msra.mxu0 %v8589
        %9180 = vmatprep.subr.bf16.mxu0 %v8574
        %9181 = vmatpush1.bf16.msra.mxu0 %v8573
        %9182 = vmatprep.subr.bf16.mxu0 %v8558
        %9183 = vmatpush1.bf16.msra.mxu0 %v8557
        %9184 = vmatprep.subr.bf16.mxu0 0
        %9185 = vmatpush2.bf16.msra.mxu0 0
        %9186 = vmatprep.subr.bf16.mxu0 0
        %9187 = vmatpush2.bf16.msra.mxu0 0
        %9188 = vmatprep.subr.bf16.mxu0 0
        %9189 = vmatpush2.bf16.msra.mxu0 0
        %9190 = vmatprep.subr.bf16.mxu0 0
        %9191 = vmatpush2.bf16.msra.mxu0 0
        %9192 = vmatprep.subr.bf16.mxu0 0
        %9193 = vmatpush2.bf16.msra.mxu0 0
        %9194 = vmatprep.subr.bf16.mxu0 0
        %9195 = vmatpush2.bf16.msra.mxu0 0
        %9196 = vmatprep.subr.bf16.mxu0 0
        %9197 = vmatpush2.bf16.msra.mxu0 0
        %9198 = vmatprep.subr.bf16.mxu0 0
        %9199 = vmatpush2.bf16.msra.mxu0 0
        %9200 = vmatprep.mubr.bf16.mxu0 0
        %9201 = vmatmul.mubr.bf16.gmra.mxu0 %v8028
        %v9202 = vpop.f32.mrf.mxu0
        %v9203 = vadd.f32 %v8860, %v9202
        %v9204 = vpop.f32.mrf.mxu0
        %v9205 = vadd.f32 %v8864, %v9204
        %v9206 = vpop.f32.mrf.mxu0
        %v9207 = vpop.f32.mrf.mxu0
        %9208 = vdwg.mxu0
        %v9209 = vpack.c.bf16 %v8916, %v8916
        %v9210 = vpack.c.bf16 %v8918, %v8918
        %v9211 = vpack.c.bf16 %v8957, %v8957
        %v9212 = vpack.c.bf16 %v8959, %v8959
        %v9213 = vpack.c.bf16 %v8998, %v8998
        %v9214 = vpack.c.bf16 %v9000, %v9000
        %v9215 = vpack.c.bf16 %v9039, %v9039
        %v9216 = vpack.c.bf16 %v9041, %v9041
        %v9217 = vpack.c.bf16 %v9080, %v9080
        %v9218 = vpack.c.bf16 %v9082, %v9082
        %v9219 = vpack.c.bf16 %v9121, %v9121
        %v9220 = vpack.c.bf16 %v9123, %v9123
        %v9221 = vpack.c.bf16 %v9162, %v9162
        %v9222 = vpack.c.bf16 %v9164, %v9164
        %v9223 = vpack.c.bf16 %v9203, %v9203
        %v9224 = vpack.c.bf16 %v9205, %v9205
        %v9225 = vld [vmem:[#allocation22] sm:$0xf]
        %v9226 = vld [vmem:[#allocation22 + $0x4] sm:$0xf]
        %v9227 = vld [vmem:[#allocation22 + $0x8] sm:$0xf]
        %v9228 = vld [vmem:[#allocation22 + $0xc] sm:$0xf]
        %v9229 = vld [vmem:[#allocation22 + $0x10] sm:$0xf]
        %v9230 = vld [vmem:[#allocation22 + $0x14] sm:$0xf]
        %v9231 = vld [vmem:[#allocation22 + $0x18] sm:$0xf]
        %v9232 = vld [vmem:[#allocation22 + $0x1c] sm:$0xf]
        %v9233 = vld [vmem:[#allocation22 + $0x20] sm:$0xf]
        %v9234 = vld [vmem:[#allocation22 + $0x24] sm:$0xf]
        %v9235 = vld [vmem:[#allocation22 + $0x28] sm:$0xf]
        %v9236 = vld [vmem:[#allocation22 + $0x2c] sm:$0xf]
        %v9237 = vld [vmem:[#allocation22 + $0x30] sm:$0xf]
        %v9238 = vld [vmem:[#allocation22 + $0x34] sm:$0xf]
        %v9239 = vld [vmem:[#allocation22 + $0x38] sm:$0xf]
        %v9240 = vld [vmem:[#allocation22 + $0x3c] sm:$0xf]
        %v9241 = vld [vmem:[#allocation22 + $0x40] sm:$0xf]
        %v9242 = vld [vmem:[#allocation22 + $0x44] sm:$0xf]
        %v9243 = vld [vmem:[#allocation22 + $0x48] sm:$0xf]
        %v9244 = vld [vmem:[#allocation22 + $0x4c] sm:$0xf]
        %v9245 = vld [vmem:[#allocation22 + $0x50] sm:$0xf]
        %v9246 = vld [vmem:[#allocation22 + $0x54] sm:$0xf]
        %v9247 = vld [vmem:[#allocation22 + $0x58] sm:$0xf]
        %v9248 = vld [vmem:[#allocation22 + $0x5c] sm:$0xf]
        %v9249 = vld [vmem:[#allocation22 + $0x60] sm:$0xf]
        %v9250 = vld [vmem:[#allocation22 + $0x64] sm:$0xf]
        %v9251 = vld [vmem:[#allocation22 + $0x68] sm:$0xf]
        %v9252 = vld [vmem:[#allocation22 + $0x6c] sm:$0xf]
        %v9253 = vld [vmem:[#allocation22 + $0x70] sm:$0xf]
        %v9254 = vld [vmem:[#allocation22 + $0x74] sm:$0xf]
        %v9255 = vld [vmem:[#allocation22 + $0x78] sm:$0xf]
        %v9256 = vld [vmem:[#allocation22 + $0x7c] sm:$0xf]
        %v9257 = vld [vmem:[#allocation22 + $0x80] sm:$0xf]
        %v9258 = vld [vmem:[#allocation22 + $0x84] sm:$0xf]
        %v9259 = vld [vmem:[#allocation22 + $0x88] sm:$0xf]
        %v9260 = vld [vmem:[#allocation22 + $0x8c] sm:$0xf]
        %v9261 = vld [vmem:[#allocation22 + $0x90] sm:$0xf]
        %v9262 = vld [vmem:[#allocation22 + $0x94] sm:$0xf]
        %v9263 = vld [vmem:[#allocation22 + $0x98] sm:$0xf]
        %v9264 = vld [vmem:[#allocation22 + $0x9c] sm:$0xf]
        %v9265 = vld [vmem:[#allocation22 + $0xa0] sm:$0xf]
        %v9266 = vld [vmem:[#allocation22 + $0xa4] sm:$0xf]
        %v9267 = vld [vmem:[#allocation22 + $0xa8] sm:$0xf]
        %v9268 = vld [vmem:[#allocation22 + $0xac] sm:$0xf]
        %v9269 = vld [vmem:[#allocation22 + $0xb0] sm:$0xf]
        %v9270 = vld [vmem:[#allocation22 + $0xb4] sm:$0xf]
        %v9271 = vld [vmem:[#allocation22 + $0xb8] sm:$0xf]
        %v9272 = vld [vmem:[#allocation22 + $0xbc] sm:$0xf]
        %v9273 = vld [vmem:[#allocation22 + $0xc0] sm:$0xf]
        %v9274 = vld [vmem:[#allocation22 + $0xc4] sm:$0xf]
        %v9275 = vld [vmem:[#allocation22 + $0xc8] sm:$0xf]
        %v9276 = vld [vmem:[#allocation22 + $0xcc] sm:$0xf]
        %v9277 = vld [vmem:[#allocation22 + $0xd0] sm:$0xf]
        %v9278 = vld [vmem:[#allocation22 + $0xd4] sm:$0xf]
        %v9279 = vld [vmem:[#allocation22 + $0xd8] sm:$0xf]
        %v9280 = vld [vmem:[#allocation22 + $0xdc] sm:$0xf]
        %v9281 = vld [vmem:[#allocation22 + $0xe0] sm:$0xf]
        %v9282 = vld [vmem:[#allocation22 + $0xe4] sm:$0xf]
        %v9283 = vld [vmem:[#allocation22 + $0xe8] sm:$0xf]
        %v9284 = vld [vmem:[#allocation22 + $0xec] sm:$0xf]
        %v9285 = vld [vmem:[#allocation22 + $0xf0] sm:$0xf]
        %v9286 = vld [vmem:[#allocation22 + $0xf4] sm:$0xf]
        %v9287 = vld [vmem:[#allocation22 + $0xf8] sm:$0xf]
        %v9288 = vld [vmem:[#allocation22 + $0xfc] sm:$0xf]
        %v9289 = vld [vmem:[#allocation22 + $0x100] sm:$0xf]
        %v9290 = vld [vmem:[#allocation22 + $0x104] sm:$0xf]
        %v9291 = vld [vmem:[#allocation22 + $0x108] sm:$0xf]
        %v9292 = vld [vmem:[#allocation22 + $0x10c] sm:$0xf]
        %v9293 = vld [vmem:[#allocation22 + $0x110] sm:$0xf]
        %v9294 = vld [vmem:[#allocation22 + $0x114] sm:$0xf]
        %v9295 = vld [vmem:[#allocation22 + $0x118] sm:$0xf]
        %v9296 = vld [vmem:[#allocation22 + $0x11c] sm:$0xf]
        %v9297 = vld [vmem:[#allocation22 + $0x120] sm:$0xf]
        %v9298 = vld [vmem:[#allocation22 + $0x124] sm:$0xf]
        %v9299 = vld [vmem:[#allocation22 + $0x128] sm:$0xf]
        %v9300 = vld [vmem:[#allocation22 + $0x12c] sm:$0xf]
        %v9301 = vld [vmem:[#allocation22 + $0x130] sm:$0xf]
        %v9302 = vld [vmem:[#allocation22 + $0x134] sm:$0xf]
        %v9303 = vld [vmem:[#allocation22 + $0x138] sm:$0xf]
        %v9304 = vld [vmem:[#allocation22 + $0x13c] sm:$0xf]
        %v9305 = vld [vmem:[#allocation22 + $0x140] sm:$0xf]
        %v9306 = vld [vmem:[#allocation22 + $0x144] sm:$0xf]
        %v9307 = vld [vmem:[#allocation22 + $0x148] sm:$0xf]
        %v9308 = vld [vmem:[#allocation22 + $0x14c] sm:$0xf]
        %v9309 = vld [vmem:[#allocation22 + $0x150] sm:$0xf]
        %v9310 = vld [vmem:[#allocation22 + $0x154] sm:$0xf]
        %v9311 = vld [vmem:[#allocation22 + $0x158] sm:$0xf]
        %v9312 = vld [vmem:[#allocation22 + $0x15c] sm:$0xf]
        %v9313 = vld [vmem:[#allocation22 + $0x160] sm:$0xf]
        %v9314 = vld [vmem:[#allocation22 + $0x164] sm:$0xf]
        %v9315 = vld [vmem:[#allocation22 + $0x168] sm:$0xf]
        %v9316 = vld [vmem:[#allocation22 + $0x16c] sm:$0xf]
        %v9317 = vld [vmem:[#allocation22 + $0x170] sm:$0xf]
        %v9318 = vld [vmem:[#allocation22 + $0x174] sm:$0xf]
        %v9319 = vld [vmem:[#allocation22 + $0x178] sm:$0xf]
        %v9320 = vld [vmem:[#allocation22 + $0x17c] sm:$0xf]
        %v9321 = vld [vmem:[#allocation22 + $0x180] sm:$0xf]
        %v9322 = vld [vmem:[#allocation22 + $0x184] sm:$0xf]
        %v9323 = vld [vmem:[#allocation22 + $0x188] sm:$0xf]
        %v9324 = vld [vmem:[#allocation22 + $0x18c] sm:$0xf]
        %v9325 = vld [vmem:[#allocation22 + $0x190] sm:$0xf]
        %v9326 = vld [vmem:[#allocation22 + $0x194] sm:$0xf]
        %v9327 = vld [vmem:[#allocation22 + $0x198] sm:$0xf]
        %v9328 = vld [vmem:[#allocation22 + $0x19c] sm:$0xf]
        %v9329 = vld [vmem:[#allocation22 + $0x1a0] sm:$0xf]
        %v9330 = vld [vmem:[#allocation22 + $0x1a4] sm:$0xf]
        %v9331 = vld [vmem:[#allocation22 + $0x1a8] sm:$0xf]
        %v9332 = vld [vmem:[#allocation22 + $0x1ac] sm:$0xf]
        %v9333 = vld [vmem:[#allocation22 + $0x1b0] sm:$0xf]
        %v9334 = vld [vmem:[#allocation22 + $0x1b4] sm:$0xf]
        %v9335 = vld [vmem:[#allocation22 + $0x1b8] sm:$0xf]
        %v9336 = vld [vmem:[#allocation22 + $0x1bc] sm:$0xf]
        %v9337 = vld [vmem:[#allocation22 + $0x1c0] sm:$0xf]
        %v9338 = vld [vmem:[#allocation22 + $0x1c4] sm:$0xf]
        %v9339 = vld [vmem:[#allocation22 + $0x1c8] sm:$0xf]
        %v9340 = vld [vmem:[#allocation22 + $0x1cc] sm:$0xf]
        %v9341 = vld [vmem:[#allocation22 + $0x1d0] sm:$0xf]
        %v9342 = vld [vmem:[#allocation22 + $0x1d4] sm:$0xf]
        %v9343 = vld [vmem:[#allocation22 + $0x1d8] sm:$0xf]
        %v9344 = vld [vmem:[#allocation22 + $0x1dc] sm:$0xf]
        %v9345 = vld [vmem:[#allocation22 + $0x1e0] sm:$0xf]
        %v9346 = vld [vmem:[#allocation22 + $0x1e4] sm:$0xf]
        %v9347 = vld [vmem:[#allocation22 + $0x1e8] sm:$0xf]
        %v9348 = vld [vmem:[#allocation22 + $0x1ec] sm:$0xf]
        %v9349 = vld [vmem:[#allocation22 + $0x1f0] sm:$0xf]
        %v9350 = vld [vmem:[#allocation22 + $0x1f4] sm:$0xf]
        %v9351 = vld [vmem:[#allocation22 + $0x1f8] sm:$0xf]
        %v9352 = vld [vmem:[#allocation22 + $0x1fc] sm:$0xf]
        %v9353 = vld [vmem:[#allocation22 + $0x200] sm:$0xf]
        %v9354 = vld [vmem:[#allocation22 + $0x204] sm:$0xf]
        %v9355 = vld [vmem:[#allocation22 + $0x208] sm:$0xf]
        %v9356 = vld [vmem:[#allocation22 + $0x20c] sm:$0xf]
        %v9357 = vld [vmem:[#allocation22 + $0x210] sm:$0xf]
        %v9358 = vld [vmem:[#allocation22 + $0x214] sm:$0xf]
        %v9359 = vld [vmem:[#allocation22 + $0x218] sm:$0xf]
        %v9360 = vld [vmem:[#allocation22 + $0x21c] sm:$0xf]
        %v9361 = vld [vmem:[#allocation22 + $0x220] sm:$0xf]
        %v9362 = vld [vmem:[#allocation22 + $0x224] sm:$0xf]
        %v9363 = vld [vmem:[#allocation22 + $0x228] sm:$0xf]
        %v9364 = vld [vmem:[#allocation22 + $0x22c] sm:$0xf]
        %v9365 = vld [vmem:[#allocation22 + $0x230] sm:$0xf]
        %v9366 = vld [vmem:[#allocation22 + $0x234] sm:$0xf]
        %v9367 = vld [vmem:[#allocation22 + $0x238] sm:$0xf]
        %v9368 = vld [vmem:[#allocation22 + $0x23c] sm:$0xf]
        %v9369 = vld [vmem:[#allocation22 + $0x240] sm:$0xf]
        %v9370 = vld [vmem:[#allocation22 + $0x244] sm:$0xf]
        %v9371 = vld [vmem:[#allocation22 + $0x248] sm:$0xf]
        %v9372 = vld [vmem:[#allocation22 + $0x24c] sm:$0xf]
        %v9373 = vld [vmem:[#allocation22 + $0x250] sm:$0xf]
        %v9374 = vld [vmem:[#allocation22 + $0x254] sm:$0xf]
        %v9375 = vld [vmem:[#allocation22 + $0x258] sm:$0xf]
        %v9376 = vld [vmem:[#allocation22 + $0x25c] sm:$0xf]
        %v9377 = vld [vmem:[#allocation22 + $0x260] sm:$0xf]
        %v9378 = vld [vmem:[#allocation22 + $0x264] sm:$0xf]
        %v9379 = vld [vmem:[#allocation22 + $0x268] sm:$0xf]
        %v9380 = vld [vmem:[#allocation22 + $0x26c] sm:$0xf]
        %v9381 = vld [vmem:[#allocation22 + $0x270] sm:$0xf]
        %v9382 = vld [vmem:[#allocation22 + $0x274] sm:$0xf]
        %v9383 = vld [vmem:[#allocation22 + $0x278] sm:$0xf]
        %v9384 = vld [vmem:[#allocation22 + $0x27c] sm:$0xf]
        %v9385 = vld [vmem:[#allocation22 + $0x280] sm:$0xf]
        %v9386 = vld [vmem:[#allocation22 + $0x284] sm:$0xf]
        %v9387 = vld [vmem:[#allocation22 + $0x288] sm:$0xf]
        %v9388 = vld [vmem:[#allocation22 + $0x28c] sm:$0xf]
        %v9389 = vld [vmem:[#allocation22 + $0x290] sm:$0xf]
        %v9390 = vld [vmem:[#allocation22 + $0x294] sm:$0xf]
        %v9391 = vld [vmem:[#allocation22 + $0x298] sm:$0xf]
        %v9392 = vld [vmem:[#allocation22 + $0x29c] sm:$0xf]
        %v9393 = vld [vmem:[#allocation22 + $0x2a0] sm:$0xf]
        %v9394 = vld [vmem:[#allocation22 + $0x2a4] sm:$0xf]
        %v9395 = vld [vmem:[#allocation22 + $0x2a8] sm:$0xf]
        %v9396 = vld [vmem:[#allocation22 + $0x2ac] sm:$0xf]
        %v9397 = vld [vmem:[#allocation22 + $0x2b0] sm:$0xf]
        %v9398 = vld [vmem:[#allocation22 + $0x2b4] sm:$0xf]
        %v9399 = vld [vmem:[#allocation22 + $0x2b8] sm:$0xf]
        %v9400 = vld [vmem:[#allocation22 + $0x2bc] sm:$0xf]
        %v9401 = vld [vmem:[#allocation22 + $0x2c0] sm:$0xf]
        %v9402 = vld [vmem:[#allocation22 + $0x2c4] sm:$0xf]
        %v9403 = vld [vmem:[#allocation22 + $0x2c8] sm:$0xf]
        %v9404 = vld [vmem:[#allocation22 + $0x2cc] sm:$0xf]
        %v9405 = vld [vmem:[#allocation22 + $0x2d0] sm:$0xf]
        %v9406 = vld [vmem:[#allocation22 + $0x2d4] sm:$0xf]
        %v9407 = vld [vmem:[#allocation22 + $0x2d8] sm:$0xf]
        %v9408 = vld [vmem:[#allocation22 + $0x2dc] sm:$0xf]
        %v9409 = vld [vmem:[#allocation22 + $0x2e0] sm:$0xf]
        %v9410 = vld [vmem:[#allocation22 + $0x2e4] sm:$0xf]
        %v9411 = vld [vmem:[#allocation22 + $0x2e8] sm:$0xf]
        %v9412 = vld [vmem:[#allocation22 + $0x2ec] sm:$0xf]
        %v9413 = vld [vmem:[#allocation22 + $0x2f0] sm:$0xf]
        %v9414 = vld [vmem:[#allocation22 + $0x2f4] sm:$0xf]
        %v9415 = vld [vmem:[#allocation22 + $0x2f8] sm:$0xf]
        %v9416 = vld [vmem:[#allocation22 + $0x2fc] sm:$0xf]
        %v9417 = vld [vmem:[#allocation22 + $0x300] sm:$0xf]
        %v9418 = vld [vmem:[#allocation22 + $0x304] sm:$0xf]
        %v9419 = vld [vmem:[#allocation22 + $0x308] sm:$0xf]
        %v9420 = vld [vmem:[#allocation22 + $0x30c] sm:$0xf]
        %v9421 = vld [vmem:[#allocation22 + $0x310] sm:$0xf]
        %v9422 = vld [vmem:[#allocation22 + $0x314] sm:$0xf]
        %v9423 = vld [vmem:[#allocation22 + $0x318] sm:$0xf]
        %v9424 = vld [vmem:[#allocation22 + $0x31c] sm:$0xf]
        %v9425 = vld [vmem:[#allocation22 + $0x320] sm:$0xf]
        %v9426 = vld [vmem:[#allocation22 + $0x324] sm:$0xf]
        %v9427 = vld [vmem:[#allocation22 + $0x328] sm:$0xf]
        %v9428 = vld [vmem:[#allocation22 + $0x32c] sm:$0xf]
        %v9429 = vld [vmem:[#allocation22 + $0x330] sm:$0xf]
        %v9430 = vld [vmem:[#allocation22 + $0x334] sm:$0xf]
        %v9431 = vld [vmem:[#allocation22 + $0x338] sm:$0xf]
        %v9432 = vld [vmem:[#allocation22 + $0x33c] sm:$0xf]
        %v9433 = vld [vmem:[#allocation22 + $0x340] sm:$0xf]
        %v9434 = vld [vmem:[#allocation22 + $0x344] sm:$0xf]
        %v9435 = vld [vmem:[#allocation22 + $0x348] sm:$0xf]
        %v9436 = vld [vmem:[#allocation22 + $0x34c] sm:$0xf]
        %v9437 = vld [vmem:[#allocation22 + $0x350] sm:$0xf]
        %v9438 = vld [vmem:[#allocation22 + $0x354] sm:$0xf]
        %v9439 = vld [vmem:[#allocation22 + $0x358] sm:$0xf]
        %v9440 = vld [vmem:[#allocation22 + $0x35c] sm:$0xf]
        %v9441 = vld [vmem:[#allocation22 + $0x360] sm:$0xf]
        %v9442 = vld [vmem:[#allocation22 + $0x364] sm:$0xf]
        %v9443 = vld [vmem:[#allocation22 + $0x368] sm:$0xf]
        %v9444 = vld [vmem:[#allocation22 + $0x36c] sm:$0xf]
        %v9445 = vld [vmem:[#allocation22 + $0x370] sm:$0xf]
        %v9446 = vld [vmem:[#allocation22 + $0x374] sm:$0xf]
        %v9447 = vld [vmem:[#allocation22 + $0x378] sm:$0xf]
        %v9448 = vld [vmem:[#allocation22 + $0x37c] sm:$0xf]
        %v9449 = vld [vmem:[#allocation22 + $0x380] sm:$0xf]
        %v9450 = vld [vmem:[#allocation22 + $0x384] sm:$0xf]
        %v9451 = vld [vmem:[#allocation22 + $0x388] sm:$0xf]
        %v9452 = vld [vmem:[#allocation22 + $0x38c] sm:$0xf]
        %v9453 = vld [vmem:[#allocation22 + $0x390] sm:$0xf]
        %v9454 = vld [vmem:[#allocation22 + $0x394] sm:$0xf]
        %v9455 = vld [vmem:[#allocation22 + $0x398] sm:$0xf]
        %v9456 = vld [vmem:[#allocation22 + $0x39c] sm:$0xf]
        %v9457 = vld [vmem:[#allocation22 + $0x3a0] sm:$0xf]
        %v9458 = vld [vmem:[#allocation22 + $0x3a4] sm:$0xf]
        %v9459 = vld [vmem:[#allocation22 + $0x3a8] sm:$0xf]
        %v9460 = vld [vmem:[#allocation22 + $0x3ac] sm:$0xf]
        %v9461 = vld [vmem:[#allocation22 + $0x3b0] sm:$0xf]
        %v9462 = vld [vmem:[#allocation22 + $0x3b4] sm:$0xf]
        %v9463 = vld [vmem:[#allocation22 + $0x3b8] sm:$0xf]
        %v9464 = vld [vmem:[#allocation22 + $0x3bc] sm:$0xf]
        %v9465 = vld [vmem:[#allocation22 + $0x3c0] sm:$0xf]
        %v9466 = vld [vmem:[#allocation22 + $0x3c4] sm:$0xf]
        %v9467 = vld [vmem:[#allocation22 + $0x3c8] sm:$0xf]
        %v9468 = vld [vmem:[#allocation22 + $0x3cc] sm:$0xf]
        %v9469 = vld [vmem:[#allocation22 + $0x3d0] sm:$0xf]
        %v9470 = vld [vmem:[#allocation22 + $0x3d4] sm:$0xf]
        %v9471 = vld [vmem:[#allocation22 + $0x3d8] sm:$0xf]
        %v9472 = vld [vmem:[#allocation22 + $0x3dc] sm:$0xf]
        %v9473 = vld [vmem:[#allocation22 + $0x3e0] sm:$0xf]
        %v9474 = vld [vmem:[#allocation22 + $0x3e4] sm:$0xf]
        %v9475 = vld [vmem:[#allocation22 + $0x3e8] sm:$0xf]
        %v9476 = vld [vmem:[#allocation22 + $0x3ec] sm:$0xf]
        %v9477 = vld [vmem:[#allocation22 + $0x3f0] sm:$0xf]
        %v9478 = vld [vmem:[#allocation22 + $0x3f4] sm:$0xf]
        %v9479 = vld [vmem:[#allocation22 + $0x3f8] sm:$0xf]
        %v9480 = vld [vmem:[#allocation22 + $0x3fc] sm:$0xf]
        %v9481 = vld [vmem:[#allocation23] sm:$0x1]
        %v9738 = vunpack.c.l.b16 %v9225
        %v9739 = vunpack.c.l.b16 %v9226
        %v9740 = vunpack.c.l.b16 %v9227
        %v9741 = vunpack.c.l.b16 %v9228
        %v9742 = vunpack.c.l.b16 %v9229
        %v9743 = vunpack.c.l.b16 %v9230
        %v9744 = vunpack.c.l.b16 %v9231
        %v9745 = vunpack.c.l.b16 %v9232
        %v9746 = vunpack.c.l.b16 %v9233
        %v9747 = vunpack.c.l.b16 %v9234
        %v9748 = vunpack.c.l.b16 %v9235
        %v9749 = vunpack.c.l.b16 %v9236
        %v9750 = vunpack.c.l.b16 %v9237
        %v9751 = vunpack.c.l.b16 %v9238
        %v9752 = vunpack.c.l.b16 %v9239
        %v9753 = vunpack.c.l.b16 %v9240
        %v9754 = vunpack.c.l.b16 %v9241
        %v9755 = vunpack.c.l.b16 %v9242
        %v9756 = vunpack.c.l.b16 %v9243
        %v9757 = vunpack.c.l.b16 %v9244
        %v9758 = vunpack.c.l.b16 %v9245
        %v9759 = vunpack.c.l.b16 %v9246
        %v9760 = vunpack.c.l.b16 %v9247
        %v9761 = vunpack.c.l.b16 %v9248
        %v9762 = vunpack.c.l.b16 %v9249
        %v9763 = vunpack.c.l.b16 %v9250
        %v9764 = vunpack.c.l.b16 %v9251
        %v9765 = vunpack.c.l.b16 %v9252
        %v9766 = vunpack.c.l.b16 %v9253
        %v9767 = vunpack.c.l.b16 %v9254
        %v9768 = vunpack.c.l.b16 %v9255
        %v9769 = vunpack.c.l.b16 %v9256
        %v9770 = vunpack.c.l.b16 %v9257
        %v9771 = vunpack.c.l.b16 %v9258
        %v9772 = vunpack.c.l.b16 %v9259
        %v9773 = vunpack.c.l.b16 %v9260
        %v9774 = vunpack.c.l.b16 %v9261
        %v9775 = vunpack.c.l.b16 %v9262
        %v9776 = vunpack.c.l.b16 %v9263
        %v9777 = vunpack.c.l.b16 %v9264
        %v9778 = vunpack.c.l.b16 %v9265
        %v9779 = vunpack.c.l.b16 %v9266
        %v9780 = vunpack.c.l.b16 %v9267
        %v9781 = vunpack.c.l.b16 %v9268
        %v9782 = vunpack.c.l.b16 %v9269
        %v9783 = vunpack.c.l.b16 %v9270
        %v9784 = vunpack.c.l.b16 %v9271
        %v9785 = vunpack.c.l.b16 %v9272
        %v9786 = vunpack.c.l.b16 %v9273
        %v9787 = vunpack.c.l.b16 %v9274
        %v9788 = vunpack.c.l.b16 %v9275
        %v9789 = vunpack.c.l.b16 %v9276
        %v9790 = vunpack.c.l.b16 %v9277
        %v9791 = vunpack.c.l.b16 %v9278
        %v9792 = vunpack.c.l.b16 %v9279
        %v9793 = vunpack.c.l.b16 %v9280
        %v9794 = vunpack.c.l.b16 %v9281
        %v9795 = vunpack.c.l.b16 %v9282
        %v9796 = vunpack.c.l.b16 %v9283
        %v9797 = vunpack.c.l.b16 %v9284
        %v9798 = vunpack.c.l.b16 %v9285
        %v9799 = vunpack.c.l.b16 %v9286
        %v9800 = vunpack.c.l.b16 %v9287
        %v9801 = vunpack.c.l.b16 %v9288
        %v9802 = vunpack.c.l.b16 %v9289
        %v9803 = vunpack.c.l.b16 %v9290
        %v9804 = vunpack.c.l.b16 %v9291
        %v9805 = vunpack.c.l.b16 %v9292
        %v9806 = vunpack.c.l.b16 %v9293
        %v9807 = vunpack.c.l.b16 %v9294
        %v9808 = vunpack.c.l.b16 %v9295
        %v9809 = vunpack.c.l.b16 %v9296
        %v9810 = vunpack.c.l.b16 %v9297
        %v9811 = vunpack.c.l.b16 %v9298
        %v9812 = vunpack.c.l.b16 %v9299
        %v9813 = vunpack.c.l.b16 %v9300
        %v9814 = vunpack.c.l.b16 %v9301
        %v9815 = vunpack.c.l.b16 %v9302
        %v9816 = vunpack.c.l.b16 %v9303
        %v9817 = vunpack.c.l.b16 %v9304
        %v9818 = vunpack.c.l.b16 %v9305
        %v9819 = vunpack.c.l.b16 %v9306
        %v9820 = vunpack.c.l.b16 %v9307
        %v9821 = vunpack.c.l.b16 %v9308
        %v9822 = vunpack.c.l.b16 %v9309
        %v9823 = vunpack.c.l.b16 %v9310
        %v9824 = vunpack.c.l.b16 %v9311
        %v9825 = vunpack.c.l.b16 %v9312
        %v9826 = vunpack.c.l.b16 %v9313
        %v9827 = vunpack.c.l.b16 %v9314
        %v9828 = vunpack.c.l.b16 %v9315
        %v9829 = vunpack.c.l.b16 %v9316
        %v9830 = vunpack.c.l.b16 %v9317
        %v9831 = vunpack.c.l.b16 %v9318
        %v9832 = vunpack.c.l.b16 %v9319
        %v9833 = vunpack.c.l.b16 %v9320
        %v9834 = vunpack.c.l.b16 %v9321
        %v9835 = vunpack.c.l.b16 %v9322
        %v9836 = vunpack.c.l.b16 %v9323
        %v9837 = vunpack.c.l.b16 %v9324
        %v9838 = vunpack.c.l.b16 %v9325
        %v9839 = vunpack.c.l.b16 %v9326
        %v9840 = vunpack.c.l.b16 %v9327
        %v9841 = vunpack.c.l.b16 %v9328
        %v9842 = vunpack.c.l.b16 %v9329
        %v9843 = vunpack.c.l.b16 %v9330
        %v9844 = vunpack.c.l.b16 %v9331
        %v9845 = vunpack.c.l.b16 %v9332
        %v9846 = vunpack.c.l.b16 %v9333
        %v9847 = vunpack.c.l.b16 %v9334
        %v9848 = vunpack.c.l.b16 %v9335
        %v9849 = vunpack.c.l.b16 %v9336
        %v9850 = vunpack.c.l.b16 %v9337
        %v9851 = vunpack.c.l.b16 %v9338
        %v9852 = vunpack.c.l.b16 %v9339
        %v9853 = vunpack.c.l.b16 %v9340
        %v9854 = vunpack.c.l.b16 %v9341
        %v9855 = vunpack.c.l.b16 %v9342
        %v9856 = vunpack.c.l.b16 %v9343
        %v9857 = vunpack.c.l.b16 %v9344
        %v9858 = vunpack.c.l.b16 %v9345
        %v9859 = vunpack.c.l.b16 %v9346
        %v9860 = vunpack.c.l.b16 %v9347
        %v9861 = vunpack.c.l.b16 %v9348
        %v9862 = vunpack.c.l.b16 %v9349
        %v9863 = vunpack.c.l.b16 %v9350
        %v9864 = vunpack.c.l.b16 %v9351
        %v9865 = vunpack.c.l.b16 %v9352
        %v9866 = vunpack.c.l.b16 %v9353
        %v9867 = vunpack.c.l.b16 %v9354
        %v9868 = vunpack.c.l.b16 %v9355
        %v9869 = vunpack.c.l.b16 %v9356
        %v9870 = vunpack.c.l.b16 %v9357
        %v9871 = vunpack.c.l.b16 %v9358
        %v9872 = vunpack.c.l.b16 %v9359
        %v9873 = vunpack.c.l.b16 %v9360
        %v9874 = vunpack.c.l.b16 %v9361
        %v9875 = vunpack.c.l.b16 %v9362
        %v9876 = vunpack.c.l.b16 %v9363
        %v9877 = vunpack.c.l.b16 %v9364
        %v9878 = vunpack.c.l.b16 %v9365
        %v9879 = vunpack.c.l.b16 %v9366
        %v9880 = vunpack.c.l.b16 %v9367
        %v9881 = vunpack.c.l.b16 %v9368
        %v9882 = vunpack.c.l.b16 %v9369
        %v9883 = vunpack.c.l.b16 %v9370
        %v9884 = vunpack.c.l.b16 %v9371
        %v9885 = vunpack.c.l.b16 %v9372
        %v9886 = vunpack.c.l.b16 %v9373
        %v9887 = vunpack.c.l.b16 %v9374
        %v9888 = vunpack.c.l.b16 %v9375
        %v9889 = vunpack.c.l.b16 %v9376
        %v9890 = vunpack.c.l.b16 %v9377
        %v9891 = vunpack.c.l.b16 %v9378
        %v9892 = vunpack.c.l.b16 %v9379
        %v9893 = vunpack.c.l.b16 %v9380
        %v9894 = vunpack.c.l.b16 %v9381
        %v9895 = vunpack.c.l.b16 %v9382
        %v9896 = vunpack.c.l.b16 %v9383
        %v9897 = vunpack.c.l.b16 %v9384
        %v9898 = vunpack.c.l.b16 %v9385
        %v9899 = vunpack.c.l.b16 %v9386
        %v9900 = vunpack.c.l.b16 %v9387
        %v9901 = vunpack.c.l.b16 %v9388
        %v9902 = vunpack.c.l.b16 %v9389
        %v9903 = vunpack.c.l.b16 %v9390
        %v9904 = vunpack.c.l.b16 %v9391
        %v9905 = vunpack.c.l.b16 %v9392
        %v9906 = vunpack.c.l.b16 %v9393
        %v9907 = vunpack.c.l.b16 %v9394
        %v9908 = vunpack.c.l.b16 %v9395
        %v9909 = vunpack.c.l.b16 %v9396
        %v9910 = vunpack.c.l.b16 %v9397
        %v9911 = vunpack.c.l.b16 %v9398
        %v9912 = vunpack.c.l.b16 %v9399
        %v9913 = vunpack.c.l.b16 %v9400
        %v9914 = vunpack.c.l.b16 %v9401
        %v9915 = vunpack.c.l.b16 %v9402
        %v9916 = vunpack.c.l.b16 %v9403
        %v9917 = vunpack.c.l.b16 %v9404
        %v9918 = vunpack.c.l.b16 %v9405
        %v9919 = vunpack.c.l.b16 %v9406
        %v9920 = vunpack.c.l.b16 %v9407
        %v9921 = vunpack.c.l.b16 %v9408
        %v9922 = vunpack.c.l.b16 %v9409
        %v9923 = vunpack.c.l.b16 %v9410
        %v9924 = vunpack.c.l.b16 %v9411
        %v9925 = vunpack.c.l.b16 %v9412
        %v9926 = vunpack.c.l.b16 %v9413
        %v9927 = vunpack.c.l.b16 %v9414
        %v9928 = vunpack.c.l.b16 %v9415
        %v9929 = vunpack.c.l.b16 %v9416
        %v9930 = vunpack.c.l.b16 %v9417
        %v9931 = vunpack.c.l.b16 %v9418
        %v9932 = vunpack.c.l.b16 %v9419
        %v9933 = vunpack.c.l.b16 %v9420
        %v9934 = vunpack.c.l.b16 %v9421
        %v9935 = vunpack.c.l.b16 %v9422
        %v9936 = vunpack.c.l.b16 %v9423
        %v9937 = vunpack.c.l.b16 %v9424
        %v9938 = vunpack.c.l.b16 %v9425
        %v9939 = vunpack.c.l.b16 %v9426
        %v9940 = vunpack.c.l.b16 %v9427
        %v9941 = vunpack.c.l.b16 %v9428
        %v9942 = vunpack.c.l.b16 %v9429
        %v9943 = vunpack.c.l.b16 %v9430
        %v9944 = vunpack.c.l.b16 %v9431
        %v9945 = vunpack.c.l.b16 %v9432
        %v9946 = vunpack.c.l.b16 %v9433
        %v9947 = vunpack.c.l.b16 %v9434
        %v9948 = vunpack.c.l.b16 %v9435
        %v9949 = vunpack.c.l.b16 %v9436
        %v9950 = vunpack.c.l.b16 %v9437
        %v9951 = vunpack.c.l.b16 %v9438
        %v9952 = vunpack.c.l.b16 %v9439
        %v9953 = vunpack.c.l.b16 %v9440
        %v9954 = vunpack.c.l.b16 %v9441
        %v9955 = vunpack.c.l.b16 %v9442
        %v9956 = vunpack.c.l.b16 %v9443
        %v9957 = vunpack.c.l.b16 %v9444
        %v9958 = vunpack.c.l.b16 %v9445
        %v9959 = vunpack.c.l.b16 %v9446
        %v9960 = vunpack.c.l.b16 %v9447
        %v9961 = vunpack.c.l.b16 %v9448
        %v9962 = vunpack.c.l.b16 %v9449
        %v9963 = vunpack.c.l.b16 %v9450
        %v9964 = vunpack.c.l.b16 %v9451
        %v9965 = vunpack.c.l.b16 %v9452
        %v9966 = vunpack.c.l.b16 %v9453
        %v9967 = vunpack.c.l.b16 %v9454
        %v9968 = vunpack.c.l.b16 %v9455
        %v9969 = vunpack.c.l.b16 %v9456
        %v9970 = vunpack.c.l.b16 %v9457
        %v9971 = vunpack.c.l.b16 %v9458
        %v9972 = vunpack.c.l.b16 %v9459
        %v9973 = vunpack.c.l.b16 %v9460
        %v9974 = vunpack.c.l.b16 %v9461
        %v9975 = vunpack.c.l.b16 %v9462
        %v9976 = vunpack.c.l.b16 %v9463
        %v9977 = vunpack.c.l.b16 %v9464
        %v9978 = vunpack.c.l.b16 %v9465
        %v9979 = vunpack.c.l.b16 %v9466
        %v9980 = vunpack.c.l.b16 %v9467
        %v9981 = vunpack.c.l.b16 %v9468
        %v9982 = vunpack.c.l.b16 %v9469
        %v9983 = vunpack.c.l.b16 %v9470
        %v9984 = vunpack.c.l.b16 %v9471
        %v9985 = vunpack.c.l.b16 %v9472
        %v9986 = vunpack.c.l.b16 %v9473
        %v9987 = vunpack.c.l.b16 %v9474
        %v9988 = vunpack.c.l.b16 %v9475
        %v9989 = vunpack.c.l.b16 %v9476
        %v9990 = vunpack.c.l.b16 %v9477
        %v9991 = vunpack.c.l.b16 %v9478
        %v9992 = vunpack.c.l.b16 %v9479
        %v9993 = vunpack.c.l.b16 %v9480
        %v9994 = vpack.c.b16 %v9739, %v9738
        %v9995 = vpack.c.b16 %v9741, %v9740
        %v9996 = vpack.c.b16 %v9743, %v9742
        %v9997 = vpack.c.b16 %v9745, %v9744
        %v9998 = vpack.c.b16 %v9747, %v9746
        %v9999 = vpack.c.b16 %v9749, %v9748
        %v10000 = vpack.c.b16 %v9751, %v9750
        %v10001 = vpack.c.b16 %v9753, %v9752
        %v10002 = vpack.c.b16 %v9755, %v9754
        %v10003 = vpack.c.b16 %v9757, %v9756
        %v10004 = vpack.c.b16 %v9759, %v9758
        %v10005 = vpack.c.b16 %v9761, %v9760
        %v10006 = vpack.c.b16 %v9763, %v9762
        %v10007 = vpack.c.b16 %v9765, %v9764
        %v10008 = vpack.c.b16 %v9767, %v9766
        %v10009 = vpack.c.b16 %v9769, %v9768
        %v10010 = vpack.c.b16 %v9771, %v9770
        %v10011 = vpack.c.b16 %v9773, %v9772
        %v10012 = vpack.c.b16 %v9775, %v9774
        %v10013 = vpack.c.b16 %v9777, %v9776
        %v10014 = vpack.c.b16 %v9779, %v9778
        %v10015 = vpack.c.b16 %v9781, %v9780
        %v10016 = vpack.c.b16 %v9783, %v9782
        %v10017 = vpack.c.b16 %v9785, %v9784
        %v10018 = vpack.c.b16 %v9787, %v9786
        %v10019 = vpack.c.b16 %v9789, %v9788
        %v10020 = vpack.c.b16 %v9791, %v9790
        %v10021 = vpack.c.b16 %v9793, %v9792
        %v10022 = vpack.c.b16 %v9795, %v9794
        %v10023 = vpack.c.b16 %v9797, %v9796
        %v10024 = vpack.c.b16 %v9799, %v9798
        %v10025 = vpack.c.b16 %v9801, %v9800
        %v10026 = vpack.c.b16 %v9803, %v9802
        %v10027 = vpack.c.b16 %v9805, %v9804
        %v10028 = vpack.c.b16 %v9807, %v9806
        %v10029 = vpack.c.b16 %v9809, %v9808
        %v10030 = vpack.c.b16 %v9811, %v9810
        %v10031 = vpack.c.b16 %v9813, %v9812
        %v10032 = vpack.c.b16 %v9815, %v9814
        %v10033 = vpack.c.b16 %v9817, %v9816
        %v10034 = vpack.c.b16 %v9819, %v9818
        %v10035 = vpack.c.b16 %v9821, %v9820
        %v10036 = vpack.c.b16 %v9823, %v9822
        %v10037 = vpack.c.b16 %v9825, %v9824
        %v10038 = vpack.c.b16 %v9827, %v9826
        %v10039 = vpack.c.b16 %v9829, %v9828
        %v10040 = vpack.c.b16 %v9831, %v9830
        %v10041 = vpack.c.b16 %v9833, %v9832
        %v10042 = vpack.c.b16 %v9835, %v9834
        %v10043 = vpack.c.b16 %v9837, %v9836
        %v10044 = vpack.c.b16 %v9839, %v9838
        %v10045 = vpack.c.b16 %v9841, %v9840
        %v10046 = vpack.c.b16 %v9843, %v9842
        %v10047 = vpack.c.b16 %v9845, %v9844
        %v10048 = vpack.c.b16 %v9847, %v9846
        %v10049 = vpack.c.b16 %v9849, %v9848
        %v10050 = vpack.c.b16 %v9851, %v9850
        %v10051 = vpack.c.b16 %v9853, %v9852
        %v10052 = vpack.c.b16 %v9855, %v9854
        %v10053 = vpack.c.b16 %v9857, %v9856
        %v10054 = vpack.c.b16 %v9859, %v9858
        %v10055 = vpack.c.b16 %v9861, %v9860
        %v10056 = vpack.c.b16 %v9863, %v9862
        %v10057 = vpack.c.b16 %v9865, %v9864
        %v10058 = vpack.c.b16 %v9867, %v9866
        %v10059 = vpack.c.b16 %v9869, %v9868
        %v10060 = vpack.c.b16 %v9871, %v9870
        %v10061 = vpack.c.b16 %v9873, %v9872
        %v10062 = vpack.c.b16 %v9875, %v9874
        %v10063 = vpack.c.b16 %v9877, %v9876
        %v10064 = vpack.c.b16 %v9879, %v9878
        %v10065 = vpack.c.b16 %v9881, %v9880
        %v10066 = vpack.c.b16 %v9883, %v9882
        %v10067 = vpack.c.b16 %v9885, %v9884
        %v10068 = vpack.c.b16 %v9887, %v9886
        %v10069 = vpack.c.b16 %v9889, %v9888
        %v10070 = vpack.c.b16 %v9891, %v9890
        %v10071 = vpack.c.b16 %v9893, %v9892
        %v10072 = vpack.c.b16 %v9895, %v9894
        %v10073 = vpack.c.b16 %v9897, %v9896
        %v10074 = vpack.c.b16 %v9899, %v9898
        %v10075 = vpack.c.b16 %v9901, %v9900
        %v10076 = vpack.c.b16 %v9903, %v9902
        %v10077 = vpack.c.b16 %v9905, %v9904
        %v10078 = vpack.c.b16 %v9907, %v9906
        %v10079 = vpack.c.b16 %v9909, %v9908
        %v10080 = vpack.c.b16 %v9911, %v9910
        %v10081 = vpack.c.b16 %v9913, %v9912
        %v10082 = vpack.c.b16 %v9915, %v9914
        %v10083 = vpack.c.b16 %v9917, %v9916
        %v10084 = vpack.c.b16 %v9919, %v9918
        %v10085 = vpack.c.b16 %v9921, %v9920
        %v10086 = vpack.c.b16 %v9923, %v9922
        %v10087 = vpack.c.b16 %v9925, %v9924
        %v10088 = vpack.c.b16 %v9927, %v9926
        %v10089 = vpack.c.b16 %v9929, %v9928
        %v10090 = vpack.c.b16 %v9931, %v9930
        %v10091 = vpack.c.b16 %v9933, %v9932
        %v10092 = vpack.c.b16 %v9935, %v9934
        %v10093 = vpack.c.b16 %v9937, %v9936
        %v10094 = vpack.c.b16 %v9939, %v9938
        %v10095 = vpack.c.b16 %v9941, %v9940
        %v10096 = vpack.c.b16 %v9943, %v9942
        %v10097 = vpack.c.b16 %v9945, %v9944
        %v10098 = vpack.c.b16 %v9947, %v9946
        %v10099 = vpack.c.b16 %v9949, %v9948
        %v10100 = vpack.c.b16 %v9951, %v9950
        %v10101 = vpack.c.b16 %v9953, %v9952
        %v10102 = vpack.c.b16 %v9955, %v9954
        %v10103 = vpack.c.b16 %v9957, %v9956
        %v10104 = vpack.c.b16 %v9959, %v9958
        %v10105 = vpack.c.b16 %v9961, %v9960
        %v10106 = vpack.c.b16 %v9963, %v9962
        %v10107 = vpack.c.b16 %v9965, %v9964
        %v10108 = vpack.c.b16 %v9967, %v9966
        %v10109 = vpack.c.b16 %v9969, %v9968
        %v10110 = vpack.c.b16 %v9971, %v9970
        %v10111 = vpack.c.b16 %v9973, %v9972
        %v10112 = vpack.c.b16 %v9975, %v9974
        %v10113 = vpack.c.b16 %v9977, %v9976
        %v10114 = vpack.c.b16 %v9979, %v9978
        %v10115 = vpack.c.b16 %v9981, %v9980
        %v10116 = vpack.c.b16 %v9983, %v9982
        %v10117 = vpack.c.b16 %v9985, %v9984
        %v10118 = vpack.c.b16 %v9987, %v9986
        %v10119 = vpack.c.b16 %v9989, %v9988
        %v10120 = vpack.c.b16 %v9991, %v9990
        %v10121 = vpack.c.b16 %v9993, %v9992
        %10250 = vmatprep.subr.bf16.mxu0 0
        %10251 = vmatpush1.bf16.msra.mxu0 %v10001
        %10252 = vmatprep.subr.bf16.mxu0 0
        %10253 = vmatpush1.bf16.msra.mxu0 %v10000
        %10254 = vmatprep.subr.bf16.mxu0 0
        %10255 = vmatpush1.bf16.msra.mxu0 %v9999
        %10256 = vmatprep.subr.bf16.mxu0 0
        %10257 = vmatpush1.bf16.msra.mxu0 %v9998
        %10258 = vmatprep.subr.bf16.mxu0 0
        %10259 = vmatpush1.bf16.msra.mxu0 %v9997
        %10260 = vmatprep.subr.bf16.mxu0 0
        %10261 = vmatpush1.bf16.msra.mxu0 %v9996
        %10262 = vmatprep.subr.bf16.mxu0 0
        %10263 = vmatpush1.bf16.msra.mxu0 %v9995
        %10264 = vmatprep.subr.bf16.mxu0 0
        %10265 = vmatpush1.bf16.msra.mxu0 %v9994
        %10266 = vmatprep.subr.bf16.mxu0 0
        %10267 = vmatpush2.bf16.msra.mxu0 %v10009
        %10268 = vmatprep.subr.bf16.mxu0 0
        %10269 = vmatpush2.bf16.msra.mxu0 %v10008
        %10270 = vmatprep.subr.bf16.mxu0 0
        %10271 = vmatpush2.bf16.msra.mxu0 %v10007
        %10272 = vmatprep.subr.bf16.mxu0 0
        %10273 = vmatpush2.bf16.msra.mxu0 %v10006
        %10274 = vmatprep.subr.bf16.mxu0 0
        %10275 = vmatpush2.bf16.msra.mxu0 %v10005
        %10276 = vmatprep.subr.bf16.mxu0 0
        %10277 = vmatpush2.bf16.msra.mxu0 %v10004
        %10278 = vmatprep.subr.bf16.mxu0 0
        %10279 = vmatpush2.bf16.msra.mxu0 %v10003
        %10280 = vmatprep.subr.bf16.mxu0 0
        %10281 = vmatpush2.bf16.msra.mxu0 %v10002
        %10282 = vmatprep.mubr.bf16.mxu0 %v9210
        %10283 = vmatmul.mubr.bf16.gmra.mxu0 %v9209
        %v10284 = vpop.f32.mrf.mxu0
        %v10285 = vadd.f32 %v9481, %v10284
        %v10286 = vpop.f32.mrf.mxu0
        %v10287 = vpop.f32.mrf.mxu0
        %v10288 = vpop.f32.mrf.mxu0
        %10289 = vdwg.mxu0
        %10290 = vmatprep.subr.bf16.mxu0 0
        %10291 = vmatpush1.bf16.msra.mxu0 %v10017
        %10292 = vmatprep.subr.bf16.mxu0 0
        %10293 = vmatpush1.bf16.msra.mxu0 %v10016
        %10294 = vmatprep.subr.bf16.mxu0 0
        %10295 = vmatpush1.bf16.msra.mxu0 %v10015
        %10296 = vmatprep.subr.bf16.mxu0 0
        %10297 = vmatpush1.bf16.msra.mxu0 %v10014
        %10298 = vmatprep.subr.bf16.mxu0 0
        %10299 = vmatpush1.bf16.msra.mxu0 %v10013
        %10300 = vmatprep.subr.bf16.mxu0 0
        %10301 = vmatpush1.bf16.msra.mxu0 %v10012
        %10302 = vmatprep.subr.bf16.mxu0 0
        %10303 = vmatpush1.bf16.msra.mxu0 %v10011
        %10304 = vmatprep.subr.bf16.mxu0 0
        %10305 = vmatpush1.bf16.msra.mxu0 %v10010
        %10306 = vmatprep.subr.bf16.mxu0 0
        %10307 = vmatpush2.bf16.msra.mxu0 %v10025
        %10308 = vmatprep.subr.bf16.mxu0 0
        %10309 = vmatpush2.bf16.msra.mxu0 %v10024
        %10310 = vmatprep.subr.bf16.mxu0 0
        %10311 = vmatpush2.bf16.msra.mxu0 %v10023
        %10312 = vmatprep.subr.bf16.mxu0 0
        %10313 = vmatpush2.bf16.msra.mxu0 %v10022
        %10314 = vmatprep.subr.bf16.mxu0 0
        %10315 = vmatpush2.bf16.msra.mxu0 %v10021
        %10316 = vmatprep.subr.bf16.mxu0 0
        %10317 = vmatpush2.bf16.msra.mxu0 %v10020
        %10318 = vmatprep.subr.bf16.mxu0 0
        %10319 = vmatpush2.bf16.msra.mxu0 %v10019
        %10320 = vmatprep.subr.bf16.mxu0 0
        %10321 = vmatpush2.bf16.msra.mxu0 %v10018
        %10322 = vmatprep.mubr.bf16.mxu0 %v9212
        %10323 = vmatmul.mubr.bf16.gmra.mxu0 %v9211
        %v10324 = vpop.f32.mrf.mxu0
        %v10325 = vadd.f32 %v10285, %v10324
        %v10326 = vpop.f32.mrf.mxu0
        %v10327 = vpop.f32.mrf.mxu0
        %v10328 = vpop.f32.mrf.mxu0
        %10329 = vdwg.mxu0
        %10330 = vmatprep.subr.bf16.mxu0 0
        %10331 = vmatpush1.bf16.msra.mxu0 %v10033
        %10332 = vmatprep.subr.bf16.mxu0 0
        %10333 = vmatpush1.bf16.msra.mxu0 %v10032
        %10334 = vmatprep.subr.bf16.mxu0 0
        %10335 = vmatpush1.bf16.msra.mxu0 %v10031
        %10336 = vmatprep.subr.bf16.mxu0 0
        %10337 = vmatpush1.bf16.msra.mxu0 %v10030
        %10338 = vmatprep.subr.bf16.mxu0 0
        %10339 = vmatpush1.bf16.msra.mxu0 %v10029
        %10340 = vmatprep.subr.bf16.mxu0 0
        %10341 = vmatpush1.bf16.msra.mxu0 %v10028
        %10342 = vmatprep.subr.bf16.mxu0 0
        %10343 = vmatpush1.bf16.msra.mxu0 %v10027
        %10344 = vmatprep.subr.bf16.mxu0 0
        %10345 = vmatpush1.bf16.msra.mxu0 %v10026
        %10346 = vmatprep.subr.bf16.mxu0 0
        %10347 = vmatpush2.bf16.msra.mxu0 %v10041
        %10348 = vmatprep.subr.bf16.mxu0 0
        %10349 = vmatpush2.bf16.msra.mxu0 %v10040
        %10350 = vmatprep.subr.bf16.mxu0 0
        %10351 = vmatpush2.bf16.msra.mxu0 %v10039
        %10352 = vmatprep.subr.bf16.mxu0 0
        %10353 = vmatpush2.bf16.msra.mxu0 %v10038
        %10354 = vmatprep.subr.bf16.mxu0 0
        %10355 = vmatpush2.bf16.msra.mxu0 %v10037
        %10356 = vmatprep.subr.bf16.mxu0 0
        %10357 = vmatpush2.bf16.msra.mxu0 %v10036
        %10358 = vmatprep.subr.bf16.mxu0 0
        %10359 = vmatpush2.bf16.msra.mxu0 %v10035
        %10360 = vmatprep.subr.bf16.mxu0 0
        %10361 = vmatpush2.bf16.msra.mxu0 %v10034
        %10362 = vmatprep.mubr.bf16.mxu0 %v9214
        %10363 = vmatmul.mubr.bf16.gmra.mxu0 %v9213
        %v10364 = vpop.f32.mrf.mxu0
        %v10365 = vadd.f32 %v10325, %v10364
        %v10366 = vpop.f32.mrf.mxu0
        %v10367 = vpop.f32.mrf.mxu0
        %v10368 = vpop.f32.mrf.mxu0
        %10369 = vdwg.mxu0
        %10370 = vmatprep.subr.bf16.mxu0 0
        %10371 = vmatpush1.bf16.msra.mxu0 %v10049
        %10372 = vmatprep.subr.bf16.mxu0 0
        %10373 = vmatpush1.bf16.msra.mxu0 %v10048
        %10374 = vmatprep.subr.bf16.mxu0 0
        %10375 = vmatpush1.bf16.msra.mxu0 %v10047
        %10376 = vmatprep.subr.bf16.mxu0 0
        %10377 = vmatpush1.bf16.msra.mxu0 %v10046
        %10378 = vmatprep.subr.bf16.mxu0 0
        %10379 = vmatpush1.bf16.msra.mxu0 %v10045
        %10380 = vmatprep.subr.bf16.mxu0 0
        %10381 = vmatpush1.bf16.msra.mxu0 %v10044
        %10382 = vmatprep.subr.bf16.mxu0 0
        %10383 = vmatpush1.bf16.msra.mxu0 %v10043
        %10384 = vmatprep.subr.bf16.mxu0 0
        %10385 = vmatpush1.bf16.msra.mxu0 %v10042
        %10386 = vmatprep.subr.bf16.mxu0 0
        %10387 = vmatpush2.bf16.msra.mxu0 %v10057
        %10388 = vmatprep.subr.bf16.mxu0 0
        %10389 = vmatpush2.bf16.msra.mxu0 %v10056
        %10390 = vmatprep.subr.bf16.mxu0 0
        %10391 = vmatpush2.bf16.msra.mxu0 %v10055
        %10392 = vmatprep.subr.bf16.mxu0 0
        %10393 = vmatpush2.bf16.msra.mxu0 %v10054
        %10394 = vmatprep.subr.bf16.mxu0 0
        %10395 = vmatpush2.bf16.msra.mxu0 %v10053
        %10396 = vmatprep.subr.bf16.mxu0 0
        %10397 = vmatpush2.bf16.msra.mxu0 %v10052
        %10398 = vmatprep.subr.bf16.mxu0 0
        %10399 = vmatpush2.bf16.msra.mxu0 %v10051
        %10400 = vmatprep.subr.bf16.mxu0 0
        %10401 = vmatpush2.bf16.msra.mxu0 %v10050
        %10402 = vmatprep.mubr.bf16.mxu0 %v9216
        %10403 = vmatmul.mubr.bf16.gmra.mxu0 %v9215
        %v10404 = vpop.f32.mrf.mxu0
        %v10405 = vadd.f32 %v10365, %v10404
        %v10406 = vpop.f32.mrf.mxu0
        %v10407 = vpop.f32.mrf.mxu0
        %v10408 = vpop.f32.mrf.mxu0
        %10409 = vdwg.mxu0
        %10410 = vmatprep.subr.bf16.mxu0 0
        %10411 = vmatpush1.bf16.msra.mxu0 %v10065
        %10412 = vmatprep.subr.bf16.mxu0 0
        %10413 = vmatpush1.bf16.msra.mxu0 %v10064
        %10414 = vmatprep.subr.bf16.mxu0 0
        %10415 = vmatpush1.bf16.msra.mxu0 %v10063
        %10416 = vmatprep.subr.bf16.mxu0 0
        %10417 = vmatpush1.bf16.msra.mxu0 %v10062
        %10418 = vmatprep.subr.bf16.mxu0 0
        %10419 = vmatpush1.bf16.msra.mxu0 %v10061
        %10420 = vmatprep.subr.bf16.mxu0 0
        %10421 = vmatpush1.bf16.msra.mxu0 %v10060
        %10422 = vmatprep.subr.bf16.mxu0 0
        %10423 = vmatpush1.bf16.msra.mxu0 %v10059
        %10424 = vmatprep.subr.bf16.mxu0 0
        %10425 = vmatpush1.bf16.msra.mxu0 %v10058
        %10426 = vmatprep.subr.bf16.mxu0 0
        %10427 = vmatpush2.bf16.msra.mxu0 %v10073
        %10428 = vmatprep.subr.bf16.mxu0 0
        %10429 = vmatpush2.bf16.msra.mxu0 %v10072
        %10430 = vmatprep.subr.bf16.mxu0 0
        %10431 = vmatpush2.bf16.msra.mxu0 %v10071
        %10432 = vmatprep.subr.bf16.mxu0 0
        %10433 = vmatpush2.bf16.msra.mxu0 %v10070
        %10434 = vmatprep.subr.bf16.mxu0 0
        %10435 = vmatpush2.bf16.msra.mxu0 %v10069
        %10436 = vmatprep.subr.bf16.mxu0 0
        %10437 = vmatpush2.bf16.msra.mxu0 %v10068
        %10438 = vmatprep.subr.bf16.mxu0 0
        %10439 = vmatpush2.bf16.msra.mxu0 %v10067
        %10440 = vmatprep.subr.bf16.mxu0 0
        %10441 = vmatpush2.bf16.msra.mxu0 %v10066
        %10442 = vmatprep.mubr.bf16.mxu0 %v9218
        %10443 = vmatmul.mubr.bf16.gmra.mxu0 %v9217
        %v10444 = vpop.f32.mrf.mxu0
        %v10445 = vadd.f32 %v10405, %v10444
        %v10446 = vpop.f32.mrf.mxu0
        %v10447 = vpop.f32.mrf.mxu0
        %v10448 = vpop.f32.mrf.mxu0
        %10449 = vdwg.mxu0
        %10450 = vmatprep.subr.bf16.mxu0 0
        %10451 = vmatpush1.bf16.msra.mxu0 %v10081
        %10452 = vmatprep.subr.bf16.mxu0 0
        %10453 = vmatpush1.bf16.msra.mxu0 %v10080
        %10454 = vmatprep.subr.bf16.mxu0 0
        %10455 = vmatpush1.bf16.msra.mxu0 %v10079
        %10456 = vmatprep.subr.bf16.mxu0 0
        %10457 = vmatpush1.bf16.msra.mxu0 %v10078
        %10458 = vmatprep.subr.bf16.mxu0 0
        %10459 = vmatpush1.bf16.msra.mxu0 %v10077
        %10460 = vmatprep.subr.bf16.mxu0 0
        %10461 = vmatpush1.bf16.msra.mxu0 %v10076
        %10462 = vmatprep.subr.bf16.mxu0 0
        %10463 = vmatpush1.bf16.msra.mxu0 %v10075
        %10464 = vmatprep.subr.bf16.mxu0 0
        %10465 = vmatpush1.bf16.msra.mxu0 %v10074
        %10466 = vmatprep.subr.bf16.mxu0 0
        %10467 = vmatpush2.bf16.msra.mxu0 %v10089
        %10468 = vmatprep.subr.bf16.mxu0 0
        %10469 = vmatpush2.bf16.msra.mxu0 %v10088
        %10470 = vmatprep.subr.bf16.mxu0 0
        %10471 = vmatpush2.bf16.msra.mxu0 %v10087
        %10472 = vmatprep.subr.bf16.mxu0 0
        %10473 = vmatpush2.bf16.msra.mxu0 %v10086
        %10474 = vmatprep.subr.bf16.mxu0 0
        %10475 = vmatpush2.bf16.msra.mxu0 %v10085
        %10476 = vmatprep.subr.bf16.mxu0 0
        %10477 = vmatpush2.bf16.msra.mxu0 %v10084
        %10478 = vmatprep.subr.bf16.mxu0 0
        %10479 = vmatpush2.bf16.msra.mxu0 %v10083
        %10480 = vmatprep.subr.bf16.mxu0 0
        %10481 = vmatpush2.bf16.msra.mxu0 %v10082
        %10482 = vmatprep.mubr.bf16.mxu0 %v9220
        %10483 = vmatmul.mubr.bf16.gmra.mxu0 %v9219
        %v10484 = vpop.f32.mrf.mxu0
        %v10485 = vadd.f32 %v10445, %v10484
        %v10486 = vpop.f32.mrf.mxu0
        %v10487 = vpop.f32.mrf.mxu0
        %v10488 = vpop.f32.mrf.mxu0
        %10489 = vdwg.mxu0
        %10490 = vmatprep.subr.bf16.mxu0 0
        %10491 = vmatpush1.bf16.msra.mxu0 %v10097
        %10492 = vmatprep.subr.bf16.mxu0 0
        %10493 = vmatpush1.bf16.msra.mxu0 %v10096
        %10494 = vmatprep.subr.bf16.mxu0 0
        %10495 = vmatpush1.bf16.msra.mxu0 %v10095
        %10496 = vmatprep.subr.bf16.mxu0 0
        %10497 = vmatpush1.bf16.msra.mxu0 %v10094
        %10498 = vmatprep.subr.bf16.mxu0 0
        %10499 = vmatpush1.bf16.msra.mxu0 %v10093
        %10500 = vmatprep.subr.bf16.mxu0 0
        %10501 = vmatpush1.bf16.msra.mxu0 %v10092
        %10502 = vmatprep.subr.bf16.mxu0 0
        %10503 = vmatpush1.bf16.msra.mxu0 %v10091
        %10504 = vmatprep.subr.bf16.mxu0 0
        %10505 = vmatpush1.bf16.msra.mxu0 %v10090
        %10506 = vmatprep.subr.bf16.mxu0 0
        %10507 = vmatpush2.bf16.msra.mxu0 %v10105
        %10508 = vmatprep.subr.bf16.mxu0 0
        %10509 = vmatpush2.bf16.msra.mxu0 %v10104
        %10510 = vmatprep.subr.bf16.mxu0 0
        %10511 = vmatpush2.bf16.msra.mxu0 %v10103
        %10512 = vmatprep.subr.bf16.mxu0 0
        %10513 = vmatpush2.bf16.msra.mxu0 %v10102
        %10514 = vmatprep.subr.bf16.mxu0 0
        %10515 = vmatpush2.bf16.msra.mxu0 %v10101
        %10516 = vmatprep.subr.bf16.mxu0 0
        %10517 = vmatpush2.bf16.msra.mxu0 %v10100
        %10518 = vmatprep.subr.bf16.mxu0 0
        %10519 = vmatpush2.bf16.msra.mxu0 %v10099
        %10520 = vmatprep.subr.bf16.mxu0 0
        %10521 = vmatpush2.bf16.msra.mxu0 %v10098
        %10522 = vmatprep.mubr.bf16.mxu0 %v9222
        %10523 = vmatmul.mubr.bf16.gmra.mxu0 %v9221
        %v10524 = vpop.f32.mrf.mxu0
        %v10525 = vadd.f32 %v10485, %v10524
        %v10526 = vpop.f32.mrf.mxu0
        %v10527 = vpop.f32.mrf.mxu0
        %v10528 = vpop.f32.mrf.mxu0
        %10529 = vdwg.mxu0
        %10530 = vmatprep.subr.bf16.mxu0 0
        %10531 = vmatpush1.bf16.msra.mxu0 %v10113
        %10532 = vmatprep.subr.bf16.mxu0 0
        %10533 = vmatpush1.bf16.msra.mxu0 %v10112
        %10534 = vmatprep.subr.bf16.mxu0 0
        %10535 = vmatpush1.bf16.msra.mxu0 %v10111
        %10536 = vmatprep.subr.bf16.mxu0 0
        %10537 = vmatpush1.bf16.msra.mxu0 %v10110
        %10538 = vmatprep.subr.bf16.mxu0 0
        %10539 = vmatpush1.bf16.msra.mxu0 %v10109
        %10540 = vmatprep.subr.bf16.mxu0 0
        %10541 = vmatpush1.bf16.msra.mxu0 %v10108
        %10542 = vmatprep.subr.bf16.mxu0 0
        %10543 = vmatpush1.bf16.msra.mxu0 %v10107
        %10544 = vmatprep.subr.bf16.mxu0 0
        %10545 = vmatpush1.bf16.msra.mxu0 %v10106
        %10546 = vmatprep.subr.bf16.mxu0 0
        %10547 = vmatpush2.bf16.msra.mxu0 %v10121
        %10548 = vmatprep.subr.bf16.mxu0 0
        %10549 = vmatpush2.bf16.msra.mxu0 %v10120
        %10550 = vmatprep.subr.bf16.mxu0 0
        %10551 = vmatpush2.bf16.msra.mxu0 %v10119
        %10552 = vmatprep.subr.bf16.mxu0 0
        %10553 = vmatpush2.bf16.msra.mxu0 %v10118
        %10554 = vmatprep.subr.bf16.mxu0 0
        %10555 = vmatpush2.bf16.msra.mxu0 %v10117
        %10556 = vmatprep.subr.bf16.mxu0 0
        %10557 = vmatpush2.bf16.msra.mxu0 %v10116
        %10558 = vmatprep.subr.bf16.mxu0 0
        %10559 = vmatpush2.bf16.msra.mxu0 %v10115
        %10560 = vmatprep.subr.bf16.mxu0 0
        %10561 = vmatpush2.bf16.msra.mxu0 %v10114
        %10562 = vmatprep.mubr.bf16.mxu0 %v9224
        %10563 = vmatmul.mubr.bf16.gmra.mxu0 %v9223
        %v10564 = vpop.f32.mrf.mxu0
        %v10565 = vadd.f32 %v10525, %v10564
        %v10566 = vpop.f32.mrf.mxu0
        %v10567 = vpop.f32.mrf.mxu0
        %v10568 = vpop.f32.mrf.mxu0
        %10569 = vdwg.mxu0
        %10570 = vst [vmem:[%s676] sm:$0x1] %v10565
        %s10571 = sand.u32 %s365, 1
        %s10572 = scalar_lea.sflag [#allocation4], %s10571
        %s10573 = sand.u32 %s365, 1
        %s10574 = scalar_lea.vmem [#allocation25], %s10573
        // Predicated region
        $region137: #{corrnet_forward.1} parent=79 // pred_check
          %p10575 = pneg %p375
        $region138: #{corrnet_forward.1} parent=79 // pred_check_branch
          %10577 = sbr.rel (%p10575) target = $region140
        $region139: #{corrnet_forward.1} parent=79 // pred_region
          %s10579 = ssub.s32 16, 16
          %10580 = vsyncadd %s10572, %s10579
          %s10581 = smul.addr %s37, 16
          %s10582 = scalar_lea.hbm %s15, %s10581
          %s10584 = sshll.u32 %s10574, 4
          %s10585 = int_to_ptr.vmem [resolvable:$true] %s10584
          %10587 = dma.vmem_to_hbm [thread:$0]  %s10585, 16, %s10582, %s10572
        $region140: #{corrnet_forward.1} parent=79 // pred_fallthru
          _
      $region80: #{corrnet_forward.1} parent=5 // pred_fallthru
        _
      %p10588 = scmp.le.s32.totalorder 2, %s32
      // Predicated region
      $region141: #{corrnet_forward.1} parent=5 // pred_check
        %p10589 = pneg %p10588
      $region142: #{corrnet_forward.1} parent=5 // pred_check_branch
        %10591 = sbr.rel (%p10589) target = $region144
      $region143: #{corrnet_forward.1} parent=5 // pred_region
        %s10592 = ssub.s32 %s32, 2
        // Predicated region
        $region145: #{corrnet_forward.1} parent=143 // pred_check
          %p10593 = pneg %p381
        $region146: #{corrnet_forward.1} parent=143 // pred_check_branch
          %10595 = sbr.rel (%p10593) target = $region148
        $region147: #{corrnet_forward.1} parent=143 // pred_region
          %s10596 = sand.u32 %s366, 1
          %s10597 = scalar_lea.sflag [#allocation4], %s10596
          %s10598 = sand.u32 %s366, 1
          %s10599 = scalar_lea.vmem [#allocation25], %s10598
          %10600 = dma.done %s10597, 16
        $region148: #{corrnet_forward.1} parent=143 // pred_fallthru
          _
      $region144: #{corrnet_forward.1} parent=5 // pred_fallthru
        _
    $region6: #{corrnet_forward.1} parent=1 // loop_footer
      %s36 = sadd.s32 1, %s32
    $region7: #{corrnet_forward.1} parent=1 // loop_footer_branch
      %31 = sbr.rel target = $region3
    $region8: #{corrnet_forward.1} parent=1 // loop_exit
      _
    %10601 = vsyncpa [#allocation3], 1
    %s10602 = scalar_lea.sflag [#allocation3], 1
    %10603 = vsyncpa %s10602, 1
    %10604 = vsyncpa [#allocation6], 1
    %10605 = vsyncpa [#allocation9], 1
    %10606 = vsyncpa [#allocation12], 1
    %10607 = vsyncpa [#allocation15], 1
    %10608 = vsyncpa [#allocation18], 1
    %10609 = vsyncpa [#allocation21], 1
    %10610 = vsyncpa [#allocation24], 1
    %10611 = vsyncpa [#allocation4], 1
    %s10612 = scalar_lea.sflag [#allocation4], 1
    %10613 = vsyncpa %s10612, 1

</llo_original>
